<compile_context>
chip_gen: v7x
topology: tpu7x:2x2x1
jax: 0.10.0
libtpu: 0.0.40
codegen_flags: <defaults>
</compile_context>

<pallas_src>
import jax
import jax.numpy as jnp
from jax.experimental import pallas as pl
from jax.experimental.pallas import tpu as pltpu

# Deterministic stand-in for `(random.random() > 0.5) * 2 - 1` in __init__.
SHIFT_DIRECTION = 1

BM = 8           # batch elements per grid step (128 / 8 = 16 steps)
ROWS_IN = 72     # per batch: 9 (h padded 7->9) * 8 (o padded 7->8)
ROWS_OUT = 56    # per batch: 7 (n)            * 8 (o padded 7->8)
KTAP = 768       # 3 (i) * 256 (j) contraction per h-tap
NOUT = 512


# ---------------------------------------------------------------------------
# Pallas kernel: fused im2col (h-tap gather) + MXU matmul.
# ---------------------------------------------------------------------------
def _conv_kernel(a_ref, w_ref, o_ref):
    # a_ref: (BM*72, 768) bf16.  Per batch b the rows are r = hp*8 + o with
    #        hp in [0,9) (zero rows at hp=0,8 and o=7) holding
    #        v[m, h=hp-1, o, (i,j)] — the pre-processed activation.
    # w_ref: (3, 768, 512) bf16.  w_ref[k][(i,j), l] = weight[j, k, i, l].
    # o_ref: (BM, 56, 512) f32.   Per batch the rows are r = n*8 + o.
    a = a_ref[...]
    # One full-width dot per h-tap; f32 accumulation on the MXU.
    y0 = jnp.dot(a, w_ref[0], preferred_element_type=jnp.float32)
    y1 = jnp.dot(a, w_ref[1], preferred_element_type=jnp.float32)
    y2 = jnp.dot(a, w_ref[2], preferred_element_type=jnp.float32)
    # Combine the taps with sublane-tile-aligned row shifts (offsets 0/8/16,
    # lengths multiples of 8) — out[n*8+o] = y0[(n+0)*8+o] + y1[(n+1)*8+o]
    # + y2[(n+2)*8+o]; the shifted-in rows are zero rows, so no masking.
    for b in range(BM):
        base = b * ROWS_IN
        o_ref[b] = (y0[base + 0:base + 0 + ROWS_OUT, :]
                    + y1[base + 8:base + 8 + ROWS_OUT, :]
                    + y2[base + 16:base + 16 + ROWS_OUT, :])


def fused_conv_matmul(a_feed, wk):
    # a_feed: (128*72, 768) bf16, wk: (3, 768, 512) bf16
    M = a_feed.shape[0] // ROWS_IN           # 128 batch elements
    return pl.pallas_call(
        _conv_kernel,
        out_shape=jax.ShapeDtypeStruct((M, ROWS_OUT, NOUT), jnp.float32),
        grid_spec=pltpu.PrefetchScalarGridSpec(
            num_scalar_prefetch=0,
            grid=(M // BM,),
            in_specs=[
                pl.BlockSpec((BM * ROWS_IN, KTAP), lambda i: (i, 0)),
                # Constant index map: weight is DMA'd once, stays VMEM-resident.
                pl.BlockSpec((3, KTAP, NOUT), lambda i: (0, 0, 0)),
            ],
            out_specs=pl.BlockSpec((BM, ROWS_OUT, NOUT), lambda i: (i, 0, 0)),
        ),
        compiler_params=pltpu.CompilerParams(
            dimension_semantics=("parallel",),
            vmem_limit_bytes=32 * 1024 * 1024),
    )(a_feed, wk)


# ---------------------------------------------------------------------------
# Full forward (semantically identical to the PyTorch forward).
# ---------------------------------------------------------------------------
def kernel_generated_6_forward(x, w, shift_direction=SHIFT_DIRECTION):
    assert shift_direction in (1, -1)
    s = shift_direction
    N = x.shape[0]                                          # 128

    # ---- lane-dense pre-processing (channel-last) --------------------------
    xh = jnp.transpose(x, (0, 2, 3, 1))                     # (N,7,7,512) NHWC
    xh = jnp.roll(xh, s, axis=2)                            # torch.roll(x, s, 3)
    xp = jnp.pad(xh, ((0, 0), (0, 0), (1, 1), (0, 0)))      # w-pad for unfold (3,1),(1,0)
    # 3 taps over w (i = 0..2), channel stays trailing (lane-dense).
    t = jnp.stack([xp[:, :, i:i + 7, :] for i in range(3)], axis=3)  # (N,7,7,3,512)
    t = t.reshape(N, 7, 7, 3, 2, 256)                       # split c -> (p, j)
    t0 = t[..., 0, :]                                       # p = 0 half
    t1 = t[..., 1, :]                                       # p = 1 half
    # roll along the interleaved 14-wide (w,p) dim + pair-sum, expressed as a
    # half-shifted add:  s=+1 -> t0[o] + t1[(o-1)%7],  s=-1 -> t1[o] + t0[(o+1)%7]
    if s == 1:
        v = t0 + jnp.roll(t1, 1, axis=2)
    else:
        v = t1 + jnp.roll(t0, -1, axis=2)
    # v[m, h, o, i, j]  ==  t_2[m, j, h, o, i] of the reference op-chain.
    v = v.reshape(N, 7, 7, 3 * 256).astype(jnp.bfloat16)    # K order (i, j)
    # Pad h -> 9 (zero rows for the second unfold's taps) and o -> 8 (so the
    # per-batch row stride is sublane-aligned inside the kernel).
    v = jnp.pad(v, ((0, 0), (1, 1), (0, 1), (0, 0)))        # (N, 9, 8, 768)
    a_feed = v.reshape(N * ROWS_IN, KTAP)

    # Weight: one (768,512) slice per h-tap k, K ordered (i, j).
    wk = jnp.transpose(w, (1, 2, 0, 3)).reshape(3, KTAP, NOUT).astype(jnp.bfloat16)

    # ---- fused im2col + MXU matmul -----------------------------------------
    out = fused_conv_matmul(a_feed, wk)                     # (N, 56, 512) f32
    out = out.reshape(N, 7, 8, NOUT)[:, :, :7, :]           # (m, n, o, l)
    return jnp.transpose(out, (0, 3, 1, 2))                 # NCHW f32


# ---------------------------------------------------------------------------
# Pure-JAX reference: direct op-by-op translation of the PyTorch forward.
# ---------------------------------------------------------------------------
def _unfold_k3_pad1_over_h(x):
    """torch.nn.functional.unfold(x, (3, 1), padding=(1, 0)) for 4-D x."""
    N, C, H, W = x.shape
    xp = jnp.pad(x, ((0, 0), (0, 0), (1, 1), (0, 0)))
    patches = jnp.stack([xp[:, :, k:k + H, :] for k in range(3)], axis=2)
    return patches.reshape(N, C * 3, H * W)


def ref_forward(x, w, shift_direction=SHIFT_DIRECTION):
    s = shift_direction
    t_2 = jnp.roll(x, s, axis=3)
    t_2 = t_2.reshape(128, 3584, 7, 1)
    t_2 = _unfold_k3_pad1_over_h(t_2).reshape(128, 512, 7, 3, 7)
    t_2 = t_2.reshape(128, 2, 256, 7, 3, 7)
    t_2 = jnp.transpose(t_2, (0, 2, 3, 4, 5, 1)).reshape(128, 256, 7, 3, 14)
    t_2 = jnp.roll(t_2, s, axis=4).reshape(128, 256, 7, 3, 7, 2)
    t_2 = jnp.sum(t_2, axis=5)
    t_2 = jnp.transpose(t_2, (0, 1, 2, 4, 3))
    t_3 = _unfold_k3_pad1_over_h(t_2.reshape(128, 256, 7, 21))
    t_3 = t_3.reshape(128, 256, 3, 7, 7, 3)
    t_3 = jnp.transpose(t_3, (0, 1, 3, 2, 4, 5))
    t_4 = jnp.einsum('mjnkoi,jkil->mnol', t_3, w)
    return jnp.transpose(t_4, (0, 3, 1, 2))


if __name__ == "__main__":
    key = jax.random.PRNGKey(0)
    kx, kw = jax.random.split(key)
    # Shapes are fixed by the module's hard-coded reshapes.
    x = jax.random.normal(kx, (128, 512, 7, 7), dtype=jnp.float32)
    w = jax.random.normal(kw, (256, 3, 3, 512), dtype=jnp.float32)

    fwd = jax.jit(kernel_generated_6_forward, static_argnames="shift_direction")
    ref = jax.jit(ref_forward, static_argnames="shift_direction")

    # The PyTorch module draws shift_direction in {+1, -1} at init: check both.
    for s in (1, -1):
        y = jax.block_until_ready(fwd(x, w, shift_direction=s))
        assert y.shape == (128, 512, 7, 7), y.shape
        assert bool(jnp.all(jnp.isfinite(y)))

        y_ref = jax.block_until_ready(ref(x, w, shift_direction=s))
        rel_err = float(jnp.max(jnp.abs(y - y_ref)) /
                        (jnp.max(jnp.abs(y_ref)) + 1e-6))
        assert rel_err < 3e-2, f"shift={s}: relative error too large: {rel_err}"

    print("KERNEL_OK")
</pallas_src>

<mosaic_0001>
module attributes {stable_mosaic.version = 11 : i64} {
  func.func @_conv_kernel(%arg0: i32, %arg1: memref<576x768xbf16, #tpu.memory_space<vmem>>, %arg2: memref<3x768x512xbf16, #tpu.memory_space<vmem>>, %arg3: memref<8x56x512xf32, #tpu.memory_space<vmem>>) attributes {dimension_semantics = [#tpu.dimension_semantics<parallel>], iteration_bounds = array<i64: 16>, scalar_prefetch = 0 : i64, scratch_operands = 0 : i64, tpu.core_type = #tpu.core_type<tc>, window_params = [{transform_indices = @transform_0, window_bounds = array<i64: 576, 768>}, {pipeline_mode = #tpu.pipeline_mode<synchronous>, transform_indices = @transform_1, window_bounds = array<i64: 3, 768, 512>}, {transform_indices = @transform_2, window_bounds = array<i64: 8, 56, 512>}]} {
    %c0 = arith.constant 0 : index
    %c0_0 = arith.constant 0 : index
    %0 = vector.load %arg1[%c0, %c0_0] : memref<576x768xbf16, #tpu.memory_space<vmem>>, vector<576x768xbf16>
    %c0_1 = arith.constant 0 : index
    %c0_2 = arith.constant 0 : index
    %c0_3 = arith.constant 0 : index
    %1 = vector.load %arg2[%c0_1, %c0_2, %c0_3] : memref<3x768x512xbf16, #tpu.memory_space<vmem>>, vector<1x768x512xbf16>
    %2 = vector.shape_cast %1 : vector<1x768x512xbf16> to vector<768x512xbf16>
    %cst = arith.constant dense<0.000000e+00> : vector<576x512xf32>
    %3 = tpu.matmul %0, %2, %cst {dimension_numbers = #tpu.dot_dimension_numbers<[1], [0], [0], [1], [0, 0, 1, 1], [], []>} : vector<576x768xbf16>, vector<768x512xbf16>, vector<576x512xf32> -> vector<576x512xf32>
    %c1 = arith.constant 1 : index
    %c0_4 = arith.constant 0 : index
    %c0_5 = arith.constant 0 : index
    %4 = vector.load %arg2[%c1, %c0_4, %c0_5] : memref<3x768x512xbf16, #tpu.memory_space<vmem>>, vector<1x768x512xbf16>
    %5 = vector.shape_cast %4 : vector<1x768x512xbf16> to vector<768x512xbf16>
    %cst_6 = arith.constant dense<0.000000e+00> : vector<576x512xf32>
    %6 = tpu.matmul %0, %5, %cst_6 {dimension_numbers = #tpu.dot_dimension_numbers<[1], [0], [0], [1], [0, 0, 1, 1], [], []>} : vector<576x768xbf16>, vector<768x512xbf16>, vector<576x512xf32> -> vector<576x512xf32>
    %c2 = arith.constant 2 : index
    %c0_7 = arith.constant 0 : index
    %c0_8 = arith.constant 0 : index
    %7 = vector.load %arg2[%c2, %c0_7, %c0_8] : memref<3x768x512xbf16, #tpu.memory_space<vmem>>, vector<1x768x512xbf16>
    %8 = vector.shape_cast %7 : vector<1x768x512xbf16> to vector<768x512xbf16>
    %cst_9 = arith.constant dense<0.000000e+00> : vector<576x512xf32>
    %9 = tpu.matmul %0, %8, %cst_9 {dimension_numbers = #tpu.dot_dimension_numbers<[1], [0], [0], [1], [0, 0, 1, 1], [], []>} : vector<576x768xbf16>, vector<768x512xbf16>, vector<576x512xf32> -> vector<576x512xf32>
    %10 = vector.extract_strided_slice %3 {offsets = [0, 0], sizes = [56, 512], strides = [1, 1]} : vector<576x512xf32> to vector<56x512xf32>
    %11 = vector.extract_strided_slice %6 {offsets = [8, 0], sizes = [56, 512], strides = [1, 1]} : vector<576x512xf32> to vector<56x512xf32>
    %12 = arith.addf %10, %11 : vector<56x512xf32>
    %13 = vector.extract_strided_slice %9 {offsets = [16, 0], sizes = [56, 512], strides = [1, 1]} : vector<576x512xf32> to vector<56x512xf32>
    %14 = arith.addf %12, %13 : vector<56x512xf32>
    %c0_10 = arith.constant 0 : index
    %c0_11 = arith.constant 0 : index
    %c0_12 = arith.constant 0 : index
    %15 = vector.load %arg3[%c0_10, %c0_11, %c0_12] : memref<8x56x512xf32, #tpu.memory_space<vmem>>, vector<1x56x512xf32>
    %16 = vector.shape_cast %15 : vector<1x56x512xf32> to vector<56x512xf32>
    %17 = vector.shape_cast %14 : vector<56x512xf32> to vector<1x56x512xf32>
    tpu.vector_store %arg3[%c0_10, %c0_11, %c0_12], %17 {strides = array<i32>} : memref<8x56x512xf32, #tpu.memory_space<vmem>>, vector<1x56x512xf32>,
    %18 = vector.extract_strided_slice %3 {offsets = [72, 0], sizes = [56, 512], strides = [1, 1]} : vector<576x512xf32> to vector<56x512xf32>
    %19 = vector.extract_strided_slice %6 {offsets = [80, 0], sizes = [56, 512], strides = [1, 1]} : vector<576x512xf32> to vector<56x512xf32>
    %20 = arith.addf %18, %19 : vector<56x512xf32>
    %21 = vector.extract_strided_slice %9 {offsets = [88, 0], sizes = [56, 512], strides = [1, 1]} : vector<576x512xf32> to vector<56x512xf32>
    %22 = arith.addf %20, %21 : vector<56x512xf32>
    %c1_13 = arith.constant 1 : index
    %c0_14 = arith.constant 0 : index
    %c0_15 = arith.constant 0 : index
    %23 = vector.load %arg3[%c1_13, %c0_14, %c0_15] : memref<8x56x512xf32, #tpu.memory_space<vmem>>, vector<1x56x512xf32>
    %24 = vector.shape_cast %23 : vector<1x56x512xf32> to vector<56x512xf32>
    %25 = vector.shape_cast %22 : vector<56x512xf32> to vector<1x56x512xf32>
    tpu.vector_store %arg3[%c1_13, %c0_14, %c0_15], %25 {strides = array<i32>} : memref<8x56x512xf32, #tpu.memory_space<vmem>>, vector<1x56x512xf32>,
    %26 = vector.extract_strided_slice %3 {offsets = [144, 0], sizes = [56, 512], strides = [1, 1]} : vector<576x512xf32> to vector<56x512xf32>
    %27 = vector.extract_strided_slice %6 {offsets = [152, 0], sizes = [56, 512], strides = [1, 1]} : vector<576x512xf32> to vector<56x512xf32>
    %28 = arith.addf %26, %27 : vector<56x512xf32>
    %29 = vector.extract_strided_slice %9 {offsets = [160, 0], sizes = [56, 512], strides = [1, 1]} : vector<576x512xf32> to vector<56x512xf32>
    %30 = arith.addf %28, %29 : vector<56x512xf32>
    %c2_16 = arith.constant 2 : index
    %c0_17 = arith.constant 0 : index
    %c0_18 = arith.constant 0 : index
    %31 = vector.load %arg3[%c2_16, %c0_17, %c0_18] : memref<8x56x512xf32, #tpu.memory_space<vmem>>, vector<1x56x512xf32>
    %32 = vector.shape_cast %31 : vector<1x56x512xf32> to vector<56x512xf32>
    %33 = vector.shape_cast %30 : vector<56x512xf32> to vector<1x56x512xf32>
    tpu.vector_store %arg3[%c2_16, %c0_17, %c0_18], %33 {strides = array<i32>} : memref<8x56x512xf32, #tpu.memory_space<vmem>>, vector<1x56x512xf32>,
    %34 = vector.extract_strided_slice %3 {offsets = [216, 0], sizes = [56, 512], strides = [1, 1]} : vector<576x512xf32> to vector<56x512xf32>
    %35 = vector.extract_strided_slice %6 {offsets = [224, 0], sizes = [56, 512], strides = [1, 1]} : vector<576x512xf32> to vector<56x512xf32>
    %36 = arith.addf %34, %35 : vector<56x512xf32>
    %37 = vector.extract_strided_slice %9 {offsets = [232, 0], sizes = [56, 512], strides = [1, 1]} : vector<576x512xf32> to vector<56x512xf32>
    %38 = arith.addf %36, %37 : vector<56x512xf32>
    %c3 = arith.constant 3 : index
    %c0_19 = arith.constant 0 : index
    %c0_20 = arith.constant 0 : index
    %39 = vector.load %arg3[%c3, %c0_19, %c0_20] : memref<8x56x512xf32, #tpu.memory_space<vmem>>, vector<1x56x512xf32>
    %40 = vector.shape_cast %39 : vector<1x56x512xf32> to vector<56x512xf32>
    %41 = vector.shape_cast %38 : vector<56x512xf32> to vector<1x56x512xf32>
    tpu.vector_store %arg3[%c3, %c0_19, %c0_20], %41 {strides = array<i32>} : memref<8x56x512xf32, #tpu.memory_space<vmem>>, vector<1x56x512xf32>,
    %42 = vector.extract_strided_slice %3 {offsets = [288, 0], sizes = [56, 512], strides = [1, 1]} : vector<576x512xf32> to vector<56x512xf32>
    %43 = vector.extract_strided_slice %6 {offsets = [296, 0], sizes = [56, 512], strides = [1, 1]} : vector<576x512xf32> to vector<56x512xf32>
    %44 = arith.addf %42, %43 : vector<56x512xf32>
    %45 = vector.extract_strided_slice %9 {offsets = [304, 0], sizes = [56, 512], strides = [1, 1]} : vector<576x512xf32> to vector<56x512xf32>
    %46 = arith.addf %44, %45 : vector<56x512xf32>
    %c4 = arith.constant 4 : index
    %c0_21 = arith.constant 0 : index
    %c0_22 = arith.constant 0 : index
    %47 = vector.load %arg3[%c4, %c0_21, %c0_22] : memref<8x56x512xf32, #tpu.memory_space<vmem>>, vector<1x56x512xf32>
    %48 = vector.shape_cast %47 : vector<1x56x512xf32> to vector<56x512xf32>
    %49 = vector.shape_cast %46 : vector<56x512xf32> to vector<1x56x512xf32>
    tpu.vector_store %arg3[%c4, %c0_21, %c0_22], %49 {strides = array<i32>} : memref<8x56x512xf32, #tpu.memory_space<vmem>>, vector<1x56x512xf32>,
    %50 = vector.extract_strided_slice %3 {offsets = [360, 0], sizes = [56, 512], strides = [1, 1]} : vector<576x512xf32> to vector<56x512xf32>
    %51 = vector.extract_strided_slice %6 {offsets = [368, 0], sizes = [56, 512], strides = [1, 1]} : vector<576x512xf32> to vector<56x512xf32>
    %52 = arith.addf %50, %51 : vector<56x512xf32>
    %53 = vector.extract_strided_slice %9 {offsets = [376, 0], sizes = [56, 512], strides = [1, 1]} : vector<576x512xf32> to vector<56x512xf32>
    %54 = arith.addf %52, %53 : vector<56x512xf32>
    %c5 = arith.constant 5 : index
    %c0_23 = arith.constant 0 : index
    %c0_24 = arith.constant 0 : index
    %55 = vector.load %arg3[%c5, %c0_23, %c0_24] : memref<8x56x512xf32, #tpu.memory_space<vmem>>, vector<1x56x512xf32>
    %56 = vector.shape_cast %55 : vector<1x56x512xf32> to vector<56x512xf32>
    %57 = vector.shape_cast %54 : vector<56x512xf32> to vector<1x56x512xf32>
    tpu.vector_store %arg3[%c5, %c0_23, %c0_24], %57 {strides = array<i32>} : memref<8x56x512xf32, #tpu.memory_space<vmem>>, vector<1x56x512xf32>,
    %58 = vector.extract_strided_slice %3 {offsets = [432, 0], sizes = [56, 512], strides = [1, 1]} : vector<576x512xf32> to vector<56x512xf32>
    %59 = vector.extract_strided_slice %6 {offsets = [440, 0], sizes = [56, 512], strides = [1, 1]} : vector<576x512xf32> to vector<56x512xf32>
    %60 = arith.addf %58, %59 : vector<56x512xf32>
    %61 = vector.extract_strided_slice %9 {offsets = [448, 0], sizes = [56, 512], strides = [1, 1]} : vector<576x512xf32> to vector<56x512xf32>
    %62 = arith.addf %60, %61 : vector<56x512xf32>
    %c6 = arith.constant 6 : index
    %c0_25 = arith.constant 0 : index
    %c0_26 = arith.constant 0 : index
    %63 = vector.load %arg3[%c6, %c0_25, %c0_26] : memref<8x56x512xf32, #tpu.memory_space<vmem>>, vector<1x56x512xf32>
    %64 = vector.shape_cast %63 : vector<1x56x512xf32> to vector<56x512xf32>
    %65 = vector.shape_cast %62 : vector<56x512xf32> to vector<1x56x512xf32>
    tpu.vector_store %arg3[%c6, %c0_25, %c0_26], %65 {strides = array<i32>} : memref<8x56x512xf32, #tpu.memory_space<vmem>>, vector<1x56x512xf32>,
    %66 = vector.extract_strided_slice %3 {offsets = [504, 0], sizes = [56, 512], strides = [1, 1]} : vector<576x512xf32> to vector<56x512xf32>
    %67 = vector.extract_strided_slice %6 {offsets = [512, 0], sizes = [56, 512], strides = [1, 1]} : vector<576x512xf32> to vector<56x512xf32>
    %68 = arith.addf %66, %67 : vector<56x512xf32>
    %69 = vector.extract_strided_slice %9 {offsets = [520, 0], sizes = [56, 512], strides = [1, 1]} : vector<576x512xf32> to vector<56x512xf32>
    %70 = arith.addf %68, %69 : vector<56x512xf32>
    %c7 = arith.constant 7 : index
    %c0_27 = arith.constant 0 : index
    %c0_28 = arith.constant 0 : index
    %71 = vector.load %arg3[%c7, %c0_27, %c0_28] : memref<8x56x512xf32, #tpu.memory_space<vmem>>, vector<1x56x512xf32>
    %72 = vector.shape_cast %71 : vector<1x56x512xf32> to vector<56x512xf32>
    %73 = vector.shape_cast %70 : vector<56x512xf32> to vector<1x56x512xf32>
    tpu.vector_store %arg3[%c7, %c0_27, %c0_28], %73 {strides = array<i32>} : memref<8x56x512xf32, #tpu.memory_space<vmem>>, vector<1x56x512xf32>,
    return
  }
  func.func @transform_0(%arg0: i32) -> (i32, i32) {
    %c0_i32 = arith.constant 0 : i32
    %c0_i32_0 = arith.constant 0 : i32
    return %arg0, %c0_i32 : i32, i32
  }
  func.func @transform_1(%arg0: i32) -> (i32, i32, i32) {
    %c0_i32 = arith.constant 0 : i32
    %c0_i32_0 = arith.constant 0 : i32
    %c0_i32_1 = arith.constant 0 : i32
    %c0_i32_2 = arith.constant 0 : i32
    return %c0_i32, %c0_i32_0, %c0_i32_1 : i32, i32, i32
  }
  func.func @transform_2(%arg0: i32) -> (i32, i32, i32) {
    %c0_i32 = arith.constant 0 : i32
    %c0_i32_0 = arith.constant 0 : i32
    %c0_i32_1 = arith.constant 0 : i32
    return %arg0, %c0_i32, %c0_i32_0 : i32, i32, i32
  }
}

</mosaic_0001>

<llo_original>
// kernel: kernel_generated_6_forward.1
$region0: #{kernel_generated_6_forward.1}
  #allocation0 [shape = 'u32[]', space=smem, size = 0x4, offset = 0x4, fixed_abs, tag = 'smem constant byte address 0x4 - core index']
  #allocation1 [shape = 'u32[144,128]{1,0:T(1,128)}', space=vmem, size = 0x12000, scoped, tag = 'internal scratch']
  %s0 = inlined_call_operand.vmem [shape: bf16[9216,768], index: 0, kind: input, shape index: {}]
  %s1 = inlined_call_operand.vmem [shape: bf16[3,768,512], index: 1, kind: input, shape index: {}]
  %s2 = inlined_call_operand.vmem [shape: f32[128,56,512], index: 2, kind: output, shape index: {}]
  %s3 = sld [smem:[#allocation0]]
  $region41: #{kernel_generated_6_forward.1} parent=0
    _
  %s5 = ssub.s32 1, %s3
  %s6 = scalar_select 0, %s5, %s3
  loop: start=0, step=1, limit=18
  $region2: #{kernel_generated_6_forward.1} parent=0 // loop_pre_header
    _
  $region3: #{kernel_generated_6_forward.1} parent=0 // loop_header
    %s8 = sphi 0, %s12
    %p9 = scmp.ge.s32.totalorder %s8, 18
    %s18 = sphi 0, %s20
    %s21 = sphi 0, %s18
    %s22 = sphi 0, %s21
    %s38 = sphi 0, %s22
    %s42 = sphi 0, %s42
    %s44 = sphi 0, %s42
    %s45 = sphi 0, %s44
    %s59 = sphi 0, %s45
    %s65 = sphi 0, %s67
    %s68 = sphi 0, %s65
    %s69 = sphi 0, %s68
    %s85 = sphi 0, %s69
  $region4: #{kernel_generated_6_forward.1} parent=0 // loop_header_branch
    %11 = sbr.rel (%p9) target = $region8
  $region5: #{kernel_generated_6_forward.1} parent=0 // loop_body
    %s13 = ssub.s32 %s8, 1
    %s14 = ssub.s32 %s8, 2
    %s15 = sadd.s32 %s8, 1
    %s16 = ssub.s32 %s8, %s15
    %p17 = scmp.eq.s32.totalorder %s16, 0
    %s19 = sadd.s32 %s18, 1
    %s20 = scalar_select %p17, %s18, %s19
    %p23 = pneg %p17
    %p24 = scmp.eq.s32.totalorder %s8, 15
    %p25 = por %p23, %p24
    %p26 = scmp.ne.s32.totalorder %s18, %s21
    %p27 = scmp.eq.s32.totalorder %s8, 0
    %p28 = por %p26, %p27
    %p29 = scmp.ne.s32.totalorder %s18, %s21
    %p30 = scmp.eq.s32.totalorder %s13, 15
    %p31 = por %p29, %p30
    %p32 = scmp.ne.s32.totalorder %s21, %s22
    %p33 = scmp.eq.s32.totalorder %s13, 0
    %p34 = por %p32, %p33
    %p35 = scmp.ne.s32.totalorder %s21, %s22
    %p36 = scmp.eq.s32.totalorder %s14, 15
    %p37 = por %p35, %p36
    %p39 = scmp.ne.s32.totalorder %s22, %s38
    %p40 = scmp.eq.s32.totalorder %s14, 0
    %p41 = por %p39, %p40
    %s43 = sadd.s32 %s42, 1
    %p46 = scmp.eq.s32.totalorder %s8, 15
    %p47 = scmp.ne.s32.totalorder %s42, %s44
    %p48 = scmp.eq.s32.totalorder %s8, 0
    %p49 = por %p47, %p48
    %p50 = scmp.ne.s32.totalorder %s42, %s44
    %p51 = scmp.eq.s32.totalorder %s13, 15
    %p52 = por %p50, %p51
    %p53 = scmp.ne.s32.totalorder %s44, %s45
    %p54 = scmp.eq.s32.totalorder %s13, 0
    %p55 = por %p53, %p54
    %p56 = scmp.ne.s32.totalorder %s44, %s45
    %p57 = scmp.eq.s32.totalorder %s14, 15
    %p58 = por %p56, %p57
    %p60 = scmp.ne.s32.totalorder %s45, %s59
    %p61 = scmp.eq.s32.totalorder %s14, 0
    %p62 = por %p60, %p61
    %s63 = ssub.s32 %s8, %s15
    %p64 = scmp.eq.s32.totalorder %s63, 0
    %s66 = sadd.s32 %s65, 1
    %s67 = scalar_select %p64, %s65, %s66
    %p70 = pneg %p64
    %p71 = scmp.eq.s32.totalorder %s8, 15
    %p72 = por %p70, %p71
    %p73 = scmp.ne.s32.totalorder %s65, %s68
    %p74 = scmp.eq.s32.totalorder %s8, 0
    %p75 = por %p73, %p74
    %p76 = scmp.ne.s32.totalorder %s65, %s68
    %p77 = scmp.eq.s32.totalorder %s13, 15
    %p78 = por %p76, %p77
    %p79 = scmp.ne.s32.totalorder %s68, %s69
    %p80 = scmp.eq.s32.totalorder %s13, 0
    %p81 = por %p79, %p80
    %p82 = scmp.ne.s32.totalorder %s68, %s69
    %p83 = scmp.eq.s32.totalorder %s14, 15
    %p84 = por %p82, %p83
    %p86 = scmp.ne.s32.totalorder %s69, %s85
    %p87 = scmp.eq.s32.totalorder %s14, 0
    %p88 = por %p86, %p87
    %p89 = scmp.le.s32.totalorder 1, %s8
    %p90 = scmp.lt.s32.totalorder %s8, 17
    %p91 = pnand %p89, %p90
    %p92 = pneg %p91
    // Predicated region
    $region9: #{kernel_generated_6_forward.1} parent=5 // pred_check
      _
    $region10: #{kernel_generated_6_forward.1} parent=5 // pred_check_branch
      %94 = sbr.rel (%p91) target = $region12
    $region11: #{kernel_generated_6_forward.1} parent=5 // pred_region
      %s95 = ssub.s32 %s8, 1
      // Predicated region
      $region13: #{kernel_generated_6_forward.1} parent=11 // pred_check
        %p96 = pneg %p55
      $region14: #{kernel_generated_6_forward.1} parent=11 // pred_check_branch
        %98 = sbr.rel (%p96) target = $region16
      $region15: #{kernel_generated_6_forward.1} parent=11 // pred_region
        _
      $region16: #{kernel_generated_6_forward.1} parent=11 // pred_fallthru
        _
    $region12: #{kernel_generated_6_forward.1} parent=5 // pred_fallthru
      _
    %p99 = scmp.lt.s32.totalorder %s8, 16
    // Predicated region
    $region17: #{kernel_generated_6_forward.1} parent=5 // pred_check
      %p100 = pneg %p99
    $region18: #{kernel_generated_6_forward.1} parent=5 // pred_check_branch
      %102 = sbr.rel (%p100) target = $region20
    $region19: #{kernel_generated_6_forward.1} parent=5 // pred_region
      // Predicated region
      $region21: #{kernel_generated_6_forward.1} parent=19 // pred_check
        %p103 = pneg %p28
      $region22: #{kernel_generated_6_forward.1} parent=19 // pred_check_branch
        %105 = sbr.rel (%p103) target = $region24
      $region23: #{kernel_generated_6_forward.1} parent=19 // pred_region
        %s106 = smul.u32 72, %s8
        %p107 = scmp.lt.s32.totalorder %s106, 1151
        %s108 = scalar_select %p107, %s106, 1151
        %s109 = smul.addr %s108, 6
        %s110 = smul.addr %s109, 4
        %s111 = scalar_lea.vmem %s0, %s110
        %s112 = smul.u32 72, %s8
      $region24: #{kernel_generated_6_forward.1} parent=19 // pred_fallthru
        _
    $region20: #{kernel_generated_6_forward.1} parent=5 // pred_fallthru
      _
    %p113 = scmp.le.s32.totalorder 1, %s8
    %p114 = scmp.lt.s32.totalorder %s8, 17
    %p115 = pnand %p113, %p114
    %p116 = pneg %p115
    // Predicated region
    $region25: #{kernel_generated_6_forward.1} parent=5 // pred_check
      _
    $region26: #{kernel_generated_6_forward.1} parent=5 // pred_check_branch
      %118 = sbr.rel (%p115) target = $region28
    $region27: #{kernel_generated_6_forward.1} parent=5 // pred_region
      %s119 = ssub.s32 %s8, 1
      %s120 = smul.u32 72, %s13
      %p121 = scmp.lt.s32.totalorder %s120, 1151
      %s122 = scalar_select %p121, %s120, 1151
      %s123 = smul.addr %s122, 6
      %s124 = smul.addr %s123, 4
      %s125 = scalar_lea.vmem %s0, %s124
      %p126 = pneg %p34
      %p127 = pneg %p31
      %p128 = pneg %p55
      %p129 = pneg %p52
      %p130 = pneg %p81
      %p131 = pneg %p78
      %s132 = smul.u32 8, %s13
      %p133 = scmp.lt.s32.totalorder %s132, 127
      %s134 = scalar_select %p133, %s132, 127
      %s135 = smul.addr %s134, 28
      %s136 = smul.addr %s135, 8
      %s137 = scalar_lea.vmem %s2, %s136
      %s138 = smul.u32 72, %s13
      %p139 = scmp.lt.s32.totalorder %s138, 1151
      %s140 = scalar_select %p139, %s138, 1151
      %s141 = smul.addr %s140, 6
      %s142 = smul.addr %s141, 4
      %s143 = scalar_lea.vmem %s0, %s142
      %s144 = smul.u32 72, %s13
      %s145 = smul.u32 8, %s13
      %p146 = scmp.lt.s32.totalorder %s145, 127
      %s147 = scalar_select %p146, %s145, 127
      %s148 = smul.addr %s147, 28
      %s149 = smul.addr %s148, 8
      %s150 = scalar_lea.vmem %s2, %s149
      %s151 = smul.u32 8, %s13
      %v152 = vld [vmem:[%s143] sm:$0xff]
      %v153 = vld [vmem:[%s143 + $0x8] sm:$0xff]
      %v154 = vld [vmem:[%s143 + $0x10] sm:$0xff]
      %v155 = vld [vmem:[%s143 + $0x18] sm:$0xff]
      %v156 = vld [vmem:[%s143 + $0x20] sm:$0xff]
      %v157 = vld [vmem:[%s143 + $0x28] sm:$0xff]
      %v158 = vld [vmem:[%s143 + $0x30] sm:$0xff]
      %v159 = vld [vmem:[%s143 + $0x38] sm:$0xff]
      %v160 = vld [vmem:[%s143 + $0x40] sm:$0xff]
      %v161 = vld [vmem:[%s143 + $0x48] sm:$0xff]
      %v162 = vld [vmem:[%s143 + $0x50] sm:$0xff]
      %v163 = vld [vmem:[%s143 + $0x58] sm:$0xff]
      %v164 = vld [vmem:[%s143 + $0x60] sm:$0xff]
      %v165 = vld [vmem:[%s143 + $0x68] sm:$0xff]
      %v166 = vld [vmem:[%s143 + $0x70] sm:$0xff]
      %v167 = vld [vmem:[%s143 + $0x78] sm:$0xff]
      %v168 = vld [vmem:[%s143 + $0x80] sm:$0xff]
      %v169 = vld [vmem:[%s143 + $0x88] sm:$0xff]
      %v170 = vld [vmem:[%s143 + $0x90] sm:$0xff]
      %v171 = vld [vmem:[%s143 + $0x98] sm:$0xff]
      %v172 = vld [vmem:[%s143 + $0xa0] sm:$0xff]
      %v173 = vld [vmem:[%s143 + $0xa8] sm:$0xff]
      %v174 = vld [vmem:[%s143 + $0xb0] sm:$0xff]
      %v175 = vld [vmem:[%s143 + $0xb8] sm:$0xff]
      %v176 = vld [vmem:[%s143 + $0xc0] sm:$0xff]
      %v177 = vld [vmem:[%s143 + $0xc8] sm:$0xff]
      %v178 = vld [vmem:[%s143 + $0xd0] sm:$0xff]
      %v179 = vld [vmem:[%s143 + $0xd8] sm:$0xff]
      %v180 = vld [vmem:[%s143 + $0xe0] sm:$0xff]
      %v181 = vld [vmem:[%s143 + $0xe8] sm:$0xff]
      %v182 = vld [vmem:[%s143 + $0xf0] sm:$0xff]
      %v183 = vld [vmem:[%s143 + $0xf8] sm:$0xff]
      %v184 = vld [vmem:[%s143 + $0x100] sm:$0xff]
      %v185 = vld [vmem:[%s143 + $0x108] sm:$0xff]
      %v186 = vld [vmem:[%s143 + $0x110] sm:$0xff]
      %v187 = vld [vmem:[%s143 + $0x118] sm:$0xff]
      %v188 = vld [vmem:[%s143 + $0x120] sm:$0xff]
      %v189 = vld [vmem:[%s143 + $0x128] sm:$0xff]
      %v190 = vld [vmem:[%s143 + $0x130] sm:$0xff]
      %v191 = vld [vmem:[%s143 + $0x138] sm:$0xff]
      %v192 = vld [vmem:[%s143 + $0x140] sm:$0xff]
      %v193 = vld [vmem:[%s143 + $0x148] sm:$0xff]
      %v194 = vld [vmem:[%s143 + $0x150] sm:$0xff]
      %v195 = vld [vmem:[%s143 + $0x158] sm:$0xff]
      %v196 = vld [vmem:[%s143 + $0x160] sm:$0xff]
      %v197 = vld [vmem:[%s143 + $0x168] sm:$0xff]
      %v198 = vld [vmem:[%s143 + $0x170] sm:$0xff]
      %v199 = vld [vmem:[%s143 + $0x178] sm:$0xff]
      %v200 = vld [vmem:[%s143 + $0x180] sm:$0xff]
      %v201 = vld [vmem:[%s143 + $0x188] sm:$0xff]
      %v202 = vld [vmem:[%s143 + $0x190] sm:$0xff]
      %v203 = vld [vmem:[%s143 + $0x198] sm:$0xff]
      %v204 = vld [vmem:[%s143 + $0x1a0] sm:$0xff]
      %v205 = vld [vmem:[%s143 + $0x1a8] sm:$0xff]
      %v206 = vld [vmem:[%s143 + $0x1b0] sm:$0xff]
      %v207 = vld [vmem:[%s143 + $0x1b8] sm:$0xff]
      %v208 = vld [vmem:[%s143 + $0x1c0] sm:$0xff]
      %v209 = vld [vmem:[%s143 + $0x1c8] sm:$0xff]
      %v210 = vld [vmem:[%s143 + $0x1d0] sm:$0xff]
      %v211 = vld [vmem:[%s143 + $0x1d8] sm:$0xff]
      %v212 = vld [vmem:[%s143 + $0x1e0] sm:$0xff]
      %v213 = vld [vmem:[%s143 + $0x1e8] sm:$0xff]
      %v214 = vld [vmem:[%s143 + $0x1f0] sm:$0xff]
      %v215 = vld [vmem:[%s143 + $0x1f8] sm:$0xff]
      %v216 = vld [vmem:[%s143 + $0x200] sm:$0xff]
      %v217 = vld [vmem:[%s143 + $0x208] sm:$0xff]
      %v218 = vld [vmem:[%s143 + $0x210] sm:$0xff]
      %v219 = vld [vmem:[%s143 + $0x218] sm:$0xff]
      %v220 = vld [vmem:[%s143 + $0x220] sm:$0xff]
      %v221 = vld [vmem:[%s143 + $0x228] sm:$0xff]
      %v222 = vld [vmem:[%s143 + $0x230] sm:$0xff]
      %v223 = vld [vmem:[%s143 + $0x238] sm:$0xff]
      %v224 = vld [vmem:[%s143 + $0x240] sm:$0xff]
      %v225 = vld [vmem:[%s143 + $0x248] sm:$0xff]
      %v226 = vld [vmem:[%s143 + $0x250] sm:$0xff]
      %v227 = vld [vmem:[%s143 + $0x258] sm:$0xff]
      %v228 = vld [vmem:[%s143 + $0x260] sm:$0xff]
      %v229 = vld [vmem:[%s143 + $0x268] sm:$0xff]
      %v230 = vld [vmem:[%s143 + $0x270] sm:$0xff]
      %v231 = vld [vmem:[%s143 + $0x278] sm:$0xff]
      %v232 = vld [vmem:[%s143 + $0x280] sm:$0xff]
      %v233 = vld [vmem:[%s143 + $0x288] sm:$0xff]
      %v234 = vld [vmem:[%s143 + $0x290] sm:$0xff]
      %v235 = vld [vmem:[%s143 + $0x298] sm:$0xff]
      %v236 = vld [vmem:[%s143 + $0x2a0] sm:$0xff]
      %v237 = vld [vmem:[%s143 + $0x2a8] sm:$0xff]
      %v238 = vld [vmem:[%s143 + $0x2b0] sm:$0xff]
      %v239 = vld [vmem:[%s143 + $0x2b8] sm:$0xff]
      %v240 = vld [vmem:[%s143 + $0x2c0] sm:$0xff]
      %v241 = vld [vmem:[%s143 + $0x2c8] sm:$0xff]
      %v242 = vld [vmem:[%s143 + $0x2d0] sm:$0xff]
      %v243 = vld [vmem:[%s143 + $0x2d8] sm:$0xff]
      %v244 = vld [vmem:[%s143 + $0x2e0] sm:$0xff]
      %v245 = vld [vmem:[%s143 + $0x2e8] sm:$0xff]
      %v246 = vld [vmem:[%s143 + $0x2f0] sm:$0xff]
      %v247 = vld [vmem:[%s143 + $0x2f8] sm:$0xff]
      %v248 = vld [vmem:[%s143 + $0x300] sm:$0xff]
      %v249 = vld [vmem:[%s143 + $0x308] sm:$0xff]
      %v250 = vld [vmem:[%s143 + $0x310] sm:$0xff]
      %v251 = vld [vmem:[%s143 + $0x318] sm:$0xff]
      %v252 = vld [vmem:[%s143 + $0x320] sm:$0xff]
      %v253 = vld [vmem:[%s143 + $0x328] sm:$0xff]
      %v254 = vld [vmem:[%s143 + $0x330] sm:$0xff]
      %v255 = vld [vmem:[%s143 + $0x338] sm:$0xff]
      %v256 = vld [vmem:[%s143 + $0x340] sm:$0xff]
      %v257 = vld [vmem:[%s143 + $0x348] sm:$0xff]
      %v258 = vld [vmem:[%s143 + $0x350] sm:$0xff]
      %v259 = vld [vmem:[%s143 + $0x358] sm:$0xff]
      %v260 = vld [vmem:[%s143 + $0x360] sm:$0xff]
      %v261 = vld [vmem:[%s143 + $0x368] sm:$0xff]
      %v262 = vld [vmem:[%s143 + $0x370] sm:$0xff]
      %v263 = vld [vmem:[%s143 + $0x378] sm:$0xff]
      %v264 = vld [vmem:[%s143 + $0x380] sm:$0xff]
      %v265 = vld [vmem:[%s143 + $0x388] sm:$0xff]
      %v266 = vld [vmem:[%s143 + $0x390] sm:$0xff]
      %v267 = vld [vmem:[%s143 + $0x398] sm:$0xff]
      %v268 = vld [vmem:[%s143 + $0x3a0] sm:$0xff]
      %v269 = vld [vmem:[%s143 + $0x3a8] sm:$0xff]
      %v270 = vld [vmem:[%s143 + $0x3b0] sm:$0xff]
      %v271 = vld [vmem:[%s143 + $0x3b8] sm:$0xff]
      %v272 = vld [vmem:[%s143 + $0x3c0] sm:$0xff]
      %v273 = vld [vmem:[%s143 + $0x3c8] sm:$0xff]
      %v274 = vld [vmem:[%s143 + $0x3d0] sm:$0xff]
      %v275 = vld [vmem:[%s143 + $0x3d8] sm:$0xff]
      %v276 = vld [vmem:[%s143 + $0x3e0] sm:$0xff]
      %v277 = vld [vmem:[%s143 + $0x3e8] sm:$0xff]
      %v278 = vld [vmem:[%s143 + $0x3f0] sm:$0xff]
      %v279 = vld [vmem:[%s143 + $0x3f8] sm:$0xff]
      %v280 = vld [vmem:[%s143 + $0x400] sm:$0xff]
      %v281 = vld [vmem:[%s143 + $0x408] sm:$0xff]
      %v282 = vld [vmem:[%s143 + $0x410] sm:$0xff]
      %v283 = vld [vmem:[%s143 + $0x418] sm:$0xff]
      %v284 = vld [vmem:[%s143 + $0x420] sm:$0xff]
      %v285 = vld [vmem:[%s143 + $0x428] sm:$0xff]
      %v286 = vld [vmem:[%s143 + $0x430] sm:$0xff]
      %v287 = vld [vmem:[%s143 + $0x438] sm:$0xff]
      %v288 = vld [vmem:[%s143 + $0x440] sm:$0xff]
      %v289 = vld [vmem:[%s143 + $0x448] sm:$0xff]
      %v290 = vld [vmem:[%s143 + $0x450] sm:$0xff]
      %v291 = vld [vmem:[%s143 + $0x458] sm:$0xff]
      %v292 = vld [vmem:[%s143 + $0x460] sm:$0xff]
      %v293 = vld [vmem:[%s143 + $0x468] sm:$0xff]
      %v294 = vld [vmem:[%s143 + $0x470] sm:$0xff]
      %v295 = vld [vmem:[%s143 + $0x478] sm:$0xff]
      %v296 = vld [vmem:[%s143 + $0x480] sm:$0xff]
      %v297 = vld [vmem:[%s143 + $0x488] sm:$0xff]
      %v298 = vld [vmem:[%s143 + $0x490] sm:$0xff]
      %v299 = vld [vmem:[%s143 + $0x498] sm:$0xff]
      %v300 = vld [vmem:[%s143 + $0x4a0] sm:$0xff]
      %v301 = vld [vmem:[%s143 + $0x4a8] sm:$0xff]
      %v302 = vld [vmem:[%s143 + $0x4b0] sm:$0xff]
      %v303 = vld [vmem:[%s143 + $0x4b8] sm:$0xff]
      %v304 = vld [vmem:[%s143 + $0x4c0] sm:$0xff]
      %v305 = vld [vmem:[%s143 + $0x4c8] sm:$0xff]
      %v306 = vld [vmem:[%s143 + $0x4d0] sm:$0xff]
      %v307 = vld [vmem:[%s143 + $0x4d8] sm:$0xff]
      %v308 = vld [vmem:[%s143 + $0x4e0] sm:$0xff]
      %v309 = vld [vmem:[%s143 + $0x4e8] sm:$0xff]
      %v310 = vld [vmem:[%s143 + $0x4f0] sm:$0xff]
      %v311 = vld [vmem:[%s143 + $0x4f8] sm:$0xff]
      %v312 = vld [vmem:[%s143 + $0x500] sm:$0xff]
      %v313 = vld [vmem:[%s143 + $0x508] sm:$0xff]
      %v314 = vld [vmem:[%s143 + $0x510] sm:$0xff]
      %v315 = vld [vmem:[%s143 + $0x518] sm:$0xff]
      %v316 = vld [vmem:[%s143 + $0x520] sm:$0xff]
      %v317 = vld [vmem:[%s143 + $0x528] sm:$0xff]
      %v318 = vld [vmem:[%s143 + $0x530] sm:$0xff]
      %v319 = vld [vmem:[%s143 + $0x538] sm:$0xff]
      %v320 = vld [vmem:[%s143 + $0x540] sm:$0xff]
      %v321 = vld [vmem:[%s143 + $0x548] sm:$0xff]
      %v322 = vld [vmem:[%s143 + $0x550] sm:$0xff]
      %v323 = vld [vmem:[%s143 + $0x558] sm:$0xff]
      %v324 = vld [vmem:[%s143 + $0x560] sm:$0xff]
      %v325 = vld [vmem:[%s143 + $0x568] sm:$0xff]
      %v326 = vld [vmem:[%s143 + $0x570] sm:$0xff]
      %v327 = vld [vmem:[%s143 + $0x578] sm:$0xff]
      %v328 = vld [vmem:[%s143 + $0x580] sm:$0xff]
      %v329 = vld [vmem:[%s143 + $0x588] sm:$0xff]
      %v330 = vld [vmem:[%s143 + $0x590] sm:$0xff]
      %v331 = vld [vmem:[%s143 + $0x598] sm:$0xff]
      %v332 = vld [vmem:[%s143 + $0x5a0] sm:$0xff]
      %v333 = vld [vmem:[%s143 + $0x5a8] sm:$0xff]
      %v334 = vld [vmem:[%s143 + $0x5b0] sm:$0xff]
      %v335 = vld [vmem:[%s143 + $0x5b8] sm:$0xff]
      %v336 = vld [vmem:[%s143 + $0x5c0] sm:$0xff]
      %v337 = vld [vmem:[%s143 + $0x5c8] sm:$0xff]
      %v338 = vld [vmem:[%s143 + $0x5d0] sm:$0xff]
      %v339 = vld [vmem:[%s143 + $0x5d8] sm:$0xff]
      %v340 = vld [vmem:[%s143 + $0x5e0] sm:$0xff]
      %v341 = vld [vmem:[%s143 + $0x5e8] sm:$0xff]
      %v342 = vld [vmem:[%s143 + $0x5f0] sm:$0xff]
      %v343 = vld [vmem:[%s143 + $0x5f8] sm:$0xff]
      %v344 = vld [vmem:[%s143 + $0x600] sm:$0xff]
      %v345 = vld [vmem:[%s143 + $0x608] sm:$0xff]
      %v346 = vld [vmem:[%s143 + $0x610] sm:$0xff]
      %v347 = vld [vmem:[%s143 + $0x618] sm:$0xff]
      %v348 = vld [vmem:[%s143 + $0x620] sm:$0xff]
      %v349 = vld [vmem:[%s143 + $0x628] sm:$0xff]
      %v350 = vld [vmem:[%s143 + $0x630] sm:$0xff]
      %v351 = vld [vmem:[%s143 + $0x638] sm:$0xff]
      %v352 = vld [vmem:[%s143 + $0x640] sm:$0xff]
      %v353 = vld [vmem:[%s143 + $0x648] sm:$0xff]
      %v354 = vld [vmem:[%s143 + $0x650] sm:$0xff]
      %v355 = vld [vmem:[%s143 + $0x658] sm:$0xff]
      %v356 = vld [vmem:[%s143 + $0x660] sm:$0xff]
      %v357 = vld [vmem:[%s143 + $0x668] sm:$0xff]
      %v358 = vld [vmem:[%s143 + $0x670] sm:$0xff]
      %v359 = vld [vmem:[%s143 + $0x678] sm:$0xff]
      %v360 = vld [vmem:[%s143 + $0x680] sm:$0xff]
      %v361 = vld [vmem:[%s143 + $0x688] sm:$0xff]
      %v362 = vld [vmem:[%s143 + $0x690] sm:$0xff]
      %v363 = vld [vmem:[%s143 + $0x698] sm:$0xff]
      %v364 = vld [vmem:[%s143 + $0x6a0] sm:$0xff]
      %v365 = vld [vmem:[%s143 + $0x6a8] sm:$0xff]
      %v366 = vld [vmem:[%s143 + $0x6b0] sm:$0xff]
      %v367 = vld [vmem:[%s143 + $0x6b8] sm:$0xff]
      %v368 = vld [vmem:[%s1] sm:$0xff]
      %v369 = vld [vmem:[%s1 + $0x8] sm:$0xff]
      %v370 = vld [vmem:[%s1 + $0x10] sm:$0xff]
      %v371 = vld [vmem:[%s1 + $0x18] sm:$0xff]
      %v372 = vld [vmem:[%s1 + $0x20] sm:$0xff]
      %v373 = vld [vmem:[%s1 + $0x28] sm:$0xff]
      %v374 = vld [vmem:[%s1 + $0x30] sm:$0xff]
      %v375 = vld [vmem:[%s1 + $0x38] sm:$0xff]
      %v376 = vld [vmem:[%s1 + $0x40] sm:$0xff]
      %v377 = vld [vmem:[%s1 + $0x48] sm:$0xff]
      %v378 = vld [vmem:[%s1 + $0x50] sm:$0xff]
      %v379 = vld [vmem:[%s1 + $0x58] sm:$0xff]
      %v380 = vld [vmem:[%s1 + $0x60] sm:$0xff]
      %v381 = vld [vmem:[%s1 + $0x68] sm:$0xff]
      %v382 = vld [vmem:[%s1 + $0x70] sm:$0xff]
      %v383 = vld [vmem:[%s1 + $0x78] sm:$0xff]
      %v384 = vld [vmem:[%s1 + $0x80] sm:$0xff]
      %v385 = vld [vmem:[%s1 + $0x88] sm:$0xff]
      %v386 = vld [vmem:[%s1 + $0x90] sm:$0xff]
      %v387 = vld [vmem:[%s1 + $0x98] sm:$0xff]
      %v388 = vld [vmem:[%s1 + $0xa0] sm:$0xff]
      %v389 = vld [vmem:[%s1 + $0xa8] sm:$0xff]
      %v390 = vld [vmem:[%s1 + $0xb0] sm:$0xff]
      %v391 = vld [vmem:[%s1 + $0xb8] sm:$0xff]
      %v392 = vld [vmem:[%s1 + $0xc0] sm:$0xff]
      %v393 = vld [vmem:[%s1 + $0xc8] sm:$0xff]
      %v394 = vld [vmem:[%s1 + $0xd0] sm:$0xff]
      %v395 = vld [vmem:[%s1 + $0xd8] sm:$0xff]
      %v396 = vld [vmem:[%s1 + $0xe0] sm:$0xff]
      %v397 = vld [vmem:[%s1 + $0xe8] sm:$0xff]
      %v398 = vld [vmem:[%s1 + $0xf0] sm:$0xff]
      %v399 = vld [vmem:[%s1 + $0xf8] sm:$0xff]
      %v400 = vld [vmem:[%s1 + $0x100] sm:$0xff]
      %v401 = vld [vmem:[%s1 + $0x108] sm:$0xff]
      %v402 = vld [vmem:[%s1 + $0x110] sm:$0xff]
      %v403 = vld [vmem:[%s1 + $0x118] sm:$0xff]
      %v404 = vld [vmem:[%s1 + $0x120] sm:$0xff]
      %v405 = vld [vmem:[%s1 + $0x128] sm:$0xff]
      %v406 = vld [vmem:[%s1 + $0x130] sm:$0xff]
      %v407 = vld [vmem:[%s1 + $0x138] sm:$0xff]
      %v408 = vld [vmem:[%s1 + $0x140] sm:$0xff]
      %v409 = vld [vmem:[%s1 + $0x148] sm:$0xff]
      %v410 = vld [vmem:[%s1 + $0x150] sm:$0xff]
      %v411 = vld [vmem:[%s1 + $0x158] sm:$0xff]
      %v412 = vld [vmem:[%s1 + $0x160] sm:$0xff]
      %v413 = vld [vmem:[%s1 + $0x168] sm:$0xff]
      %v414 = vld [vmem:[%s1 + $0x170] sm:$0xff]
      %v415 = vld [vmem:[%s1 + $0x178] sm:$0xff]
      %v416 = vld [vmem:[%s1 + $0x180] sm:$0xff]
      %v417 = vld [vmem:[%s1 + $0x188] sm:$0xff]
      %v418 = vld [vmem:[%s1 + $0x190] sm:$0xff]
      %v419 = vld [vmem:[%s1 + $0x198] sm:$0xff]
      %v420 = vld [vmem:[%s1 + $0x1a0] sm:$0xff]
      %v421 = vld [vmem:[%s1 + $0x1a8] sm:$0xff]
      %v422 = vld [vmem:[%s1 + $0x1b0] sm:$0xff]
      %v423 = vld [vmem:[%s1 + $0x1b8] sm:$0xff]
      %v424 = vld [vmem:[%s1 + $0x1c0] sm:$0xff]
      %v425 = vld [vmem:[%s1 + $0x1c8] sm:$0xff]
      %v426 = vld [vmem:[%s1 + $0x1d0] sm:$0xff]
      %v427 = vld [vmem:[%s1 + $0x1d8] sm:$0xff]
      %v428 = vld [vmem:[%s1 + $0x1e0] sm:$0xff]
      %v429 = vld [vmem:[%s1 + $0x1e8] sm:$0xff]
      %v430 = vld [vmem:[%s1 + $0x1f0] sm:$0xff]
      %v431 = vld [vmem:[%s1 + $0x1f8] sm:$0xff]
      %v432 = vld [vmem:[%s1 + $0x200] sm:$0xff]
      %v433 = vld [vmem:[%s1 + $0x208] sm:$0xff]
      %v434 = vld [vmem:[%s1 + $0x210] sm:$0xff]
      %v435 = vld [vmem:[%s1 + $0x218] sm:$0xff]
      %v436 = vld [vmem:[%s1 + $0x220] sm:$0xff]
      %v437 = vld [vmem:[%s1 + $0x228] sm:$0xff]
      %v438 = vld [vmem:[%s1 + $0x230] sm:$0xff]
      %v439 = vld [vmem:[%s1 + $0x238] sm:$0xff]
      %v440 = vld [vmem:[%s1 + $0x240] sm:$0xff]
      %v441 = vld [vmem:[%s1 + $0x248] sm:$0xff]
      %v442 = vld [vmem:[%s1 + $0x250] sm:$0xff]
      %v443 = vld [vmem:[%s1 + $0x258] sm:$0xff]
      %v444 = vld [vmem:[%s1 + $0x260] sm:$0xff]
      %v445 = vld [vmem:[%s1 + $0x268] sm:$0xff]
      %v446 = vld [vmem:[%s1 + $0x270] sm:$0xff]
      %v447 = vld [vmem:[%s1 + $0x278] sm:$0xff]
      %v448 = vld [vmem:[%s1 + $0x280] sm:$0xff]
      %v449 = vld [vmem:[%s1 + $0x288] sm:$0xff]
      %v450 = vld [vmem:[%s1 + $0x290] sm:$0xff]
      %v451 = vld [vmem:[%s1 + $0x298] sm:$0xff]
      %v452 = vld [vmem:[%s1 + $0x2a0] sm:$0xff]
      %v453 = vld [vmem:[%s1 + $0x2a8] sm:$0xff]
      %v454 = vld [vmem:[%s1 + $0x2b0] sm:$0xff]
      %v455 = vld [vmem:[%s1 + $0x2b8] sm:$0xff]
      %v456 = vld [vmem:[%s1 + $0x2c0] sm:$0xff]
      %v457 = vld [vmem:[%s1 + $0x2c8] sm:$0xff]
      %v458 = vld [vmem:[%s1 + $0x2d0] sm:$0xff]
      %v459 = vld [vmem:[%s1 + $0x2d8] sm:$0xff]
      %v460 = vld [vmem:[%s1 + $0x2e0] sm:$0xff]
      %v461 = vld [vmem:[%s1 + $0x2e8] sm:$0xff]
      %v462 = vld [vmem:[%s1 + $0x2f0] sm:$0xff]
      %v463 = vld [vmem:[%s1 + $0x2f8] sm:$0xff]
      %v464 = vld [vmem:[%s1 + $0x300] sm:$0xff]
      %v465 = vld [vmem:[%s1 + $0x308] sm:$0xff]
      %v466 = vld [vmem:[%s1 + $0x310] sm:$0xff]
      %v467 = vld [vmem:[%s1 + $0x318] sm:$0xff]
      %v468 = vld [vmem:[%s1 + $0x320] sm:$0xff]
      %v469 = vld [vmem:[%s1 + $0x328] sm:$0xff]
      %v470 = vld [vmem:[%s1 + $0x330] sm:$0xff]
      %v471 = vld [vmem:[%s1 + $0x338] sm:$0xff]
      %v472 = vld [vmem:[%s1 + $0x340] sm:$0xff]
      %v473 = vld [vmem:[%s1 + $0x348] sm:$0xff]
      %v474 = vld [vmem:[%s1 + $0x350] sm:$0xff]
      %v475 = vld [vmem:[%s1 + $0x358] sm:$0xff]
      %v476 = vld [vmem:[%s1 + $0x360] sm:$0xff]
      %v477 = vld [vmem:[%s1 + $0x368] sm:$0xff]
      %v478 = vld [vmem:[%s1 + $0x370] sm:$0xff]
      %v479 = vld [vmem:[%s1 + $0x378] sm:$0xff]
      %v480 = vld [vmem:[%s1 + $0x380] sm:$0xff]
      %v481 = vld [vmem:[%s1 + $0x388] sm:$0xff]
      %v482 = vld [vmem:[%s1 + $0x390] sm:$0xff]
      %v483 = vld [vmem:[%s1 + $0x398] sm:$0xff]
      %v484 = vld [vmem:[%s1 + $0x3a0] sm:$0xff]
      %v485 = vld [vmem:[%s1 + $0x3a8] sm:$0xff]
      %v486 = vld [vmem:[%s1 + $0x3b0] sm:$0xff]
      %v487 = vld [vmem:[%s1 + $0x3b8] sm:$0xff]
      %v488 = vld [vmem:[%s1 + $0x3c0] sm:$0xff]
      %v489 = vld [vmem:[%s1 + $0x3c8] sm:$0xff]
      %v490 = vld [vmem:[%s1 + $0x3d0] sm:$0xff]
      %v491 = vld [vmem:[%s1 + $0x3d8] sm:$0xff]
      %v492 = vld [vmem:[%s1 + $0x3e0] sm:$0xff]
      %v493 = vld [vmem:[%s1 + $0x3e8] sm:$0xff]
      %v494 = vld [vmem:[%s1 + $0x3f0] sm:$0xff]
      %v495 = vld [vmem:[%s1 + $0x3f8] sm:$0xff]
      %v496 = vld [vmem:[%s1 + $0x400] sm:$0xff]
      %v497 = vld [vmem:[%s1 + $0x408] sm:$0xff]
      %v498 = vld [vmem:[%s1 + $0x410] sm:$0xff]
      %v499 = vld [vmem:[%s1 + $0x418] sm:$0xff]
      %v500 = vld [vmem:[%s1 + $0x420] sm:$0xff]
      %v501 = vld [vmem:[%s1 + $0x428] sm:$0xff]
      %v502 = vld [vmem:[%s1 + $0x430] sm:$0xff]
      %v503 = vld [vmem:[%s1 + $0x438] sm:$0xff]
      %v504 = vld [vmem:[%s1 + $0x440] sm:$0xff]
      %v505 = vld [vmem:[%s1 + $0x448] sm:$0xff]
      %v506 = vld [vmem:[%s1 + $0x450] sm:$0xff]
      %v507 = vld [vmem:[%s1 + $0x458] sm:$0xff]
      %v508 = vld [vmem:[%s1 + $0x460] sm:$0xff]
      %v509 = vld [vmem:[%s1 + $0x468] sm:$0xff]
      %v510 = vld [vmem:[%s1 + $0x470] sm:$0xff]
      %v511 = vld [vmem:[%s1 + $0x478] sm:$0xff]
      %v512 = vld [vmem:[%s1 + $0x480] sm:$0xff]
      %v513 = vld [vmem:[%s1 + $0x488] sm:$0xff]
      %v514 = vld [vmem:[%s1 + $0x490] sm:$0xff]
      %v515 = vld [vmem:[%s1 + $0x498] sm:$0xff]
      %v516 = vld [vmem:[%s1 + $0x4a0] sm:$0xff]
      %v517 = vld [vmem:[%s1 + $0x4a8] sm:$0xff]
      %v518 = vld [vmem:[%s1 + $0x4b0] sm:$0xff]
      %v519 = vld [vmem:[%s1 + $0x4b8] sm:$0xff]
      %v520 = vld [vmem:[%s1 + $0x4c0] sm:$0xff]
      %v521 = vld [vmem:[%s1 + $0x4c8] sm:$0xff]
      %v522 = vld [vmem:[%s1 + $0x4d0] sm:$0xff]
      %v523 = vld [vmem:[%s1 + $0x4d8] sm:$0xff]
      %v524 = vld [vmem:[%s1 + $0x4e0] sm:$0xff]
      %v525 = vld [vmem:[%s1 + $0x4e8] sm:$0xff]
      %v526 = vld [vmem:[%s1 + $0x4f0] sm:$0xff]
      %v527 = vld [vmem:[%s1 + $0x4f8] sm:$0xff]
      %v528 = vld [vmem:[%s1 + $0x500] sm:$0xff]
      %v529 = vld [vmem:[%s1 + $0x508] sm:$0xff]
      %v530 = vld [vmem:[%s1 + $0x510] sm:$0xff]
      %v531 = vld [vmem:[%s1 + $0x518] sm:$0xff]
      %v532 = vld [vmem:[%s1 + $0x520] sm:$0xff]
      %v533 = vld [vmem:[%s1 + $0x528] sm:$0xff]
      %v534 = vld [vmem:[%s1 + $0x530] sm:$0xff]
      %v535 = vld [vmem:[%s1 + $0x538] sm:$0xff]
      %v536 = vld [vmem:[%s1 + $0x540] sm:$0xff]
      %v537 = vld [vmem:[%s1 + $0x548] sm:$0xff]
      %v538 = vld [vmem:[%s1 + $0x550] sm:$0xff]
      %v539 = vld [vmem:[%s1 + $0x558] sm:$0xff]
      %v540 = vld [vmem:[%s1 + $0x560] sm:$0xff]
      %v541 = vld [vmem:[%s1 + $0x568] sm:$0xff]
      %v542 = vld [vmem:[%s1 + $0x570] sm:$0xff]
      %v543 = vld [vmem:[%s1 + $0x578] sm:$0xff]
      %v544 = vld [vmem:[%s1 + $0x580] sm:$0xff]
      %v545 = vld [vmem:[%s1 + $0x588] sm:$0xff]
      %v546 = vld [vmem:[%s1 + $0x590] sm:$0xff]
      %v547 = vld [vmem:[%s1 + $0x598] sm:$0xff]
      %v548 = vld [vmem:[%s1 + $0x5a0] sm:$0xff]
      %v549 = vld [vmem:[%s1 + $0x5a8] sm:$0xff]
      %v550 = vld [vmem:[%s1 + $0x5b0] sm:$0xff]
      %v551 = vld [vmem:[%s1 + $0x5b8] sm:$0xff]
      %v552 = vld [vmem:[%s1 + $0x5c0] sm:$0xff]
      %v553 = vld [vmem:[%s1 + $0x5c8] sm:$0xff]
      %v554 = vld [vmem:[%s1 + $0x5d0] sm:$0xff]
      %v555 = vld [vmem:[%s1 + $0x5d8] sm:$0xff]
      %v556 = vld [vmem:[%s1 + $0x5e0] sm:$0xff]
      %v557 = vld [vmem:[%s1 + $0x5e8] sm:$0xff]
      %v558 = vld [vmem:[%s1 + $0x5f0] sm:$0xff]
      %v559 = vld [vmem:[%s1 + $0x5f8] sm:$0xff]
      %v776 = vunpack.c.l.b16 %v152
      %v777 = vunpack.c.h.b16 %v152
      %v778 = vunpack.c.l.b16 %v153
      %v779 = vunpack.c.h.b16 %v153
      %v780 = vunpack.c.l.b16 %v154
      %v781 = vunpack.c.h.b16 %v154
      %v782 = vunpack.c.l.b16 %v155
      %v783 = vunpack.c.h.b16 %v155
      %v784 = vunpack.c.l.b16 %v156
      %v785 = vunpack.c.h.b16 %v156
      %v786 = vunpack.c.l.b16 %v157
      %v787 = vunpack.c.h.b16 %v157
      %v788 = vunpack.c.l.b16 %v158
      %v789 = vunpack.c.h.b16 %v158
      %v790 = vunpack.c.l.b16 %v159
      %v791 = vunpack.c.h.b16 %v159
      %v792 = vunpack.c.l.b16 %v160
      %v793 = vunpack.c.h.b16 %v160
      %v794 = vunpack.c.l.b16 %v161
      %v795 = vunpack.c.h.b16 %v161
      %v796 = vunpack.c.l.b16 %v162
      %v797 = vunpack.c.h.b16 %v162
      %v798 = vunpack.c.l.b16 %v163
      %v799 = vunpack.c.h.b16 %v163
      %v800 = vunpack.c.l.b16 %v164
      %v801 = vunpack.c.h.b16 %v164
      %v802 = vunpack.c.l.b16 %v165
      %v803 = vunpack.c.h.b16 %v165
      %v804 = vunpack.c.l.b16 %v166
      %v805 = vunpack.c.h.b16 %v166
      %v806 = vunpack.c.l.b16 %v167
      %v807 = vunpack.c.h.b16 %v167
      %v808 = vunpack.c.l.b16 %v168
      %v809 = vunpack.c.h.b16 %v168
      %v810 = vunpack.c.l.b16 %v169
      %v811 = vunpack.c.h.b16 %v169
      %v812 = vunpack.c.l.b16 %v170
      %v813 = vunpack.c.h.b16 %v170
      %v814 = vunpack.c.l.b16 %v171
      %v815 = vunpack.c.h.b16 %v171
      %v816 = vunpack.c.l.b16 %v172
      %v817 = vunpack.c.h.b16 %v172
      %v818 = vunpack.c.l.b16 %v173
      %v819 = vunpack.c.h.b16 %v173
      %v820 = vunpack.c.l.b16 %v174
      %v821 = vunpack.c.h.b16 %v174
      %v822 = vunpack.c.l.b16 %v175
      %v823 = vunpack.c.h.b16 %v175
      %v824 = vunpack.c.l.b16 %v176
      %v825 = vunpack.c.h.b16 %v176
      %v826 = vunpack.c.l.b16 %v177
      %v827 = vunpack.c.h.b16 %v177
      %v828 = vunpack.c.l.b16 %v178
      %v829 = vunpack.c.h.b16 %v178
      %v830 = vunpack.c.l.b16 %v179
      %v831 = vunpack.c.h.b16 %v179
      %v832 = vunpack.c.l.b16 %v180
      %v833 = vunpack.c.h.b16 %v180
      %v834 = vunpack.c.l.b16 %v181
      %v835 = vunpack.c.h.b16 %v181
      %v836 = vunpack.c.l.b16 %v182
      %v837 = vunpack.c.h.b16 %v182
      %v838 = vunpack.c.l.b16 %v183
      %v839 = vunpack.c.h.b16 %v183
      %v840 = vunpack.c.l.b16 %v184
      %v841 = vunpack.c.h.b16 %v184
      %v842 = vunpack.c.l.b16 %v185
      %v843 = vunpack.c.h.b16 %v185
      %v844 = vunpack.c.l.b16 %v186
      %v845 = vunpack.c.h.b16 %v186
      %v846 = vunpack.c.l.b16 %v187
      %v847 = vunpack.c.h.b16 %v187
      %v848 = vunpack.c.l.b16 %v188
      %v849 = vunpack.c.h.b16 %v188
      %v850 = vunpack.c.l.b16 %v189
      %v851 = vunpack.c.h.b16 %v189
      %v852 = vunpack.c.l.b16 %v190
      %v853 = vunpack.c.h.b16 %v190
      %v854 = vunpack.c.l.b16 %v191
      %v855 = vunpack.c.h.b16 %v191
      %v856 = vunpack.c.l.b16 %v192
      %v857 = vunpack.c.h.b16 %v192
      %v858 = vunpack.c.l.b16 %v193
      %v859 = vunpack.c.h.b16 %v193
      %v860 = vunpack.c.l.b16 %v194
      %v861 = vunpack.c.h.b16 %v194
      %v862 = vunpack.c.l.b16 %v195
      %v863 = vunpack.c.h.b16 %v195
      %v864 = vunpack.c.l.b16 %v196
      %v865 = vunpack.c.h.b16 %v196
      %v866 = vunpack.c.l.b16 %v197
      %v867 = vunpack.c.h.b16 %v197
      %v868 = vunpack.c.l.b16 %v198
      %v869 = vunpack.c.h.b16 %v198
      %v870 = vunpack.c.l.b16 %v199
      %v871 = vunpack.c.h.b16 %v199
      %v872 = vunpack.c.l.b16 %v200
      %v873 = vunpack.c.h.b16 %v200
      %v874 = vunpack.c.l.b16 %v201
      %v875 = vunpack.c.h.b16 %v201
      %v876 = vunpack.c.l.b16 %v202
      %v877 = vunpack.c.h.b16 %v202
      %v878 = vunpack.c.l.b16 %v203
      %v879 = vunpack.c.h.b16 %v203
      %v880 = vunpack.c.l.b16 %v204
      %v881 = vunpack.c.h.b16 %v204
      %v882 = vunpack.c.l.b16 %v205
      %v883 = vunpack.c.h.b16 %v205
      %v884 = vunpack.c.l.b16 %v206
      %v885 = vunpack.c.h.b16 %v206
      %v886 = vunpack.c.l.b16 %v207
      %v887 = vunpack.c.h.b16 %v207
      %v888 = vunpack.c.l.b16 %v208
      %v889 = vunpack.c.h.b16 %v208
      %v890 = vunpack.c.l.b16 %v209
      %v891 = vunpack.c.h.b16 %v209
      %v892 = vunpack.c.l.b16 %v210
      %v893 = vunpack.c.h.b16 %v210
      %v894 = vunpack.c.l.b16 %v211
      %v895 = vunpack.c.h.b16 %v211
      %v896 = vunpack.c.l.b16 %v212
      %v897 = vunpack.c.h.b16 %v212
      %v898 = vunpack.c.l.b16 %v213
      %v899 = vunpack.c.h.b16 %v213
      %v900 = vunpack.c.l.b16 %v214
      %v901 = vunpack.c.h.b16 %v214
      %v902 = vunpack.c.l.b16 %v215
      %v903 = vunpack.c.h.b16 %v215
      %v904 = vunpack.c.l.b16 %v216
      %v905 = vunpack.c.h.b16 %v216
      %v906 = vunpack.c.l.b16 %v217
      %v907 = vunpack.c.h.b16 %v217
      %v908 = vunpack.c.l.b16 %v218
      %v909 = vunpack.c.h.b16 %v218
      %v910 = vunpack.c.l.b16 %v219
      %v911 = vunpack.c.h.b16 %v219
      %v912 = vunpack.c.l.b16 %v220
      %v913 = vunpack.c.h.b16 %v220
      %v914 = vunpack.c.l.b16 %v221
      %v915 = vunpack.c.h.b16 %v221
      %v916 = vunpack.c.l.b16 %v222
      %v917 = vunpack.c.h.b16 %v222
      %v918 = vunpack.c.l.b16 %v223
      %v919 = vunpack.c.h.b16 %v223
      %v920 = vunpack.c.l.b16 %v224
      %v921 = vunpack.c.h.b16 %v224
      %v922 = vunpack.c.l.b16 %v225
      %v923 = vunpack.c.h.b16 %v225
      %v924 = vunpack.c.l.b16 %v226
      %v925 = vunpack.c.h.b16 %v226
      %v926 = vunpack.c.l.b16 %v227
      %v927 = vunpack.c.h.b16 %v227
      %v928 = vunpack.c.l.b16 %v228
      %v929 = vunpack.c.h.b16 %v228
      %v930 = vunpack.c.l.b16 %v229
      %v931 = vunpack.c.h.b16 %v229
      %v932 = vunpack.c.l.b16 %v230
      %v933 = vunpack.c.h.b16 %v230
      %v934 = vunpack.c.l.b16 %v231
      %v935 = vunpack.c.h.b16 %v231
      %v936 = vunpack.c.l.b16 %v232
      %v937 = vunpack.c.h.b16 %v232
      %v938 = vunpack.c.l.b16 %v233
      %v939 = vunpack.c.h.b16 %v233
      %v940 = vunpack.c.l.b16 %v234
      %v941 = vunpack.c.h.b16 %v234
      %v942 = vunpack.c.l.b16 %v235
      %v943 = vunpack.c.h.b16 %v235
      %v944 = vunpack.c.l.b16 %v236
      %v945 = vunpack.c.h.b16 %v236
      %v946 = vunpack.c.l.b16 %v237
      %v947 = vunpack.c.h.b16 %v237
      %v948 = vunpack.c.l.b16 %v238
      %v949 = vunpack.c.h.b16 %v238
      %v950 = vunpack.c.l.b16 %v239
      %v951 = vunpack.c.h.b16 %v239
      %v952 = vunpack.c.l.b16 %v240
      %v953 = vunpack.c.h.b16 %v240
      %v954 = vunpack.c.l.b16 %v241
      %v955 = vunpack.c.h.b16 %v241
      %v956 = vunpack.c.l.b16 %v242
      %v957 = vunpack.c.h.b16 %v242
      %v958 = vunpack.c.l.b16 %v243
      %v959 = vunpack.c.h.b16 %v243
      %v960 = vunpack.c.l.b16 %v244
      %v961 = vunpack.c.h.b16 %v244
      %v962 = vunpack.c.l.b16 %v245
      %v963 = vunpack.c.h.b16 %v245
      %v964 = vunpack.c.l.b16 %v246
      %v965 = vunpack.c.h.b16 %v246
      %v966 = vunpack.c.l.b16 %v247
      %v967 = vunpack.c.h.b16 %v247
      %v968 = vunpack.c.l.b16 %v248
      %v969 = vunpack.c.h.b16 %v248
      %v970 = vunpack.c.l.b16 %v249
      %v971 = vunpack.c.h.b16 %v249
      %v972 = vunpack.c.l.b16 %v250
      %v973 = vunpack.c.h.b16 %v250
      %v974 = vunpack.c.l.b16 %v251
      %v975 = vunpack.c.h.b16 %v251
      %v976 = vunpack.c.l.b16 %v252
      %v977 = vunpack.c.h.b16 %v252
      %v978 = vunpack.c.l.b16 %v253
      %v979 = vunpack.c.h.b16 %v253
      %v980 = vunpack.c.l.b16 %v254
      %v981 = vunpack.c.h.b16 %v254
      %v982 = vunpack.c.l.b16 %v255
      %v983 = vunpack.c.h.b16 %v255
      %v984 = vunpack.c.l.b16 %v256
      %v985 = vunpack.c.h.b16 %v256
      %v986 = vunpack.c.l.b16 %v257
      %v987 = vunpack.c.h.b16 %v257
      %v988 = vunpack.c.l.b16 %v258
      %v989 = vunpack.c.h.b16 %v258
      %v990 = vunpack.c.l.b16 %v259
      %v991 = vunpack.c.h.b16 %v259
      %v992 = vunpack.c.l.b16 %v260
      %v993 = vunpack.c.h.b16 %v260
      %v994 = vunpack.c.l.b16 %v261
      %v995 = vunpack.c.h.b16 %v261
      %v996 = vunpack.c.l.b16 %v262
      %v997 = vunpack.c.h.b16 %v262
      %v998 = vunpack.c.l.b16 %v263
      %v999 = vunpack.c.h.b16 %v263
      %v1000 = vunpack.c.l.b16 %v264
      %v1001 = vunpack.c.h.b16 %v264
      %v1002 = vunpack.c.l.b16 %v265
      %v1003 = vunpack.c.h.b16 %v265
      %v1004 = vunpack.c.l.b16 %v266
      %v1005 = vunpack.c.h.b16 %v266
      %v1006 = vunpack.c.l.b16 %v267
      %v1007 = vunpack.c.h.b16 %v267
      %v1008 = vunpack.c.l.b16 %v268
      %v1009 = vunpack.c.h.b16 %v268
      %v1010 = vunpack.c.l.b16 %v269
      %v1011 = vunpack.c.h.b16 %v269
      %v1012 = vunpack.c.l.b16 %v270
      %v1013 = vunpack.c.h.b16 %v270
      %v1014 = vunpack.c.l.b16 %v271
      %v1015 = vunpack.c.h.b16 %v271
      %v1016 = vunpack.c.l.b16 %v272
      %v1017 = vunpack.c.h.b16 %v272
      %v1018 = vunpack.c.l.b16 %v273
      %v1019 = vunpack.c.h.b16 %v273
      %v1020 = vunpack.c.l.b16 %v274
      %v1021 = vunpack.c.h.b16 %v274
      %v1022 = vunpack.c.l.b16 %v275
      %v1023 = vunpack.c.h.b16 %v275
      %v1024 = vunpack.c.l.b16 %v276
      %v1025 = vunpack.c.h.b16 %v276
      %v1026 = vunpack.c.l.b16 %v277
      %v1027 = vunpack.c.h.b16 %v277
      %v1028 = vunpack.c.l.b16 %v278
      %v1029 = vunpack.c.h.b16 %v278
      %v1030 = vunpack.c.l.b16 %v279
      %v1031 = vunpack.c.h.b16 %v279
      %v1032 = vunpack.c.l.b16 %v280
      %v1033 = vunpack.c.h.b16 %v280
      %v1034 = vunpack.c.l.b16 %v281
      %v1035 = vunpack.c.h.b16 %v281
      %v1036 = vunpack.c.l.b16 %v282
      %v1037 = vunpack.c.h.b16 %v282
      %v1038 = vunpack.c.l.b16 %v283
      %v1039 = vunpack.c.h.b16 %v283
      %v1040 = vunpack.c.l.b16 %v284
      %v1041 = vunpack.c.h.b16 %v284
      %v1042 = vunpack.c.l.b16 %v285
      %v1043 = vunpack.c.h.b16 %v285
      %v1044 = vunpack.c.l.b16 %v286
      %v1045 = vunpack.c.h.b16 %v286
      %v1046 = vunpack.c.l.b16 %v287
      %v1047 = vunpack.c.h.b16 %v287
      %v1048 = vunpack.c.l.b16 %v288
      %v1049 = vunpack.c.h.b16 %v288
      %v1050 = vunpack.c.l.b16 %v289
      %v1051 = vunpack.c.h.b16 %v289
      %v1052 = vunpack.c.l.b16 %v290
      %v1053 = vunpack.c.h.b16 %v290
      %v1054 = vunpack.c.l.b16 %v291
      %v1055 = vunpack.c.h.b16 %v291
      %v1056 = vunpack.c.l.b16 %v292
      %v1057 = vunpack.c.h.b16 %v292
      %v1058 = vunpack.c.l.b16 %v293
      %v1059 = vunpack.c.h.b16 %v293
      %v1060 = vunpack.c.l.b16 %v294
      %v1061 = vunpack.c.h.b16 %v294
      %v1062 = vunpack.c.l.b16 %v295
      %v1063 = vunpack.c.h.b16 %v295
      %v1064 = vunpack.c.l.b16 %v296
      %v1065 = vunpack.c.h.b16 %v296
      %v1066 = vunpack.c.l.b16 %v297
      %v1067 = vunpack.c.h.b16 %v297
      %v1068 = vunpack.c.l.b16 %v298
      %v1069 = vunpack.c.h.b16 %v298
      %v1070 = vunpack.c.l.b16 %v299
      %v1071 = vunpack.c.h.b16 %v299
      %v1072 = vunpack.c.l.b16 %v300
      %v1073 = vunpack.c.h.b16 %v300
      %v1074 = vunpack.c.l.b16 %v301
      %v1075 = vunpack.c.h.b16 %v301
      %v1076 = vunpack.c.l.b16 %v302
      %v1077 = vunpack.c.h.b16 %v302
      %v1078 = vunpack.c.l.b16 %v303
      %v1079 = vunpack.c.h.b16 %v303
      %v1080 = vunpack.c.l.b16 %v304
      %v1081 = vunpack.c.h.b16 %v304
      %v1082 = vunpack.c.l.b16 %v305
      %v1083 = vunpack.c.h.b16 %v305
      %v1084 = vunpack.c.l.b16 %v306
      %v1085 = vunpack.c.h.b16 %v306
      %v1086 = vunpack.c.l.b16 %v307
      %v1087 = vunpack.c.h.b16 %v307
      %v1088 = vunpack.c.l.b16 %v308
      %v1089 = vunpack.c.h.b16 %v308
      %v1090 = vunpack.c.l.b16 %v309
      %v1091 = vunpack.c.h.b16 %v309
      %v1092 = vunpack.c.l.b16 %v310
      %v1093 = vunpack.c.h.b16 %v310
      %v1094 = vunpack.c.l.b16 %v311
      %v1095 = vunpack.c.h.b16 %v311
      %v1096 = vunpack.c.l.b16 %v312
      %v1097 = vunpack.c.h.b16 %v312
      %v1098 = vunpack.c.l.b16 %v313
      %v1099 = vunpack.c.h.b16 %v313
      %v1100 = vunpack.c.l.b16 %v314
      %v1101 = vunpack.c.h.b16 %v314
      %v1102 = vunpack.c.l.b16 %v315
      %v1103 = vunpack.c.h.b16 %v315
      %v1104 = vunpack.c.l.b16 %v316
      %v1105 = vunpack.c.h.b16 %v316
      %v1106 = vunpack.c.l.b16 %v317
      %v1107 = vunpack.c.h.b16 %v317
      %v1108 = vunpack.c.l.b16 %v318
      %v1109 = vunpack.c.h.b16 %v318
      %v1110 = vunpack.c.l.b16 %v319
      %v1111 = vunpack.c.h.b16 %v319
      %v1112 = vunpack.c.l.b16 %v320
      %v1113 = vunpack.c.h.b16 %v320
      %v1114 = vunpack.c.l.b16 %v321
      %v1115 = vunpack.c.h.b16 %v321
      %v1116 = vunpack.c.l.b16 %v322
      %v1117 = vunpack.c.h.b16 %v322
      %v1118 = vunpack.c.l.b16 %v323
      %v1119 = vunpack.c.h.b16 %v323
      %v1120 = vunpack.c.l.b16 %v324
      %v1121 = vunpack.c.h.b16 %v324
      %v1122 = vunpack.c.l.b16 %v325
      %v1123 = vunpack.c.h.b16 %v325
      %v1124 = vunpack.c.l.b16 %v326
      %v1125 = vunpack.c.h.b16 %v326
      %v1126 = vunpack.c.l.b16 %v327
      %v1127 = vunpack.c.h.b16 %v327
      %v1128 = vunpack.c.l.b16 %v328
      %v1129 = vunpack.c.h.b16 %v328
      %v1130 = vunpack.c.l.b16 %v329
      %v1131 = vunpack.c.h.b16 %v329
      %v1132 = vunpack.c.l.b16 %v330
      %v1133 = vunpack.c.h.b16 %v330
      %v1134 = vunpack.c.l.b16 %v331
      %v1135 = vunpack.c.h.b16 %v331
      %v1136 = vunpack.c.l.b16 %v332
      %v1137 = vunpack.c.h.b16 %v332
      %v1138 = vunpack.c.l.b16 %v333
      %v1139 = vunpack.c.h.b16 %v333
      %v1140 = vunpack.c.l.b16 %v334
      %v1141 = vunpack.c.h.b16 %v334
      %v1142 = vunpack.c.l.b16 %v335
      %v1143 = vunpack.c.h.b16 %v335
      %v1144 = vunpack.c.l.b16 %v336
      %v1145 = vunpack.c.h.b16 %v336
      %v1146 = vunpack.c.l.b16 %v337
      %v1147 = vunpack.c.h.b16 %v337
      %v1148 = vunpack.c.l.b16 %v338
      %v1149 = vunpack.c.h.b16 %v338
      %v1150 = vunpack.c.l.b16 %v339
      %v1151 = vunpack.c.h.b16 %v339
      %v1152 = vunpack.c.l.b16 %v340
      %v1153 = vunpack.c.h.b16 %v340
      %v1154 = vunpack.c.l.b16 %v341
      %v1155 = vunpack.c.h.b16 %v341
      %v1156 = vunpack.c.l.b16 %v342
      %v1157 = vunpack.c.h.b16 %v342
      %v1158 = vunpack.c.l.b16 %v343
      %v1159 = vunpack.c.h.b16 %v343
      %v1160 = vunpack.c.l.b16 %v344
      %v1161 = vunpack.c.h.b16 %v344
      %v1162 = vunpack.c.l.b16 %v345
      %v1163 = vunpack.c.h.b16 %v345
      %v1164 = vunpack.c.l.b16 %v346
      %v1165 = vunpack.c.h.b16 %v346
      %v1166 = vunpack.c.l.b16 %v347
      %v1167 = vunpack.c.h.b16 %v347
      %v1168 = vunpack.c.l.b16 %v348
      %v1169 = vunpack.c.h.b16 %v348
      %v1170 = vunpack.c.l.b16 %v349
      %v1171 = vunpack.c.h.b16 %v349
      %v1172 = vunpack.c.l.b16 %v350
      %v1173 = vunpack.c.h.b16 %v350
      %v1174 = vunpack.c.l.b16 %v351
      %v1175 = vunpack.c.h.b16 %v351
      %v1176 = vunpack.c.l.b16 %v352
      %v1177 = vunpack.c.h.b16 %v352
      %v1178 = vunpack.c.l.b16 %v353
      %v1179 = vunpack.c.h.b16 %v353
      %v1180 = vunpack.c.l.b16 %v354
      %v1181 = vunpack.c.h.b16 %v354
      %v1182 = vunpack.c.l.b16 %v355
      %v1183 = vunpack.c.h.b16 %v355
      %v1184 = vunpack.c.l.b16 %v356
      %v1185 = vunpack.c.h.b16 %v356
      %v1186 = vunpack.c.l.b16 %v357
      %v1187 = vunpack.c.h.b16 %v357
      %v1188 = vunpack.c.l.b16 %v358
      %v1189 = vunpack.c.h.b16 %v358
      %v1190 = vunpack.c.l.b16 %v359
      %v1191 = vunpack.c.h.b16 %v359
      %v1192 = vunpack.c.l.b16 %v360
      %v1193 = vunpack.c.h.b16 %v360
      %v1194 = vunpack.c.l.b16 %v361
      %v1195 = vunpack.c.h.b16 %v361
      %v1196 = vunpack.c.l.b16 %v362
      %v1197 = vunpack.c.h.b16 %v362
      %v1198 = vunpack.c.l.b16 %v363
      %v1199 = vunpack.c.h.b16 %v363
      %v1200 = vunpack.c.l.b16 %v364
      %v1201 = vunpack.c.h.b16 %v364
      %v1202 = vunpack.c.l.b16 %v365
      %v1203 = vunpack.c.h.b16 %v365
      %v1204 = vunpack.c.l.b16 %v366
      %v1205 = vunpack.c.h.b16 %v366
      %v1206 = vunpack.c.l.b16 %v367
      %v1207 = vunpack.c.h.b16 %v367
      %v1208 = vpack.c.b16 %v782, %v776
      %v1209 = vpack.c.b16 %v783, %v777
      %v1210 = vpack.c.b16 %v784, %v778
      %v1211 = vpack.c.b16 %v785, %v779
      %v1212 = vpack.c.b16 %v786, %v780
      %v1213 = vpack.c.b16 %v787, %v781
      %v1214 = vpack.c.b16 %v794, %v788
      %v1215 = vpack.c.b16 %v795, %v789
      %v1216 = vpack.c.b16 %v796, %v790
      %v1217 = vpack.c.b16 %v797, %v791
      %v1218 = vpack.c.b16 %v798, %v792
      %v1219 = vpack.c.b16 %v799, %v793
      %v1220 = vpack.c.b16 %v806, %v800
      %v1221 = vpack.c.b16 %v807, %v801
      %v1222 = vpack.c.b16 %v808, %v802
      %v1223 = vpack.c.b16 %v809, %v803
      %v1224 = vpack.c.b16 %v810, %v804
      %v1225 = vpack.c.b16 %v811, %v805
      %v1226 = vpack.c.b16 %v818, %v812
      %v1227 = vpack.c.b16 %v819, %v813
      %v1228 = vpack.c.b16 %v820, %v814
      %v1229 = vpack.c.b16 %v821, %v815
      %v1230 = vpack.c.b16 %v822, %v816
      %v1231 = vpack.c.b16 %v823, %v817
      %v1232 = vpack.c.b16 %v830, %v824
      %v1233 = vpack.c.b16 %v831, %v825
      %v1234 = vpack.c.b16 %v832, %v826
      %v1235 = vpack.c.b16 %v833, %v827
      %v1236 = vpack.c.b16 %v834, %v828
      %v1237 = vpack.c.b16 %v835, %v829
      %v1238 = vpack.c.b16 %v842, %v836
      %v1239 = vpack.c.b16 %v843, %v837
      %v1240 = vpack.c.b16 %v844, %v838
      %v1241 = vpack.c.b16 %v845, %v839
      %v1242 = vpack.c.b16 %v846, %v840
      %v1243 = vpack.c.b16 %v847, %v841
      %v1244 = vpack.c.b16 %v854, %v848
      %v1245 = vpack.c.b16 %v855, %v849
      %v1246 = vpack.c.b16 %v856, %v850
      %v1247 = vpack.c.b16 %v857, %v851
      %v1248 = vpack.c.b16 %v858, %v852
      %v1249 = vpack.c.b16 %v859, %v853
      %v1250 = vpack.c.b16 %v866, %v860
      %v1251 = vpack.c.b16 %v867, %v861
      %v1252 = vpack.c.b16 %v868, %v862
      %v1253 = vpack.c.b16 %v869, %v863
      %v1254 = vpack.c.b16 %v870, %v864
      %v1255 = vpack.c.b16 %v871, %v865
      %v1256 = vpack.c.b16 %v878, %v872
      %v1257 = vpack.c.b16 %v879, %v873
      %v1258 = vpack.c.b16 %v880, %v874
      %v1259 = vpack.c.b16 %v881, %v875
      %v1260 = vpack.c.b16 %v882, %v876
      %v1261 = vpack.c.b16 %v883, %v877
      %v1262 = vpack.c.b16 %v890, %v884
      %v1263 = vpack.c.b16 %v891, %v885
      %v1264 = vpack.c.b16 %v892, %v886
      %v1265 = vpack.c.b16 %v893, %v887
      %v1266 = vpack.c.b16 %v894, %v888
      %v1267 = vpack.c.b16 %v895, %v889
      %v1268 = vpack.c.b16 %v902, %v896
      %v1269 = vpack.c.b16 %v903, %v897
      %v1270 = vpack.c.b16 %v904, %v898
      %v1271 = vpack.c.b16 %v905, %v899
      %v1272 = vpack.c.b16 %v906, %v900
      %v1273 = vpack.c.b16 %v907, %v901
      %v1274 = vpack.c.b16 %v914, %v908
      %v1275 = vpack.c.b16 %v915, %v909
      %v1276 = vpack.c.b16 %v916, %v910
      %v1277 = vpack.c.b16 %v917, %v911
      %v1278 = vpack.c.b16 %v918, %v912
      %v1279 = vpack.c.b16 %v919, %v913
      %v1280 = vpack.c.b16 %v926, %v920
      %v1281 = vpack.c.b16 %v927, %v921
      %v1282 = vpack.c.b16 %v928, %v922
      %v1283 = vpack.c.b16 %v929, %v923
      %v1284 = vpack.c.b16 %v930, %v924
      %v1285 = vpack.c.b16 %v931, %v925
      %v1286 = vpack.c.b16 %v938, %v932
      %v1287 = vpack.c.b16 %v939, %v933
      %v1288 = vpack.c.b16 %v940, %v934
      %v1289 = vpack.c.b16 %v941, %v935
      %v1290 = vpack.c.b16 %v942, %v936
      %v1291 = vpack.c.b16 %v943, %v937
      %v1292 = vpack.c.b16 %v950, %v944
      %v1293 = vpack.c.b16 %v951, %v945
      %v1294 = vpack.c.b16 %v952, %v946
      %v1295 = vpack.c.b16 %v953, %v947
      %v1296 = vpack.c.b16 %v954, %v948
      %v1297 = vpack.c.b16 %v955, %v949
      %v1298 = vpack.c.b16 %v962, %v956
      %v1299 = vpack.c.b16 %v963, %v957
      %v1300 = vpack.c.b16 %v964, %v958
      %v1301 = vpack.c.b16 %v965, %v959
      %v1302 = vpack.c.b16 %v966, %v960
      %v1303 = vpack.c.b16 %v967, %v961
      %v1304 = vpack.c.b16 %v974, %v968
      %v1305 = vpack.c.b16 %v975, %v969
      %v1306 = vpack.c.b16 %v976, %v970
      %v1307 = vpack.c.b16 %v977, %v971
      %v1308 = vpack.c.b16 %v978, %v972
      %v1309 = vpack.c.b16 %v979, %v973
      %v1310 = vpack.c.b16 %v986, %v980
      %v1311 = vpack.c.b16 %v987, %v981
      %v1312 = vpack.c.b16 %v988, %v982
      %v1313 = vpack.c.b16 %v989, %v983
      %v1314 = vpack.c.b16 %v990, %v984
      %v1315 = vpack.c.b16 %v991, %v985
      %v1316 = vpack.c.b16 %v998, %v992
      %v1317 = vpack.c.b16 %v999, %v993
      %v1318 = vpack.c.b16 %v1000, %v994
      %v1319 = vpack.c.b16 %v1001, %v995
      %v1320 = vpack.c.b16 %v1002, %v996
      %v1321 = vpack.c.b16 %v1003, %v997
      %v1322 = vpack.c.b16 %v1010, %v1004
      %v1323 = vpack.c.b16 %v1011, %v1005
      %v1324 = vpack.c.b16 %v1012, %v1006
      %v1325 = vpack.c.b16 %v1013, %v1007
      %v1326 = vpack.c.b16 %v1014, %v1008
      %v1327 = vpack.c.b16 %v1015, %v1009
      %v1328 = vpack.c.b16 %v1022, %v1016
      %v1329 = vpack.c.b16 %v1023, %v1017
      %v1330 = vpack.c.b16 %v1024, %v1018
      %v1331 = vpack.c.b16 %v1025, %v1019
      %v1332 = vpack.c.b16 %v1026, %v1020
      %v1333 = vpack.c.b16 %v1027, %v1021
      %v1334 = vpack.c.b16 %v1034, %v1028
      %v1335 = vpack.c.b16 %v1035, %v1029
      %v1336 = vpack.c.b16 %v1036, %v1030
      %v1337 = vpack.c.b16 %v1037, %v1031
      %v1338 = vpack.c.b16 %v1038, %v1032
      %v1339 = vpack.c.b16 %v1039, %v1033
      %v1340 = vpack.c.b16 %v1046, %v1040
      %v1341 = vpack.c.b16 %v1047, %v1041
      %v1342 = vpack.c.b16 %v1048, %v1042
      %v1343 = vpack.c.b16 %v1049, %v1043
      %v1344 = vpack.c.b16 %v1050, %v1044
      %v1345 = vpack.c.b16 %v1051, %v1045
      %v1346 = vpack.c.b16 %v1058, %v1052
      %v1347 = vpack.c.b16 %v1059, %v1053
      %v1348 = vpack.c.b16 %v1060, %v1054
      %v1349 = vpack.c.b16 %v1061, %v1055
      %v1350 = vpack.c.b16 %v1062, %v1056
      %v1351 = vpack.c.b16 %v1063, %v1057
      %v1352 = vpack.c.b16 %v1070, %v1064
      %v1353 = vpack.c.b16 %v1071, %v1065
      %v1354 = vpack.c.b16 %v1072, %v1066
      %v1355 = vpack.c.b16 %v1073, %v1067
      %v1356 = vpack.c.b16 %v1074, %v1068
      %v1357 = vpack.c.b16 %v1075, %v1069
      %v1358 = vpack.c.b16 %v1082, %v1076
      %v1359 = vpack.c.b16 %v1083, %v1077
      %v1360 = vpack.c.b16 %v1084, %v1078
      %v1361 = vpack.c.b16 %v1085, %v1079
      %v1362 = vpack.c.b16 %v1086, %v1080
      %v1363 = vpack.c.b16 %v1087, %v1081
      %v1364 = vpack.c.b16 %v1094, %v1088
      %v1365 = vpack.c.b16 %v1095, %v1089
      %v1366 = vpack.c.b16 %v1096, %v1090
      %v1367 = vpack.c.b16 %v1097, %v1091
      %v1368 = vpack.c.b16 %v1098, %v1092
      %v1369 = vpack.c.b16 %v1099, %v1093
      %v1370 = vpack.c.b16 %v1106, %v1100
      %v1371 = vpack.c.b16 %v1107, %v1101
      %v1372 = vpack.c.b16 %v1108, %v1102
      %v1373 = vpack.c.b16 %v1109, %v1103
      %v1374 = vpack.c.b16 %v1110, %v1104
      %v1375 = vpack.c.b16 %v1111, %v1105
      %v1376 = vpack.c.b16 %v1118, %v1112
      %v1377 = vpack.c.b16 %v1119, %v1113
      %v1378 = vpack.c.b16 %v1120, %v1114
      %v1379 = vpack.c.b16 %v1121, %v1115
      %v1380 = vpack.c.b16 %v1122, %v1116
      %v1381 = vpack.c.b16 %v1123, %v1117
      %v1382 = vpack.c.b16 %v1130, %v1124
      %v1383 = vpack.c.b16 %v1131, %v1125
      %v1384 = vpack.c.b16 %v1132, %v1126
      %v1385 = vpack.c.b16 %v1133, %v1127
      %v1386 = vpack.c.b16 %v1134, %v1128
      %v1387 = vpack.c.b16 %v1135, %v1129
      %v1388 = vpack.c.b16 %v1142, %v1136
      %v1389 = vpack.c.b16 %v1143, %v1137
      %v1390 = vpack.c.b16 %v1144, %v1138
      %v1391 = vpack.c.b16 %v1145, %v1139
      %v1392 = vpack.c.b16 %v1146, %v1140
      %v1393 = vpack.c.b16 %v1147, %v1141
      %v1394 = vpack.c.b16 %v1154, %v1148
      %v1395 = vpack.c.b16 %v1155, %v1149
      %v1396 = vpack.c.b16 %v1156, %v1150
      %v1397 = vpack.c.b16 %v1157, %v1151
      %v1398 = vpack.c.b16 %v1158, %v1152
      %v1399 = vpack.c.b16 %v1159, %v1153
      %v1400 = vpack.c.b16 %v1166, %v1160
      %v1401 = vpack.c.b16 %v1167, %v1161
      %v1402 = vpack.c.b16 %v1168, %v1162
      %v1403 = vpack.c.b16 %v1169, %v1163
      %v1404 = vpack.c.b16 %v1170, %v1164
      %v1405 = vpack.c.b16 %v1171, %v1165
      %v1406 = vpack.c.b16 %v1178, %v1172
      %v1407 = vpack.c.b16 %v1179, %v1173
      %v1408 = vpack.c.b16 %v1180, %v1174
      %v1409 = vpack.c.b16 %v1181, %v1175
      %v1410 = vpack.c.b16 %v1182, %v1176
      %v1411 = vpack.c.b16 %v1183, %v1177
      %v1412 = vpack.c.b16 %v1190, %v1184
      %v1413 = vpack.c.b16 %v1191, %v1185
      %v1414 = vpack.c.b16 %v1192, %v1186
      %v1415 = vpack.c.b16 %v1193, %v1187
      %v1416 = vpack.c.b16 %v1194, %v1188
      %v1417 = vpack.c.b16 %v1195, %v1189
      %v1418 = vpack.c.b16 %v1202, %v1196
      %v1419 = vpack.c.b16 %v1203, %v1197
      %v1420 = vpack.c.b16 %v1204, %v1198
      %v1421 = vpack.c.b16 %v1205, %v1199
      %v1422 = vpack.c.b16 %v1206, %v1200
      %v1423 = vpack.c.b16 %v1207, %v1201
      %v1832 = vunpack.c.l.b16 %v368
      %v1833 = vunpack.c.h.b16 %v368
      %v1834 = vunpack.c.l.b16 %v369
      %v1835 = vunpack.c.h.b16 %v369
      %v1836 = vunpack.c.l.b16 %v370
      %v1837 = vunpack.c.h.b16 %v370
      %v1838 = vunpack.c.l.b16 %v371
      %v1839 = vunpack.c.h.b16 %v371
      %v1840 = vunpack.c.l.b16 %v372
      %v1841 = vunpack.c.h.b16 %v372
      %v1842 = vunpack.c.l.b16 %v373
      %v1843 = vunpack.c.h.b16 %v373
      %v1844 = vunpack.c.l.b16 %v374
      %v1845 = vunpack.c.h.b16 %v374
      %v1846 = vunpack.c.l.b16 %v375
      %v1847 = vunpack.c.h.b16 %v375
      %v1848 = vunpack.c.l.b16 %v376
      %v1849 = vunpack.c.h.b16 %v376
      %v1850 = vunpack.c.l.b16 %v377
      %v1851 = vunpack.c.h.b16 %v377
      %v1852 = vunpack.c.l.b16 %v378
      %v1853 = vunpack.c.h.b16 %v378
      %v1854 = vunpack.c.l.b16 %v379
      %v1855 = vunpack.c.h.b16 %v379
      %v1856 = vunpack.c.l.b16 %v380
      %v1857 = vunpack.c.h.b16 %v380
      %v1858 = vunpack.c.l.b16 %v381
      %v1859 = vunpack.c.h.b16 %v381
      %v1860 = vunpack.c.l.b16 %v382
      %v1861 = vunpack.c.h.b16 %v382
      %v1862 = vunpack.c.l.b16 %v383
      %v1863 = vunpack.c.h.b16 %v383
      %v1864 = vunpack.c.l.b16 %v384
      %v1865 = vunpack.c.h.b16 %v384
      %v1866 = vunpack.c.l.b16 %v385
      %v1867 = vunpack.c.h.b16 %v385
      %v1868 = vunpack.c.l.b16 %v386
      %v1869 = vunpack.c.h.b16 %v386
      %v1870 = vunpack.c.l.b16 %v387
      %v1871 = vunpack.c.h.b16 %v387
      %v1872 = vunpack.c.l.b16 %v388
      %v1873 = vunpack.c.h.b16 %v388
      %v1874 = vunpack.c.l.b16 %v389
      %v1875 = vunpack.c.h.b16 %v389
      %v1876 = vunpack.c.l.b16 %v390
      %v1877 = vunpack.c.h.b16 %v390
      %v1878 = vunpack.c.l.b16 %v391
      %v1879 = vunpack.c.h.b16 %v391
      %v1880 = vunpack.c.l.b16 %v392
      %v1881 = vunpack.c.h.b16 %v392
      %v1882 = vunpack.c.l.b16 %v393
      %v1883 = vunpack.c.h.b16 %v393
      %v1884 = vunpack.c.l.b16 %v394
      %v1885 = vunpack.c.h.b16 %v394
      %v1886 = vunpack.c.l.b16 %v395
      %v1887 = vunpack.c.h.b16 %v395
      %v1888 = vunpack.c.l.b16 %v396
      %v1889 = vunpack.c.h.b16 %v396
      %v1890 = vunpack.c.l.b16 %v397
      %v1891 = vunpack.c.h.b16 %v397
      %v1892 = vunpack.c.l.b16 %v398
      %v1893 = vunpack.c.h.b16 %v398
      %v1894 = vunpack.c.l.b16 %v399
      %v1895 = vunpack.c.h.b16 %v399
      %v1896 = vunpack.c.l.b16 %v400
      %v1897 = vunpack.c.h.b16 %v400
      %v1898 = vunpack.c.l.b16 %v401
      %v1899 = vunpack.c.h.b16 %v401
      %v1900 = vunpack.c.l.b16 %v402
      %v1901 = vunpack.c.h.b16 %v402
      %v1902 = vunpack.c.l.b16 %v403
      %v1903 = vunpack.c.h.b16 %v403
      %v1904 = vunpack.c.l.b16 %v404
      %v1905 = vunpack.c.h.b16 %v404
      %v1906 = vunpack.c.l.b16 %v405
      %v1907 = vunpack.c.h.b16 %v405
      %v1908 = vunpack.c.l.b16 %v406
      %v1909 = vunpack.c.h.b16 %v406
      %v1910 = vunpack.c.l.b16 %v407
      %v1911 = vunpack.c.h.b16 %v407
      %v1912 = vunpack.c.l.b16 %v408
      %v1913 = vunpack.c.h.b16 %v408
      %v1914 = vunpack.c.l.b16 %v409
      %v1915 = vunpack.c.h.b16 %v409
      %v1916 = vunpack.c.l.b16 %v410
      %v1917 = vunpack.c.h.b16 %v410
      %v1918 = vunpack.c.l.b16 %v411
      %v1919 = vunpack.c.h.b16 %v411
      %v1920 = vunpack.c.l.b16 %v412
      %v1921 = vunpack.c.h.b16 %v412
      %v1922 = vunpack.c.l.b16 %v413
      %v1923 = vunpack.c.h.b16 %v413
      %v1924 = vunpack.c.l.b16 %v414
      %v1925 = vunpack.c.h.b16 %v414
      %v1926 = vunpack.c.l.b16 %v415
      %v1927 = vunpack.c.h.b16 %v415
      %v1928 = vunpack.c.l.b16 %v416
      %v1929 = vunpack.c.h.b16 %v416
      %v1930 = vunpack.c.l.b16 %v417
      %v1931 = vunpack.c.h.b16 %v417
      %v1932 = vunpack.c.l.b16 %v418
      %v1933 = vunpack.c.h.b16 %v418
      %v1934 = vunpack.c.l.b16 %v419
      %v1935 = vunpack.c.h.b16 %v419
      %v1936 = vunpack.c.l.b16 %v420
      %v1937 = vunpack.c.h.b16 %v420
      %v1938 = vunpack.c.l.b16 %v421
      %v1939 = vunpack.c.h.b16 %v421
      %v1940 = vunpack.c.l.b16 %v422
      %v1941 = vunpack.c.h.b16 %v422
      %v1942 = vunpack.c.l.b16 %v423
      %v1943 = vunpack.c.h.b16 %v423
      %v1944 = vunpack.c.l.b16 %v424
      %v1945 = vunpack.c.h.b16 %v424
      %v1946 = vunpack.c.l.b16 %v425
      %v1947 = vunpack.c.h.b16 %v425
      %v1948 = vunpack.c.l.b16 %v426
      %v1949 = vunpack.c.h.b16 %v426
      %v1950 = vunpack.c.l.b16 %v427
      %v1951 = vunpack.c.h.b16 %v427
      %v1952 = vunpack.c.l.b16 %v428
      %v1953 = vunpack.c.h.b16 %v428
      %v1954 = vunpack.c.l.b16 %v429
      %v1955 = vunpack.c.h.b16 %v429
      %v1956 = vunpack.c.l.b16 %v430
      %v1957 = vunpack.c.h.b16 %v430
      %v1958 = vunpack.c.l.b16 %v431
      %v1959 = vunpack.c.h.b16 %v431
      %v1960 = vunpack.c.l.b16 %v432
      %v1961 = vunpack.c.h.b16 %v432
      %v1962 = vunpack.c.l.b16 %v433
      %v1963 = vunpack.c.h.b16 %v433
      %v1964 = vunpack.c.l.b16 %v434
      %v1965 = vunpack.c.h.b16 %v434
      %v1966 = vunpack.c.l.b16 %v435
      %v1967 = vunpack.c.h.b16 %v435
      %v1968 = vunpack.c.l.b16 %v436
      %v1969 = vunpack.c.h.b16 %v436
      %v1970 = vunpack.c.l.b16 %v437
      %v1971 = vunpack.c.h.b16 %v437
      %v1972 = vunpack.c.l.b16 %v438
      %v1973 = vunpack.c.h.b16 %v438
      %v1974 = vunpack.c.l.b16 %v439
      %v1975 = vunpack.c.h.b16 %v439
      %v1976 = vunpack.c.l.b16 %v440
      %v1977 = vunpack.c.h.b16 %v440
      %v1978 = vunpack.c.l.b16 %v441
      %v1979 = vunpack.c.h.b16 %v441
      %v1980 = vunpack.c.l.b16 %v442
      %v1981 = vunpack.c.h.b16 %v442
      %v1982 = vunpack.c.l.b16 %v443
      %v1983 = vunpack.c.h.b16 %v443
      %v1984 = vunpack.c.l.b16 %v444
      %v1985 = vunpack.c.h.b16 %v444
      %v1986 = vunpack.c.l.b16 %v445
      %v1987 = vunpack.c.h.b16 %v445
      %v1988 = vunpack.c.l.b16 %v446
      %v1989 = vunpack.c.h.b16 %v446
      %v1990 = vunpack.c.l.b16 %v447
      %v1991 = vunpack.c.h.b16 %v447
      %v1992 = vunpack.c.l.b16 %v448
      %v1993 = vunpack.c.h.b16 %v448
      %v1994 = vunpack.c.l.b16 %v449
      %v1995 = vunpack.c.h.b16 %v449
      %v1996 = vunpack.c.l.b16 %v450
      %v1997 = vunpack.c.h.b16 %v450
      %v1998 = vunpack.c.l.b16 %v451
      %v1999 = vunpack.c.h.b16 %v451
      %v2000 = vunpack.c.l.b16 %v452
      %v2001 = vunpack.c.h.b16 %v452
      %v2002 = vunpack.c.l.b16 %v453
      %v2003 = vunpack.c.h.b16 %v453
      %v2004 = vunpack.c.l.b16 %v454
      %v2005 = vunpack.c.h.b16 %v454
      %v2006 = vunpack.c.l.b16 %v455
      %v2007 = vunpack.c.h.b16 %v455
      %v2008 = vunpack.c.l.b16 %v456
      %v2009 = vunpack.c.h.b16 %v456
      %v2010 = vunpack.c.l.b16 %v457
      %v2011 = vunpack.c.h.b16 %v457
      %v2012 = vunpack.c.l.b16 %v458
      %v2013 = vunpack.c.h.b16 %v458
      %v2014 = vunpack.c.l.b16 %v459
      %v2015 = vunpack.c.h.b16 %v459
      %v2016 = vunpack.c.l.b16 %v460
      %v2017 = vunpack.c.h.b16 %v460
      %v2018 = vunpack.c.l.b16 %v461
      %v2019 = vunpack.c.h.b16 %v461
      %v2020 = vunpack.c.l.b16 %v462
      %v2021 = vunpack.c.h.b16 %v462
      %v2022 = vunpack.c.l.b16 %v463
      %v2023 = vunpack.c.h.b16 %v463
      %v2024 = vunpack.c.l.b16 %v464
      %v2025 = vunpack.c.h.b16 %v464
      %v2026 = vunpack.c.l.b16 %v465
      %v2027 = vunpack.c.h.b16 %v465
      %v2028 = vunpack.c.l.b16 %v466
      %v2029 = vunpack.c.h.b16 %v466
      %v2030 = vunpack.c.l.b16 %v467
      %v2031 = vunpack.c.h.b16 %v467
      %v2032 = vunpack.c.l.b16 %v468
      %v2033 = vunpack.c.h.b16 %v468
      %v2034 = vunpack.c.l.b16 %v469
      %v2035 = vunpack.c.h.b16 %v469
      %v2036 = vunpack.c.l.b16 %v470
      %v2037 = vunpack.c.h.b16 %v470
      %v2038 = vunpack.c.l.b16 %v471
      %v2039 = vunpack.c.h.b16 %v471
      %v2040 = vunpack.c.l.b16 %v472
      %v2041 = vunpack.c.h.b16 %v472
      %v2042 = vunpack.c.l.b16 %v473
      %v2043 = vunpack.c.h.b16 %v473
      %v2044 = vunpack.c.l.b16 %v474
      %v2045 = vunpack.c.h.b16 %v474
      %v2046 = vunpack.c.l.b16 %v475
      %v2047 = vunpack.c.h.b16 %v475
      %v2048 = vunpack.c.l.b16 %v476
      %v2049 = vunpack.c.h.b16 %v476
      %v2050 = vunpack.c.l.b16 %v477
      %v2051 = vunpack.c.h.b16 %v477
      %v2052 = vunpack.c.l.b16 %v478
      %v2053 = vunpack.c.h.b16 %v478
      %v2054 = vunpack.c.l.b16 %v479
      %v2055 = vunpack.c.h.b16 %v479
      %v2056 = vunpack.c.l.b16 %v480
      %v2057 = vunpack.c.h.b16 %v480
      %v2058 = vunpack.c.l.b16 %v481
      %v2059 = vunpack.c.h.b16 %v481
      %v2060 = vunpack.c.l.b16 %v482
      %v2061 = vunpack.c.h.b16 %v482
      %v2062 = vunpack.c.l.b16 %v483
      %v2063 = vunpack.c.h.b16 %v483
      %v2064 = vunpack.c.l.b16 %v484
      %v2065 = vunpack.c.h.b16 %v484
      %v2066 = vunpack.c.l.b16 %v485
      %v2067 = vunpack.c.h.b16 %v485
      %v2068 = vunpack.c.l.b16 %v486
      %v2069 = vunpack.c.h.b16 %v486
      %v2070 = vunpack.c.l.b16 %v487
      %v2071 = vunpack.c.h.b16 %v487
      %v2072 = vunpack.c.l.b16 %v488
      %v2073 = vunpack.c.h.b16 %v488
      %v2074 = vunpack.c.l.b16 %v489
      %v2075 = vunpack.c.h.b16 %v489
      %v2076 = vunpack.c.l.b16 %v490
      %v2077 = vunpack.c.h.b16 %v490
      %v2078 = vunpack.c.l.b16 %v491
      %v2079 = vunpack.c.h.b16 %v491
      %v2080 = vunpack.c.l.b16 %v492
      %v2081 = vunpack.c.h.b16 %v492
      %v2082 = vunpack.c.l.b16 %v493
      %v2083 = vunpack.c.h.b16 %v493
      %v2084 = vunpack.c.l.b16 %v494
      %v2085 = vunpack.c.h.b16 %v494
      %v2086 = vunpack.c.l.b16 %v495
      %v2087 = vunpack.c.h.b16 %v495
      %v2088 = vunpack.c.l.b16 %v496
      %v2089 = vunpack.c.h.b16 %v496
      %v2090 = vunpack.c.l.b16 %v497
      %v2091 = vunpack.c.h.b16 %v497
      %v2092 = vunpack.c.l.b16 %v498
      %v2093 = vunpack.c.h.b16 %v498
      %v2094 = vunpack.c.l.b16 %v499
      %v2095 = vunpack.c.h.b16 %v499
      %v2096 = vunpack.c.l.b16 %v500
      %v2097 = vunpack.c.h.b16 %v500
      %v2098 = vunpack.c.l.b16 %v501
      %v2099 = vunpack.c.h.b16 %v501
      %v2100 = vunpack.c.l.b16 %v502
      %v2101 = vunpack.c.h.b16 %v502
      %v2102 = vunpack.c.l.b16 %v503
      %v2103 = vunpack.c.h.b16 %v503
      %v2104 = vunpack.c.l.b16 %v504
      %v2105 = vunpack.c.h.b16 %v504
      %v2106 = vunpack.c.l.b16 %v505
      %v2107 = vunpack.c.h.b16 %v505
      %v2108 = vunpack.c.l.b16 %v506
      %v2109 = vunpack.c.h.b16 %v506
      %v2110 = vunpack.c.l.b16 %v507
      %v2111 = vunpack.c.h.b16 %v507
      %v2112 = vunpack.c.l.b16 %v508
      %v2113 = vunpack.c.h.b16 %v508
      %v2114 = vunpack.c.l.b16 %v509
      %v2115 = vunpack.c.h.b16 %v509
      %v2116 = vunpack.c.l.b16 %v510
      %v2117 = vunpack.c.h.b16 %v510
      %v2118 = vunpack.c.l.b16 %v511
      %v2119 = vunpack.c.h.b16 %v511
      %v2120 = vunpack.c.l.b16 %v512
      %v2121 = vunpack.c.h.b16 %v512
      %v2122 = vunpack.c.l.b16 %v513
      %v2123 = vunpack.c.h.b16 %v513
      %v2124 = vunpack.c.l.b16 %v514
      %v2125 = vunpack.c.h.b16 %v514
      %v2126 = vunpack.c.l.b16 %v515
      %v2127 = vunpack.c.h.b16 %v515
      %v2128 = vunpack.c.l.b16 %v516
      %v2129 = vunpack.c.h.b16 %v516
      %v2130 = vunpack.c.l.b16 %v517
      %v2131 = vunpack.c.h.b16 %v517
      %v2132 = vunpack.c.l.b16 %v518
      %v2133 = vunpack.c.h.b16 %v518
      %v2134 = vunpack.c.l.b16 %v519
      %v2135 = vunpack.c.h.b16 %v519
      %v2136 = vunpack.c.l.b16 %v520
      %v2137 = vunpack.c.h.b16 %v520
      %v2138 = vunpack.c.l.b16 %v521
      %v2139 = vunpack.c.h.b16 %v521
      %v2140 = vunpack.c.l.b16 %v522
      %v2141 = vunpack.c.h.b16 %v522
      %v2142 = vunpack.c.l.b16 %v523
      %v2143 = vunpack.c.h.b16 %v523
      %v2144 = vunpack.c.l.b16 %v524
      %v2145 = vunpack.c.h.b16 %v524
      %v2146 = vunpack.c.l.b16 %v525
      %v2147 = vunpack.c.h.b16 %v525
      %v2148 = vunpack.c.l.b16 %v526
      %v2149 = vunpack.c.h.b16 %v526
      %v2150 = vunpack.c.l.b16 %v527
      %v2151 = vunpack.c.h.b16 %v527
      %v2152 = vunpack.c.l.b16 %v528
      %v2153 = vunpack.c.h.b16 %v528
      %v2154 = vunpack.c.l.b16 %v529
      %v2155 = vunpack.c.h.b16 %v529
      %v2156 = vunpack.c.l.b16 %v530
      %v2157 = vunpack.c.h.b16 %v530
      %v2158 = vunpack.c.l.b16 %v531
      %v2159 = vunpack.c.h.b16 %v531
      %v2160 = vunpack.c.l.b16 %v532
      %v2161 = vunpack.c.h.b16 %v532
      %v2162 = vunpack.c.l.b16 %v533
      %v2163 = vunpack.c.h.b16 %v533
      %v2164 = vunpack.c.l.b16 %v534
      %v2165 = vunpack.c.h.b16 %v534
      %v2166 = vunpack.c.l.b16 %v535
      %v2167 = vunpack.c.h.b16 %v535
      %v2168 = vunpack.c.l.b16 %v536
      %v2169 = vunpack.c.h.b16 %v536
      %v2170 = vunpack.c.l.b16 %v537
      %v2171 = vunpack.c.h.b16 %v537
      %v2172 = vunpack.c.l.b16 %v538
      %v2173 = vunpack.c.h.b16 %v538
      %v2174 = vunpack.c.l.b16 %v539
      %v2175 = vunpack.c.h.b16 %v539
      %v2176 = vunpack.c.l.b16 %v540
      %v2177 = vunpack.c.h.b16 %v540
      %v2178 = vunpack.c.l.b16 %v541
      %v2179 = vunpack.c.h.b16 %v541
      %v2180 = vunpack.c.l.b16 %v542
      %v2181 = vunpack.c.h.b16 %v542
      %v2182 = vunpack.c.l.b16 %v543
      %v2183 = vunpack.c.h.b16 %v543
      %v2184 = vunpack.c.l.b16 %v544
      %v2185 = vunpack.c.h.b16 %v544
      %v2186 = vunpack.c.l.b16 %v545
      %v2187 = vunpack.c.h.b16 %v545
      %v2188 = vunpack.c.l.b16 %v546
      %v2189 = vunpack.c.h.b16 %v546
      %v2190 = vunpack.c.l.b16 %v547
      %v2191 = vunpack.c.h.b16 %v547
      %v2192 = vunpack.c.l.b16 %v548
      %v2193 = vunpack.c.h.b16 %v548
      %v2194 = vunpack.c.l.b16 %v549
      %v2195 = vunpack.c.h.b16 %v549
      %v2196 = vunpack.c.l.b16 %v550
      %v2197 = vunpack.c.h.b16 %v550
      %v2198 = vunpack.c.l.b16 %v551
      %v2199 = vunpack.c.h.b16 %v551
      %v2200 = vunpack.c.l.b16 %v552
      %v2201 = vunpack.c.h.b16 %v552
      %v2202 = vunpack.c.l.b16 %v553
      %v2203 = vunpack.c.h.b16 %v553
      %v2204 = vunpack.c.l.b16 %v554
      %v2205 = vunpack.c.h.b16 %v554
      %v2206 = vunpack.c.l.b16 %v555
      %v2207 = vunpack.c.h.b16 %v555
      %v2208 = vunpack.c.l.b16 %v556
      %v2209 = vunpack.c.h.b16 %v556
      %v2210 = vunpack.c.l.b16 %v557
      %v2211 = vunpack.c.h.b16 %v557
      %v2212 = vunpack.c.l.b16 %v558
      %v2213 = vunpack.c.h.b16 %v558
      %v2214 = vunpack.c.l.b16 %v559
      %v2215 = vunpack.c.h.b16 %v559
      %v2216 = vpack.c.b16 %v1836, %v1832
      %v2217 = vpack.c.b16 %v1837, %v1833
      %v2218 = vpack.c.b16 %v1838, %v1834
      %v2219 = vpack.c.b16 %v1839, %v1835
      %v2220 = vpack.c.b16 %v1844, %v1840
      %v2221 = vpack.c.b16 %v1845, %v1841
      %v2222 = vpack.c.b16 %v1846, %v1842
      %v2223 = vpack.c.b16 %v1847, %v1843
      %v2224 = vpack.c.b16 %v1852, %v1848
      %v2225 = vpack.c.b16 %v1853, %v1849
      %v2226 = vpack.c.b16 %v1854, %v1850
      %v2227 = vpack.c.b16 %v1855, %v1851
      %v2228 = vpack.c.b16 %v1860, %v1856
      %v2229 = vpack.c.b16 %v1861, %v1857
      %v2230 = vpack.c.b16 %v1862, %v1858
      %v2231 = vpack.c.b16 %v1863, %v1859
      %v2232 = vpack.c.b16 %v1868, %v1864
      %v2233 = vpack.c.b16 %v1869, %v1865
      %v2234 = vpack.c.b16 %v1870, %v1866
      %v2235 = vpack.c.b16 %v1871, %v1867
      %v2236 = vpack.c.b16 %v1876, %v1872
      %v2237 = vpack.c.b16 %v1877, %v1873
      %v2238 = vpack.c.b16 %v1878, %v1874
      %v2239 = vpack.c.b16 %v1879, %v1875
      %v2240 = vpack.c.b16 %v1884, %v1880
      %v2241 = vpack.c.b16 %v1885, %v1881
      %v2242 = vpack.c.b16 %v1886, %v1882
      %v2243 = vpack.c.b16 %v1887, %v1883
      %v2244 = vpack.c.b16 %v1892, %v1888
      %v2245 = vpack.c.b16 %v1893, %v1889
      %v2246 = vpack.c.b16 %v1894, %v1890
      %v2247 = vpack.c.b16 %v1895, %v1891
      %v2248 = vpack.c.b16 %v1900, %v1896
      %v2249 = vpack.c.b16 %v1901, %v1897
      %v2250 = vpack.c.b16 %v1902, %v1898
      %v2251 = vpack.c.b16 %v1903, %v1899
      %v2252 = vpack.c.b16 %v1908, %v1904
      %v2253 = vpack.c.b16 %v1909, %v1905
      %v2254 = vpack.c.b16 %v1910, %v1906
      %v2255 = vpack.c.b16 %v1911, %v1907
      %v2256 = vpack.c.b16 %v1916, %v1912
      %v2257 = vpack.c.b16 %v1917, %v1913
      %v2258 = vpack.c.b16 %v1918, %v1914
      %v2259 = vpack.c.b16 %v1919, %v1915
      %v2260 = vpack.c.b16 %v1924, %v1920
      %v2261 = vpack.c.b16 %v1925, %v1921
      %v2262 = vpack.c.b16 %v1926, %v1922
      %v2263 = vpack.c.b16 %v1927, %v1923
      %v2264 = vpack.c.b16 %v1932, %v1928
      %v2265 = vpack.c.b16 %v1933, %v1929
      %v2266 = vpack.c.b16 %v1934, %v1930
      %v2267 = vpack.c.b16 %v1935, %v1931
      %v2268 = vpack.c.b16 %v1940, %v1936
      %v2269 = vpack.c.b16 %v1941, %v1937
      %v2270 = vpack.c.b16 %v1942, %v1938
      %v2271 = vpack.c.b16 %v1943, %v1939
      %v2272 = vpack.c.b16 %v1948, %v1944
      %v2273 = vpack.c.b16 %v1949, %v1945
      %v2274 = vpack.c.b16 %v1950, %v1946
      %v2275 = vpack.c.b16 %v1951, %v1947
      %v2276 = vpack.c.b16 %v1956, %v1952
      %v2277 = vpack.c.b16 %v1957, %v1953
      %v2278 = vpack.c.b16 %v1958, %v1954
      %v2279 = vpack.c.b16 %v1959, %v1955
      %v2280 = vpack.c.b16 %v1964, %v1960
      %v2281 = vpack.c.b16 %v1965, %v1961
      %v2282 = vpack.c.b16 %v1966, %v1962
      %v2283 = vpack.c.b16 %v1967, %v1963
      %v2284 = vpack.c.b16 %v1972, %v1968
      %v2285 = vpack.c.b16 %v1973, %v1969
      %v2286 = vpack.c.b16 %v1974, %v1970
      %v2287 = vpack.c.b16 %v1975, %v1971
      %v2288 = vpack.c.b16 %v1980, %v1976
      %v2289 = vpack.c.b16 %v1981, %v1977
      %v2290 = vpack.c.b16 %v1982, %v1978
      %v2291 = vpack.c.b16 %v1983, %v1979
      %v2292 = vpack.c.b16 %v1988, %v1984
      %v2293 = vpack.c.b16 %v1989, %v1985
      %v2294 = vpack.c.b16 %v1990, %v1986
      %v2295 = vpack.c.b16 %v1991, %v1987
      %v2296 = vpack.c.b16 %v1996, %v1992
      %v2297 = vpack.c.b16 %v1997, %v1993
      %v2298 = vpack.c.b16 %v1998, %v1994
      %v2299 = vpack.c.b16 %v1999, %v1995
      %v2300 = vpack.c.b16 %v2004, %v2000
      %v2301 = vpack.c.b16 %v2005, %v2001
      %v2302 = vpack.c.b16 %v2006, %v2002
      %v2303 = vpack.c.b16 %v2007, %v2003
      %v2304 = vpack.c.b16 %v2012, %v2008
      %v2305 = vpack.c.b16 %v2013, %v2009
      %v2306 = vpack.c.b16 %v2014, %v2010
      %v2307 = vpack.c.b16 %v2015, %v2011
      %v2308 = vpack.c.b16 %v2020, %v2016
      %v2309 = vpack.c.b16 %v2021, %v2017
      %v2310 = vpack.c.b16 %v2022, %v2018
      %v2311 = vpack.c.b16 %v2023, %v2019
      %v2312 = vpack.c.b16 %v2028, %v2024
      %v2313 = vpack.c.b16 %v2029, %v2025
      %v2314 = vpack.c.b16 %v2030, %v2026
      %v2315 = vpack.c.b16 %v2031, %v2027
      %v2316 = vpack.c.b16 %v2036, %v2032
      %v2317 = vpack.c.b16 %v2037, %v2033
      %v2318 = vpack.c.b16 %v2038, %v2034
      %v2319 = vpack.c.b16 %v2039, %v2035
      %v2320 = vpack.c.b16 %v2044, %v2040
      %v2321 = vpack.c.b16 %v2045, %v2041
      %v2322 = vpack.c.b16 %v2046, %v2042
      %v2323 = vpack.c.b16 %v2047, %v2043
      %v2324 = vpack.c.b16 %v2052, %v2048
      %v2325 = vpack.c.b16 %v2053, %v2049
      %v2326 = vpack.c.b16 %v2054, %v2050
      %v2327 = vpack.c.b16 %v2055, %v2051
      %v2328 = vpack.c.b16 %v2060, %v2056
      %v2329 = vpack.c.b16 %v2061, %v2057
      %v2330 = vpack.c.b16 %v2062, %v2058
      %v2331 = vpack.c.b16 %v2063, %v2059
      %v2332 = vpack.c.b16 %v2068, %v2064
      %v2333 = vpack.c.b16 %v2069, %v2065
      %v2334 = vpack.c.b16 %v2070, %v2066
      %v2335 = vpack.c.b16 %v2071, %v2067
      %v2336 = vpack.c.b16 %v2076, %v2072
      %v2337 = vpack.c.b16 %v2077, %v2073
      %v2338 = vpack.c.b16 %v2078, %v2074
      %v2339 = vpack.c.b16 %v2079, %v2075
      %v2340 = vpack.c.b16 %v2084, %v2080
      %v2341 = vpack.c.b16 %v2085, %v2081
      %v2342 = vpack.c.b16 %v2086, %v2082
      %v2343 = vpack.c.b16 %v2087, %v2083
      %v2344 = vpack.c.b16 %v2092, %v2088
      %v2345 = vpack.c.b16 %v2093, %v2089
      %v2346 = vpack.c.b16 %v2094, %v2090
      %v2347 = vpack.c.b16 %v2095, %v2091
      %v2348 = vpack.c.b16 %v2100, %v2096
      %v2349 = vpack.c.b16 %v2101, %v2097
      %v2350 = vpack.c.b16 %v2102, %v2098
      %v2351 = vpack.c.b16 %v2103, %v2099
      %v2352 = vpack.c.b16 %v2108, %v2104
      %v2353 = vpack.c.b16 %v2109, %v2105
      %v2354 = vpack.c.b16 %v2110, %v2106
      %v2355 = vpack.c.b16 %v2111, %v2107
      %v2356 = vpack.c.b16 %v2116, %v2112
      %v2357 = vpack.c.b16 %v2117, %v2113
      %v2358 = vpack.c.b16 %v2118, %v2114
      %v2359 = vpack.c.b16 %v2119, %v2115
      %v2360 = vpack.c.b16 %v2124, %v2120
      %v2361 = vpack.c.b16 %v2125, %v2121
      %v2362 = vpack.c.b16 %v2126, %v2122
      %v2363 = vpack.c.b16 %v2127, %v2123
      %v2364 = vpack.c.b16 %v2132, %v2128
      %v2365 = vpack.c.b16 %v2133, %v2129
      %v2366 = vpack.c.b16 %v2134, %v2130
      %v2367 = vpack.c.b16 %v2135, %v2131
      %v2368 = vpack.c.b16 %v2140, %v2136
      %v2369 = vpack.c.b16 %v2141, %v2137
      %v2370 = vpack.c.b16 %v2142, %v2138
      %v2371 = vpack.c.b16 %v2143, %v2139
      %v2372 = vpack.c.b16 %v2148, %v2144
      %v2373 = vpack.c.b16 %v2149, %v2145
      %v2374 = vpack.c.b16 %v2150, %v2146
      %v2375 = vpack.c.b16 %v2151, %v2147
      %v2376 = vpack.c.b16 %v2156, %v2152
      %v2377 = vpack.c.b16 %v2157, %v2153
      %v2378 = vpack.c.b16 %v2158, %v2154
      %v2379 = vpack.c.b16 %v2159, %v2155
      %v2380 = vpack.c.b16 %v2164, %v2160
      %v2381 = vpack.c.b16 %v2165, %v2161
      %v2382 = vpack.c.b16 %v2166, %v2162
      %v2383 = vpack.c.b16 %v2167, %v2163
      %v2384 = vpack.c.b16 %v2172, %v2168
      %v2385 = vpack.c.b16 %v2173, %v2169
      %v2386 = vpack.c.b16 %v2174, %v2170
      %v2387 = vpack.c.b16 %v2175, %v2171
      %v2388 = vpack.c.b16 %v2180, %v2176
      %v2389 = vpack.c.b16 %v2181, %v2177
      %v2390 = vpack.c.b16 %v2182, %v2178
      %v2391 = vpack.c.b16 %v2183, %v2179
      %v2392 = vpack.c.b16 %v2188, %v2184
      %v2393 = vpack.c.b16 %v2189, %v2185
      %v2394 = vpack.c.b16 %v2190, %v2186
      %v2395 = vpack.c.b16 %v2191, %v2187
      %v2396 = vpack.c.b16 %v2196, %v2192
      %v2397 = vpack.c.b16 %v2197, %v2193
      %v2398 = vpack.c.b16 %v2198, %v2194
      %v2399 = vpack.c.b16 %v2199, %v2195
      %v2400 = vpack.c.b16 %v2204, %v2200
      %v2401 = vpack.c.b16 %v2205, %v2201
      %v2402 = vpack.c.b16 %v2206, %v2202
      %v2403 = vpack.c.b16 %v2207, %v2203
      %v2404 = vpack.c.b16 %v2212, %v2208
      %v2405 = vpack.c.b16 %v2213, %v2209
      %v2406 = vpack.c.b16 %v2214, %v2210
      %v2407 = vpack.c.b16 %v2215, %v2211
      %2600 = vmatprep.subr.bf16.mxu0 %v2217
      %2601 = vmatpush1.bf16.msra.mxu0 %v2216
      %2602 = vmatprep.subr.bf16.mxu0 %v2221
      %2603 = vmatpush1.bf16.msra.mxu0 %v2220
      %2604 = vmatprep.subr.bf16.mxu0 %v2225
      %2605 = vmatpush1.bf16.msra.mxu0 %v2224
      %2606 = vmatprep.subr.bf16.mxu0 %v2229
      %2607 = vmatpush1.bf16.msra.mxu0 %v2228
      %2608 = vmatprep.subr.bf16.mxu0 %v2233
      %2609 = vmatpush1.bf16.msra.mxu0 %v2232
      %2610 = vmatprep.subr.bf16.mxu0 %v2237
      %2611 = vmatpush1.bf16.msra.mxu0 %v2236
      %2612 = vmatprep.subr.bf16.mxu0 %v2241
      %2613 = vmatpush1.bf16.msra.mxu0 %v2240
      %2614 = vmatprep.subr.bf16.mxu0 %v2245
      %2615 = vmatpush1.bf16.msra.mxu0 %v2244
      %2616 = vmatprep.subr.bf16.mxu0 %v2249
      %2617 = vmatpush1.bf16.msra.mxu0 %v2248
      %2618 = vmatprep.subr.bf16.mxu0 %v2253
      %2619 = vmatpush1.bf16.msra.mxu0 %v2252
      %2620 = vmatprep.subr.bf16.mxu0 %v2257
      %2621 = vmatpush1.bf16.msra.mxu0 %v2256
      %2622 = vmatprep.subr.bf16.mxu0 %v2261
      %2623 = vmatpush1.bf16.msra.mxu0 %v2260
      %2624 = vmatprep.subr.bf16.mxu0 %v2265
      %2625 = vmatpush1.bf16.msra.mxu0 %v2264
      %2626 = vmatprep.subr.bf16.mxu0 %v2269
      %2627 = vmatpush1.bf16.msra.mxu0 %v2268
      %2628 = vmatprep.subr.bf16.mxu0 %v2273
      %2629 = vmatpush1.bf16.msra.mxu0 %v2272
      %2630 = vmatprep.subr.bf16.mxu0 %v2277
      %2631 = vmatpush1.bf16.msra.mxu0 %v2276
      %2632 = vmatprep.mubr.bf16.mxu0 %v1209
      %2633 = vmatmul.mubr.bf16.gmra.mrb[0].mxu0 %v1208
      %v2634 = vpop.f32.mrb[0].mxu0
      %v2635 = vadd.f32 0.0, %v2634
      %v2636 = vpop.f32.mrb[0].mxu0
      %v2637 = vadd.f32 0.0, %v2636
      %v2638 = vpop.f32.mrb[0].mxu0
      %v2639 = vadd.f32 0.0, %v2638
      %v2640 = vpop.f32.mrb[0].mxu0
      %v2641 = vadd.f32 0.0, %v2640
      %2642 = vmatprep.mubr.bf16.mxu0 %v1215
      %2643 = vmatmul.mubr.bf16.gmra.mrb[0].mxu0 %v1214
      %v2644 = vpop.f32.mrb[0].mxu0
      %v2645 = vadd.f32 0.0, %v2644
      %v2646 = vpop.f32.mrb[0].mxu0
      %v2647 = vadd.f32 0.0, %v2646
      %v2648 = vpop.f32.mrb[0].mxu0
      %v2649 = vadd.f32 0.0, %v2648
      %v2650 = vpop.f32.mrb[0].mxu0
      %v2651 = vadd.f32 0.0, %v2650
      %2652 = vmatprep.mubr.bf16.mxu0 %v1221
      %2653 = vmatmul.mubr.bf16.gmra.mrb[0].mxu0 %v1220
      %v2654 = vpop.f32.mrb[0].mxu0
      %v2655 = vadd.f32 0.0, %v2654
      %v2656 = vpop.f32.mrb[0].mxu0
      %v2657 = vadd.f32 0.0, %v2656
      %v2658 = vpop.f32.mrb[0].mxu0
      %v2659 = vadd.f32 0.0, %v2658
      %v2660 = vpop.f32.mrb[0].mxu0
      %v2661 = vadd.f32 0.0, %v2660
      %2662 = vmatprep.mubr.bf16.mxu0 %v1227
      %2663 = vmatmul.mubr.bf16.gmra.mrb[0].mxu0 %v1226
      %v2664 = vpop.f32.mrb[0].mxu0
      %v2665 = vadd.f32 0.0, %v2664
      %v2666 = vpop.f32.mrb[0].mxu0
      %v2667 = vadd.f32 0.0, %v2666
      %v2668 = vpop.f32.mrb[0].mxu0
      %v2669 = vpop.f32.mrb[0].mxu0
      %2670 = vmatprep.mubr.bf16.mxu0 %v1233
      %2671 = vmatmul.mubr.bf16.gmra.mrb[0].mxu0 %v1232
      %v2672 = vpop.f32.mrb[0].mxu0
      %v2673 = vpop.f32.mrb[0].mxu0
      %v2674 = vpop.f32.mrb[0].mxu0
      %v2675 = vadd.f32 0.0, %v2674
      %v2676 = vpop.f32.mrb[0].mxu0
      %v2677 = vadd.f32 0.0, %v2676
      %2678 = vmatprep.mubr.bf16.mxu0 %v1239
      %2679 = vmatmul.mubr.bf16.gmra.mrb[0].mxu0 %v1238
      %v2680 = vpop.f32.mrb[0].mxu0
      %v2681 = vadd.f32 0.0, %v2680
      %v2682 = vpop.f32.mrb[0].mxu0
      %v2683 = vadd.f32 0.0, %v2682
      %v2684 = vpop.f32.mrb[0].mxu0
      %v2685 = vadd.f32 0.0, %v2684
      %v2686 = vpop.f32.mrb[0].mxu0
      %v2687 = vadd.f32 0.0, %v2686
      %2688 = vmatprep.mubr.bf16.mxu0 %v1245
      %2689 = vmatmul.mubr.bf16.gmra.mrb[0].mxu0 %v1244
      %v2690 = vpop.f32.mrb[0].mxu0
      %v2691 = vadd.f32 0.0, %v2690
      %v2692 = vpop.f32.mrb[0].mxu0
      %v2693 = vadd.f32 0.0, %v2692
      %v2694 = vpop.f32.mrb[0].mxu0
      %v2695 = vadd.f32 0.0, %v2694
      %v2696 = vpop.f32.mrb[0].mxu0
      %v2697 = vadd.f32 0.0, %v2696
      %2698 = vmatprep.mubr.bf16.mxu0 %v1251
      %2699 = vmatmul.mubr.bf16.gmra.mrb[0].mxu0 %v1250
      %v2700 = vpop.f32.mrb[0].mxu0
      %v2701 = vadd.f32 0.0, %v2700
      %v2702 = vpop.f32.mrb[0].mxu0
      %v2703 = vadd.f32 0.0, %v2702
      %v2704 = vpop.f32.mrb[0].mxu0
      %v2705 = vadd.f32 0.0, %v2704
      %v2706 = vpop.f32.mrb[0].mxu0
      %v2707 = vadd.f32 0.0, %v2706
      %2708 = vmatprep.mubr.bf16.mxu0 %v1257
      %2709 = vmatmul.mubr.bf16.gmra.mrb[0].mxu0 %v1256
      %v2710 = vpop.f32.mrb[0].mxu0
      %v2711 = vpop.f32.mrb[0].mxu0
      %v2712 = vpop.f32.mrb[0].mxu0
      %v2713 = vpop.f32.mrb[0].mxu0
      %2714 = vmatprep.mubr.bf16.mxu0 %v1263
      %2715 = vmatmul.mubr.bf16.gmra.mrb[0].mxu0 %v1262
      %v2716 = vpop.f32.mrb[0].mxu0
      %v2717 = vadd.f32 0.0, %v2716
      %v2718 = vpop.f32.mrb[0].mxu0
      %v2719 = vadd.f32 0.0, %v2718
      %v2720 = vpop.f32.mrb[0].mxu0
      %v2721 = vadd.f32 0.0, %v2720
      %v2722 = vpop.f32.mrb[0].mxu0
      %v2723 = vadd.f32 0.0, %v2722
      %2724 = vmatprep.mubr.bf16.mxu0 %v1269
      %2725 = vmatmul.mubr.bf16.gmra.mrb[0].mxu0 %v1268
      %v2726 = vpop.f32.mrb[0].mxu0
      %v2727 = vadd.f32 0.0, %v2726
      %v2728 = vpop.f32.mrb[0].mxu0
      %v2729 = vadd.f32 0.0, %v2728
      %v2730 = vpop.f32.mrb[0].mxu0
      %v2731 = vadd.f32 0.0, %v2730
      %v2732 = vpop.f32.mrb[0].mxu0
      %v2733 = vadd.f32 0.0, %v2732
      %2734 = vmatprep.mubr.bf16.mxu0 %v1275
      %2735 = vmatmul.mubr.bf16.gmra.mrb[0].mxu0 %v1274
      %v2736 = vpop.f32.mrb[0].mxu0
      %v2737 = vadd.f32 0.0, %v2736
      %v2738 = vpop.f32.mrb[0].mxu0
      %v2739 = vadd.f32 0.0, %v2738
      %v2740 = vpop.f32.mrb[0].mxu0
      %v2741 = vadd.f32 0.0, %v2740
      %v2742 = vpop.f32.mrb[0].mxu0
      %v2743 = vadd.f32 0.0, %v2742
      %2744 = vmatprep.mubr.bf16.mxu0 %v1281
      %2745 = vmatmul.mubr.bf16.gmra.mrb[0].mxu0 %v1280
      %v2746 = vpop.f32.mrb[0].mxu0
      %v2747 = vadd.f32 0.0, %v2746
      %v2748 = vpop.f32.mrb[0].mxu0
      %v2749 = vadd.f32 0.0, %v2748
      %v2750 = vpop.f32.mrb[0].mxu0
      %v2751 = vpop.f32.mrb[0].mxu0
      %2752 = vmatprep.mubr.bf16.mxu0 %v1287
      %2753 = vmatmul.mubr.bf16.gmra.mrb[0].mxu0 %v1286
      %v2754 = vpop.f32.mrb[0].mxu0
      %v2755 = vpop.f32.mrb[0].mxu0
      %v2756 = vpop.f32.mrb[0].mxu0
      %v2757 = vadd.f32 0.0, %v2756
      %v2758 = vpop.f32.mrb[0].mxu0
      %v2759 = vadd.f32 0.0, %v2758
      %2760 = vmatprep.mubr.bf16.mxu0 %v1293
      %2761 = vmatmul.mubr.bf16.gmra.mrb[0].mxu0 %v1292
      %v2762 = vpop.f32.mrb[0].mxu0
      %v2763 = vadd.f32 0.0, %v2762
      %v2764 = vpop.f32.mrb[0].mxu0
      %v2765 = vadd.f32 0.0, %v2764
      %v2766 = vpop.f32.mrb[0].mxu0
      %v2767 = vadd.f32 0.0, %v2766
      %v2768 = vpop.f32.mrb[0].mxu0
      %v2769 = vadd.f32 0.0, %v2768
      %2770 = vmatprep.mubr.bf16.mxu0 %v1299
      %2771 = vmatmul.mubr.bf16.gmra.mrb[0].mxu0 %v1298
      %v2772 = vpop.f32.mrb[0].mxu0
      %v2773 = vadd.f32 0.0, %v2772
      %v2774 = vpop.f32.mrb[0].mxu0
      %v2775 = vadd.f32 0.0, %v2774
      %v2776 = vpop.f32.mrb[0].mxu0
      %v2777 = vadd.f32 0.0, %v2776
      %v2778 = vpop.f32.mrb[0].mxu0
      %v2779 = vadd.f32 0.0, %v2778
      %2780 = vmatprep.mubr.bf16.mxu0 %v1305
      %2781 = vmatmul.mubr.bf16.gmra.mrb[0].mxu0 %v1304
      %v2782 = vpop.f32.mrb[0].mxu0
      %v2783 = vadd.f32 0.0, %v2782
      %v2784 = vpop.f32.mrb[0].mxu0
      %v2785 = vadd.f32 0.0, %v2784
      %v2786 = vpop.f32.mrb[0].mxu0
      %v2787 = vadd.f32 0.0, %v2786
      %v2788 = vpop.f32.mrb[0].mxu0
      %v2789 = vadd.f32 0.0, %v2788
      %2790 = vmatprep.mubr.bf16.mxu0 %v1311
      %2791 = vmatmul.mubr.bf16.gmra.mrb[0].mxu0 %v1310
      %v2792 = vpop.f32.mrb[0].mxu0
      %v2793 = vpop.f32.mrb[0].mxu0
      %v2794 = vpop.f32.mrb[0].mxu0
      %v2795 = vpop.f32.mrb[0].mxu0
      %2796 = vmatprep.mubr.bf16.mxu0 %v1317
      %2797 = vmatmul.mubr.bf16.gmra.mrb[0].mxu0 %v1316
      %v2798 = vpop.f32.mrb[0].mxu0
      %v2799 = vadd.f32 0.0, %v2798
      %v2800 = vpop.f32.mrb[0].mxu0
      %v2801 = vadd.f32 0.0, %v2800
      %v2802 = vpop.f32.mrb[0].mxu0
      %v2803 = vadd.f32 0.0, %v2802
      %v2804 = vpop.f32.mrb[0].mxu0
      %v2805 = vadd.f32 0.0, %v2804
      %2806 = vmatprep.mubr.bf16.mxu0 %v1323
      %2807 = vmatmul.mubr.bf16.gmra.mrb[0].mxu0 %v1322
      %v2808 = vpop.f32.mrb[0].mxu0
      %v2809 = vadd.f32 0.0, %v2808
      %v2810 = vpop.f32.mrb[0].mxu0
      %v2811 = vadd.f32 0.0, %v2810
      %v2812 = vpop.f32.mrb[0].mxu0
      %v2813 = vadd.f32 0.0, %v2812
      %v2814 = vpop.f32.mrb[0].mxu0
      %v2815 = vadd.f32 0.0, %v2814
      %2816 = vmatprep.mubr.bf16.mxu0 %v1329
      %2817 = vmatmul.mubr.bf16.gmra.mrb[0].mxu0 %v1328
      %v2818 = vpop.f32.mrb[0].mxu0
      %v2819 = vadd.f32 0.0, %v2818
      %v2820 = vpop.f32.mrb[0].mxu0
      %v2821 = vadd.f32 0.0, %v2820
      %v2822 = vpop.f32.mrb[0].mxu0
      %v2823 = vadd.f32 0.0, %v2822
      %v2824 = vpop.f32.mrb[0].mxu0
      %v2825 = vadd.f32 0.0, %v2824
      %2826 = vmatprep.mubr.bf16.mxu0 %v1335
      %2827 = vmatmul.mubr.bf16.gmra.mrb[0].mxu0 %v1334
      %v2828 = vpop.f32.mrb[0].mxu0
      %v2829 = vadd.f32 0.0, %v2828
      %v2830 = vpop.f32.mrb[0].mxu0
      %v2831 = vadd.f32 0.0, %v2830
      %v2832 = vpop.f32.mrb[0].mxu0
      %v2833 = vpop.f32.mrb[0].mxu0
      %2834 = vmatprep.mubr.bf16.mxu0 %v1341
      %2835 = vmatmul.mubr.bf16.gmra.mrb[0].mxu0 %v1340
      %v2836 = vpop.f32.mrb[0].mxu0
      %v2837 = vpop.f32.mrb[0].mxu0
      %v2838 = vpop.f32.mrb[0].mxu0
      %v2839 = vadd.f32 0.0, %v2838
      %v2840 = vpop.f32.mrb[0].mxu0
      %v2841 = vadd.f32 0.0, %v2840
      %2842 = vmatprep.mubr.bf16.mxu0 %v1347
      %2843 = vmatmul.mubr.bf16.gmra.mrb[0].mxu0 %v1346
      %v2844 = vpop.f32.mrb[0].mxu0
      %v2845 = vadd.f32 0.0, %v2844
      %v2846 = vpop.f32.mrb[0].mxu0
      %v2847 = vadd.f32 0.0, %v2846
      %v2848 = vpop.f32.mrb[0].mxu0
      %v2849 = vadd.f32 0.0, %v2848
      %v2850 = vpop.f32.mrb[0].mxu0
      %v2851 = vadd.f32 0.0, %v2850
      %2852 = vmatprep.mubr.bf16.mxu0 %v1353
      %2853 = vmatmul.mubr.bf16.gmra.mrb[0].mxu0 %v1352
      %v2854 = vpop.f32.mrb[0].mxu0
      %v2855 = vadd.f32 0.0, %v2854
      %v2856 = vpop.f32.mrb[0].mxu0
      %v2857 = vadd.f32 0.0, %v2856
      %v2858 = vpop.f32.mrb[0].mxu0
      %v2859 = vadd.f32 0.0, %v2858
      %v2860 = vpop.f32.mrb[0].mxu0
      %v2861 = vadd.f32 0.0, %v2860
      %2862 = vmatprep.mubr.bf16.mxu0 %v1359
      %2863 = vmatmul.mubr.bf16.gmra.mrb[0].mxu0 %v1358
      %v2864 = vpop.f32.mrb[0].mxu0
      %v2865 = vadd.f32 0.0, %v2864
      %v2866 = vpop.f32.mrb[0].mxu0
      %v2867 = vadd.f32 0.0, %v2866
      %v2868 = vpop.f32.mrb[0].mxu0
      %v2869 = vadd.f32 0.0, %v2868
      %v2870 = vpop.f32.mrb[0].mxu0
      %v2871 = vadd.f32 0.0, %v2870
      %2872 = vmatprep.mubr.bf16.mxu0 %v1365
      %2873 = vmatmul.mubr.bf16.gmra.mrb[0].mxu0 %v1364
      %v2874 = vpop.f32.mrb[0].mxu0
      %v2875 = vpop.f32.mrb[0].mxu0
      %v2876 = vpop.f32.mrb[0].mxu0
      %v2877 = vpop.f32.mrb[0].mxu0
      %2878 = vmatprep.mubr.bf16.mxu0 %v1371
      %2879 = vmatmul.mubr.bf16.gmra.mrb[0].mxu0 %v1370
      %v2880 = vpop.f32.mrb[0].mxu0
      %v2881 = vadd.f32 0.0, %v2880
      %v2882 = vpop.f32.mrb[0].mxu0
      %v2883 = vadd.f32 0.0, %v2882
      %v2884 = vpop.f32.mrb[0].mxu0
      %v2885 = vadd.f32 0.0, %v2884
      %v2886 = vpop.f32.mrb[0].mxu0
      %v2887 = vadd.f32 0.0, %v2886
      %2888 = vmatprep.mubr.bf16.mxu0 %v1377
      %2889 = vmatmul.mubr.bf16.gmra.mrb[0].mxu0 %v1376
      %v2890 = vpop.f32.mrb[0].mxu0
      %v2891 = vadd.f32 0.0, %v2890
      %v2892 = vpop.f32.mrb[0].mxu0
      %v2893 = vadd.f32 0.0, %v2892
      %v2894 = vpop.f32.mrb[0].mxu0
      %v2895 = vadd.f32 0.0, %v2894
      %v2896 = vpop.f32.mrb[0].mxu0
      %v2897 = vadd.f32 0.0, %v2896
      %2898 = vmatprep.mubr.bf16.mxu0 %v1383
      %2899 = vmatmul.mubr.bf16.gmra.mrb[0].mxu0 %v1382
      %v2900 = vpop.f32.mrb[0].mxu0
      %v2901 = vadd.f32 0.0, %v2900
      %v2902 = vpop.f32.mrb[0].mxu0
      %v2903 = vadd.f32 0.0, %v2902
      %v2904 = vpop.f32.mrb[0].mxu0
      %v2905 = vadd.f32 0.0, %v2904
      %v2906 = vpop.f32.mrb[0].mxu0
      %v2907 = vadd.f32 0.0, %v2906
      %2908 = vmatprep.mubr.bf16.mxu0 %v1389
      %2909 = vmatmul.mubr.bf16.gmra.mrb[0].mxu0 %v1388
      %v2910 = vpop.f32.mrb[0].mxu0
      %v2911 = vadd.f32 0.0, %v2910
      %v2912 = vpop.f32.mrb[0].mxu0
      %v2913 = vadd.f32 0.0, %v2912
      %v2914 = vpop.f32.mrb[0].mxu0
      %v2915 = vpop.f32.mrb[0].mxu0
      %2916 = vmatprep.mubr.bf16.mxu0 %v1395
      %2917 = vmatmul.mubr.bf16.gmra.mrb[0].mxu0 %v1394
      %v2918 = vpop.f32.mrb[0].mxu0
      %v2919 = vpop.f32.mrb[0].mxu0
      %v2920 = vpop.f32.mrb[0].mxu0
      %v2921 = vadd.f32 0.0, %v2920
      %v2922 = vpop.f32.mrb[0].mxu0
      %v2923 = vadd.f32 0.0, %v2922
      %2924 = vmatprep.mubr.bf16.mxu0 %v1401
      %2925 = vmatmul.mubr.bf16.gmra.mrb[0].mxu0 %v1400
      %v2926 = vpop.f32.mrb[0].mxu0
      %v2927 = vadd.f32 0.0, %v2926
      %v2928 = vpop.f32.mrb[0].mxu0
      %v2929 = vadd.f32 0.0, %v2928
      %v2930 = vpop.f32.mrb[0].mxu0
      %v2931 = vadd.f32 0.0, %v2930
      %v2932 = vpop.f32.mrb[0].mxu0
      %v2933 = vadd.f32 0.0, %v2932
      %2934 = vmatprep.mubr.bf16.mxu0 %v1407
      %2935 = vmatmul.mubr.bf16.gmra.mrb[0].mxu0 %v1406
      %v2936 = vpop.f32.mrb[0].mxu0
      %v2937 = vadd.f32 0.0, %v2936
      %v2938 = vpop.f32.mrb[0].mxu0
      %v2939 = vadd.f32 0.0, %v2938
      %v2940 = vpop.f32.mrb[0].mxu0
      %v2941 = vadd.f32 0.0, %v2940
      %v2942 = vpop.f32.mrb[0].mxu0
      %v2943 = vadd.f32 0.0, %v2942
      %2944 = vmatprep.mubr.bf16.mxu0 %v1413
      %2945 = vmatmul.mubr.bf16.gmra.mrb[0].mxu0 %v1412
      %v2946 = vpop.f32.mrb[0].mxu0
      %v2947 = vadd.f32 0.0, %v2946
      %v2948 = vpop.f32.mrb[0].mxu0
      %v2949 = vadd.f32 0.0, %v2948
      %v2950 = vpop.f32.mrb[0].mxu0
      %v2951 = vadd.f32 0.0, %v2950
      %v2952 = vpop.f32.mrb[0].mxu0
      %v2953 = vadd.f32 0.0, %v2952
      %2954 = vmatprep.mubr.bf16.mxu0 %v1419
      %2955 = vmatmul.mubr.bf16.gmra.mrb[0].mxu0 %v1418
      %v2956 = vpop.f32.mrb[0].mxu0
      %v2957 = vpop.f32.mrb[0].mxu0
      %v2958 = vpop.f32.mrb[0].mxu0
      %v2959 = vpop.f32.mrb[0].mxu0
      %2960 = vdwg.mxu0
      %2961 = vmatprep.subr.bf16.mxu0 %v2281
      %2962 = vmatpush1.bf16.msra.mxu0 %v2280
      %2963 = vmatprep.subr.bf16.mxu0 %v2285
      %2964 = vmatpush1.bf16.msra.mxu0 %v2284
      %2965 = vmatprep.subr.bf16.mxu0 %v2289
      %2966 = vmatpush1.bf16.msra.mxu0 %v2288
      %2967 = vmatprep.subr.bf16.mxu0 %v2293
      %2968 = vmatpush1.bf16.msra.mxu0 %v2292
      %2969 = vmatprep.subr.bf16.mxu0 %v2297
      %2970 = vmatpush1.bf16.msra.mxu0 %v2296
      %2971 = vmatprep.subr.bf16.mxu0 %v2301
      %2972 = vmatpush1.bf16.msra.mxu0 %v2300
      %2973 = vmatprep.subr.bf16.mxu0 %v2305
      %2974 = vmatpush1.bf16.msra.mxu0 %v2304
      %2975 = vmatprep.subr.bf16.mxu0 %v2309
      %2976 = vmatpush1.bf16.msra.mxu0 %v2308
      %2977 = vmatprep.subr.bf16.mxu0 %v2313
      %2978 = vmatpush1.bf16.msra.mxu0 %v2312
      %2979 = vmatprep.subr.bf16.mxu0 %v2317
      %2980 = vmatpush1.bf16.msra.mxu0 %v2316
      %2981 = vmatprep.subr.bf16.mxu0 %v2321
      %2982 = vmatpush1.bf16.msra.mxu0 %v2320
      %2983 = vmatprep.subr.bf16.mxu0 %v2325
      %2984 = vmatpush1.bf16.msra.mxu0 %v2324
      %2985 = vmatprep.subr.bf16.mxu0 %v2329
      %2986 = vmatpush1.bf16.msra.mxu0 %v2328
      %2987 = vmatprep.subr.bf16.mxu0 %v2333
      %2988 = vmatpush1.bf16.msra.mxu0 %v2332
      %2989 = vmatprep.subr.bf16.mxu0 %v2337
      %2990 = vmatpush1.bf16.msra.mxu0 %v2336
      %2991 = vmatprep.subr.bf16.mxu0 %v2341
      %2992 = vmatpush1.bf16.msra.mxu0 %v2340
      %2993 = vmatprep.mubr.bf16.mxu0 %v1211
      %2994 = vmatmul.mubr.bf16.gmra.mrb[0].mxu0 %v1210
      %v2995 = vpop.f32.mrb[0].mxu0
      %v2996 = vadd.f32 %v2635, %v2995
      %v2997 = vpop.f32.mrb[0].mxu0
      %v2998 = vadd.f32 %v2637, %v2997
      %v2999 = vpop.f32.mrb[0].mxu0
      %v3000 = vadd.f32 %v2639, %v2999
      %v3001 = vpop.f32.mrb[0].mxu0
      %v3002 = vadd.f32 %v2641, %v3001
      %3003 = vmatprep.mubr.bf16.mxu0 %v1217
      %3004 = vmatmul.mubr.bf16.gmra.mrb[0].mxu0 %v1216
      %v3005 = vpop.f32.mrb[0].mxu0
      %v3006 = vadd.f32 %v2645, %v3005
      %v3007 = vpop.f32.mrb[0].mxu0
      %v3008 = vadd.f32 %v2647, %v3007
      %v3009 = vpop.f32.mrb[0].mxu0
      %v3010 = vadd.f32 %v2649, %v3009
      %v3011 = vpop.f32.mrb[0].mxu0
      %v3012 = vadd.f32 %v2651, %v3011
      %3013 = vmatprep.mubr.bf16.mxu0 %v1223
      %3014 = vmatmul.mubr.bf16.gmra.mrb[0].mxu0 %v1222
      %v3015 = vpop.f32.mrb[0].mxu0
      %v3016 = vadd.f32 %v2655, %v3015
      %v3017 = vpop.f32.mrb[0].mxu0
      %v3018 = vadd.f32 %v2657, %v3017
      %v3019 = vpop.f32.mrb[0].mxu0
      %v3020 = vadd.f32 %v2659, %v3019
      %v3021 = vpop.f32.mrb[0].mxu0
      %v3022 = vadd.f32 %v2661, %v3021
      %3023 = vmatprep.mubr.bf16.mxu0 %v1229
      %3024 = vmatmul.mubr.bf16.gmra.mrb[0].mxu0 %v1228
      %v3025 = vpop.f32.mrb[0].mxu0
      %v3026 = vadd.f32 %v2665, %v3025
      %v3027 = vpop.f32.mrb[0].mxu0
      %v3028 = vadd.f32 %v2667, %v3027
      %v3029 = vpop.f32.mrb[0].mxu0
      %v3030 = vpop.f32.mrb[0].mxu0
      %3031 = vmatprep.mubr.bf16.mxu0 %v1235
      %3032 = vmatmul.mubr.bf16.gmra.mrb[0].mxu0 %v1234
      %v3033 = vpop.f32.mrb[0].mxu0
      %v3034 = vpop.f32.mrb[0].mxu0
      %v3035 = vpop.f32.mrb[0].mxu0
      %v3036 = vadd.f32 %v2675, %v3035
      %v3037 = vpop.f32.mrb[0].mxu0
      %v3038 = vadd.f32 %v2677, %v3037
      %3039 = vmatprep.mubr.bf16.mxu0 %v1241
      %3040 = vmatmul.mubr.bf16.gmra.mrb[0].mxu0 %v1240
      %v3041 = vpop.f32.mrb[0].mxu0
      %v3042 = vadd.f32 %v2681, %v3041
      %v3043 = vpop.f32.mrb[0].mxu0
      %v3044 = vadd.f32 %v2683, %v3043
      %v3045 = vpop.f32.mrb[0].mxu0
      %v3046 = vadd.f32 %v2685, %v3045
      %v3047 = vpop.f32.mrb[0].mxu0
      %v3048 = vadd.f32 %v2687, %v3047
      %3049 = vmatprep.mubr.bf16.mxu0 %v1247
      %3050 = vmatmul.mubr.bf16.gmra.mrb[0].mxu0 %v1246
      %v3051 = vpop.f32.mrb[0].mxu0
      %v3052 = vadd.f32 %v2691, %v3051
      %v3053 = vpop.f32.mrb[0].mxu0
      %v3054 = vadd.f32 %v2693, %v3053
      %v3055 = vpop.f32.mrb[0].mxu0
      %v3056 = vadd.f32 %v2695, %v3055
      %v3057 = vpop.f32.mrb[0].mxu0
      %v3058 = vadd.f32 %v2697, %v3057
      %3059 = vmatprep.mubr.bf16.mxu0 %v1253
      %3060 = vmatmul.mubr.bf16.gmra.mrb[0].mxu0 %v1252
      %v3061 = vpop.f32.mrb[0].mxu0
      %v3062 = vadd.f32 %v2701, %v3061
      %v3063 = vpop.f32.mrb[0].mxu0
      %v3064 = vadd.f32 %v2703, %v3063
      %v3065 = vpop.f32.mrb[0].mxu0
      %v3066 = vadd.f32 %v2705, %v3065
      %v3067 = vpop.f32.mrb[0].mxu0
      %v3068 = vadd.f32 %v2707, %v3067
      %3069 = vmatprep.mubr.bf16.mxu0 %v1259
      %3070 = vmatmul.mubr.bf16.gmra.mrb[0].mxu0 %v1258
      %v3071 = vpop.f32.mrb[0].mxu0
      %v3072 = vpop.f32.mrb[0].mxu0
      %v3073 = vpop.f32.mrb[0].mxu0
      %v3074 = vpop.f32.mrb[0].mxu0
      %3075 = vmatprep.mubr.bf16.mxu0 %v1265
      %3076 = vmatmul.mubr.bf16.gmra.mrb[0].mxu0 %v1264
      %v3077 = vpop.f32.mrb[0].mxu0
      %v3078 = vadd.f32 %v2717, %v3077
      %v3079 = vpop.f32.mrb[0].mxu0
      %v3080 = vadd.f32 %v2719, %v3079
      %v3081 = vpop.f32.mrb[0].mxu0
      %v3082 = vadd.f32 %v2721, %v3081
      %v3083 = vpop.f32.mrb[0].mxu0
      %v3084 = vadd.f32 %v2723, %v3083
      %3085 = vmatprep.mubr.bf16.mxu0 %v1271
      %3086 = vmatmul.mubr.bf16.gmra.mrb[0].mxu0 %v1270
      %v3087 = vpop.f32.mrb[0].mxu0
      %v3088 = vadd.f32 %v2727, %v3087
      %v3089 = vpop.f32.mrb[0].mxu0
      %v3090 = vadd.f32 %v2729, %v3089
      %v3091 = vpop.f32.mrb[0].mxu0
      %v3092 = vadd.f32 %v2731, %v3091
      %v3093 = vpop.f32.mrb[0].mxu0
      %v3094 = vadd.f32 %v2733, %v3093
      %3095 = vmatprep.mubr.bf16.mxu0 %v1277
      %3096 = vmatmul.mubr.bf16.gmra.mrb[0].mxu0 %v1276
      %v3097 = vpop.f32.mrb[0].mxu0
      %v3098 = vadd.f32 %v2737, %v3097
      %v3099 = vpop.f32.mrb[0].mxu0
      %v3100 = vadd.f32 %v2739, %v3099
      %v3101 = vpop.f32.mrb[0].mxu0
      %v3102 = vadd.f32 %v2741, %v3101
      %v3103 = vpop.f32.mrb[0].mxu0
      %v3104 = vadd.f32 %v2743, %v3103
      %3105 = vmatprep.mubr.bf16.mxu0 %v1283
      %3106 = vmatmul.mubr.bf16.gmra.mrb[0].mxu0 %v1282
      %v3107 = vpop.f32.mrb[0].mxu0
      %v3108 = vadd.f32 %v2747, %v3107
      %v3109 = vpop.f32.mrb[0].mxu0
      %v3110 = vadd.f32 %v2749, %v3109
      %v3111 = vpop.f32.mrb[0].mxu0
      %v3112 = vpop.f32.mrb[0].mxu0
      %3113 = vmatprep.mubr.bf16.mxu0 %v1289
      %3114 = vmatmul.mubr.bf16.gmra.mrb[0].mxu0 %v1288
      %v3115 = vpop.f32.mrb[0].mxu0
      %v3116 = vpop.f32.mrb[0].mxu0
      %v3117 = vpop.f32.mrb[0].mxu0
      %v3118 = vadd.f32 %v2757, %v3117
      %v3119 = vpop.f32.mrb[0].mxu0
      %v3120 = vadd.f32 %v2759, %v3119
      %3121 = vmatprep.mubr.bf16.mxu0 %v1295
      %3122 = vmatmul.mubr.bf16.gmra.mrb[0].mxu0 %v1294
      %v3123 = vpop.f32.mrb[0].mxu0
      %v3124 = vadd.f32 %v2763, %v3123
      %v3125 = vpop.f32.mrb[0].mxu0
      %v3126 = vadd.f32 %v2765, %v3125
      %v3127 = vpop.f32.mrb[0].mxu0
      %v3128 = vadd.f32 %v2767, %v3127
      %v3129 = vpop.f32.mrb[0].mxu0
      %v3130 = vadd.f32 %v2769, %v3129
      %3131 = vmatprep.mubr.bf16.mxu0 %v1301
      %3132 = vmatmul.mubr.bf16.gmra.mrb[0].mxu0 %v1300
      %v3133 = vpop.f32.mrb[0].mxu0
      %v3134 = vadd.f32 %v2773, %v3133
      %v3135 = vpop.f32.mrb[0].mxu0
      %v3136 = vadd.f32 %v2775, %v3135
      %v3137 = vpop.f32.mrb[0].mxu0
      %v3138 = vadd.f32 %v2777, %v3137
      %v3139 = vpop.f32.mrb[0].mxu0
      %v3140 = vadd.f32 %v2779, %v3139
      %3141 = vmatprep.mubr.bf16.mxu0 %v1307
      %3142 = vmatmul.mubr.bf16.gmra.mrb[0].mxu0 %v1306
      %v3143 = vpop.f32.mrb[0].mxu0
      %v3144 = vadd.f32 %v2783, %v3143
      %v3145 = vpop.f32.mrb[0].mxu0
      %v3146 = vadd.f32 %v2785, %v3145
      %v3147 = vpop.f32.mrb[0].mxu0
      %v3148 = vadd.f32 %v2787, %v3147
      %v3149 = vpop.f32.mrb[0].mxu0
      %v3150 = vadd.f32 %v2789, %v3149
      %3151 = vmatprep.mubr.bf16.mxu0 %v1313
      %3152 = vmatmul.mubr.bf16.gmra.mrb[0].mxu0 %v1312
      %v3153 = vpop.f32.mrb[0].mxu0
      %v3154 = vpop.f32.mrb[0].mxu0
      %v3155 = vpop.f32.mrb[0].mxu0
      %v3156 = vpop.f32.mrb[0].mxu0
      %3157 = vmatprep.mubr.bf16.mxu0 %v1319
      %3158 = vmatmul.mubr.bf16.gmra.mrb[0].mxu0 %v1318
      %v3159 = vpop.f32.mrb[0].mxu0
      %v3160 = vadd.f32 %v2799, %v3159
      %v3161 = vpop.f32.mrb[0].mxu0
      %v3162 = vadd.f32 %v2801, %v3161
      %v3163 = vpop.f32.mrb[0].mxu0
      %v3164 = vadd.f32 %v2803, %v3163
      %v3165 = vpop.f32.mrb[0].mxu0
      %v3166 = vadd.f32 %v2805, %v3165
      %3167 = vmatprep.mubr.bf16.mxu0 %v1325
      %3168 = vmatmul.mubr.bf16.gmra.mrb[0].mxu0 %v1324
      %v3169 = vpop.f32.mrb[0].mxu0
      %v3170 = vadd.f32 %v2809, %v3169
      %v3171 = vpop.f32.mrb[0].mxu0
      %v3172 = vadd.f32 %v2811, %v3171
      %v3173 = vpop.f32.mrb[0].mxu0
      %v3174 = vadd.f32 %v2813, %v3173
      %v3175 = vpop.f32.mrb[0].mxu0
      %v3176 = vadd.f32 %v2815, %v3175
      %3177 = vmatprep.mubr.bf16.mxu0 %v1331
      %3178 = vmatmul.mubr.bf16.gmra.mrb[0].mxu0 %v1330
      %v3179 = vpop.f32.mrb[0].mxu0
      %v3180 = vadd.f32 %v2819, %v3179
      %v3181 = vpop.f32.mrb[0].mxu0
      %v3182 = vadd.f32 %v2821, %v3181
      %v3183 = vpop.f32.mrb[0].mxu0
      %v3184 = vadd.f32 %v2823, %v3183
      %v3185 = vpop.f32.mrb[0].mxu0
      %v3186 = vadd.f32 %v2825, %v3185
      %3187 = vmatprep.mubr.bf16.mxu0 %v1337
      %3188 = vmatmul.mubr.bf16.gmra.mrb[0].mxu0 %v1336
      %v3189 = vpop.f32.mrb[0].mxu0
      %v3190 = vadd.f32 %v2829, %v3189
      %v3191 = vpop.f32.mrb[0].mxu0
      %v3192 = vadd.f32 %v2831, %v3191
      %v3193 = vpop.f32.mrb[0].mxu0
      %v3194 = vpop.f32.mrb[0].mxu0
      %3195 = vmatprep.mubr.bf16.mxu0 %v1343
      %3196 = vmatmul.mubr.bf16.gmra.mrb[0].mxu0 %v1342
      %v3197 = vpop.f32.mrb[0].mxu0
      %v3198 = vpop.f32.mrb[0].mxu0
      %v3199 = vpop.f32.mrb[0].mxu0
      %v3200 = vadd.f32 %v2839, %v3199
      %v3201 = vpop.f32.mrb[0].mxu0
      %v3202 = vadd.f32 %v2841, %v3201
      %3203 = vmatprep.mubr.bf16.mxu0 %v1349
      %3204 = vmatmul.mubr.bf16.gmra.mrb[0].mxu0 %v1348
      %v3205 = vpop.f32.mrb[0].mxu0
      %v3206 = vadd.f32 %v2845, %v3205
      %v3207 = vpop.f32.mrb[0].mxu0
      %v3208 = vadd.f32 %v2847, %v3207
      %v3209 = vpop.f32.mrb[0].mxu0
      %v3210 = vadd.f32 %v2849, %v3209
      %v3211 = vpop.f32.mrb[0].mxu0
      %v3212 = vadd.f32 %v2851, %v3211
      %3213 = vmatprep.mubr.bf16.mxu0 %v1355
      %3214 = vmatmul.mubr.bf16.gmra.mrb[0].mxu0 %v1354
      %v3215 = vpop.f32.mrb[0].mxu0
      %v3216 = vadd.f32 %v2855, %v3215
      %v3217 = vpop.f32.mrb[0].mxu0
      %v3218 = vadd.f32 %v2857, %v3217
      %v3219 = vpop.f32.mrb[0].mxu0
      %v3220 = vadd.f32 %v2859, %v3219
      %v3221 = vpop.f32.mrb[0].mxu0
      %v3222 = vadd.f32 %v2861, %v3221
      %3223 = vmatprep.mubr.bf16.mxu0 %v1361
      %3224 = vmatmul.mubr.bf16.gmra.mrb[0].mxu0 %v1360
      %v3225 = vpop.f32.mrb[0].mxu0
      %v3226 = vadd.f32 %v2865, %v3225
      %v3227 = vpop.f32.mrb[0].mxu0
      %v3228 = vadd.f32 %v2867, %v3227
      %v3229 = vpop.f32.mrb[0].mxu0
      %v3230 = vadd.f32 %v2869, %v3229
      %v3231 = vpop.f32.mrb[0].mxu0
      %v3232 = vadd.f32 %v2871, %v3231
      %3233 = vmatprep.mubr.bf16.mxu0 %v1367
      %3234 = vmatmul.mubr.bf16.gmra.mrb[0].mxu0 %v1366
      %v3235 = vpop.f32.mrb[0].mxu0
      %v3236 = vpop.f32.mrb[0].mxu0
      %v3237 = vpop.f32.mrb[0].mxu0
      %v3238 = vpop.f32.mrb[0].mxu0
      %3239 = vmatprep.mubr.bf16.mxu0 %v1373
      %3240 = vmatmul.mubr.bf16.gmra.mrb[0].mxu0 %v1372
      %v3241 = vpop.f32.mrb[0].mxu0
      %v3242 = vadd.f32 %v2881, %v3241
      %v3243 = vpop.f32.mrb[0].mxu0
      %v3244 = vadd.f32 %v2883, %v3243
      %v3245 = vpop.f32.mrb[0].mxu0
      %v3246 = vadd.f32 %v2885, %v3245
      %v3247 = vpop.f32.mrb[0].mxu0
      %v3248 = vadd.f32 %v2887, %v3247
      %3249 = vmatprep.mubr.bf16.mxu0 %v1379
      %3250 = vmatmul.mubr.bf16.gmra.mrb[0].mxu0 %v1378
      %v3251 = vpop.f32.mrb[0].mxu0
      %v3252 = vadd.f32 %v2891, %v3251
      %v3253 = vpop.f32.mrb[0].mxu0
      %v3254 = vadd.f32 %v2893, %v3253
      %v3255 = vpop.f32.mrb[0].mxu0
      %v3256 = vadd.f32 %v2895, %v3255
      %v3257 = vpop.f32.mrb[0].mxu0
      %v3258 = vadd.f32 %v2897, %v3257
      %3259 = vmatprep.mubr.bf16.mxu0 %v1385
      %3260 = vmatmul.mubr.bf16.gmra.mrb[0].mxu0 %v1384
      %v3261 = vpop.f32.mrb[0].mxu0
      %v3262 = vadd.f32 %v2901, %v3261
      %v3263 = vpop.f32.mrb[0].mxu0
      %v3264 = vadd.f32 %v2903, %v3263
      %v3265 = vpop.f32.mrb[0].mxu0
      %v3266 = vadd.f32 %v2905, %v3265
      %v3267 = vpop.f32.mrb[0].mxu0
      %v3268 = vadd.f32 %v2907, %v3267
      %3269 = vmatprep.mubr.bf16.mxu0 %v1391
      %3270 = vmatmul.mubr.bf16.gmra.mrb[0].mxu0 %v1390
      %v3271 = vpop.f32.mrb[0].mxu0
      %v3272 = vadd.f32 %v2911, %v3271
      %v3273 = vpop.f32.mrb[0].mxu0
      %v3274 = vadd.f32 %v2913, %v3273
      %v3275 = vpop.f32.mrb[0].mxu0
      %v3276 = vpop.f32.mrb[0].mxu0
      %3277 = vmatprep.mubr.bf16.mxu0 %v1397
      %3278 = vmatmul.mubr.bf16.gmra.mrb[0].mxu0 %v1396
      %v3279 = vpop.f32.mrb[0].mxu0
      %v3280 = vpop.f32.mrb[0].mxu0
      %v3281 = vpop.f32.mrb[0].mxu0
      %v3282 = vadd.f32 %v2921, %v3281
      %v3283 = vpop.f32.mrb[0].mxu0
      %v3284 = vadd.f32 %v2923, %v3283
      %3285 = vmatprep.mubr.bf16.mxu0 %v1403
      %3286 = vmatmul.mubr.bf16.gmra.mrb[0].mxu0 %v1402
      %v3287 = vpop.f32.mrb[0].mxu0
      %v3288 = vadd.f32 %v2927, %v3287
      %v3289 = vpop.f32.mrb[0].mxu0
      %v3290 = vadd.f32 %v2929, %v3289
      %v3291 = vpop.f32.mrb[0].mxu0
      %v3292 = vadd.f32 %v2931, %v3291
      %v3293 = vpop.f32.mrb[0].mxu0
      %v3294 = vadd.f32 %v2933, %v3293
      %3295 = vmatprep.mubr.bf16.mxu0 %v1409
      %3296 = vmatmul.mubr.bf16.gmra.mrb[0].mxu0 %v1408
      %v3297 = vpop.f32.mrb[0].mxu0
      %v3298 = vadd.f32 %v2937, %v3297
      %v3299 = vpop.f32.mrb[0].mxu0
      %v3300 = vadd.f32 %v2939, %v3299
      %v3301 = vpop.f32.mrb[0].mxu0
      %v3302 = vadd.f32 %v2941, %v3301
      %v3303 = vpop.f32.mrb[0].mxu0
      %v3304 = vadd.f32 %v2943, %v3303
      %3305 = vmatprep.mubr.bf16.mxu0 %v1415
      %3306 = vmatmul.mubr.bf16.gmra.mrb[0].mxu0 %v1414
      %v3307 = vpop.f32.mrb[0].mxu0
      %v3308 = vadd.f32 %v2947, %v3307
      %v3309 = vpop.f32.mrb[0].mxu0
      %v3310 = vadd.f32 %v2949, %v3309
      %v3311 = vpop.f32.mrb[0].mxu0
      %v3312 = vadd.f32 %v2951, %v3311
      %v3313 = vpop.f32.mrb[0].mxu0
      %v3314 = vadd.f32 %v2953, %v3313
      %3315 = vmatprep.mubr.bf16.mxu0 %v1421
      %3316 = vmatmul.mubr.bf16.gmra.mrb[0].mxu0 %v1420
      %v3317 = vpop.f32.mrb[0].mxu0
      %v3318 = vpop.f32.mrb[0].mxu0
      %v3319 = vpop.f32.mrb[0].mxu0
      %v3320 = vpop.f32.mrb[0].mxu0
      %3321 = vdwg.mxu0
      %3322 = vmatprep.subr.bf16.mxu0 %v2345
      %3323 = vmatpush1.bf16.msra.mxu0 %v2344
      %3324 = vmatprep.subr.bf16.mxu0 %v2349
      %3325 = vmatpush1.bf16.msra.mxu0 %v2348
      %3326 = vmatprep.subr.bf16.mxu0 %v2353
      %3327 = vmatpush1.bf16.msra.mxu0 %v2352
      %3328 = vmatprep.subr.bf16.mxu0 %v2357
      %3329 = vmatpush1.bf16.msra.mxu0 %v2356
      %3330 = vmatprep.subr.bf16.mxu0 %v2361
      %3331 = vmatpush1.bf16.msra.mxu0 %v2360
      %3332 = vmatprep.subr.bf16.mxu0 %v2365
      %3333 = vmatpush1.bf16.msra.mxu0 %v2364
      %3334 = vmatprep.subr.bf16.mxu0 %v2369
      %3335 = vmatpush1.bf16.msra.mxu0 %v2368
      %3336 = vmatprep.subr.bf16.mxu0 %v2373
      %3337 = vmatpush1.bf16.msra.mxu0 %v2372
      %3338 = vmatprep.subr.bf16.mxu0 %v2377
      %3339 = vmatpush1.bf16.msra.mxu0 %v2376
      %3340 = vmatprep.subr.bf16.mxu0 %v2381
      %3341 = vmatpush1.bf16.msra.mxu0 %v2380
      %3342 = vmatprep.subr.bf16.mxu0 %v2385
      %3343 = vmatpush1.bf16.msra.mxu0 %v2384
      %3344 = vmatprep.subr.bf16.mxu0 %v2389
      %3345 = vmatpush1.bf16.msra.mxu0 %v2388
      %3346 = vmatprep.subr.bf16.mxu0 %v2393
      %3347 = vmatpush1.bf16.msra.mxu0 %v2392
      %3348 = vmatprep.subr.bf16.mxu0 %v2397
      %3349 = vmatpush1.bf16.msra.mxu0 %v2396
      %3350 = vmatprep.subr.bf16.mxu0 %v2401
      %3351 = vmatpush1.bf16.msra.mxu0 %v2400
      %3352 = vmatprep.subr.bf16.mxu0 %v2405
      %3353 = vmatpush1.bf16.msra.mxu0 %v2404
      %3354 = vmatprep.mubr.bf16.mxu0 %v1213
      %3355 = vmatmul.mubr.bf16.gmra.mrb[0].mxu0 %v1212
      %v3356 = vpop.f32.mrb[0].mxu0
      %v3357 = vadd.f32 %v2996, %v3356
      %v3358 = vpop.f32.mrb[0].mxu0
      %v3359 = vadd.f32 %v2998, %v3358
      %v3360 = vpop.f32.mrb[0].mxu0
      %v3361 = vadd.f32 %v3000, %v3360
      %v3362 = vpop.f32.mrb[0].mxu0
      %v3363 = vadd.f32 %v3002, %v3362
      %3364 = vmatprep.mubr.bf16.mxu0 %v1219
      %3365 = vmatmul.mubr.bf16.gmra.mrb[0].mxu0 %v1218
      %v3366 = vpop.f32.mrb[0].mxu0
      %v3367 = vadd.f32 %v3006, %v3366
      %v3368 = vpop.f32.mrb[0].mxu0
      %v3369 = vadd.f32 %v3008, %v3368
      %v3370 = vpop.f32.mrb[0].mxu0
      %v3371 = vadd.f32 %v3010, %v3370
      %v3372 = vpop.f32.mrb[0].mxu0
      %v3373 = vadd.f32 %v3012, %v3372
      %3374 = vmatprep.mubr.bf16.mxu0 %v1225
      %3375 = vmatmul.mubr.bf16.gmra.mrb[0].mxu0 %v1224
      %v3376 = vpop.f32.mrb[0].mxu0
      %v3377 = vadd.f32 %v3016, %v3376
      %v3378 = vpop.f32.mrb[0].mxu0
      %v3379 = vadd.f32 %v3018, %v3378
      %v3380 = vpop.f32.mrb[0].mxu0
      %v3381 = vadd.f32 %v3020, %v3380
      %v3382 = vpop.f32.mrb[0].mxu0
      %v3383 = vadd.f32 %v3022, %v3382
      %3384 = vmatprep.mubr.bf16.mxu0 %v1231
      %3385 = vmatmul.mubr.bf16.gmra.mrb[0].mxu0 %v1230
      %v3386 = vpop.f32.mrb[0].mxu0
      %v3387 = vadd.f32 %v3026, %v3386
      %v3388 = vpop.f32.mrb[0].mxu0
      %v3389 = vadd.f32 %v3028, %v3388
      %v3390 = vpop.f32.mrb[0].mxu0
      %v3391 = vpop.f32.mrb[0].mxu0
      %3392 = vmatprep.mubr.bf16.mxu0 %v1237
      %3393 = vmatmul.mubr.bf16.gmra.mrb[0].mxu0 %v1236
      %v3394 = vpop.f32.mrb[0].mxu0
      %v3395 = vpop.f32.mrb[0].mxu0
      %v3396 = vpop.f32.mrb[0].mxu0
      %v3397 = vadd.f32 %v3036, %v3396
      %v3398 = vpop.f32.mrb[0].mxu0
      %v3399 = vadd.f32 %v3038, %v3398
      %3400 = vmatprep.mubr.bf16.mxu0 %v1243
      %3401 = vmatmul.mubr.bf16.gmra.mrb[0].mxu0 %v1242
      %v3402 = vpop.f32.mrb[0].mxu0
      %v3403 = vadd.f32 %v3042, %v3402
      %v3404 = vpop.f32.mrb[0].mxu0
      %v3405 = vadd.f32 %v3044, %v3404
      %v3406 = vpop.f32.mrb[0].mxu0
      %v3407 = vadd.f32 %v3046, %v3406
      %v3408 = vpop.f32.mrb[0].mxu0
      %v3409 = vadd.f32 %v3048, %v3408
      %3410 = vmatprep.mubr.bf16.mxu0 %v1249
      %3411 = vmatmul.mubr.bf16.gmra.mrb[0].mxu0 %v1248
      %v3412 = vpop.f32.mrb[0].mxu0
      %v3413 = vadd.f32 %v3052, %v3412
      %v3414 = vpop.f32.mrb[0].mxu0
      %v3415 = vadd.f32 %v3054, %v3414
      %v3416 = vpop.f32.mrb[0].mxu0
      %v3417 = vadd.f32 %v3056, %v3416
      %v3418 = vpop.f32.mrb[0].mxu0
      %v3419 = vadd.f32 %v3058, %v3418
      %3420 = vmatprep.mubr.bf16.mxu0 %v1255
      %3421 = vmatmul.mubr.bf16.gmra.mrb[0].mxu0 %v1254
      %v3422 = vpop.f32.mrb[0].mxu0
      %v3423 = vadd.f32 %v3062, %v3422
      %v3424 = vpop.f32.mrb[0].mxu0
      %v3425 = vadd.f32 %v3064, %v3424
      %v3426 = vpop.f32.mrb[0].mxu0
      %v3427 = vadd.f32 %v3066, %v3426
      %v3428 = vpop.f32.mrb[0].mxu0
      %v3429 = vadd.f32 %v3068, %v3428
      %3430 = vmatprep.mubr.bf16.mxu0 %v1261
      %3431 = vmatmul.mubr.bf16.gmra.mrb[0].mxu0 %v1260
      %v3432 = vpop.f32.mrb[0].mxu0
      %v3433 = vpop.f32.mrb[0].mxu0
      %v3434 = vpop.f32.mrb[0].mxu0
      %v3435 = vpop.f32.mrb[0].mxu0
      %3436 = vmatprep.mubr.bf16.mxu0 %v1267
      %3437 = vmatmul.mubr.bf16.gmra.mrb[0].mxu0 %v1266
      %v3438 = vpop.f32.mrb[0].mxu0
      %v3439 = vadd.f32 %v3078, %v3438
      %v3440 = vpop.f32.mrb[0].mxu0
      %v3441 = vadd.f32 %v3080, %v3440
      %v3442 = vpop.f32.mrb[0].mxu0
      %v3443 = vadd.f32 %v3082, %v3442
      %v3444 = vpop.f32.mrb[0].mxu0
      %v3445 = vadd.f32 %v3084, %v3444
      %3446 = vmatprep.mubr.bf16.mxu0 %v1273
      %3447 = vmatmul.mubr.bf16.gmra.mrb[0].mxu0 %v1272
      %v3448 = vpop.f32.mrb[0].mxu0
      %v3449 = vadd.f32 %v3088, %v3448
      %v3450 = vpop.f32.mrb[0].mxu0
      %v3451 = vadd.f32 %v3090, %v3450
      %v3452 = vpop.f32.mrb[0].mxu0
      %v3453 = vadd.f32 %v3092, %v3452
      %v3454 = vpop.f32.mrb[0].mxu0
      %v3455 = vadd.f32 %v3094, %v3454
      %3456 = vmatprep.mubr.bf16.mxu0 %v1279
      %3457 = vmatmul.mubr.bf16.gmra.mrb[0].mxu0 %v1278
      %v3458 = vpop.f32.mrb[0].mxu0
      %v3459 = vadd.f32 %v3098, %v3458
      %v3460 = vpop.f32.mrb[0].mxu0
      %v3461 = vadd.f32 %v3100, %v3460
      %v3462 = vpop.f32.mrb[0].mxu0
      %v3463 = vadd.f32 %v3102, %v3462
      %v3464 = vpop.f32.mrb[0].mxu0
      %v3465 = vadd.f32 %v3104, %v3464
      %3466 = vmatprep.mubr.bf16.mxu0 %v1285
      %3467 = vmatmul.mubr.bf16.gmra.mrb[0].mxu0 %v1284
      %v3468 = vpop.f32.mrb[0].mxu0
      %v3469 = vadd.f32 %v3108, %v3468
      %v3470 = vpop.f32.mrb[0].mxu0
      %v3471 = vadd.f32 %v3110, %v3470
      %v3472 = vpop.f32.mrb[0].mxu0
      %v3473 = vpop.f32.mrb[0].mxu0
      %3474 = vmatprep.mubr.bf16.mxu0 %v1291
      %3475 = vmatmul.mubr.bf16.gmra.mrb[0].mxu0 %v1290
      %v3476 = vpop.f32.mrb[0].mxu0
      %v3477 = vpop.f32.mrb[0].mxu0
      %v3478 = vpop.f32.mrb[0].mxu0
      %v3479 = vadd.f32 %v3118, %v3478
      %v3480 = vpop.f32.mrb[0].mxu0
      %v3481 = vadd.f32 %v3120, %v3480
      %3482 = vmatprep.mubr.bf16.mxu0 %v1297
      %3483 = vmatmul.mubr.bf16.gmra.mrb[0].mxu0 %v1296
      %v3484 = vpop.f32.mrb[0].mxu0
      %v3485 = vadd.f32 %v3124, %v3484
      %v3486 = vpop.f32.mrb[0].mxu0
      %v3487 = vadd.f32 %v3126, %v3486
      %v3488 = vpop.f32.mrb[0].mxu0
      %v3489 = vadd.f32 %v3128, %v3488
      %v3490 = vpop.f32.mrb[0].mxu0
      %v3491 = vadd.f32 %v3130, %v3490
      %3492 = vmatprep.mubr.bf16.mxu0 %v1303
      %3493 = vmatmul.mubr.bf16.gmra.mrb[0].mxu0 %v1302
      %v3494 = vpop.f32.mrb[0].mxu0
      %v3495 = vadd.f32 %v3134, %v3494
      %v3496 = vpop.f32.mrb[0].mxu0
      %v3497 = vadd.f32 %v3136, %v3496
      %v3498 = vpop.f32.mrb[0].mxu0
      %v3499 = vadd.f32 %v3138, %v3498
      %v3500 = vpop.f32.mrb[0].mxu0
      %v3501 = vadd.f32 %v3140, %v3500
      %3502 = vmatprep.mubr.bf16.mxu0 %v1309
      %3503 = vmatmul.mubr.bf16.gmra.mrb[0].mxu0 %v1308
      %v3504 = vpop.f32.mrb[0].mxu0
      %v3505 = vadd.f32 %v3144, %v3504
      %v3506 = vpop.f32.mrb[0].mxu0
      %v3507 = vadd.f32 %v3146, %v3506
      %v3508 = vpop.f32.mrb[0].mxu0
      %v3509 = vadd.f32 %v3148, %v3508
      %v3510 = vpop.f32.mrb[0].mxu0
      %v3511 = vadd.f32 %v3150, %v3510
      %3512 = vmatprep.mubr.bf16.mxu0 %v1315
      %3513 = vmatmul.mubr.bf16.gmra.mrb[0].mxu0 %v1314
      %v3514 = vpop.f32.mrb[0].mxu0
      %v3515 = vpop.f32.mrb[0].mxu0
      %v3516 = vpop.f32.mrb[0].mxu0
      %v3517 = vpop.f32.mrb[0].mxu0
      %3518 = vmatprep.mubr.bf16.mxu0 %v1321
      %3519 = vmatmul.mubr.bf16.gmra.mrb[0].mxu0 %v1320
      %v3520 = vpop.f32.mrb[0].mxu0
      %v3521 = vadd.f32 %v3160, %v3520
      %v3522 = vpop.f32.mrb[0].mxu0
      %v3523 = vadd.f32 %v3162, %v3522
      %v3524 = vpop.f32.mrb[0].mxu0
      %v3525 = vadd.f32 %v3164, %v3524
      %v3526 = vpop.f32.mrb[0].mxu0
      %v3527 = vadd.f32 %v3166, %v3526
      %3528 = vmatprep.mubr.bf16.mxu0 %v1327
      %3529 = vmatmul.mubr.bf16.gmra.mrb[0].mxu0 %v1326
      %v3530 = vpop.f32.mrb[0].mxu0
      %v3531 = vadd.f32 %v3170, %v3530
      %v3532 = vpop.f32.mrb[0].mxu0
      %v3533 = vadd.f32 %v3172, %v3532
      %v3534 = vpop.f32.mrb[0].mxu0
      %v3535 = vadd.f32 %v3174, %v3534
      %v3536 = vpop.f32.mrb[0].mxu0
      %v3537 = vadd.f32 %v3176, %v3536
      %3538 = vmatprep.mubr.bf16.mxu0 %v1333
      %3539 = vmatmul.mubr.bf16.gmra.mrb[0].mxu0 %v1332
      %v3540 = vpop.f32.mrb[0].mxu0
      %v3541 = vadd.f32 %v3180, %v3540
      %v3542 = vpop.f32.mrb[0].mxu0
      %v3543 = vadd.f32 %v3182, %v3542
      %v3544 = vpop.f32.mrb[0].mxu0
      %v3545 = vadd.f32 %v3184, %v3544
      %v3546 = vpop.f32.mrb[0].mxu0
      %v3547 = vadd.f32 %v3186, %v3546
      %3548 = vmatprep.mubr.bf16.mxu0 %v1339
      %3549 = vmatmul.mubr.bf16.gmra.mrb[0].mxu0 %v1338
      %v3550 = vpop.f32.mrb[0].mxu0
      %v3551 = vadd.f32 %v3190, %v3550
      %v3552 = vpop.f32.mrb[0].mxu0
      %v3553 = vadd.f32 %v3192, %v3552
      %v3554 = vpop.f32.mrb[0].mxu0
      %v3555 = vpop.f32.mrb[0].mxu0
      %3556 = vmatprep.mubr.bf16.mxu0 %v1345
      %3557 = vmatmul.mubr.bf16.gmra.mrb[0].mxu0 %v1344
      %v3558 = vpop.f32.mrb[0].mxu0
      %v3559 = vpop.f32.mrb[0].mxu0
      %v3560 = vpop.f32.mrb[0].mxu0
      %v3561 = vadd.f32 %v3200, %v3560
      %v3562 = vpop.f32.mrb[0].mxu0
      %v3563 = vadd.f32 %v3202, %v3562
      %3564 = vmatprep.mubr.bf16.mxu0 %v1351
      %3565 = vmatmul.mubr.bf16.gmra.mrb[0].mxu0 %v1350
      %v3566 = vpop.f32.mrb[0].mxu0
      %v3567 = vadd.f32 %v3206, %v3566
      %v3568 = vpop.f32.mrb[0].mxu0
      %v3569 = vadd.f32 %v3208, %v3568
      %v3570 = vpop.f32.mrb[0].mxu0
      %v3571 = vadd.f32 %v3210, %v3570
      %v3572 = vpop.f32.mrb[0].mxu0
      %v3573 = vadd.f32 %v3212, %v3572
      %3574 = vmatprep.mubr.bf16.mxu0 %v1357
      %3575 = vmatmul.mubr.bf16.gmra.mrb[0].mxu0 %v1356
      %v3576 = vpop.f32.mrb[0].mxu0
      %v3577 = vadd.f32 %v3216, %v3576
      %v3578 = vpop.f32.mrb[0].mxu0
      %v3579 = vadd.f32 %v3218, %v3578
      %v3580 = vpop.f32.mrb[0].mxu0
      %v3581 = vadd.f32 %v3220, %v3580
      %v3582 = vpop.f32.mrb[0].mxu0
      %v3583 = vadd.f32 %v3222, %v3582
      %3584 = vmatprep.mubr.bf16.mxu0 %v1363
      %3585 = vmatmul.mubr.bf16.gmra.mrb[0].mxu0 %v1362
      %v3586 = vpop.f32.mrb[0].mxu0
      %v3587 = vadd.f32 %v3226, %v3586
      %v3588 = vpop.f32.mrb[0].mxu0
      %v3589 = vadd.f32 %v3228, %v3588
      %v3590 = vpop.f32.mrb[0].mxu0
      %v3591 = vadd.f32 %v3230, %v3590
      %v3592 = vpop.f32.mrb[0].mxu0
      %v3593 = vadd.f32 %v3232, %v3592
      %3594 = vmatprep.mubr.bf16.mxu0 %v1369
      %3595 = vmatmul.mubr.bf16.gmra.mrb[0].mxu0 %v1368
      %v3596 = vpop.f32.mrb[0].mxu0
      %v3597 = vpop.f32.mrb[0].mxu0
      %v3598 = vpop.f32.mrb[0].mxu0
      %v3599 = vpop.f32.mrb[0].mxu0
      %3600 = vmatprep.mubr.bf16.mxu0 %v1375
      %3601 = vmatmul.mubr.bf16.gmra.mrb[0].mxu0 %v1374
      %v3602 = vpop.f32.mrb[0].mxu0
      %v3603 = vadd.f32 %v3242, %v3602
      %v3604 = vpop.f32.mrb[0].mxu0
      %v3605 = vadd.f32 %v3244, %v3604
      %v3606 = vpop.f32.mrb[0].mxu0
      %v3607 = vadd.f32 %v3246, %v3606
      %v3608 = vpop.f32.mrb[0].mxu0
      %v3609 = vadd.f32 %v3248, %v3608
      %3610 = vmatprep.mubr.bf16.mxu0 %v1381
      %3611 = vmatmul.mubr.bf16.gmra.mrb[0].mxu0 %v1380
      %v3612 = vpop.f32.mrb[0].mxu0
      %v3613 = vadd.f32 %v3252, %v3612
      %v3614 = vpop.f32.mrb[0].mxu0
      %v3615 = vadd.f32 %v3254, %v3614
      %v3616 = vpop.f32.mrb[0].mxu0
      %v3617 = vadd.f32 %v3256, %v3616
      %v3618 = vpop.f32.mrb[0].mxu0
      %v3619 = vadd.f32 %v3258, %v3618
      %3620 = vmatprep.mubr.bf16.mxu0 %v1387
      %3621 = vmatmul.mubr.bf16.gmra.mrb[0].mxu0 %v1386
      %v3622 = vpop.f32.mrb[0].mxu0
      %v3623 = vadd.f32 %v3262, %v3622
      %v3624 = vpop.f32.mrb[0].mxu0
      %v3625 = vadd.f32 %v3264, %v3624
      %v3626 = vpop.f32.mrb[0].mxu0
      %v3627 = vadd.f32 %v3266, %v3626
      %v3628 = vpop.f32.mrb[0].mxu0
      %v3629 = vadd.f32 %v3268, %v3628
      %3630 = vmatprep.mubr.bf16.mxu0 %v1393
      %3631 = vmatmul.mubr.bf16.gmra.mrb[0].mxu0 %v1392
      %v3632 = vpop.f32.mrb[0].mxu0
      %v3633 = vadd.f32 %v3272, %v3632
      %v3634 = vpop.f32.mrb[0].mxu0
      %v3635 = vadd.f32 %v3274, %v3634
      %v3636 = vpop.f32.mrb[0].mxu0
      %v3637 = vpop.f32.mrb[0].mxu0
      %3638 = vmatprep.mubr.bf16.mxu0 %v1399
      %3639 = vmatmul.mubr.bf16.gmra.mrb[0].mxu0 %v1398
      %v3640 = vpop.f32.mrb[0].mxu0
      %v3641 = vpop.f32.mrb[0].mxu0
      %v3642 = vpop.f32.mrb[0].mxu0
      %v3643 = vadd.f32 %v3282, %v3642
      %v3644 = vpop.f32.mrb[0].mxu0
      %v3645 = vadd.f32 %v3284, %v3644
      %3646 = vmatprep.mubr.bf16.mxu0 %v1405
      %3647 = vmatmul.mubr.bf16.gmra.mrb[0].mxu0 %v1404
      %v3648 = vpop.f32.mrb[0].mxu0
      %v3649 = vadd.f32 %v3288, %v3648
      %v3650 = vpop.f32.mrb[0].mxu0
      %v3651 = vadd.f32 %v3290, %v3650
      %v3652 = vpop.f32.mrb[0].mxu0
      %v3653 = vadd.f32 %v3292, %v3652
      %v3654 = vpop.f32.mrb[0].mxu0
      %v3655 = vadd.f32 %v3294, %v3654
      %3656 = vmatprep.mubr.bf16.mxu0 %v1411
      %3657 = vmatmul.mubr.bf16.gmra.mrb[0].mxu0 %v1410
      %v3658 = vpop.f32.mrb[0].mxu0
      %v3659 = vadd.f32 %v3298, %v3658
      %v3660 = vpop.f32.mrb[0].mxu0
      %v3661 = vadd.f32 %v3300, %v3660
      %v3662 = vpop.f32.mrb[0].mxu0
      %v3663 = vadd.f32 %v3302, %v3662
      %v3664 = vpop.f32.mrb[0].mxu0
      %v3665 = vadd.f32 %v3304, %v3664
      %3666 = vmatprep.mubr.bf16.mxu0 %v1417
      %3667 = vmatmul.mubr.bf16.gmra.mrb[0].mxu0 %v1416
      %v3668 = vpop.f32.mrb[0].mxu0
      %v3669 = vadd.f32 %v3308, %v3668
      %v3670 = vpop.f32.mrb[0].mxu0
      %v3671 = vadd.f32 %v3310, %v3670
      %v3672 = vpop.f32.mrb[0].mxu0
      %v3673 = vadd.f32 %v3312, %v3672
      %v3674 = vpop.f32.mrb[0].mxu0
      %v3675 = vadd.f32 %v3314, %v3674
      %3676 = vmatprep.mubr.bf16.mxu0 %v1423
      %3677 = vmatmul.mubr.bf16.gmra.mrb[0].mxu0 %v1422
      %v3678 = vpop.f32.mrb[0].mxu0
      %v3679 = vpop.f32.mrb[0].mxu0
      %v3680 = vpop.f32.mrb[0].mxu0
      %v3681 = vpop.f32.mrb[0].mxu0
      %3682 = vdwg.mxu0
      %3683 = vmatprep.subr.bf16.mxu0 %v2219
      %3684 = vmatpush1.bf16.msra.mxu0 %v2218
      %3685 = vmatprep.subr.bf16.mxu0 %v2223
      %3686 = vmatpush1.bf16.msra.mxu0 %v2222
      %3687 = vmatprep.subr.bf16.mxu0 %v2227
      %3688 = vmatpush1.bf16.msra.mxu0 %v2226
      %3689 = vmatprep.subr.bf16.mxu0 %v2231
      %3690 = vmatpush1.bf16.msra.mxu0 %v2230
      %3691 = vmatprep.subr.bf16.mxu0 %v2235
      %3692 = vmatpush1.bf16.msra.mxu0 %v2234
      %3693 = vmatprep.subr.bf16.mxu0 %v2239
      %3694 = vmatpush1.bf16.msra.mxu0 %v2238
      %3695 = vmatprep.subr.bf16.mxu0 %v2243
      %3696 = vmatpush1.bf16.msra.mxu0 %v2242
      %3697 = vmatprep.subr.bf16.mxu0 %v2247
      %3698 = vmatpush1.bf16.msra.mxu0 %v2246
      %3699 = vmatprep.subr.bf16.mxu0 %v2251
      %3700 = vmatpush1.bf16.msra.mxu0 %v2250
      %3701 = vmatprep.subr.bf16.mxu0 %v2255
      %3702 = vmatpush1.bf16.msra.mxu0 %v2254
      %3703 = vmatprep.subr.bf16.mxu0 %v2259
      %3704 = vmatpush1.bf16.msra.mxu0 %v2258
      %3705 = vmatprep.subr.bf16.mxu0 %v2263
      %3706 = vmatpush1.bf16.msra.mxu0 %v2262
      %3707 = vmatprep.subr.bf16.mxu0 %v2267
      %3708 = vmatpush1.bf16.msra.mxu0 %v2266
      %3709 = vmatprep.subr.bf16.mxu0 %v2271
      %3710 = vmatpush1.bf16.msra.mxu0 %v2270
      %3711 = vmatprep.subr.bf16.mxu0 %v2275
      %3712 = vmatpush1.bf16.msra.mxu0 %v2274
      %3713 = vmatprep.subr.bf16.mxu0 %v2279
      %3714 = vmatpush1.bf16.msra.mxu0 %v2278
      %3715 = vmatprep.mubr.bf16.mxu0 %v1209
      %3716 = vmatmul.mubr.bf16.gmra.mrb[0].mxu0 %v1208
      %v3717 = vpop.f32.mrb[0].mxu0
      %v3718 = vadd.f32 0.0, %v3717
      %v3719 = vpop.f32.mrb[0].mxu0
      %v3720 = vadd.f32 0.0, %v3719
      %v3721 = vpop.f32.mrb[0].mxu0
      %v3722 = vadd.f32 0.0, %v3721
      %v3723 = vpop.f32.mrb[0].mxu0
      %v3724 = vadd.f32 0.0, %v3723
      %3725 = vmatprep.mubr.bf16.mxu0 %v1215
      %3726 = vmatmul.mubr.bf16.gmra.mrb[0].mxu0 %v1214
      %v3727 = vpop.f32.mrb[0].mxu0
      %v3728 = vadd.f32 0.0, %v3727
      %v3729 = vpop.f32.mrb[0].mxu0
      %v3730 = vadd.f32 0.0, %v3729
      %v3731 = vpop.f32.mrb[0].mxu0
      %v3732 = vadd.f32 0.0, %v3731
      %v3733 = vpop.f32.mrb[0].mxu0
      %v3734 = vadd.f32 0.0, %v3733
      %3735 = vmatprep.mubr.bf16.mxu0 %v1221
      %3736 = vmatmul.mubr.bf16.gmra.mrb[0].mxu0 %v1220
      %v3737 = vpop.f32.mrb[0].mxu0
      %v3738 = vadd.f32 0.0, %v3737
      %v3739 = vpop.f32.mrb[0].mxu0
      %v3740 = vadd.f32 0.0, %v3739
      %v3741 = vpop.f32.mrb[0].mxu0
      %v3742 = vadd.f32 0.0, %v3741
      %v3743 = vpop.f32.mrb[0].mxu0
      %v3744 = vadd.f32 0.0, %v3743
      %3745 = vmatprep.mubr.bf16.mxu0 %v1227
      %3746 = vmatmul.mubr.bf16.gmra.mrb[0].mxu0 %v1226
      %v3747 = vpop.f32.mrb[0].mxu0
      %v3748 = vadd.f32 0.0, %v3747
      %v3749 = vpop.f32.mrb[0].mxu0
      %v3750 = vadd.f32 0.0, %v3749
      %v3751 = vpop.f32.mrb[0].mxu0
      %v3752 = vpop.f32.mrb[0].mxu0
      %3753 = vmatprep.mubr.bf16.mxu0 %v1233
      %3754 = vmatmul.mubr.bf16.gmra.mrb[0].mxu0 %v1232
      %v3755 = vpop.f32.mrb[0].mxu0
      %v3756 = vpop.f32.mrb[0].mxu0
      %v3757 = vpop.f32.mrb[0].mxu0
      %v3758 = vadd.f32 0.0, %v3757
      %v3759 = vpop.f32.mrb[0].mxu0
      %v3760 = vadd.f32 0.0, %v3759
      %3761 = vmatprep.mubr.bf16.mxu0 %v1239
      %3762 = vmatmul.mubr.bf16.gmra.mrb[0].mxu0 %v1238
      %v3763 = vpop.f32.mrb[0].mxu0
      %v3764 = vadd.f32 0.0, %v3763
      %v3765 = vpop.f32.mrb[0].mxu0
      %v3766 = vadd.f32 0.0, %v3765
      %v3767 = vpop.f32.mrb[0].mxu0
      %v3768 = vadd.f32 0.0, %v3767
      %v3769 = vpop.f32.mrb[0].mxu0
      %v3770 = vadd.f32 0.0, %v3769
      %3771 = vmatprep.mubr.bf16.mxu0 %v1245
      %3772 = vmatmul.mubr.bf16.gmra.mrb[0].mxu0 %v1244
      %v3773 = vpop.f32.mrb[0].mxu0
      %v3774 = vadd.f32 0.0, %v3773
      %v3775 = vpop.f32.mrb[0].mxu0
      %v3776 = vadd.f32 0.0, %v3775
      %v3777 = vpop.f32.mrb[0].mxu0
      %v3778 = vadd.f32 0.0, %v3777
      %v3779 = vpop.f32.mrb[0].mxu0
      %v3780 = vadd.f32 0.0, %v3779
      %3781 = vmatprep.mubr.bf16.mxu0 %v1251
      %3782 = vmatmul.mubr.bf16.gmra.mrb[0].mxu0 %v1250
      %v3783 = vpop.f32.mrb[0].mxu0
      %v3784 = vadd.f32 0.0, %v3783
      %v3785 = vpop.f32.mrb[0].mxu0
      %v3786 = vadd.f32 0.0, %v3785
      %v3787 = vpop.f32.mrb[0].mxu0
      %v3788 = vadd.f32 0.0, %v3787
      %v3789 = vpop.f32.mrb[0].mxu0
      %v3790 = vadd.f32 0.0, %v3789
      %3791 = vmatprep.mubr.bf16.mxu0 %v1257
      %3792 = vmatmul.mubr.bf16.gmra.mrb[0].mxu0 %v1256
      %v3793 = vpop.f32.mrb[0].mxu0
      %v3794 = vpop.f32.mrb[0].mxu0
      %v3795 = vpop.f32.mrb[0].mxu0
      %v3796 = vpop.f32.mrb[0].mxu0
      %3797 = vmatprep.mubr.bf16.mxu0 %v1263
      %3798 = vmatmul.mubr.bf16.gmra.mrb[0].mxu0 %v1262
      %v3799 = vpop.f32.mrb[0].mxu0
      %v3800 = vadd.f32 0.0, %v3799
      %v3801 = vpop.f32.mrb[0].mxu0
      %v3802 = vadd.f32 0.0, %v3801
      %v3803 = vpop.f32.mrb[0].mxu0
      %v3804 = vadd.f32 0.0, %v3803
      %v3805 = vpop.f32.mrb[0].mxu0
      %v3806 = vadd.f32 0.0, %v3805
      %3807 = vmatprep.mubr.bf16.mxu0 %v1269
      %3808 = vmatmul.mubr.bf16.gmra.mrb[0].mxu0 %v1268
      %v3809 = vpop.f32.mrb[0].mxu0
      %v3810 = vadd.f32 0.0, %v3809
      %v3811 = vpop.f32.mrb[0].mxu0
      %v3812 = vadd.f32 0.0, %v3811
      %v3813 = vpop.f32.mrb[0].mxu0
      %v3814 = vadd.f32 0.0, %v3813
      %v3815 = vpop.f32.mrb[0].mxu0
      %v3816 = vadd.f32 0.0, %v3815
      %3817 = vmatprep.mubr.bf16.mxu0 %v1275
      %3818 = vmatmul.mubr.bf16.gmra.mrb[0].mxu0 %v1274
      %v3819 = vpop.f32.mrb[0].mxu0
      %v3820 = vadd.f32 0.0, %v3819
      %v3821 = vpop.f32.mrb[0].mxu0
      %v3822 = vadd.f32 0.0, %v3821
      %v3823 = vpop.f32.mrb[0].mxu0
      %v3824 = vadd.f32 0.0, %v3823
      %v3825 = vpop.f32.mrb[0].mxu0
      %v3826 = vadd.f32 0.0, %v3825
      %3827 = vmatprep.mubr.bf16.mxu0 %v1281
      %3828 = vmatmul.mubr.bf16.gmra.mrb[0].mxu0 %v1280
      %v3829 = vpop.f32.mrb[0].mxu0
      %v3830 = vadd.f32 0.0, %v3829
      %v3831 = vpop.f32.mrb[0].mxu0
      %v3832 = vadd.f32 0.0, %v3831
      %v3833 = vpop.f32.mrb[0].mxu0
      %v3834 = vpop.f32.mrb[0].mxu0
      %3835 = vmatprep.mubr.bf16.mxu0 %v1287
      %3836 = vmatmul.mubr.bf16.gmra.mrb[0].mxu0 %v1286
      %v3837 = vpop.f32.mrb[0].mxu0
      %v3838 = vpop.f32.mrb[0].mxu0
      %v3839 = vpop.f32.mrb[0].mxu0
      %v3840 = vadd.f32 0.0, %v3839
      %v3841 = vpop.f32.mrb[0].mxu0
      %v3842 = vadd.f32 0.0, %v3841
      %3843 = vmatprep.mubr.bf16.mxu0 %v1293
      %3844 = vmatmul.mubr.bf16.gmra.mrb[0].mxu0 %v1292
      %v3845 = vpop.f32.mrb[0].mxu0
      %v3846 = vadd.f32 0.0, %v3845
      %v3847 = vpop.f32.mrb[0].mxu0
      %v3848 = vadd.f32 0.0, %v3847
      %v3849 = vpop.f32.mrb[0].mxu0
      %v3850 = vadd.f32 0.0, %v3849
      %v3851 = vpop.f32.mrb[0].mxu0
      %v3852 = vadd.f32 0.0, %v3851
      %3853 = vmatprep.mubr.bf16.mxu0 %v1299
      %3854 = vmatmul.mubr.bf16.gmra.mrb[0].mxu0 %v1298
      %v3855 = vpop.f32.mrb[0].mxu0
      %v3856 = vadd.f32 0.0, %v3855
      %v3857 = vpop.f32.mrb[0].mxu0
      %v3858 = vadd.f32 0.0, %v3857
      %v3859 = vpop.f32.mrb[0].mxu0
      %v3860 = vadd.f32 0.0, %v3859
      %v3861 = vpop.f32.mrb[0].mxu0
      %v3862 = vadd.f32 0.0, %v3861
      %3863 = vmatprep.mubr.bf16.mxu0 %v1305
      %3864 = vmatmul.mubr.bf16.gmra.mrb[0].mxu0 %v1304
      %v3865 = vpop.f32.mrb[0].mxu0
      %v3866 = vadd.f32 0.0, %v3865
      %v3867 = vpop.f32.mrb[0].mxu0
      %v3868 = vadd.f32 0.0, %v3867
      %v3869 = vpop.f32.mrb[0].mxu0
      %v3870 = vadd.f32 0.0, %v3869
      %v3871 = vpop.f32.mrb[0].mxu0
      %v3872 = vadd.f32 0.0, %v3871
      %3873 = vmatprep.mubr.bf16.mxu0 %v1311
      %3874 = vmatmul.mubr.bf16.gmra.mrb[0].mxu0 %v1310
      %v3875 = vpop.f32.mrb[0].mxu0
      %v3876 = vpop.f32.mrb[0].mxu0
      %v3877 = vpop.f32.mrb[0].mxu0
      %v3878 = vpop.f32.mrb[0].mxu0
      %3879 = vmatprep.mubr.bf16.mxu0 %v1317
      %3880 = vmatmul.mubr.bf16.gmra.mrb[0].mxu0 %v1316
      %v3881 = vpop.f32.mrb[0].mxu0
      %v3882 = vadd.f32 0.0, %v3881
      %v3883 = vpop.f32.mrb[0].mxu0
      %v3884 = vadd.f32 0.0, %v3883
      %v3885 = vpop.f32.mrb[0].mxu0
      %v3886 = vadd.f32 0.0, %v3885
      %v3887 = vpop.f32.mrb[0].mxu0
      %v3888 = vadd.f32 0.0, %v3887
      %3889 = vmatprep.mubr.bf16.mxu0 %v1323
      %3890 = vmatmul.mubr.bf16.gmra.mrb[0].mxu0 %v1322
      %v3891 = vpop.f32.mrb[0].mxu0
      %v3892 = vadd.f32 0.0, %v3891
      %v3893 = vpop.f32.mrb[0].mxu0
      %v3894 = vadd.f32 0.0, %v3893
      %v3895 = vpop.f32.mrb[0].mxu0
      %v3896 = vadd.f32 0.0, %v3895
      %v3897 = vpop.f32.mrb[0].mxu0
      %v3898 = vadd.f32 0.0, %v3897
      %3899 = vmatprep.mubr.bf16.mxu0 %v1329
      %3900 = vmatmul.mubr.bf16.gmra.mrb[0].mxu0 %v1328
      %v3901 = vpop.f32.mrb[0].mxu0
      %v3902 = vadd.f32 0.0, %v3901
      %v3903 = vpop.f32.mrb[0].mxu0
      %v3904 = vadd.f32 0.0, %v3903
      %v3905 = vpop.f32.mrb[0].mxu0
      %v3906 = vadd.f32 0.0, %v3905
      %v3907 = vpop.f32.mrb[0].mxu0
      %v3908 = vadd.f32 0.0, %v3907
      %3909 = vmatprep.mubr.bf16.mxu0 %v1335
      %3910 = vmatmul.mubr.bf16.gmra.mrb[0].mxu0 %v1334
      %v3911 = vpop.f32.mrb[0].mxu0
      %v3912 = vadd.f32 0.0, %v3911
      %v3913 = vpop.f32.mrb[0].mxu0
      %v3914 = vadd.f32 0.0, %v3913
      %v3915 = vpop.f32.mrb[0].mxu0
      %v3916 = vpop.f32.mrb[0].mxu0
      %3917 = vmatprep.mubr.bf16.mxu0 %v1341
      %3918 = vmatmul.mubr.bf16.gmra.mrb[0].mxu0 %v1340
      %v3919 = vpop.f32.mrb[0].mxu0
      %v3920 = vpop.f32.mrb[0].mxu0
      %v3921 = vpop.f32.mrb[0].mxu0
      %v3922 = vadd.f32 0.0, %v3921
      %v3923 = vpop.f32.mrb[0].mxu0
      %v3924 = vadd.f32 0.0, %v3923
      %3925 = vmatprep.mubr.bf16.mxu0 %v1347
      %3926 = vmatmul.mubr.bf16.gmra.mrb[0].mxu0 %v1346
      %v3927 = vpop.f32.mrb[0].mxu0
      %v3928 = vadd.f32 0.0, %v3927
      %v3929 = vpop.f32.mrb[0].mxu0
      %v3930 = vadd.f32 0.0, %v3929
      %v3931 = vpop.f32.mrb[0].mxu0
      %v3932 = vadd.f32 0.0, %v3931
      %v3933 = vpop.f32.mrb[0].mxu0
      %v3934 = vadd.f32 0.0, %v3933
      %3935 = vmatprep.mubr.bf16.mxu0 %v1353
      %3936 = vmatmul.mubr.bf16.gmra.mrb[0].mxu0 %v1352
      %v3937 = vpop.f32.mrb[0].mxu0
      %v3938 = vadd.f32 0.0, %v3937
      %v3939 = vpop.f32.mrb[0].mxu0
      %v3940 = vadd.f32 0.0, %v3939
      %v3941 = vpop.f32.mrb[0].mxu0
      %v3942 = vadd.f32 0.0, %v3941
      %v3943 = vpop.f32.mrb[0].mxu0
      %v3944 = vadd.f32 0.0, %v3943
      %3945 = vmatprep.mubr.bf16.mxu0 %v1359
      %3946 = vmatmul.mubr.bf16.gmra.mrb[0].mxu0 %v1358
      %v3947 = vpop.f32.mrb[0].mxu0
      %v3948 = vadd.f32 0.0, %v3947
      %v3949 = vpop.f32.mrb[0].mxu0
      %v3950 = vadd.f32 0.0, %v3949
      %v3951 = vpop.f32.mrb[0].mxu0
      %v3952 = vadd.f32 0.0, %v3951
      %v3953 = vpop.f32.mrb[0].mxu0
      %v3954 = vadd.f32 0.0, %v3953
      %3955 = vmatprep.mubr.bf16.mxu0 %v1365
      %3956 = vmatmul.mubr.bf16.gmra.mrb[0].mxu0 %v1364
      %v3957 = vpop.f32.mrb[0].mxu0
      %v3958 = vpop.f32.mrb[0].mxu0
      %v3959 = vpop.f32.mrb[0].mxu0
      %v3960 = vpop.f32.mrb[0].mxu0
      %3961 = vmatprep.mubr.bf16.mxu0 %v1371
      %3962 = vmatmul.mubr.bf16.gmra.mrb[0].mxu0 %v1370
      %v3963 = vpop.f32.mrb[0].mxu0
      %v3964 = vadd.f32 0.0, %v3963
      %v3965 = vpop.f32.mrb[0].mxu0
      %v3966 = vadd.f32 0.0, %v3965
      %v3967 = vpop.f32.mrb[0].mxu0
      %v3968 = vadd.f32 0.0, %v3967
      %v3969 = vpop.f32.mrb[0].mxu0
      %v3970 = vadd.f32 0.0, %v3969
      %3971 = vmatprep.mubr.bf16.mxu0 %v1377
      %3972 = vmatmul.mubr.bf16.gmra.mrb[0].mxu0 %v1376
      %v3973 = vpop.f32.mrb[0].mxu0
      %v3974 = vadd.f32 0.0, %v3973
      %v3975 = vpop.f32.mrb[0].mxu0
      %v3976 = vadd.f32 0.0, %v3975
      %v3977 = vpop.f32.mrb[0].mxu0
      %v3978 = vadd.f32 0.0, %v3977
      %v3979 = vpop.f32.mrb[0].mxu0
      %v3980 = vadd.f32 0.0, %v3979
      %3981 = vmatprep.mubr.bf16.mxu0 %v1383
      %3982 = vmatmul.mubr.bf16.gmra.mrb[0].mxu0 %v1382
      %v3983 = vpop.f32.mrb[0].mxu0
      %v3984 = vadd.f32 0.0, %v3983
      %v3985 = vpop.f32.mrb[0].mxu0
      %v3986 = vadd.f32 0.0, %v3985
      %v3987 = vpop.f32.mrb[0].mxu0
      %v3988 = vadd.f32 0.0, %v3987
      %v3989 = vpop.f32.mrb[0].mxu0
      %v3990 = vadd.f32 0.0, %v3989
      %3991 = vmatprep.mubr.bf16.mxu0 %v1389
      %3992 = vmatmul.mubr.bf16.gmra.mrb[0].mxu0 %v1388
      %v3993 = vpop.f32.mrb[0].mxu0
      %v3994 = vadd.f32 0.0, %v3993
      %v3995 = vpop.f32.mrb[0].mxu0
      %v3996 = vadd.f32 0.0, %v3995
      %v3997 = vpop.f32.mrb[0].mxu0
      %v3998 = vpop.f32.mrb[0].mxu0
      %3999 = vmatprep.mubr.bf16.mxu0 %v1395
      %4000 = vmatmul.mubr.bf16.gmra.mrb[0].mxu0 %v1394
      %v4001 = vpop.f32.mrb[0].mxu0
      %v4002 = vpop.f32.mrb[0].mxu0
      %v4003 = vpop.f32.mrb[0].mxu0
      %v4004 = vadd.f32 0.0, %v4003
      %v4005 = vpop.f32.mrb[0].mxu0
      %v4006 = vadd.f32 0.0, %v4005
      %4007 = vmatprep.mubr.bf16.mxu0 %v1401
      %4008 = vmatmul.mubr.bf16.gmra.mrb[0].mxu0 %v1400
      %v4009 = vpop.f32.mrb[0].mxu0
      %v4010 = vadd.f32 0.0, %v4009
      %v4011 = vpop.f32.mrb[0].mxu0
      %v4012 = vadd.f32 0.0, %v4011
      %v4013 = vpop.f32.mrb[0].mxu0
      %v4014 = vadd.f32 0.0, %v4013
      %v4015 = vpop.f32.mrb[0].mxu0
      %v4016 = vadd.f32 0.0, %v4015
      %4017 = vmatprep.mubr.bf16.mxu0 %v1407
      %4018 = vmatmul.mubr.bf16.gmra.mrb[0].mxu0 %v1406
      %v4019 = vpop.f32.mrb[0].mxu0
      %v4020 = vadd.f32 0.0, %v4019
      %v4021 = vpop.f32.mrb[0].mxu0
      %v4022 = vadd.f32 0.0, %v4021
      %v4023 = vpop.f32.mrb[0].mxu0
      %v4024 = vadd.f32 0.0, %v4023
      %v4025 = vpop.f32.mrb[0].mxu0
      %v4026 = vadd.f32 0.0, %v4025
      %4027 = vmatprep.mubr.bf16.mxu0 %v1413
      %4028 = vmatmul.mubr.bf16.gmra.mrb[0].mxu0 %v1412
      %v4029 = vpop.f32.mrb[0].mxu0
      %v4030 = vadd.f32 0.0, %v4029
      %v4031 = vpop.f32.mrb[0].mxu0
      %v4032 = vadd.f32 0.0, %v4031
      %v4033 = vpop.f32.mrb[0].mxu0
      %v4034 = vadd.f32 0.0, %v4033
      %v4035 = vpop.f32.mrb[0].mxu0
      %v4036 = vadd.f32 0.0, %v4035
      %4037 = vmatprep.mubr.bf16.mxu0 %v1419
      %4038 = vmatmul.mubr.bf16.gmra.mrb[0].mxu0 %v1418
      %v4039 = vpop.f32.mrb[0].mxu0
      %v4040 = vpop.f32.mrb[0].mxu0
      %v4041 = vpop.f32.mrb[0].mxu0
      %v4042 = vpop.f32.mrb[0].mxu0
      %4043 = vdwg.mxu0
      %4044 = vmatprep.subr.bf16.mxu0 %v2283
      %4045 = vmatpush1.bf16.msra.mxu0 %v2282
      %4046 = vmatprep.subr.bf16.mxu0 %v2287
      %4047 = vmatpush1.bf16.msra.mxu0 %v2286
      %4048 = vmatprep.subr.bf16.mxu0 %v2291
      %4049 = vmatpush1.bf16.msra.mxu0 %v2290
      %4050 = vmatprep.subr.bf16.mxu0 %v2295
      %4051 = vmatpush1.bf16.msra.mxu0 %v2294
      %4052 = vmatprep.subr.bf16.mxu0 %v2299
      %4053 = vmatpush1.bf16.msra.mxu0 %v2298
      %4054 = vmatprep.subr.bf16.mxu0 %v2303
      %4055 = vmatpush1.bf16.msra.mxu0 %v2302
      %4056 = vmatprep.subr.bf16.mxu0 %v2307
      %4057 = vmatpush1.bf16.msra.mxu0 %v2306
      %4058 = vmatprep.subr.bf16.mxu0 %v2311
      %4059 = vmatpush1.bf16.msra.mxu0 %v2310
      %4060 = vmatprep.subr.bf16.mxu0 %v2315
      %4061 = vmatpush1.bf16.msra.mxu0 %v2314
      %4062 = vmatprep.subr.bf16.mxu0 %v2319
      %4063 = vmatpush1.bf16.msra.mxu0 %v2318
      %4064 = vmatprep.subr.bf16.mxu0 %v2323
      %4065 = vmatpush1.bf16.msra.mxu0 %v2322
      %4066 = vmatprep.subr.bf16.mxu0 %v2327
      %4067 = vmatpush1.bf16.msra.mxu0 %v2326
      %4068 = vmatprep.subr.bf16.mxu0 %v2331
      %4069 = vmatpush1.bf16.msra.mxu0 %v2330
      %4070 = vmatprep.subr.bf16.mxu0 %v2335
      %4071 = vmatpush1.bf16.msra.mxu0 %v2334
      %4072 = vmatprep.subr.bf16.mxu0 %v2339
      %4073 = vmatpush1.bf16.msra.mxu0 %v2338
      %4074 = vmatprep.subr.bf16.mxu0 %v2343
      %4075 = vmatpush1.bf16.msra.mxu0 %v2342
      %4076 = vmatprep.mubr.bf16.mxu0 %v1211
      %4077 = vmatmul.mubr.bf16.gmra.mrb[0].mxu0 %v1210
      %v4078 = vpop.f32.mrb[0].mxu0
      %v4079 = vadd.f32 %v3718, %v4078
      %v4080 = vpop.f32.mrb[0].mxu0
      %v4081 = vadd.f32 %v3720, %v4080
      %v4082 = vpop.f32.mrb[0].mxu0
      %v4083 = vadd.f32 %v3722, %v4082
      %v4084 = vpop.f32.mrb[0].mxu0
      %v4085 = vadd.f32 %v3724, %v4084
      %4086 = vmatprep.mubr.bf16.mxu0 %v1217
      %4087 = vmatmul.mubr.bf16.gmra.mrb[0].mxu0 %v1216
      %v4088 = vpop.f32.mrb[0].mxu0
      %v4089 = vadd.f32 %v3728, %v4088
      %v4090 = vpop.f32.mrb[0].mxu0
      %v4091 = vadd.f32 %v3730, %v4090
      %v4092 = vpop.f32.mrb[0].mxu0
      %v4093 = vadd.f32 %v3732, %v4092
      %v4094 = vpop.f32.mrb[0].mxu0
      %v4095 = vadd.f32 %v3734, %v4094
      %4096 = vmatprep.mubr.bf16.mxu0 %v1223
      %4097 = vmatmul.mubr.bf16.gmra.mrb[0].mxu0 %v1222
      %v4098 = vpop.f32.mrb[0].mxu0
      %v4099 = vadd.f32 %v3738, %v4098
      %v4100 = vpop.f32.mrb[0].mxu0
      %v4101 = vadd.f32 %v3740, %v4100
      %v4102 = vpop.f32.mrb[0].mxu0
      %v4103 = vadd.f32 %v3742, %v4102
      %v4104 = vpop.f32.mrb[0].mxu0
      %v4105 = vadd.f32 %v3744, %v4104
      %4106 = vmatprep.mubr.bf16.mxu0 %v1229
      %4107 = vmatmul.mubr.bf16.gmra.mrb[0].mxu0 %v1228
      %v4108 = vpop.f32.mrb[0].mxu0
      %v4109 = vadd.f32 %v3748, %v4108
      %v4110 = vpop.f32.mrb[0].mxu0
      %v4111 = vadd.f32 %v3750, %v4110
      %v4112 = vpop.f32.mrb[0].mxu0
      %v4113 = vpop.f32.mrb[0].mxu0
      %4114 = vmatprep.mubr.bf16.mxu0 %v1235
      %4115 = vmatmul.mubr.bf16.gmra.mrb[0].mxu0 %v1234
      %v4116 = vpop.f32.mrb[0].mxu0
      %v4117 = vpop.f32.mrb[0].mxu0
      %v4118 = vpop.f32.mrb[0].mxu0
      %v4119 = vadd.f32 %v3758, %v4118
      %v4120 = vpop.f32.mrb[0].mxu0
      %v4121 = vadd.f32 %v3760, %v4120
      %4122 = vmatprep.mubr.bf16.mxu0 %v1241
      %4123 = vmatmul.mubr.bf16.gmra.mrb[0].mxu0 %v1240
      %v4124 = vpop.f32.mrb[0].mxu0
      %v4125 = vadd.f32 %v3764, %v4124
      %v4126 = vpop.f32.mrb[0].mxu0
      %v4127 = vadd.f32 %v3766, %v4126
      %v4128 = vpop.f32.mrb[0].mxu0
      %v4129 = vadd.f32 %v3768, %v4128
      %v4130 = vpop.f32.mrb[0].mxu0
      %v4131 = vadd.f32 %v3770, %v4130
      %4132 = vmatprep.mubr.bf16.mxu0 %v1247
      %4133 = vmatmul.mubr.bf16.gmra.mrb[0].mxu0 %v1246
      %v4134 = vpop.f32.mrb[0].mxu0
      %v4135 = vadd.f32 %v3774, %v4134
      %v4136 = vpop.f32.mrb[0].mxu0
      %v4137 = vadd.f32 %v3776, %v4136
      %v4138 = vpop.f32.mrb[0].mxu0
      %v4139 = vadd.f32 %v3778, %v4138
      %v4140 = vpop.f32.mrb[0].mxu0
      %v4141 = vadd.f32 %v3780, %v4140
      %4142 = vmatprep.mubr.bf16.mxu0 %v1253
      %4143 = vmatmul.mubr.bf16.gmra.mrb[0].mxu0 %v1252
      %v4144 = vpop.f32.mrb[0].mxu0
      %v4145 = vadd.f32 %v3784, %v4144
      %v4146 = vpop.f32.mrb[0].mxu0
      %v4147 = vadd.f32 %v3786, %v4146
      %v4148 = vpop.f32.mrb[0].mxu0
      %v4149 = vadd.f32 %v3788, %v4148
      %v4150 = vpop.f32.mrb[0].mxu0
      %v4151 = vadd.f32 %v3790, %v4150
      %4152 = vmatprep.mubr.bf16.mxu0 %v1259
      %4153 = vmatmul.mubr.bf16.gmra.mrb[0].mxu0 %v1258
      %v4154 = vpop.f32.mrb[0].mxu0
      %v4155 = vpop.f32.mrb[0].mxu0
      %v4156 = vpop.f32.mrb[0].mxu0
      %v4157 = vpop.f32.mrb[0].mxu0
      %4158 = vmatprep.mubr.bf16.mxu0 %v1265
      %4159 = vmatmul.mubr.bf16.gmra.mrb[0].mxu0 %v1264
      %v4160 = vpop.f32.mrb[0].mxu0
      %v4161 = vadd.f32 %v3800, %v4160
      %v4162 = vpop.f32.mrb[0].mxu0
      %v4163 = vadd.f32 %v3802, %v4162
      %v4164 = vpop.f32.mrb[0].mxu0
      %v4165 = vadd.f32 %v3804, %v4164
      %v4166 = vpop.f32.mrb[0].mxu0
      %v4167 = vadd.f32 %v3806, %v4166
      %4168 = vmatprep.mubr.bf16.mxu0 %v1271
      %4169 = vmatmul.mubr.bf16.gmra.mrb[0].mxu0 %v1270
      %v4170 = vpop.f32.mrb[0].mxu0
      %v4171 = vadd.f32 %v3810, %v4170
      %v4172 = vpop.f32.mrb[0].mxu0
      %v4173 = vadd.f32 %v3812, %v4172
      %v4174 = vpop.f32.mrb[0].mxu0
      %v4175 = vadd.f32 %v3814, %v4174
      %v4176 = vpop.f32.mrb[0].mxu0
      %v4177 = vadd.f32 %v3816, %v4176
      %4178 = vmatprep.mubr.bf16.mxu0 %v1277
      %4179 = vmatmul.mubr.bf16.gmra.mrb[0].mxu0 %v1276
      %v4180 = vpop.f32.mrb[0].mxu0
      %v4181 = vadd.f32 %v3820, %v4180
      %v4182 = vpop.f32.mrb[0].mxu0
      %v4183 = vadd.f32 %v3822, %v4182
      %v4184 = vpop.f32.mrb[0].mxu0
      %v4185 = vadd.f32 %v3824, %v4184
      %v4186 = vpop.f32.mrb[0].mxu0
      %v4187 = vadd.f32 %v3826, %v4186
      %4188 = vmatprep.mubr.bf16.mxu0 %v1283
      %4189 = vmatmul.mubr.bf16.gmra.mrb[0].mxu0 %v1282
      %v4190 = vpop.f32.mrb[0].mxu0
      %v4191 = vadd.f32 %v3830, %v4190
      %v4192 = vpop.f32.mrb[0].mxu0
      %v4193 = vadd.f32 %v3832, %v4192
      %v4194 = vpop.f32.mrb[0].mxu0
      %v4195 = vpop.f32.mrb[0].mxu0
      %4196 = vmatprep.mubr.bf16.mxu0 %v1289
      %4197 = vmatmul.mubr.bf16.gmra.mrb[0].mxu0 %v1288
      %v4198 = vpop.f32.mrb[0].mxu0
      %v4199 = vpop.f32.mrb[0].mxu0
      %v4200 = vpop.f32.mrb[0].mxu0
      %v4201 = vadd.f32 %v3840, %v4200
      %v4202 = vpop.f32.mrb[0].mxu0
      %v4203 = vadd.f32 %v3842, %v4202
      %4204 = vmatprep.mubr.bf16.mxu0 %v1295
      %4205 = vmatmul.mubr.bf16.gmra.mrb[0].mxu0 %v1294
      %v4206 = vpop.f32.mrb[0].mxu0
      %v4207 = vadd.f32 %v3846, %v4206
      %v4208 = vpop.f32.mrb[0].mxu0
      %v4209 = vadd.f32 %v3848, %v4208
      %v4210 = vpop.f32.mrb[0].mxu0
      %v4211 = vadd.f32 %v3850, %v4210
      %v4212 = vpop.f32.mrb[0].mxu0
      %v4213 = vadd.f32 %v3852, %v4212
      %4214 = vmatprep.mubr.bf16.mxu0 %v1301
      %4215 = vmatmul.mubr.bf16.gmra.mrb[0].mxu0 %v1300
      %v4216 = vpop.f32.mrb[0].mxu0
      %v4217 = vadd.f32 %v3856, %v4216
      %v4218 = vpop.f32.mrb[0].mxu0
      %v4219 = vadd.f32 %v3858, %v4218
      %v4220 = vpop.f32.mrb[0].mxu0
      %v4221 = vadd.f32 %v3860, %v4220
      %v4222 = vpop.f32.mrb[0].mxu0
      %v4223 = vadd.f32 %v3862, %v4222
      %4224 = vmatprep.mubr.bf16.mxu0 %v1307
      %4225 = vmatmul.mubr.bf16.gmra.mrb[0].mxu0 %v1306
      %v4226 = vpop.f32.mrb[0].mxu0
      %v4227 = vadd.f32 %v3866, %v4226
      %v4228 = vpop.f32.mrb[0].mxu0
      %v4229 = vadd.f32 %v3868, %v4228
      %v4230 = vpop.f32.mrb[0].mxu0
      %v4231 = vadd.f32 %v3870, %v4230
      %v4232 = vpop.f32.mrb[0].mxu0
      %v4233 = vadd.f32 %v3872, %v4232
      %4234 = vmatprep.mubr.bf16.mxu0 %v1313
      %4235 = vmatmul.mubr.bf16.gmra.mrb[0].mxu0 %v1312
      %v4236 = vpop.f32.mrb[0].mxu0
      %v4237 = vpop.f32.mrb[0].mxu0
      %v4238 = vpop.f32.mrb[0].mxu0
      %v4239 = vpop.f32.mrb[0].mxu0
      %4240 = vmatprep.mubr.bf16.mxu0 %v1319
      %4241 = vmatmul.mubr.bf16.gmra.mrb[0].mxu0 %v1318
      %v4242 = vpop.f32.mrb[0].mxu0
      %v4243 = vadd.f32 %v3882, %v4242
      %v4244 = vpop.f32.mrb[0].mxu0
      %v4245 = vadd.f32 %v3884, %v4244
      %v4246 = vpop.f32.mrb[0].mxu0
      %v4247 = vadd.f32 %v3886, %v4246
      %v4248 = vpop.f32.mrb[0].mxu0
      %v4249 = vadd.f32 %v3888, %v4248
      %4250 = vmatprep.mubr.bf16.mxu0 %v1325
      %4251 = vmatmul.mubr.bf16.gmra.mrb[0].mxu0 %v1324
      %v4252 = vpop.f32.mrb[0].mxu0
      %v4253 = vadd.f32 %v3892, %v4252
      %v4254 = vpop.f32.mrb[0].mxu0
      %v4255 = vadd.f32 %v3894, %v4254
      %v4256 = vpop.f32.mrb[0].mxu0
      %v4257 = vadd.f32 %v3896, %v4256
      %v4258 = vpop.f32.mrb[0].mxu0
      %v4259 = vadd.f32 %v3898, %v4258
      %4260 = vmatprep.mubr.bf16.mxu0 %v1331
      %4261 = vmatmul.mubr.bf16.gmra.mrb[0].mxu0 %v1330
      %v4262 = vpop.f32.mrb[0].mxu0
      %v4263 = vadd.f32 %v3902, %v4262
      %v4264 = vpop.f32.mrb[0].mxu0
      %v4265 = vadd.f32 %v3904, %v4264
      %v4266 = vpop.f32.mrb[0].mxu0
      %v4267 = vadd.f32 %v3906, %v4266
      %v4268 = vpop.f32.mrb[0].mxu0
      %v4269 = vadd.f32 %v3908, %v4268
      %4270 = vmatprep.mubr.bf16.mxu0 %v1337
      %4271 = vmatmul.mubr.bf16.gmra.mrb[0].mxu0 %v1336
      %v4272 = vpop.f32.mrb[0].mxu0
      %v4273 = vadd.f32 %v3912, %v4272
      %v4274 = vpop.f32.mrb[0].mxu0
      %v4275 = vadd.f32 %v3914, %v4274
      %v4276 = vpop.f32.mrb[0].mxu0
      %v4277 = vpop.f32.mrb[0].mxu0
      %4278 = vmatprep.mubr.bf16.mxu0 %v1343
      %4279 = vmatmul.mubr.bf16.gmra.mrb[0].mxu0 %v1342
      %v4280 = vpop.f32.mrb[0].mxu0
      %v4281 = vpop.f32.mrb[0].mxu0
      %v4282 = vpop.f32.mrb[0].mxu0
      %v4283 = vadd.f32 %v3922, %v4282
      %v4284 = vpop.f32.mrb[0].mxu0
      %v4285 = vadd.f32 %v3924, %v4284
      %4286 = vmatprep.mubr.bf16.mxu0 %v1349
      %4287 = vmatmul.mubr.bf16.gmra.mrb[0].mxu0 %v1348
      %v4288 = vpop.f32.mrb[0].mxu0
      %v4289 = vadd.f32 %v3928, %v4288
      %v4290 = vpop.f32.mrb[0].mxu0
      %v4291 = vadd.f32 %v3930, %v4290
      %v4292 = vpop.f32.mrb[0].mxu0
      %v4293 = vadd.f32 %v3932, %v4292
      %v4294 = vpop.f32.mrb[0].mxu0
      %v4295 = vadd.f32 %v3934, %v4294
      %4296 = vmatprep.mubr.bf16.mxu0 %v1355
      %4297 = vmatmul.mubr.bf16.gmra.mrb[0].mxu0 %v1354
      %v4298 = vpop.f32.mrb[0].mxu0
      %v4299 = vadd.f32 %v3938, %v4298
      %v4300 = vpop.f32.mrb[0].mxu0
      %v4301 = vadd.f32 %v3940, %v4300
      %v4302 = vpop.f32.mrb[0].mxu0
      %v4303 = vadd.f32 %v3942, %v4302
      %v4304 = vpop.f32.mrb[0].mxu0
      %v4305 = vadd.f32 %v3944, %v4304
      %4306 = vmatprep.mubr.bf16.mxu0 %v1361
      %4307 = vmatmul.mubr.bf16.gmra.mrb[0].mxu0 %v1360
      %v4308 = vpop.f32.mrb[0].mxu0
      %v4309 = vadd.f32 %v3948, %v4308
      %v4310 = vpop.f32.mrb[0].mxu0
      %v4311 = vadd.f32 %v3950, %v4310
      %v4312 = vpop.f32.mrb[0].mxu0
      %v4313 = vadd.f32 %v3952, %v4312
      %v4314 = vpop.f32.mrb[0].mxu0
      %v4315 = vadd.f32 %v3954, %v4314
      %4316 = vmatprep.mubr.bf16.mxu0 %v1367
      %4317 = vmatmul.mubr.bf16.gmra.mrb[0].mxu0 %v1366
      %v4318 = vpop.f32.mrb[0].mxu0
      %v4319 = vpop.f32.mrb[0].mxu0
      %v4320 = vpop.f32.mrb[0].mxu0
      %v4321 = vpop.f32.mrb[0].mxu0
      %4322 = vmatprep.mubr.bf16.mxu0 %v1373
      %4323 = vmatmul.mubr.bf16.gmra.mrb[0].mxu0 %v1372
      %v4324 = vpop.f32.mrb[0].mxu0
      %v4325 = vadd.f32 %v3964, %v4324
      %v4326 = vpop.f32.mrb[0].mxu0
      %v4327 = vadd.f32 %v3966, %v4326
      %v4328 = vpop.f32.mrb[0].mxu0
      %v4329 = vadd.f32 %v3968, %v4328
      %v4330 = vpop.f32.mrb[0].mxu0
      %v4331 = vadd.f32 %v3970, %v4330
      %4332 = vmatprep.mubr.bf16.mxu0 %v1379
      %4333 = vmatmul.mubr.bf16.gmra.mrb[0].mxu0 %v1378
      %v4334 = vpop.f32.mrb[0].mxu0
      %v4335 = vadd.f32 %v3974, %v4334
      %v4336 = vpop.f32.mrb[0].mxu0
      %v4337 = vadd.f32 %v3976, %v4336
      %v4338 = vpop.f32.mrb[0].mxu0
      %v4339 = vadd.f32 %v3978, %v4338
      %v4340 = vpop.f32.mrb[0].mxu0
      %v4341 = vadd.f32 %v3980, %v4340
      %4342 = vmatprep.mubr.bf16.mxu0 %v1385
      %4343 = vmatmul.mubr.bf16.gmra.mrb[0].mxu0 %v1384
      %v4344 = vpop.f32.mrb[0].mxu0
      %v4345 = vadd.f32 %v3984, %v4344
      %v4346 = vpop.f32.mrb[0].mxu0
      %v4347 = vadd.f32 %v3986, %v4346
      %v4348 = vpop.f32.mrb[0].mxu0
      %v4349 = vadd.f32 %v3988, %v4348
      %v4350 = vpop.f32.mrb[0].mxu0
      %v4351 = vadd.f32 %v3990, %v4350
      %4352 = vmatprep.mubr.bf16.mxu0 %v1391
      %4353 = vmatmul.mubr.bf16.gmra.mrb[0].mxu0 %v1390
      %v4354 = vpop.f32.mrb[0].mxu0
      %v4355 = vadd.f32 %v3994, %v4354
      %v4356 = vpop.f32.mrb[0].mxu0
      %v4357 = vadd.f32 %v3996, %v4356
      %v4358 = vpop.f32.mrb[0].mxu0
      %v4359 = vpop.f32.mrb[0].mxu0
      %4360 = vmatprep.mubr.bf16.mxu0 %v1397
      %4361 = vmatmul.mubr.bf16.gmra.mrb[0].mxu0 %v1396
      %v4362 = vpop.f32.mrb[0].mxu0
      %v4363 = vpop.f32.mrb[0].mxu0
      %v4364 = vpop.f32.mrb[0].mxu0
      %v4365 = vadd.f32 %v4004, %v4364
      %v4366 = vpop.f32.mrb[0].mxu0
      %v4367 = vadd.f32 %v4006, %v4366
      %4368 = vmatprep.mubr.bf16.mxu0 %v1403
      %4369 = vmatmul.mubr.bf16.gmra.mrb[0].mxu0 %v1402
      %v4370 = vpop.f32.mrb[0].mxu0
      %v4371 = vadd.f32 %v4010, %v4370
      %v4372 = vpop.f32.mrb[0].mxu0
      %v4373 = vadd.f32 %v4012, %v4372
      %v4374 = vpop.f32.mrb[0].mxu0
      %v4375 = vadd.f32 %v4014, %v4374
      %v4376 = vpop.f32.mrb[0].mxu0
      %v4377 = vadd.f32 %v4016, %v4376
      %4378 = vmatprep.mubr.bf16.mxu0 %v1409
      %4379 = vmatmul.mubr.bf16.gmra.mrb[0].mxu0 %v1408
      %v4380 = vpop.f32.mrb[0].mxu0
      %v4381 = vadd.f32 %v4020, %v4380
      %v4382 = vpop.f32.mrb[0].mxu0
      %v4383 = vadd.f32 %v4022, %v4382
      %v4384 = vpop.f32.mrb[0].mxu0
      %v4385 = vadd.f32 %v4024, %v4384
      %v4386 = vpop.f32.mrb[0].mxu0
      %v4387 = vadd.f32 %v4026, %v4386
      %4388 = vmatprep.mubr.bf16.mxu0 %v1415
      %4389 = vmatmul.mubr.bf16.gmra.mrb[0].mxu0 %v1414
      %v4390 = vpop.f32.mrb[0].mxu0
      %v4391 = vadd.f32 %v4030, %v4390
      %v4392 = vpop.f32.mrb[0].mxu0
      %v4393 = vadd.f32 %v4032, %v4392
      %v4394 = vpop.f32.mrb[0].mxu0
      %v4395 = vadd.f32 %v4034, %v4394
      %v4396 = vpop.f32.mrb[0].mxu0
      %v4397 = vadd.f32 %v4036, %v4396
      %4398 = vmatprep.mubr.bf16.mxu0 %v1421
      %4399 = vmatmul.mubr.bf16.gmra.mrb[0].mxu0 %v1420
      %v4400 = vpop.f32.mrb[0].mxu0
      %v4401 = vpop.f32.mrb[0].mxu0
      %v4402 = vpop.f32.mrb[0].mxu0
      %v4403 = vpop.f32.mrb[0].mxu0
      %4404 = vdwg.mxu0
      %4405 = vmatprep.subr.bf16.mxu0 %v2347
      %4406 = vmatpush1.bf16.msra.mxu0 %v2346
      %4407 = vmatprep.subr.bf16.mxu0 %v2351
      %4408 = vmatpush1.bf16.msra.mxu0 %v2350
      %4409 = vmatprep.subr.bf16.mxu0 %v2355
      %4410 = vmatpush1.bf16.msra.mxu0 %v2354
      %4411 = vmatprep.subr.bf16.mxu0 %v2359
      %4412 = vmatpush1.bf16.msra.mxu0 %v2358
      %4413 = vmatprep.subr.bf16.mxu0 %v2363
      %4414 = vmatpush1.bf16.msra.mxu0 %v2362
      %4415 = vmatprep.subr.bf16.mxu0 %v2367
      %4416 = vmatpush1.bf16.msra.mxu0 %v2366
      %4417 = vmatprep.subr.bf16.mxu0 %v2371
      %4418 = vmatpush1.bf16.msra.mxu0 %v2370
      %4419 = vmatprep.subr.bf16.mxu0 %v2375
      %4420 = vmatpush1.bf16.msra.mxu0 %v2374
      %4421 = vmatprep.subr.bf16.mxu0 %v2379
      %4422 = vmatpush1.bf16.msra.mxu0 %v2378
      %4423 = vmatprep.subr.bf16.mxu0 %v2383
      %4424 = vmatpush1.bf16.msra.mxu0 %v2382
      %4425 = vmatprep.subr.bf16.mxu0 %v2387
      %4426 = vmatpush1.bf16.msra.mxu0 %v2386
      %4427 = vmatprep.subr.bf16.mxu0 %v2391
      %4428 = vmatpush1.bf16.msra.mxu0 %v2390
      %4429 = vmatprep.subr.bf16.mxu0 %v2395
      %4430 = vmatpush1.bf16.msra.mxu0 %v2394
      %4431 = vmatprep.subr.bf16.mxu0 %v2399
      %4432 = vmatpush1.bf16.msra.mxu0 %v2398
      %4433 = vmatprep.subr.bf16.mxu0 %v2403
      %4434 = vmatpush1.bf16.msra.mxu0 %v2402
      %4435 = vmatprep.subr.bf16.mxu0 %v2407
      %4436 = vmatpush1.bf16.msra.mxu0 %v2406
      %4437 = vmatprep.mubr.bf16.mxu0 %v1213
      %4438 = vmatmul.mubr.bf16.gmra.mrb[0].mxu0 %v1212
      %v4439 = vpop.f32.mrb[0].mxu0
      %v4440 = vadd.f32 %v4079, %v4439
      %v4441 = vpop.f32.mrb[0].mxu0
      %v4442 = vadd.f32 %v4081, %v4441
      %v4443 = vpop.f32.mrb[0].mxu0
      %v4444 = vadd.f32 %v4083, %v4443
      %v4445 = vpop.f32.mrb[0].mxu0
      %v4446 = vadd.f32 %v4085, %v4445
      %4447 = vmatprep.mubr.bf16.mxu0 %v1219
      %4448 = vmatmul.mubr.bf16.gmra.mrb[0].mxu0 %v1218
      %v4449 = vpop.f32.mrb[0].mxu0
      %v4450 = vadd.f32 %v4089, %v4449
      %v4451 = vpop.f32.mrb[0].mxu0
      %v4452 = vadd.f32 %v4091, %v4451
      %v4453 = vpop.f32.mrb[0].mxu0
      %v4454 = vadd.f32 %v4093, %v4453
      %v4455 = vpop.f32.mrb[0].mxu0
      %v4456 = vadd.f32 %v4095, %v4455
      %4457 = vmatprep.mubr.bf16.mxu0 %v1225
      %4458 = vmatmul.mubr.bf16.gmra.mrb[0].mxu0 %v1224
      %v4459 = vpop.f32.mrb[0].mxu0
      %v4460 = vadd.f32 %v4099, %v4459
      %v4461 = vpop.f32.mrb[0].mxu0
      %v4462 = vadd.f32 %v4101, %v4461
      %v4463 = vpop.f32.mrb[0].mxu0
      %v4464 = vadd.f32 %v4103, %v4463
      %v4465 = vpop.f32.mrb[0].mxu0
      %v4466 = vadd.f32 %v4105, %v4465
      %4467 = vmatprep.mubr.bf16.mxu0 %v1231
      %4468 = vmatmul.mubr.bf16.gmra.mrb[0].mxu0 %v1230
      %v4469 = vpop.f32.mrb[0].mxu0
      %v4470 = vadd.f32 %v4109, %v4469
      %v4471 = vpop.f32.mrb[0].mxu0
      %v4472 = vadd.f32 %v4111, %v4471
      %v4473 = vpop.f32.mrb[0].mxu0
      %v4474 = vpop.f32.mrb[0].mxu0
      %4475 = vmatprep.mubr.bf16.mxu0 %v1237
      %4476 = vmatmul.mubr.bf16.gmra.mrb[0].mxu0 %v1236
      %v4477 = vpop.f32.mrb[0].mxu0
      %v4478 = vpop.f32.mrb[0].mxu0
      %v4479 = vpop.f32.mrb[0].mxu0
      %v4480 = vadd.f32 %v4119, %v4479
      %v4481 = vpop.f32.mrb[0].mxu0
      %v4482 = vadd.f32 %v4121, %v4481
      %4483 = vmatprep.mubr.bf16.mxu0 %v1243
      %4484 = vmatmul.mubr.bf16.gmra.mrb[0].mxu0 %v1242
      %v4485 = vpop.f32.mrb[0].mxu0
      %v4486 = vadd.f32 %v4125, %v4485
      %v4487 = vpop.f32.mrb[0].mxu0
      %v4488 = vadd.f32 %v4127, %v4487
      %v4489 = vpop.f32.mrb[0].mxu0
      %v4490 = vadd.f32 %v4129, %v4489
      %v4491 = vpop.f32.mrb[0].mxu0
      %v4492 = vadd.f32 %v4131, %v4491
      %4493 = vmatprep.mubr.bf16.mxu0 %v1249
      %4494 = vmatmul.mubr.bf16.gmra.mrb[0].mxu0 %v1248
      %v4495 = vpop.f32.mrb[0].mxu0
      %v4496 = vadd.f32 %v4135, %v4495
      %v4497 = vpop.f32.mrb[0].mxu0
      %v4498 = vadd.f32 %v4137, %v4497
      %v4499 = vpop.f32.mrb[0].mxu0
      %v4500 = vadd.f32 %v4139, %v4499
      %v4501 = vpop.f32.mrb[0].mxu0
      %v4502 = vadd.f32 %v4141, %v4501
      %4503 = vmatprep.mubr.bf16.mxu0 %v1255
      %4504 = vmatmul.mubr.bf16.gmra.mrb[0].mxu0 %v1254
      %v4505 = vpop.f32.mrb[0].mxu0
      %v4506 = vadd.f32 %v4145, %v4505
      %v4507 = vpop.f32.mrb[0].mxu0
      %v4508 = vadd.f32 %v4147, %v4507
      %v4509 = vpop.f32.mrb[0].mxu0
      %v4510 = vadd.f32 %v4149, %v4509
      %v4511 = vpop.f32.mrb[0].mxu0
      %v4512 = vadd.f32 %v4151, %v4511
      %4513 = vmatprep.mubr.bf16.mxu0 %v1261
      %4514 = vmatmul.mubr.bf16.gmra.mrb[0].mxu0 %v1260
      %v4515 = vpop.f32.mrb[0].mxu0
      %v4516 = vpop.f32.mrb[0].mxu0
      %v4517 = vpop.f32.mrb[0].mxu0
      %v4518 = vpop.f32.mrb[0].mxu0
      %4519 = vmatprep.mubr.bf16.mxu0 %v1267
      %4520 = vmatmul.mubr.bf16.gmra.mrb[0].mxu0 %v1266
      %v4521 = vpop.f32.mrb[0].mxu0
      %v4522 = vadd.f32 %v4161, %v4521
      %v4523 = vpop.f32.mrb[0].mxu0
      %v4524 = vadd.f32 %v4163, %v4523
      %v4525 = vpop.f32.mrb[0].mxu0
      %v4526 = vadd.f32 %v4165, %v4525
      %v4527 = vpop.f32.mrb[0].mxu0
      %v4528 = vadd.f32 %v4167, %v4527
      %4529 = vmatprep.mubr.bf16.mxu0 %v1273
      %4530 = vmatmul.mubr.bf16.gmra.mrb[0].mxu0 %v1272
      %v4531 = vpop.f32.mrb[0].mxu0
      %v4532 = vadd.f32 %v4171, %v4531
      %v4533 = vpop.f32.mrb[0].mxu0
      %v4534 = vadd.f32 %v4173, %v4533
      %v4535 = vpop.f32.mrb[0].mxu0
      %v4536 = vadd.f32 %v4175, %v4535
      %v4537 = vpop.f32.mrb[0].mxu0
      %v4538 = vadd.f32 %v4177, %v4537
      %4539 = vmatprep.mubr.bf16.mxu0 %v1279
      %4540 = vmatmul.mubr.bf16.gmra.mrb[0].mxu0 %v1278
      %v4541 = vpop.f32.mrb[0].mxu0
      %v4542 = vadd.f32 %v4181, %v4541
      %v4543 = vpop.f32.mrb[0].mxu0
      %v4544 = vadd.f32 %v4183, %v4543
      %v4545 = vpop.f32.mrb[0].mxu0
      %v4546 = vadd.f32 %v4185, %v4545
      %v4547 = vpop.f32.mrb[0].mxu0
      %v4548 = vadd.f32 %v4187, %v4547
      %4549 = vmatprep.mubr.bf16.mxu0 %v1285
      %4550 = vmatmul.mubr.bf16.gmra.mrb[0].mxu0 %v1284
      %v4551 = vpop.f32.mrb[0].mxu0
      %v4552 = vadd.f32 %v4191, %v4551
      %v4553 = vpop.f32.mrb[0].mxu0
      %v4554 = vadd.f32 %v4193, %v4553
      %v4555 = vpop.f32.mrb[0].mxu0
      %v4556 = vpop.f32.mrb[0].mxu0
      %4557 = vmatprep.mubr.bf16.mxu0 %v1291
      %4558 = vmatmul.mubr.bf16.gmra.mrb[0].mxu0 %v1290
      %v4559 = vpop.f32.mrb[0].mxu0
      %v4560 = vpop.f32.mrb[0].mxu0
      %v4561 = vpop.f32.mrb[0].mxu0
      %v4562 = vadd.f32 %v4201, %v4561
      %v4563 = vpop.f32.mrb[0].mxu0
      %v4564 = vadd.f32 %v4203, %v4563
      %4565 = vmatprep.mubr.bf16.mxu0 %v1297
      %4566 = vmatmul.mubr.bf16.gmra.mrb[0].mxu0 %v1296
      %v4567 = vpop.f32.mrb[0].mxu0
      %v4568 = vadd.f32 %v4207, %v4567
      %v4569 = vpop.f32.mrb[0].mxu0
      %v4570 = vadd.f32 %v4209, %v4569
      %v4571 = vpop.f32.mrb[0].mxu0
      %v4572 = vadd.f32 %v4211, %v4571
      %v4573 = vpop.f32.mrb[0].mxu0
      %v4574 = vadd.f32 %v4213, %v4573
      %4575 = vmatprep.mubr.bf16.mxu0 %v1303
      %4576 = vmatmul.mubr.bf16.gmra.mrb[0].mxu0 %v1302
      %v4577 = vpop.f32.mrb[0].mxu0
      %v4578 = vadd.f32 %v4217, %v4577
      %v4579 = vpop.f32.mrb[0].mxu0
      %v4580 = vadd.f32 %v4219, %v4579
      %v4581 = vpop.f32.mrb[0].mxu0
      %v4582 = vadd.f32 %v4221, %v4581
      %v4583 = vpop.f32.mrb[0].mxu0
      %v4584 = vadd.f32 %v4223, %v4583
      %4585 = vmatprep.mubr.bf16.mxu0 %v1309
      %4586 = vmatmul.mubr.bf16.gmra.mrb[0].mxu0 %v1308
      %v4587 = vpop.f32.mrb[0].mxu0
      %v4588 = vadd.f32 %v4227, %v4587
      %v4589 = vpop.f32.mrb[0].mxu0
      %v4590 = vadd.f32 %v4229, %v4589
      %v4591 = vpop.f32.mrb[0].mxu0
      %v4592 = vadd.f32 %v4231, %v4591
      %v4593 = vpop.f32.mrb[0].mxu0
      %v4594 = vadd.f32 %v4233, %v4593
      %4595 = vmatprep.mubr.bf16.mxu0 %v1315
      %4596 = vmatmul.mubr.bf16.gmra.mrb[0].mxu0 %v1314
      %v4597 = vpop.f32.mrb[0].mxu0
      %v4598 = vpop.f32.mrb[0].mxu0
      %v4599 = vpop.f32.mrb[0].mxu0
      %v4600 = vpop.f32.mrb[0].mxu0
      %4601 = vmatprep.mubr.bf16.mxu0 %v1321
      %4602 = vmatmul.mubr.bf16.gmra.mrb[0].mxu0 %v1320
      %v4603 = vpop.f32.mrb[0].mxu0
      %v4604 = vadd.f32 %v4243, %v4603
      %v4605 = vpop.f32.mrb[0].mxu0
      %v4606 = vadd.f32 %v4245, %v4605
      %v4607 = vpop.f32.mrb[0].mxu0
      %v4608 = vadd.f32 %v4247, %v4607
      %v4609 = vpop.f32.mrb[0].mxu0
      %v4610 = vadd.f32 %v4249, %v4609
      %4611 = vmatprep.mubr.bf16.mxu0 %v1327
      %4612 = vmatmul.mubr.bf16.gmra.mrb[0].mxu0 %v1326
      %v4613 = vpop.f32.mrb[0].mxu0
      %v4614 = vadd.f32 %v4253, %v4613
      %v4615 = vpop.f32.mrb[0].mxu0
      %v4616 = vadd.f32 %v4255, %v4615
      %v4617 = vpop.f32.mrb[0].mxu0
      %v4618 = vadd.f32 %v4257, %v4617
      %v4619 = vpop.f32.mrb[0].mxu0
      %v4620 = vadd.f32 %v4259, %v4619
      %4621 = vmatprep.mubr.bf16.mxu0 %v1333
      %4622 = vmatmul.mubr.bf16.gmra.mrb[0].mxu0 %v1332
      %v4623 = vpop.f32.mrb[0].mxu0
      %v4624 = vadd.f32 %v4263, %v4623
      %v4625 = vpop.f32.mrb[0].mxu0
      %v4626 = vadd.f32 %v4265, %v4625
      %v4627 = vpop.f32.mrb[0].mxu0
      %v4628 = vadd.f32 %v4267, %v4627
      %v4629 = vpop.f32.mrb[0].mxu0
      %v4630 = vadd.f32 %v4269, %v4629
      %4631 = vmatprep.mubr.bf16.mxu0 %v1339
      %4632 = vmatmul.mubr.bf16.gmra.mrb[0].mxu0 %v1338
      %v4633 = vpop.f32.mrb[0].mxu0
      %v4634 = vadd.f32 %v4273, %v4633
      %v4635 = vpop.f32.mrb[0].mxu0
      %v4636 = vadd.f32 %v4275, %v4635
      %v4637 = vpop.f32.mrb[0].mxu0
      %v4638 = vpop.f32.mrb[0].mxu0
      %4639 = vmatprep.mubr.bf16.mxu0 %v1345
      %4640 = vmatmul.mubr.bf16.gmra.mrb[0].mxu0 %v1344
      %v4641 = vpop.f32.mrb[0].mxu0
      %v4642 = vpop.f32.mrb[0].mxu0
      %v4643 = vpop.f32.mrb[0].mxu0
      %v4644 = vadd.f32 %v4283, %v4643
      %v4645 = vpop.f32.mrb[0].mxu0
      %v4646 = vadd.f32 %v4285, %v4645
      %4647 = vmatprep.mubr.bf16.mxu0 %v1351
      %4648 = vmatmul.mubr.bf16.gmra.mrb[0].mxu0 %v1350
      %v4649 = vpop.f32.mrb[0].mxu0
      %v4650 = vadd.f32 %v4289, %v4649
      %v4651 = vpop.f32.mrb[0].mxu0
      %v4652 = vadd.f32 %v4291, %v4651
      %v4653 = vpop.f32.mrb[0].mxu0
      %v4654 = vadd.f32 %v4293, %v4653
      %v4655 = vpop.f32.mrb[0].mxu0
      %v4656 = vadd.f32 %v4295, %v4655
      %4657 = vmatprep.mubr.bf16.mxu0 %v1357
      %4658 = vmatmul.mubr.bf16.gmra.mrb[0].mxu0 %v1356
      %v4659 = vpop.f32.mrb[0].mxu0
      %v4660 = vadd.f32 %v4299, %v4659
      %v4661 = vpop.f32.mrb[0].mxu0
      %v4662 = vadd.f32 %v4301, %v4661
      %v4663 = vpop.f32.mrb[0].mxu0
      %v4664 = vadd.f32 %v4303, %v4663
      %v4665 = vpop.f32.mrb[0].mxu0
      %v4666 = vadd.f32 %v4305, %v4665
      %4667 = vmatprep.mubr.bf16.mxu0 %v1363
      %4668 = vmatmul.mubr.bf16.gmra.mrb[0].mxu0 %v1362
      %v4669 = vpop.f32.mrb[0].mxu0
      %v4670 = vadd.f32 %v4309, %v4669
      %v4671 = vpop.f32.mrb[0].mxu0
      %v4672 = vadd.f32 %v4311, %v4671
      %v4673 = vpop.f32.mrb[0].mxu0
      %v4674 = vadd.f32 %v4313, %v4673
      %v4675 = vpop.f32.mrb[0].mxu0
      %v4676 = vadd.f32 %v4315, %v4675
      %4677 = vmatprep.mubr.bf16.mxu0 %v1369
      %4678 = vmatmul.mubr.bf16.gmra.mrb[0].mxu0 %v1368
      %v4679 = vpop.f32.mrb[0].mxu0
      %v4680 = vpop.f32.mrb[0].mxu0
      %v4681 = vpop.f32.mrb[0].mxu0
      %v4682 = vpop.f32.mrb[0].mxu0
      %4683 = vmatprep.mubr.bf16.mxu0 %v1375
      %4684 = vmatmul.mubr.bf16.gmra.mrb[0].mxu0 %v1374
      %v4685 = vpop.f32.mrb[0].mxu0
      %v4686 = vadd.f32 %v4325, %v4685
      %v4687 = vpop.f32.mrb[0].mxu0
      %v4688 = vadd.f32 %v4327, %v4687
      %v4689 = vpop.f32.mrb[0].mxu0
      %v4690 = vadd.f32 %v4329, %v4689
      %v4691 = vpop.f32.mrb[0].mxu0
      %v4692 = vadd.f32 %v4331, %v4691
      %4693 = vmatprep.mubr.bf16.mxu0 %v1381
      %4694 = vmatmul.mubr.bf16.gmra.mrb[0].mxu0 %v1380
      %v4695 = vpop.f32.mrb[0].mxu0
      %v4696 = vadd.f32 %v4335, %v4695
      %v4697 = vpop.f32.mrb[0].mxu0
      %v4698 = vadd.f32 %v4337, %v4697
      %v4699 = vpop.f32.mrb[0].mxu0
      %v4700 = vadd.f32 %v4339, %v4699
      %v4701 = vpop.f32.mrb[0].mxu0
      %v4702 = vadd.f32 %v4341, %v4701
      %4703 = vmatprep.mubr.bf16.mxu0 %v1387
      %4704 = vmatmul.mubr.bf16.gmra.mrb[0].mxu0 %v1386
      %v4705 = vpop.f32.mrb[0].mxu0
      %v4706 = vadd.f32 %v4345, %v4705
      %v4707 = vpop.f32.mrb[0].mxu0
      %v4708 = vadd.f32 %v4347, %v4707
      %v4709 = vpop.f32.mrb[0].mxu0
      %v4710 = vadd.f32 %v4349, %v4709
      %v4711 = vpop.f32.mrb[0].mxu0
      %v4712 = vadd.f32 %v4351, %v4711
      %4713 = vmatprep.mubr.bf16.mxu0 %v1393
      %4714 = vmatmul.mubr.bf16.gmra.mrb[0].mxu0 %v1392
      %v4715 = vpop.f32.mrb[0].mxu0
      %v4716 = vadd.f32 %v4355, %v4715
      %v4717 = vpop.f32.mrb[0].mxu0
      %v4718 = vadd.f32 %v4357, %v4717
      %v4719 = vpop.f32.mrb[0].mxu0
      %v4720 = vpop.f32.mrb[0].mxu0
      %4721 = vmatprep.mubr.bf16.mxu0 %v1399
      %4722 = vmatmul.mubr.bf16.gmra.mrb[0].mxu0 %v1398
      %v4723 = vpop.f32.mrb[0].mxu0
      %v4724 = vpop.f32.mrb[0].mxu0
      %v4725 = vpop.f32.mrb[0].mxu0
      %v4726 = vadd.f32 %v4365, %v4725
      %v4727 = vpop.f32.mrb[0].mxu0
      %v4728 = vadd.f32 %v4367, %v4727
      %4729 = vmatprep.mubr.bf16.mxu0 %v1405
      %4730 = vmatmul.mubr.bf16.gmra.mrb[0].mxu0 %v1404
      %v4731 = vpop.f32.mrb[0].mxu0
      %v4732 = vadd.f32 %v4371, %v4731
      %v4733 = vpop.f32.mrb[0].mxu0
      %v4734 = vadd.f32 %v4373, %v4733
      %v4735 = vpop.f32.mrb[0].mxu0
      %v4736 = vadd.f32 %v4375, %v4735
      %v4737 = vpop.f32.mrb[0].mxu0
      %v4738 = vadd.f32 %v4377, %v4737
      %4739 = vmatprep.mubr.bf16.mxu0 %v1411
      %4740 = vmatmul.mubr.bf16.gmra.mrb[0].mxu0 %v1410
      %v4741 = vpop.f32.mrb[0].mxu0
      %v4742 = vadd.f32 %v4381, %v4741
      %v4743 = vpop.f32.mrb[0].mxu0
      %v4744 = vadd.f32 %v4383, %v4743
      %v4745 = vpop.f32.mrb[0].mxu0
      %v4746 = vadd.f32 %v4385, %v4745
      %v4747 = vpop.f32.mrb[0].mxu0
      %v4748 = vadd.f32 %v4387, %v4747
      %4749 = vmatprep.mubr.bf16.mxu0 %v1417
      %4750 = vmatmul.mubr.bf16.gmra.mrb[0].mxu0 %v1416
      %v4751 = vpop.f32.mrb[0].mxu0
      %v4752 = vadd.f32 %v4391, %v4751
      %v4753 = vpop.f32.mrb[0].mxu0
      %v4754 = vadd.f32 %v4393, %v4753
      %v4755 = vpop.f32.mrb[0].mxu0
      %v4756 = vadd.f32 %v4395, %v4755
      %v4757 = vpop.f32.mrb[0].mxu0
      %v4758 = vadd.f32 %v4397, %v4757
      %4759 = vmatprep.mubr.bf16.mxu0 %v1423
      %4760 = vmatmul.mubr.bf16.gmra.mrb[0].mxu0 %v1422
      %v4761 = vpop.f32.mrb[0].mxu0
      %v4762 = vpop.f32.mrb[0].mxu0
      %v4763 = vpop.f32.mrb[0].mxu0
      %v4764 = vpop.f32.mrb[0].mxu0
      %4765 = vdwg.mxu0
      %s4766 = scalar_lea.vmem %s1, 1536
      %v4767 = vld [vmem:[%s4766] sm:$0xff]
      %v4768 = vld [vmem:[%s4766 + $0x8] sm:$0xff]
      %v4769 = vld [vmem:[%s4766 + $0x10] sm:$0xff]
      %v4770 = vld [vmem:[%s4766 + $0x18] sm:$0xff]
      %v4771 = vld [vmem:[%s4766 + $0x20] sm:$0xff]
      %v4772 = vld [vmem:[%s4766 + $0x28] sm:$0xff]
      %v4773 = vld [vmem:[%s4766 + $0x30] sm:$0xff]
      %v4774 = vld [vmem:[%s4766 + $0x38] sm:$0xff]
      %v4775 = vld [vmem:[%s4766 + $0x40] sm:$0xff]
      %v4776 = vld [vmem:[%s4766 + $0x48] sm:$0xff]
      %v4777 = vld [vmem:[%s4766 + $0x50] sm:$0xff]
      %v4778 = vld [vmem:[%s4766 + $0x58] sm:$0xff]
      %v4779 = vld [vmem:[%s4766 + $0x60] sm:$0xff]
      %v4780 = vld [vmem:[%s4766 + $0x68] sm:$0xff]
      %v4781 = vld [vmem:[%s4766 + $0x70] sm:$0xff]
      %v4782 = vld [vmem:[%s4766 + $0x78] sm:$0xff]
      %v4783 = vld [vmem:[%s4766 + $0x80] sm:$0xff]
      %v4784 = vld [vmem:[%s4766 + $0x88] sm:$0xff]
      %v4785 = vld [vmem:[%s4766 + $0x90] sm:$0xff]
      %v4786 = vld [vmem:[%s4766 + $0x98] sm:$0xff]
      %v4787 = vld [vmem:[%s4766 + $0xa0] sm:$0xff]
      %v4788 = vld [vmem:[%s4766 + $0xa8] sm:$0xff]
      %v4789 = vld [vmem:[%s4766 + $0xb0] sm:$0xff]
      %v4790 = vld [vmem:[%s4766 + $0xb8] sm:$0xff]
      %v4791 = vld [vmem:[%s4766 + $0xc0] sm:$0xff]
      %v4792 = vld [vmem:[%s4766 + $0xc8] sm:$0xff]
      %v4793 = vld [vmem:[%s4766 + $0xd0] sm:$0xff]
      %v4794 = vld [vmem:[%s4766 + $0xd8] sm:$0xff]
      %v4795 = vld [vmem:[%s4766 + $0xe0] sm:$0xff]
      %v4796 = vld [vmem:[%s4766 + $0xe8] sm:$0xff]
      %v4797 = vld [vmem:[%s4766 + $0xf0] sm:$0xff]
      %v4798 = vld [vmem:[%s4766 + $0xf8] sm:$0xff]
      %v4799 = vld [vmem:[%s4766 + $0x100] sm:$0xff]
      %v4800 = vld [vmem:[%s4766 + $0x108] sm:$0xff]
      %v4801 = vld [vmem:[%s4766 + $0x110] sm:$0xff]
      %v4802 = vld [vmem:[%s4766 + $0x118] sm:$0xff]
      %v4803 = vld [vmem:[%s4766 + $0x120] sm:$0xff]
      %v4804 = vld [vmem:[%s4766 + $0x128] sm:$0xff]
      %v4805 = vld [vmem:[%s4766 + $0x130] sm:$0xff]
      %v4806 = vld [vmem:[%s4766 + $0x138] sm:$0xff]
      %v4807 = vld [vmem:[%s4766 + $0x140] sm:$0xff]
      %v4808 = vld [vmem:[%s4766 + $0x148] sm:$0xff]
      %v4809 = vld [vmem:[%s4766 + $0x150] sm:$0xff]
      %v4810 = vld [vmem:[%s4766 + $0x158] sm:$0xff]
      %v4811 = vld [vmem:[%s4766 + $0x160] sm:$0xff]
      %v4812 = vld [vmem:[%s4766 + $0x168] sm:$0xff]
      %v4813 = vld [vmem:[%s4766 + $0x170] sm:$0xff]
      %v4814 = vld [vmem:[%s4766 + $0x178] sm:$0xff]
      %v4815 = vld [vmem:[%s4766 + $0x180] sm:$0xff]
      %v4816 = vld [vmem:[%s4766 + $0x188] sm:$0xff]
      %v4817 = vld [vmem:[%s4766 + $0x190] sm:$0xff]
      %v4818 = vld [vmem:[%s4766 + $0x198] sm:$0xff]
      %v4819 = vld [vmem:[%s4766 + $0x1a0] sm:$0xff]
      %v4820 = vld [vmem:[%s4766 + $0x1a8] sm:$0xff]
      %v4821 = vld [vmem:[%s4766 + $0x1b0] sm:$0xff]
      %v4822 = vld [vmem:[%s4766 + $0x1b8] sm:$0xff]
      %v4823 = vld [vmem:[%s4766 + $0x1c0] sm:$0xff]
      %v4824 = vld [vmem:[%s4766 + $0x1c8] sm:$0xff]
      %v4825 = vld [vmem:[%s4766 + $0x1d0] sm:$0xff]
      %v4826 = vld [vmem:[%s4766 + $0x1d8] sm:$0xff]
      %v4827 = vld [vmem:[%s4766 + $0x1e0] sm:$0xff]
      %v4828 = vld [vmem:[%s4766 + $0x1e8] sm:$0xff]
      %v4829 = vld [vmem:[%s4766 + $0x1f0] sm:$0xff]
      %v4830 = vld [vmem:[%s4766 + $0x1f8] sm:$0xff]
      %v4831 = vld [vmem:[%s4766 + $0x200] sm:$0xff]
      %v4832 = vld [vmem:[%s4766 + $0x208] sm:$0xff]
      %v4833 = vld [vmem:[%s4766 + $0x210] sm:$0xff]
      %v4834 = vld [vmem:[%s4766 + $0x218] sm:$0xff]
      %v4835 = vld [vmem:[%s4766 + $0x220] sm:$0xff]
      %v4836 = vld [vmem:[%s4766 + $0x228] sm:$0xff]
      %v4837 = vld [vmem:[%s4766 + $0x230] sm:$0xff]
      %v4838 = vld [vmem:[%s4766 + $0x238] sm:$0xff]
      %v4839 = vld [vmem:[%s4766 + $0x240] sm:$0xff]
      %v4840 = vld [vmem:[%s4766 + $0x248] sm:$0xff]
      %v4841 = vld [vmem:[%s4766 + $0x250] sm:$0xff]
      %v4842 = vld [vmem:[%s4766 + $0x258] sm:$0xff]
      %v4843 = vld [vmem:[%s4766 + $0x260] sm:$0xff]
      %v4844 = vld [vmem:[%s4766 + $0x268] sm:$0xff]
      %v4845 = vld [vmem:[%s4766 + $0x270] sm:$0xff]
      %v4846 = vld [vmem:[%s4766 + $0x278] sm:$0xff]
      %v4847 = vld [vmem:[%s4766 + $0x280] sm:$0xff]
      %v4848 = vld [vmem:[%s4766 + $0x288] sm:$0xff]
      %v4849 = vld [vmem:[%s4766 + $0x290] sm:$0xff]
      %v4850 = vld [vmem:[%s4766 + $0x298] sm:$0xff]
      %v4851 = vld [vmem:[%s4766 + $0x2a0] sm:$0xff]
      %v4852 = vld [vmem:[%s4766 + $0x2a8] sm:$0xff]
      %v4853 = vld [vmem:[%s4766 + $0x2b0] sm:$0xff]
      %v4854 = vld [vmem:[%s4766 + $0x2b8] sm:$0xff]
      %v4855 = vld [vmem:[%s4766 + $0x2c0] sm:$0xff]
      %v4856 = vld [vmem:[%s4766 + $0x2c8] sm:$0xff]
      %v4857 = vld [vmem:[%s4766 + $0x2d0] sm:$0xff]
      %v4858 = vld [vmem:[%s4766 + $0x2d8] sm:$0xff]
      %v4859 = vld [vmem:[%s4766 + $0x2e0] sm:$0xff]
      %v4860 = vld [vmem:[%s4766 + $0x2e8] sm:$0xff]
      %v4861 = vld [vmem:[%s4766 + $0x2f0] sm:$0xff]
      %v4862 = vld [vmem:[%s4766 + $0x2f8] sm:$0xff]
      %v4863 = vld [vmem:[%s4766 + $0x300] sm:$0xff]
      %v4864 = vld [vmem:[%s4766 + $0x308] sm:$0xff]
      %v4865 = vld [vmem:[%s4766 + $0x310] sm:$0xff]
      %v4866 = vld [vmem:[%s4766 + $0x318] sm:$0xff]
      %v4867 = vld [vmem:[%s4766 + $0x320] sm:$0xff]
      %v4868 = vld [vmem:[%s4766 + $0x328] sm:$0xff]
      %v4869 = vld [vmem:[%s4766 + $0x330] sm:$0xff]
      %v4870 = vld [vmem:[%s4766 + $0x338] sm:$0xff]
      %v4871 = vld [vmem:[%s4766 + $0x340] sm:$0xff]
      %v4872 = vld [vmem:[%s4766 + $0x348] sm:$0xff]
      %v4873 = vld [vmem:[%s4766 + $0x350] sm:$0xff]
      %v4874 = vld [vmem:[%s4766 + $0x358] sm:$0xff]
      %v4875 = vld [vmem:[%s4766 + $0x360] sm:$0xff]
      %v4876 = vld [vmem:[%s4766 + $0x368] sm:$0xff]
      %v4877 = vld [vmem:[%s4766 + $0x370] sm:$0xff]
      %v4878 = vld [vmem:[%s4766 + $0x378] sm:$0xff]
      %v4879 = vld [vmem:[%s4766 + $0x380] sm:$0xff]
      %v4880 = vld [vmem:[%s4766 + $0x388] sm:$0xff]
      %v4881 = vld [vmem:[%s4766 + $0x390] sm:$0xff]
      %v4882 = vld [vmem:[%s4766 + $0x398] sm:$0xff]
      %v4883 = vld [vmem:[%s4766 + $0x3a0] sm:$0xff]
      %v4884 = vld [vmem:[%s4766 + $0x3a8] sm:$0xff]
      %v4885 = vld [vmem:[%s4766 + $0x3b0] sm:$0xff]
      %v4886 = vld [vmem:[%s4766 + $0x3b8] sm:$0xff]
      %v4887 = vld [vmem:[%s4766 + $0x3c0] sm:$0xff]
      %v4888 = vld [vmem:[%s4766 + $0x3c8] sm:$0xff]
      %v4889 = vld [vmem:[%s4766 + $0x3d0] sm:$0xff]
      %v4890 = vld [vmem:[%s4766 + $0x3d8] sm:$0xff]
      %v4891 = vld [vmem:[%s4766 + $0x3e0] sm:$0xff]
      %v4892 = vld [vmem:[%s4766 + $0x3e8] sm:$0xff]
      %v4893 = vld [vmem:[%s4766 + $0x3f0] sm:$0xff]
      %v4894 = vld [vmem:[%s4766 + $0x3f8] sm:$0xff]
      %v4895 = vld [vmem:[%s4766 + $0x400] sm:$0xff]
      %v4896 = vld [vmem:[%s4766 + $0x408] sm:$0xff]
      %v4897 = vld [vmem:[%s4766 + $0x410] sm:$0xff]
      %v4898 = vld [vmem:[%s4766 + $0x418] sm:$0xff]
      %v4899 = vld [vmem:[%s4766 + $0x420] sm:$0xff]
      %v4900 = vld [vmem:[%s4766 + $0x428] sm:$0xff]
      %v4901 = vld [vmem:[%s4766 + $0x430] sm:$0xff]
      %v4902 = vld [vmem:[%s4766 + $0x438] sm:$0xff]
      %v4903 = vld [vmem:[%s4766 + $0x440] sm:$0xff]
      %v4904 = vld [vmem:[%s4766 + $0x448] sm:$0xff]
      %v4905 = vld [vmem:[%s4766 + $0x450] sm:$0xff]
      %v4906 = vld [vmem:[%s4766 + $0x458] sm:$0xff]
      %v4907 = vld [vmem:[%s4766 + $0x460] sm:$0xff]
      %v4908 = vld [vmem:[%s4766 + $0x468] sm:$0xff]
      %v4909 = vld [vmem:[%s4766 + $0x470] sm:$0xff]
      %v4910 = vld [vmem:[%s4766 + $0x478] sm:$0xff]
      %v4911 = vld [vmem:[%s4766 + $0x480] sm:$0xff]
      %v4912 = vld [vmem:[%s4766 + $0x488] sm:$0xff]
      %v4913 = vld [vmem:[%s4766 + $0x490] sm:$0xff]
      %v4914 = vld [vmem:[%s4766 + $0x498] sm:$0xff]
      %v4915 = vld [vmem:[%s4766 + $0x4a0] sm:$0xff]
      %v4916 = vld [vmem:[%s4766 + $0x4a8] sm:$0xff]
      %v4917 = vld [vmem:[%s4766 + $0x4b0] sm:$0xff]
      %v4918 = vld [vmem:[%s4766 + $0x4b8] sm:$0xff]
      %v4919 = vld [vmem:[%s4766 + $0x4c0] sm:$0xff]
      %v4920 = vld [vmem:[%s4766 + $0x4c8] sm:$0xff]
      %v4921 = vld [vmem:[%s4766 + $0x4d0] sm:$0xff]
      %v4922 = vld [vmem:[%s4766 + $0x4d8] sm:$0xff]
      %v4923 = vld [vmem:[%s4766 + $0x4e0] sm:$0xff]
      %v4924 = vld [vmem:[%s4766 + $0x4e8] sm:$0xff]
      %v4925 = vld [vmem:[%s4766 + $0x4f0] sm:$0xff]
      %v4926 = vld [vmem:[%s4766 + $0x4f8] sm:$0xff]
      %v4927 = vld [vmem:[%s4766 + $0x500] sm:$0xff]
      %v4928 = vld [vmem:[%s4766 + $0x508] sm:$0xff]
      %v4929 = vld [vmem:[%s4766 + $0x510] sm:$0xff]
      %v4930 = vld [vmem:[%s4766 + $0x518] sm:$0xff]
      %v4931 = vld [vmem:[%s4766 + $0x520] sm:$0xff]
      %v4932 = vld [vmem:[%s4766 + $0x528] sm:$0xff]
      %v4933 = vld [vmem:[%s4766 + $0x530] sm:$0xff]
      %v4934 = vld [vmem:[%s4766 + $0x538] sm:$0xff]
      %v4935 = vld [vmem:[%s4766 + $0x540] sm:$0xff]
      %v4936 = vld [vmem:[%s4766 + $0x548] sm:$0xff]
      %v4937 = vld [vmem:[%s4766 + $0x550] sm:$0xff]
      %v4938 = vld [vmem:[%s4766 + $0x558] sm:$0xff]
      %v4939 = vld [vmem:[%s4766 + $0x560] sm:$0xff]
      %v4940 = vld [vmem:[%s4766 + $0x568] sm:$0xff]
      %v4941 = vld [vmem:[%s4766 + $0x570] sm:$0xff]
      %v4942 = vld [vmem:[%s4766 + $0x578] sm:$0xff]
      %v4943 = vld [vmem:[%s4766 + $0x580] sm:$0xff]
      %v4944 = vld [vmem:[%s4766 + $0x588] sm:$0xff]
      %v4945 = vld [vmem:[%s4766 + $0x590] sm:$0xff]
      %v4946 = vld [vmem:[%s4766 + $0x598] sm:$0xff]
      %v4947 = vld [vmem:[%s4766 + $0x5a0] sm:$0xff]
      %v4948 = vld [vmem:[%s4766 + $0x5a8] sm:$0xff]
      %v4949 = vld [vmem:[%s4766 + $0x5b0] sm:$0xff]
      %v4950 = vld [vmem:[%s4766 + $0x5b8] sm:$0xff]
      %v4951 = vld [vmem:[%s4766 + $0x5c0] sm:$0xff]
      %v4952 = vld [vmem:[%s4766 + $0x5c8] sm:$0xff]
      %v4953 = vld [vmem:[%s4766 + $0x5d0] sm:$0xff]
      %v4954 = vld [vmem:[%s4766 + $0x5d8] sm:$0xff]
      %v4955 = vld [vmem:[%s4766 + $0x5e0] sm:$0xff]
      %v4956 = vld [vmem:[%s4766 + $0x5e8] sm:$0xff]
      %v4957 = vld [vmem:[%s4766 + $0x5f0] sm:$0xff]
      %v4958 = vld [vmem:[%s4766 + $0x5f8] sm:$0xff]
      %v5151 = vunpack.c.l.b16 %v4767
      %v5152 = vunpack.c.h.b16 %v4767
      %v5153 = vunpack.c.l.b16 %v4768
      %v5154 = vunpack.c.h.b16 %v4768
      %v5155 = vunpack.c.l.b16 %v4769
      %v5156 = vunpack.c.h.b16 %v4769
      %v5157 = vunpack.c.l.b16 %v4770
      %v5158 = vunpack.c.h.b16 %v4770
      %v5159 = vunpack.c.l.b16 %v4771
      %v5160 = vunpack.c.h.b16 %v4771
      %v5161 = vunpack.c.l.b16 %v4772
      %v5162 = vunpack.c.h.b16 %v4772
      %v5163 = vunpack.c.l.b16 %v4773
      %v5164 = vunpack.c.h.b16 %v4773
      %v5165 = vunpack.c.l.b16 %v4774
      %v5166 = vunpack.c.h.b16 %v4774
      %v5167 = vunpack.c.l.b16 %v4775
      %v5168 = vunpack.c.h.b16 %v4775
      %v5169 = vunpack.c.l.b16 %v4776
      %v5170 = vunpack.c.h.b16 %v4776
      %v5171 = vunpack.c.l.b16 %v4777
      %v5172 = vunpack.c.h.b16 %v4777
      %v5173 = vunpack.c.l.b16 %v4778
      %v5174 = vunpack.c.h.b16 %v4778
      %v5175 = vunpack.c.l.b16 %v4779
      %v5176 = vunpack.c.h.b16 %v4779
      %v5177 = vunpack.c.l.b16 %v4780
      %v5178 = vunpack.c.h.b16 %v4780
      %v5179 = vunpack.c.l.b16 %v4781
      %v5180 = vunpack.c.h.b16 %v4781
      %v5181 = vunpack.c.l.b16 %v4782
      %v5182 = vunpack.c.h.b16 %v4782
      %v5183 = vunpack.c.l.b16 %v4783
      %v5184 = vunpack.c.h.b16 %v4783
      %v5185 = vunpack.c.l.b16 %v4784
      %v5186 = vunpack.c.h.b16 %v4784
      %v5187 = vunpack.c.l.b16 %v4785
      %v5188 = vunpack.c.h.b16 %v4785
      %v5189 = vunpack.c.l.b16 %v4786
      %v5190 = vunpack.c.h.b16 %v4786
      %v5191 = vunpack.c.l.b16 %v4787
      %v5192 = vunpack.c.h.b16 %v4787
      %v5193 = vunpack.c.l.b16 %v4788
      %v5194 = vunpack.c.h.b16 %v4788
      %v5195 = vunpack.c.l.b16 %v4789
      %v5196 = vunpack.c.h.b16 %v4789
      %v5197 = vunpack.c.l.b16 %v4790
      %v5198 = vunpack.c.h.b16 %v4790
      %v5199 = vunpack.c.l.b16 %v4791
      %v5200 = vunpack.c.h.b16 %v4791
      %v5201 = vunpack.c.l.b16 %v4792
      %v5202 = vunpack.c.h.b16 %v4792
      %v5203 = vunpack.c.l.b16 %v4793
      %v5204 = vunpack.c.h.b16 %v4793
      %v5205 = vunpack.c.l.b16 %v4794
      %v5206 = vunpack.c.h.b16 %v4794
      %v5207 = vunpack.c.l.b16 %v4795
      %v5208 = vunpack.c.h.b16 %v4795
      %v5209 = vunpack.c.l.b16 %v4796
      %v5210 = vunpack.c.h.b16 %v4796
      %v5211 = vunpack.c.l.b16 %v4797
      %v5212 = vunpack.c.h.b16 %v4797
      %v5213 = vunpack.c.l.b16 %v4798
      %v5214 = vunpack.c.h.b16 %v4798
      %v5215 = vunpack.c.l.b16 %v4799
      %v5216 = vunpack.c.h.b16 %v4799
      %v5217 = vunpack.c.l.b16 %v4800
      %v5218 = vunpack.c.h.b16 %v4800
      %v5219 = vunpack.c.l.b16 %v4801
      %v5220 = vunpack.c.h.b16 %v4801
      %v5221 = vunpack.c.l.b16 %v4802
      %v5222 = vunpack.c.h.b16 %v4802
      %v5223 = vunpack.c.l.b16 %v4803
      %v5224 = vunpack.c.h.b16 %v4803
      %v5225 = vunpack.c.l.b16 %v4804
      %v5226 = vunpack.c.h.b16 %v4804
      %v5227 = vunpack.c.l.b16 %v4805
      %v5228 = vunpack.c.h.b16 %v4805
      %v5229 = vunpack.c.l.b16 %v4806
      %v5230 = vunpack.c.h.b16 %v4806
      %v5231 = vunpack.c.l.b16 %v4807
      %v5232 = vunpack.c.h.b16 %v4807
      %v5233 = vunpack.c.l.b16 %v4808
      %v5234 = vunpack.c.h.b16 %v4808
      %v5235 = vunpack.c.l.b16 %v4809
      %v5236 = vunpack.c.h.b16 %v4809
      %v5237 = vunpack.c.l.b16 %v4810
      %v5238 = vunpack.c.h.b16 %v4810
      %v5239 = vunpack.c.l.b16 %v4811
      %v5240 = vunpack.c.h.b16 %v4811
      %v5241 = vunpack.c.l.b16 %v4812
      %v5242 = vunpack.c.h.b16 %v4812
      %v5243 = vunpack.c.l.b16 %v4813
      %v5244 = vunpack.c.h.b16 %v4813
      %v5245 = vunpack.c.l.b16 %v4814
      %v5246 = vunpack.c.h.b16 %v4814
      %v5247 = vunpack.c.l.b16 %v4815
      %v5248 = vunpack.c.h.b16 %v4815
      %v5249 = vunpack.c.l.b16 %v4816
      %v5250 = vunpack.c.h.b16 %v4816
      %v5251 = vunpack.c.l.b16 %v4817
      %v5252 = vunpack.c.h.b16 %v4817
      %v5253 = vunpack.c.l.b16 %v4818
      %v5254 = vunpack.c.h.b16 %v4818
      %v5255 = vunpack.c.l.b16 %v4819
      %v5256 = vunpack.c.h.b16 %v4819
      %v5257 = vunpack.c.l.b16 %v4820
      %v5258 = vunpack.c.h.b16 %v4820
      %v5259 = vunpack.c.l.b16 %v4821
      %v5260 = vunpack.c.h.b16 %v4821
      %v5261 = vunpack.c.l.b16 %v4822
      %v5262 = vunpack.c.h.b16 %v4822
      %v5263 = vunpack.c.l.b16 %v4823
      %v5264 = vunpack.c.h.b16 %v4823
      %v5265 = vunpack.c.l.b16 %v4824
      %v5266 = vunpack.c.h.b16 %v4824
      %v5267 = vunpack.c.l.b16 %v4825
      %v5268 = vunpack.c.h.b16 %v4825
      %v5269 = vunpack.c.l.b16 %v4826
      %v5270 = vunpack.c.h.b16 %v4826
      %v5271 = vunpack.c.l.b16 %v4827
      %v5272 = vunpack.c.h.b16 %v4827
      %v5273 = vunpack.c.l.b16 %v4828
      %v5274 = vunpack.c.h.b16 %v4828
      %v5275 = vunpack.c.l.b16 %v4829
      %v5276 = vunpack.c.h.b16 %v4829
      %v5277 = vunpack.c.l.b16 %v4830
      %v5278 = vunpack.c.h.b16 %v4830
      %v5279 = vunpack.c.l.b16 %v4831
      %v5280 = vunpack.c.h.b16 %v4831
      %v5281 = vunpack.c.l.b16 %v4832
      %v5282 = vunpack.c.h.b16 %v4832
      %v5283 = vunpack.c.l.b16 %v4833
      %v5284 = vunpack.c.h.b16 %v4833
      %v5285 = vunpack.c.l.b16 %v4834
      %v5286 = vunpack.c.h.b16 %v4834
      %v5287 = vunpack.c.l.b16 %v4835
      %v5288 = vunpack.c.h.b16 %v4835
      %v5289 = vunpack.c.l.b16 %v4836
      %v5290 = vunpack.c.h.b16 %v4836
      %v5291 = vunpack.c.l.b16 %v4837
      %v5292 = vunpack.c.h.b16 %v4837
      %v5293 = vunpack.c.l.b16 %v4838
      %v5294 = vunpack.c.h.b16 %v4838
      %v5295 = vunpack.c.l.b16 %v4839
      %v5296 = vunpack.c.h.b16 %v4839
      %v5297 = vunpack.c.l.b16 %v4840
      %v5298 = vunpack.c.h.b16 %v4840
      %v5299 = vunpack.c.l.b16 %v4841
      %v5300 = vunpack.c.h.b16 %v4841
      %v5301 = vunpack.c.l.b16 %v4842
      %v5302 = vunpack.c.h.b16 %v4842
      %v5303 = vunpack.c.l.b16 %v4843
      %v5304 = vunpack.c.h.b16 %v4843
      %v5305 = vunpack.c.l.b16 %v4844
      %v5306 = vunpack.c.h.b16 %v4844
      %v5307 = vunpack.c.l.b16 %v4845
      %v5308 = vunpack.c.h.b16 %v4845
      %v5309 = vunpack.c.l.b16 %v4846
      %v5310 = vunpack.c.h.b16 %v4846
      %v5311 = vunpack.c.l.b16 %v4847
      %v5312 = vunpack.c.h.b16 %v4847
      %v5313 = vunpack.c.l.b16 %v4848
      %v5314 = vunpack.c.h.b16 %v4848
      %v5315 = vunpack.c.l.b16 %v4849
      %v5316 = vunpack.c.h.b16 %v4849
      %v5317 = vunpack.c.l.b16 %v4850
      %v5318 = vunpack.c.h.b16 %v4850
      %v5319 = vunpack.c.l.b16 %v4851
      %v5320 = vunpack.c.h.b16 %v4851
      %v5321 = vunpack.c.l.b16 %v4852
      %v5322 = vunpack.c.h.b16 %v4852
      %v5323 = vunpack.c.l.b16 %v4853
      %v5324 = vunpack.c.h.b16 %v4853
      %v5325 = vunpack.c.l.b16 %v4854
      %v5326 = vunpack.c.h.b16 %v4854
      %v5327 = vunpack.c.l.b16 %v4855
      %v5328 = vunpack.c.h.b16 %v4855
      %v5329 = vunpack.c.l.b16 %v4856
      %v5330 = vunpack.c.h.b16 %v4856
      %v5331 = vunpack.c.l.b16 %v4857
      %v5332 = vunpack.c.h.b16 %v4857
      %v5333 = vunpack.c.l.b16 %v4858
      %v5334 = vunpack.c.h.b16 %v4858
      %v5335 = vunpack.c.l.b16 %v4859
      %v5336 = vunpack.c.h.b16 %v4859
      %v5337 = vunpack.c.l.b16 %v4860
      %v5338 = vunpack.c.h.b16 %v4860
      %v5339 = vunpack.c.l.b16 %v4861
      %v5340 = vunpack.c.h.b16 %v4861
      %v5341 = vunpack.c.l.b16 %v4862
      %v5342 = vunpack.c.h.b16 %v4862
      %v5343 = vunpack.c.l.b16 %v4863
      %v5344 = vunpack.c.h.b16 %v4863
      %v5345 = vunpack.c.l.b16 %v4864
      %v5346 = vunpack.c.h.b16 %v4864
      %v5347 = vunpack.c.l.b16 %v4865
      %v5348 = vunpack.c.h.b16 %v4865
      %v5349 = vunpack.c.l.b16 %v4866
      %v5350 = vunpack.c.h.b16 %v4866
      %v5351 = vunpack.c.l.b16 %v4867
      %v5352 = vunpack.c.h.b16 %v4867
      %v5353 = vunpack.c.l.b16 %v4868
      %v5354 = vunpack.c.h.b16 %v4868
      %v5355 = vunpack.c.l.b16 %v4869
      %v5356 = vunpack.c.h.b16 %v4869
      %v5357 = vunpack.c.l.b16 %v4870
      %v5358 = vunpack.c.h.b16 %v4870
      %v5359 = vunpack.c.l.b16 %v4871
      %v5360 = vunpack.c.h.b16 %v4871
      %v5361 = vunpack.c.l.b16 %v4872
      %v5362 = vunpack.c.h.b16 %v4872
      %v5363 = vunpack.c.l.b16 %v4873
      %v5364 = vunpack.c.h.b16 %v4873
      %v5365 = vunpack.c.l.b16 %v4874
      %v5366 = vunpack.c.h.b16 %v4874
      %v5367 = vunpack.c.l.b16 %v4875
      %v5368 = vunpack.c.h.b16 %v4875
      %v5369 = vunpack.c.l.b16 %v4876
      %v5370 = vunpack.c.h.b16 %v4876
      %v5371 = vunpack.c.l.b16 %v4877
      %v5372 = vunpack.c.h.b16 %v4877
      %v5373 = vunpack.c.l.b16 %v4878
      %v5374 = vunpack.c.h.b16 %v4878
      %v5375 = vunpack.c.l.b16 %v4879
      %v5376 = vunpack.c.h.b16 %v4879
      %v5377 = vunpack.c.l.b16 %v4880
      %v5378 = vunpack.c.h.b16 %v4880
      %v5379 = vunpack.c.l.b16 %v4881
      %v5380 = vunpack.c.h.b16 %v4881
      %v5381 = vunpack.c.l.b16 %v4882
      %v5382 = vunpack.c.h.b16 %v4882
      %v5383 = vunpack.c.l.b16 %v4883
      %v5384 = vunpack.c.h.b16 %v4883
      %v5385 = vunpack.c.l.b16 %v4884
      %v5386 = vunpack.c.h.b16 %v4884
      %v5387 = vunpack.c.l.b16 %v4885
      %v5388 = vunpack.c.h.b16 %v4885
      %v5389 = vunpack.c.l.b16 %v4886
      %v5390 = vunpack.c.h.b16 %v4886
      %v5391 = vunpack.c.l.b16 %v4887
      %v5392 = vunpack.c.h.b16 %v4887
      %v5393 = vunpack.c.l.b16 %v4888
      %v5394 = vunpack.c.h.b16 %v4888
      %v5395 = vunpack.c.l.b16 %v4889
      %v5396 = vunpack.c.h.b16 %v4889
      %v5397 = vunpack.c.l.b16 %v4890
      %v5398 = vunpack.c.h.b16 %v4890
      %v5399 = vunpack.c.l.b16 %v4891
      %v5400 = vunpack.c.h.b16 %v4891
      %v5401 = vunpack.c.l.b16 %v4892
      %v5402 = vunpack.c.h.b16 %v4892
      %v5403 = vunpack.c.l.b16 %v4893
      %v5404 = vunpack.c.h.b16 %v4893
      %v5405 = vunpack.c.l.b16 %v4894
      %v5406 = vunpack.c.h.b16 %v4894
      %v5407 = vunpack.c.l.b16 %v4895
      %v5408 = vunpack.c.h.b16 %v4895
      %v5409 = vunpack.c.l.b16 %v4896
      %v5410 = vunpack.c.h.b16 %v4896
      %v5411 = vunpack.c.l.b16 %v4897
      %v5412 = vunpack.c.h.b16 %v4897
      %v5413 = vunpack.c.l.b16 %v4898
      %v5414 = vunpack.c.h.b16 %v4898
      %v5415 = vunpack.c.l.b16 %v4899
      %v5416 = vunpack.c.h.b16 %v4899
      %v5417 = vunpack.c.l.b16 %v4900
      %v5418 = vunpack.c.h.b16 %v4900
      %v5419 = vunpack.c.l.b16 %v4901
      %v5420 = vunpack.c.h.b16 %v4901
      %v5421 = vunpack.c.l.b16 %v4902
      %v5422 = vunpack.c.h.b16 %v4902
      %v5423 = vunpack.c.l.b16 %v4903
      %v5424 = vunpack.c.h.b16 %v4903
      %v5425 = vunpack.c.l.b16 %v4904
      %v5426 = vunpack.c.h.b16 %v4904
      %v5427 = vunpack.c.l.b16 %v4905
      %v5428 = vunpack.c.h.b16 %v4905
      %v5429 = vunpack.c.l.b16 %v4906
      %v5430 = vunpack.c.h.b16 %v4906
      %v5431 = vunpack.c.l.b16 %v4907
      %v5432 = vunpack.c.h.b16 %v4907
      %v5433 = vunpack.c.l.b16 %v4908
      %v5434 = vunpack.c.h.b16 %v4908
      %v5435 = vunpack.c.l.b16 %v4909
      %v5436 = vunpack.c.h.b16 %v4909
      %v5437 = vunpack.c.l.b16 %v4910
      %v5438 = vunpack.c.h.b16 %v4910
      %v5439 = vunpack.c.l.b16 %v4911
      %v5440 = vunpack.c.h.b16 %v4911
      %v5441 = vunpack.c.l.b16 %v4912
      %v5442 = vunpack.c.h.b16 %v4912
      %v5443 = vunpack.c.l.b16 %v4913
      %v5444 = vunpack.c.h.b16 %v4913
      %v5445 = vunpack.c.l.b16 %v4914
      %v5446 = vunpack.c.h.b16 %v4914
      %v5447 = vunpack.c.l.b16 %v4915
      %v5448 = vunpack.c.h.b16 %v4915
      %v5449 = vunpack.c.l.b16 %v4916
      %v5450 = vunpack.c.h.b16 %v4916
      %v5451 = vunpack.c.l.b16 %v4917
      %v5452 = vunpack.c.h.b16 %v4917
      %v5453 = vunpack.c.l.b16 %v4918
      %v5454 = vunpack.c.h.b16 %v4918
      %v5455 = vunpack.c.l.b16 %v4919
      %v5456 = vunpack.c.h.b16 %v4919
      %v5457 = vunpack.c.l.b16 %v4920
      %v5458 = vunpack.c.h.b16 %v4920
      %v5459 = vunpack.c.l.b16 %v4921
      %v5460 = vunpack.c.h.b16 %v4921
      %v5461 = vunpack.c.l.b16 %v4922
      %v5462 = vunpack.c.h.b16 %v4922
      %v5463 = vunpack.c.l.b16 %v4923
      %v5464 = vunpack.c.h.b16 %v4923
      %v5465 = vunpack.c.l.b16 %v4924
      %v5466 = vunpack.c.h.b16 %v4924
      %v5467 = vunpack.c.l.b16 %v4925
      %v5468 = vunpack.c.h.b16 %v4925
      %v5469 = vunpack.c.l.b16 %v4926
      %v5470 = vunpack.c.h.b16 %v4926
      %v5471 = vunpack.c.l.b16 %v4927
      %v5472 = vunpack.c.h.b16 %v4927
      %v5473 = vunpack.c.l.b16 %v4928
      %v5474 = vunpack.c.h.b16 %v4928
      %v5475 = vunpack.c.l.b16 %v4929
      %v5476 = vunpack.c.h.b16 %v4929
      %v5477 = vunpack.c.l.b16 %v4930
      %v5478 = vunpack.c.h.b16 %v4930
      %v5479 = vunpack.c.l.b16 %v4931
      %v5480 = vunpack.c.h.b16 %v4931
      %v5481 = vunpack.c.l.b16 %v4932
      %v5482 = vunpack.c.h.b16 %v4932
      %v5483 = vunpack.c.l.b16 %v4933
      %v5484 = vunpack.c.h.b16 %v4933
      %v5485 = vunpack.c.l.b16 %v4934
      %v5486 = vunpack.c.h.b16 %v4934
      %v5487 = vunpack.c.l.b16 %v4935
      %v5488 = vunpack.c.h.b16 %v4935
      %v5489 = vunpack.c.l.b16 %v4936
      %v5490 = vunpack.c.h.b16 %v4936
      %v5491 = vunpack.c.l.b16 %v4937
      %v5492 = vunpack.c.h.b16 %v4937
      %v5493 = vunpack.c.l.b16 %v4938
      %v5494 = vunpack.c.h.b16 %v4938
      %v5495 = vunpack.c.l.b16 %v4939
      %v5496 = vunpack.c.h.b16 %v4939
      %v5497 = vunpack.c.l.b16 %v4940
      %v5498 = vunpack.c.h.b16 %v4940
      %v5499 = vunpack.c.l.b16 %v4941
      %v5500 = vunpack.c.h.b16 %v4941
      %v5501 = vunpack.c.l.b16 %v4942
      %v5502 = vunpack.c.h.b16 %v4942
      %v5503 = vunpack.c.l.b16 %v4943
      %v5504 = vunpack.c.h.b16 %v4943
      %v5505 = vunpack.c.l.b16 %v4944
      %v5506 = vunpack.c.h.b16 %v4944
      %v5507 = vunpack.c.l.b16 %v4945
      %v5508 = vunpack.c.h.b16 %v4945
      %v5509 = vunpack.c.l.b16 %v4946
      %v5510 = vunpack.c.h.b16 %v4946
      %v5511 = vunpack.c.l.b16 %v4947
      %v5512 = vunpack.c.h.b16 %v4947
      %v5513 = vunpack.c.l.b16 %v4948
      %v5514 = vunpack.c.h.b16 %v4948
      %v5515 = vunpack.c.l.b16 %v4949
      %v5516 = vunpack.c.h.b16 %v4949
      %v5517 = vunpack.c.l.b16 %v4950
      %v5518 = vunpack.c.h.b16 %v4950
      %v5519 = vunpack.c.l.b16 %v4951
      %v5520 = vunpack.c.h.b16 %v4951
      %v5521 = vunpack.c.l.b16 %v4952
      %v5522 = vunpack.c.h.b16 %v4952
      %v5523 = vunpack.c.l.b16 %v4953
      %v5524 = vunpack.c.h.b16 %v4953
      %v5525 = vunpack.c.l.b16 %v4954
      %v5526 = vunpack.c.h.b16 %v4954
      %v5527 = vunpack.c.l.b16 %v4955
      %v5528 = vunpack.c.h.b16 %v4955
      %v5529 = vunpack.c.l.b16 %v4956
      %v5530 = vunpack.c.h.b16 %v4956
      %v5531 = vunpack.c.l.b16 %v4957
      %v5532 = vunpack.c.h.b16 %v4957
      %v5533 = vunpack.c.l.b16 %v4958
      %v5534 = vunpack.c.h.b16 %v4958
      %v5535 = vpack.c.b16 %v5155, %v5151
      %v5536 = vpack.c.b16 %v5156, %v5152
      %v5537 = vpack.c.b16 %v5157, %v5153
      %v5538 = vpack.c.b16 %v5158, %v5154
      %v5539 = vpack.c.b16 %v5163, %v5159
      %v5540 = vpack.c.b16 %v5164, %v5160
      %v5541 = vpack.c.b16 %v5165, %v5161
      %v5542 = vpack.c.b16 %v5166, %v5162
      %v5543 = vpack.c.b16 %v5171, %v5167
      %v5544 = vpack.c.b16 %v5172, %v5168
      %v5545 = vpack.c.b16 %v5173, %v5169
      %v5546 = vpack.c.b16 %v5174, %v5170
      %v5547 = vpack.c.b16 %v5179, %v5175
      %v5548 = vpack.c.b16 %v5180, %v5176
      %v5549 = vpack.c.b16 %v5181, %v5177
      %v5550 = vpack.c.b16 %v5182, %v5178
      %v5551 = vpack.c.b16 %v5187, %v5183
      %v5552 = vpack.c.b16 %v5188, %v5184
      %v5553 = vpack.c.b16 %v5189, %v5185
      %v5554 = vpack.c.b16 %v5190, %v5186
      %v5555 = vpack.c.b16 %v5195, %v5191
      %v5556 = vpack.c.b16 %v5196, %v5192
      %v5557 = vpack.c.b16 %v5197, %v5193
      %v5558 = vpack.c.b16 %v5198, %v5194
      %v5559 = vpack.c.b16 %v5203, %v5199
      %v5560 = vpack.c.b16 %v5204, %v5200
      %v5561 = vpack.c.b16 %v5205, %v5201
      %v5562 = vpack.c.b16 %v5206, %v5202
      %v5563 = vpack.c.b16 %v5211, %v5207
      %v5564 = vpack.c.b16 %v5212, %v5208
      %v5565 = vpack.c.b16 %v5213, %v5209
      %v5566 = vpack.c.b16 %v5214, %v5210
      %v5567 = vpack.c.b16 %v5219, %v5215
      %v5568 = vpack.c.b16 %v5220, %v5216
      %v5569 = vpack.c.b16 %v5221, %v5217
      %v5570 = vpack.c.b16 %v5222, %v5218
      %v5571 = vpack.c.b16 %v5227, %v5223
      %v5572 = vpack.c.b16 %v5228, %v5224
      %v5573 = vpack.c.b16 %v5229, %v5225
      %v5574 = vpack.c.b16 %v5230, %v5226
      %v5575 = vpack.c.b16 %v5235, %v5231
      %v5576 = vpack.c.b16 %v5236, %v5232
      %v5577 = vpack.c.b16 %v5237, %v5233
      %v5578 = vpack.c.b16 %v5238, %v5234
      %v5579 = vpack.c.b16 %v5243, %v5239
      %v5580 = vpack.c.b16 %v5244, %v5240
      %v5581 = vpack.c.b16 %v5245, %v5241
      %v5582 = vpack.c.b16 %v5246, %v5242
      %v5583 = vpack.c.b16 %v5251, %v5247
      %v5584 = vpack.c.b16 %v5252, %v5248
      %v5585 = vpack.c.b16 %v5253, %v5249
      %v5586 = vpack.c.b16 %v5254, %v5250
      %v5587 = vpack.c.b16 %v5259, %v5255
      %v5588 = vpack.c.b16 %v5260, %v5256
      %v5589 = vpack.c.b16 %v5261, %v5257
      %v5590 = vpack.c.b16 %v5262, %v5258
      %v5591 = vpack.c.b16 %v5267, %v5263
      %v5592 = vpack.c.b16 %v5268, %v5264
      %v5593 = vpack.c.b16 %v5269, %v5265
      %v5594 = vpack.c.b16 %v5270, %v5266
      %v5595 = vpack.c.b16 %v5275, %v5271
      %v5596 = vpack.c.b16 %v5276, %v5272
      %v5597 = vpack.c.b16 %v5277, %v5273
      %v5598 = vpack.c.b16 %v5278, %v5274
      %v5599 = vpack.c.b16 %v5283, %v5279
      %v5600 = vpack.c.b16 %v5284, %v5280
      %v5601 = vpack.c.b16 %v5285, %v5281
      %v5602 = vpack.c.b16 %v5286, %v5282
      %v5603 = vpack.c.b16 %v5291, %v5287
      %v5604 = vpack.c.b16 %v5292, %v5288
      %v5605 = vpack.c.b16 %v5293, %v5289
      %v5606 = vpack.c.b16 %v5294, %v5290
      %v5607 = vpack.c.b16 %v5299, %v5295
      %v5608 = vpack.c.b16 %v5300, %v5296
      %v5609 = vpack.c.b16 %v5301, %v5297
      %v5610 = vpack.c.b16 %v5302, %v5298
      %v5611 = vpack.c.b16 %v5307, %v5303
      %v5612 = vpack.c.b16 %v5308, %v5304
      %v5613 = vpack.c.b16 %v5309, %v5305
      %v5614 = vpack.c.b16 %v5310, %v5306
      %v5615 = vpack.c.b16 %v5315, %v5311
      %v5616 = vpack.c.b16 %v5316, %v5312
      %v5617 = vpack.c.b16 %v5317, %v5313
      %v5618 = vpack.c.b16 %v5318, %v5314
      %v5619 = vpack.c.b16 %v5323, %v5319
      %v5620 = vpack.c.b16 %v5324, %v5320
      %v5621 = vpack.c.b16 %v5325, %v5321
      %v5622 = vpack.c.b16 %v5326, %v5322
      %v5623 = vpack.c.b16 %v5331, %v5327
      %v5624 = vpack.c.b16 %v5332, %v5328
      %v5625 = vpack.c.b16 %v5333, %v5329
      %v5626 = vpack.c.b16 %v5334, %v5330
      %v5627 = vpack.c.b16 %v5339, %v5335
      %v5628 = vpack.c.b16 %v5340, %v5336
      %v5629 = vpack.c.b16 %v5341, %v5337
      %v5630 = vpack.c.b16 %v5342, %v5338
      %v5631 = vpack.c.b16 %v5347, %v5343
      %v5632 = vpack.c.b16 %v5348, %v5344
      %v5633 = vpack.c.b16 %v5349, %v5345
      %v5634 = vpack.c.b16 %v5350, %v5346
      %v5635 = vpack.c.b16 %v5355, %v5351
      %v5636 = vpack.c.b16 %v5356, %v5352
      %v5637 = vpack.c.b16 %v5357, %v5353
      %v5638 = vpack.c.b16 %v5358, %v5354
      %v5639 = vpack.c.b16 %v5363, %v5359
      %v5640 = vpack.c.b16 %v5364, %v5360
      %v5641 = vpack.c.b16 %v5365, %v5361
      %v5642 = vpack.c.b16 %v5366, %v5362
      %v5643 = vpack.c.b16 %v5371, %v5367
      %v5644 = vpack.c.b16 %v5372, %v5368
      %v5645 = vpack.c.b16 %v5373, %v5369
      %v5646 = vpack.c.b16 %v5374, %v5370
      %v5647 = vpack.c.b16 %v5379, %v5375
      %v5648 = vpack.c.b16 %v5380, %v5376
      %v5649 = vpack.c.b16 %v5381, %v5377
      %v5650 = vpack.c.b16 %v5382, %v5378
      %v5651 = vpack.c.b16 %v5387, %v5383
      %v5652 = vpack.c.b16 %v5388, %v5384
      %v5653 = vpack.c.b16 %v5389, %v5385
      %v5654 = vpack.c.b16 %v5390, %v5386
      %v5655 = vpack.c.b16 %v5395, %v5391
      %v5656 = vpack.c.b16 %v5396, %v5392
      %v5657 = vpack.c.b16 %v5397, %v5393
      %v5658 = vpack.c.b16 %v5398, %v5394
      %v5659 = vpack.c.b16 %v5403, %v5399
      %v5660 = vpack.c.b16 %v5404, %v5400
      %v5661 = vpack.c.b16 %v5405, %v5401
      %v5662 = vpack.c.b16 %v5406, %v5402
      %v5663 = vpack.c.b16 %v5411, %v5407
      %v5664 = vpack.c.b16 %v5412, %v5408
      %v5665 = vpack.c.b16 %v5413, %v5409
      %v5666 = vpack.c.b16 %v5414, %v5410
      %v5667 = vpack.c.b16 %v5419, %v5415
      %v5668 = vpack.c.b16 %v5420, %v5416
      %v5669 = vpack.c.b16 %v5421, %v5417
      %v5670 = vpack.c.b16 %v5422, %v5418
      %v5671 = vpack.c.b16 %v5427, %v5423
      %v5672 = vpack.c.b16 %v5428, %v5424
      %v5673 = vpack.c.b16 %v5429, %v5425
      %v5674 = vpack.c.b16 %v5430, %v5426
      %v5675 = vpack.c.b16 %v5435, %v5431
      %v5676 = vpack.c.b16 %v5436, %v5432
      %v5677 = vpack.c.b16 %v5437, %v5433
      %v5678 = vpack.c.b16 %v5438, %v5434
      %v5679 = vpack.c.b16 %v5443, %v5439
      %v5680 = vpack.c.b16 %v5444, %v5440
      %v5681 = vpack.c.b16 %v5445, %v5441
      %v5682 = vpack.c.b16 %v5446, %v5442
      %v5683 = vpack.c.b16 %v5451, %v5447
      %v5684 = vpack.c.b16 %v5452, %v5448
      %v5685 = vpack.c.b16 %v5453, %v5449
      %v5686 = vpack.c.b16 %v5454, %v5450
      %v5687 = vpack.c.b16 %v5459, %v5455
      %v5688 = vpack.c.b16 %v5460, %v5456
      %v5689 = vpack.c.b16 %v5461, %v5457
      %v5690 = vpack.c.b16 %v5462, %v5458
      %v5691 = vpack.c.b16 %v5467, %v5463
      %v5692 = vpack.c.b16 %v5468, %v5464
      %v5693 = vpack.c.b16 %v5469, %v5465
      %v5694 = vpack.c.b16 %v5470, %v5466
      %v5695 = vpack.c.b16 %v5475, %v5471
      %v5696 = vpack.c.b16 %v5476, %v5472
      %v5697 = vpack.c.b16 %v5477, %v5473
      %v5698 = vpack.c.b16 %v5478, %v5474
      %v5699 = vpack.c.b16 %v5483, %v5479
      %v5700 = vpack.c.b16 %v5484, %v5480
      %v5701 = vpack.c.b16 %v5485, %v5481
      %v5702 = vpack.c.b16 %v5486, %v5482
      %v5703 = vpack.c.b16 %v5491, %v5487
      %v5704 = vpack.c.b16 %v5492, %v5488
      %v5705 = vpack.c.b16 %v5493, %v5489
      %v5706 = vpack.c.b16 %v5494, %v5490
      %v5707 = vpack.c.b16 %v5499, %v5495
      %v5708 = vpack.c.b16 %v5500, %v5496
      %v5709 = vpack.c.b16 %v5501, %v5497
      %v5710 = vpack.c.b16 %v5502, %v5498
      %v5711 = vpack.c.b16 %v5507, %v5503
      %v5712 = vpack.c.b16 %v5508, %v5504
      %v5713 = vpack.c.b16 %v5509, %v5505
      %v5714 = vpack.c.b16 %v5510, %v5506
      %v5715 = vpack.c.b16 %v5515, %v5511
      %v5716 = vpack.c.b16 %v5516, %v5512
      %v5717 = vpack.c.b16 %v5517, %v5513
      %v5718 = vpack.c.b16 %v5518, %v5514
      %v5719 = vpack.c.b16 %v5523, %v5519
      %v5720 = vpack.c.b16 %v5524, %v5520
      %v5721 = vpack.c.b16 %v5525, %v5521
      %v5722 = vpack.c.b16 %v5526, %v5522
      %v5723 = vpack.c.b16 %v5531, %v5527
      %v5724 = vpack.c.b16 %v5532, %v5528
      %v5725 = vpack.c.b16 %v5533, %v5529
      %v5726 = vpack.c.b16 %v5534, %v5530
      %5919 = vmatprep.subr.bf16.mxu0 %v5536
      %5920 = vmatpush1.bf16.msra.mxu0 %v5535
      %5921 = vmatprep.subr.bf16.mxu0 %v5540
      %5922 = vmatpush1.bf16.msra.mxu0 %v5539
      %5923 = vmatprep.subr.bf16.mxu0 %v5544
      %5924 = vmatpush1.bf16.msra.mxu0 %v5543
      %5925 = vmatprep.subr.bf16.mxu0 %v5548
      %5926 = vmatpush1.bf16.msra.mxu0 %v5547
      %5927 = vmatprep.subr.bf16.mxu0 %v5552
      %5928 = vmatpush1.bf16.msra.mxu0 %v5551
      %5929 = vmatprep.subr.bf16.mxu0 %v5556
      %5930 = vmatpush1.bf16.msra.mxu0 %v5555
      %5931 = vmatprep.subr.bf16.mxu0 %v5560
      %5932 = vmatpush1.bf16.msra.mxu0 %v5559
      %5933 = vmatprep.subr.bf16.mxu0 %v5564
      %5934 = vmatpush1.bf16.msra.mxu0 %v5563
      %5935 = vmatprep.subr.bf16.mxu0 %v5568
      %5936 = vmatpush1.bf16.msra.mxu0 %v5567
      %5937 = vmatprep.subr.bf16.mxu0 %v5572
      %5938 = vmatpush1.bf16.msra.mxu0 %v5571
      %5939 = vmatprep.subr.bf16.mxu0 %v5576
      %5940 = vmatpush1.bf16.msra.mxu0 %v5575
      %5941 = vmatprep.subr.bf16.mxu0 %v5580
      %5942 = vmatpush1.bf16.msra.mxu0 %v5579
      %5943 = vmatprep.subr.bf16.mxu0 %v5584
      %5944 = vmatpush1.bf16.msra.mxu0 %v5583
      %5945 = vmatprep.subr.bf16.mxu0 %v5588
      %5946 = vmatpush1.bf16.msra.mxu0 %v5587
      %5947 = vmatprep.subr.bf16.mxu0 %v5592
      %5948 = vmatpush1.bf16.msra.mxu0 %v5591
      %5949 = vmatprep.subr.bf16.mxu0 %v5596
      %5950 = vmatpush1.bf16.msra.mxu0 %v5595
      %5951 = vmatprep.mubr.bf16.mxu0 %v1209
      %5952 = vmatmul.mubr.bf16.gmra.mrb[0].mxu0 %v1208
      %v5953 = vpop.f32.mrb[0].mxu0
      %v5954 = vpop.f32.mrb[0].mxu0
      %v5955 = vpop.f32.mrb[0].mxu0
      %v5956 = vadd.f32 0.0, %v5955
      %v5957 = vpop.f32.mrb[0].mxu0
      %v5958 = vadd.f32 0.0, %v5957
      %5959 = vmatprep.mubr.bf16.mxu0 %v1215
      %5960 = vmatmul.mubr.bf16.gmra.mrb[0].mxu0 %v1214
      %v5961 = vpop.f32.mrb[0].mxu0
      %v5962 = vadd.f32 0.0, %v5961
      %v5963 = vpop.f32.mrb[0].mxu0
      %v5964 = vadd.f32 0.0, %v5963
      %v5965 = vpop.f32.mrb[0].mxu0
      %v5966 = vadd.f32 0.0, %v5965
      %v5967 = vpop.f32.mrb[0].mxu0
      %v5968 = vadd.f32 0.0, %v5967
      %5969 = vmatprep.mubr.bf16.mxu0 %v1221
      %5970 = vmatmul.mubr.bf16.gmra.mrb[0].mxu0 %v1220
      %v5971 = vpop.f32.mrb[0].mxu0
      %v5972 = vadd.f32 0.0, %v5971
      %v5973 = vpop.f32.mrb[0].mxu0
      %v5974 = vadd.f32 0.0, %v5973
      %v5975 = vpop.f32.mrb[0].mxu0
      %v5976 = vadd.f32 0.0, %v5975
      %v5977 = vpop.f32.mrb[0].mxu0
      %v5978 = vadd.f32 0.0, %v5977
      %5979 = vmatprep.mubr.bf16.mxu0 %v1227
      %5980 = vmatmul.mubr.bf16.gmra.mrb[0].mxu0 %v1226
      %v5981 = vpop.f32.mrb[0].mxu0
      %v5982 = vadd.f32 0.0, %v5981
      %v5983 = vpop.f32.mrb[0].mxu0
      %v5984 = vadd.f32 0.0, %v5983
      %v5985 = vpop.f32.mrb[0].mxu0
      %v5986 = vadd.f32 0.0, %v5985
      %v5987 = vpop.f32.mrb[0].mxu0
      %v5988 = vadd.f32 0.0, %v5987
      %5989 = vmatprep.mubr.bf16.mxu0 %v1233
      %5990 = vmatmul.mubr.bf16.gmra.mrb[0].mxu0 %v1232
      %v5991 = vpop.f32.mrb[0].mxu0
      %v5992 = vpop.f32.mrb[0].mxu0
      %v5993 = vpop.f32.mrb[0].mxu0
      %v5994 = vpop.f32.mrb[0].mxu0
      %5995 = vmatprep.mubr.bf16.mxu0 %v1239
      %5996 = vmatmul.mubr.bf16.gmra.mrb[0].mxu0 %v1238
      %v5997 = vpop.f32.mrb[0].mxu0
      %v5998 = vadd.f32 0.0, %v5997
      %v5999 = vpop.f32.mrb[0].mxu0
      %v6000 = vadd.f32 0.0, %v5999
      %v6001 = vpop.f32.mrb[0].mxu0
      %v6002 = vadd.f32 0.0, %v6001
      %v6003 = vpop.f32.mrb[0].mxu0
      %v6004 = vadd.f32 0.0, %v6003
      %6005 = vmatprep.mubr.bf16.mxu0 %v1245
      %6006 = vmatmul.mubr.bf16.gmra.mrb[0].mxu0 %v1244
      %v6007 = vpop.f32.mrb[0].mxu0
      %v6008 = vadd.f32 0.0, %v6007
      %v6009 = vpop.f32.mrb[0].mxu0
      %v6010 = vadd.f32 0.0, %v6009
      %v6011 = vpop.f32.mrb[0].mxu0
      %v6012 = vadd.f32 0.0, %v6011
      %v6013 = vpop.f32.mrb[0].mxu0
      %v6014 = vadd.f32 0.0, %v6013
      %6015 = vmatprep.mubr.bf16.mxu0 %v1251
      %6016 = vmatmul.mubr.bf16.gmra.mrb[0].mxu0 %v1250
      %v6017 = vpop.f32.mrb[0].mxu0
      %v6018 = vadd.f32 0.0, %v6017
      %v6019 = vpop.f32.mrb[0].mxu0
      %v6020 = vadd.f32 0.0, %v6019
      %v6021 = vpop.f32.mrb[0].mxu0
      %v6022 = vadd.f32 0.0, %v6021
      %v6023 = vpop.f32.mrb[0].mxu0
      %v6024 = vadd.f32 0.0, %v6023
      %6025 = vmatprep.mubr.bf16.mxu0 %v1257
      %6026 = vmatmul.mubr.bf16.gmra.mrb[0].mxu0 %v1256
      %v6027 = vpop.f32.mrb[0].mxu0
      %v6028 = vadd.f32 0.0, %v6027
      %v6029 = vpop.f32.mrb[0].mxu0
      %v6030 = vadd.f32 0.0, %v6029
      %v6031 = vpop.f32.mrb[0].mxu0
      %v6032 = vpop.f32.mrb[0].mxu0
      %6033 = vmatprep.mubr.bf16.mxu0 %v1263
      %6034 = vmatmul.mubr.bf16.gmra.mrb[0].mxu0 %v1262
      %v6035 = vpop.f32.mrb[0].mxu0
      %v6036 = vpop.f32.mrb[0].mxu0
      %v6037 = vpop.f32.mrb[0].mxu0
      %v6038 = vadd.f32 0.0, %v6037
      %v6039 = vpop.f32.mrb[0].mxu0
      %v6040 = vadd.f32 0.0, %v6039
      %6041 = vmatprep.mubr.bf16.mxu0 %v1269
      %6042 = vmatmul.mubr.bf16.gmra.mrb[0].mxu0 %v1268
      %v6043 = vpop.f32.mrb[0].mxu0
      %v6044 = vadd.f32 0.0, %v6043
      %v6045 = vpop.f32.mrb[0].mxu0
      %v6046 = vadd.f32 0.0, %v6045
      %v6047 = vpop.f32.mrb[0].mxu0
      %v6048 = vadd.f32 0.0, %v6047
      %v6049 = vpop.f32.mrb[0].mxu0
      %v6050 = vadd.f32 0.0, %v6049
      %6051 = vmatprep.mubr.bf16.mxu0 %v1275
      %6052 = vmatmul.mubr.bf16.gmra.mrb[0].mxu0 %v1274
      %v6053 = vpop.f32.mrb[0].mxu0
      %v6054 = vadd.f32 0.0, %v6053
      %v6055 = vpop.f32.mrb[0].mxu0
      %v6056 = vadd.f32 0.0, %v6055
      %v6057 = vpop.f32.mrb[0].mxu0
      %v6058 = vadd.f32 0.0, %v6057
      %v6059 = vpop.f32.mrb[0].mxu0
      %v6060 = vadd.f32 0.0, %v6059
      %6061 = vmatprep.mubr.bf16.mxu0 %v1281
      %6062 = vmatmul.mubr.bf16.gmra.mrb[0].mxu0 %v1280
      %v6063 = vpop.f32.mrb[0].mxu0
      %v6064 = vadd.f32 0.0, %v6063
      %v6065 = vpop.f32.mrb[0].mxu0
      %v6066 = vadd.f32 0.0, %v6065
      %v6067 = vpop.f32.mrb[0].mxu0
      %v6068 = vadd.f32 0.0, %v6067
      %v6069 = vpop.f32.mrb[0].mxu0
      %v6070 = vadd.f32 0.0, %v6069
      %6071 = vmatprep.mubr.bf16.mxu0 %v1287
      %6072 = vmatmul.mubr.bf16.gmra.mrb[0].mxu0 %v1286
      %v6073 = vpop.f32.mrb[0].mxu0
      %v6074 = vpop.f32.mrb[0].mxu0
      %v6075 = vpop.f32.mrb[0].mxu0
      %v6076 = vpop.f32.mrb[0].mxu0
      %6077 = vmatprep.mubr.bf16.mxu0 %v1293
      %6078 = vmatmul.mubr.bf16.gmra.mrb[0].mxu0 %v1292
      %v6079 = vpop.f32.mrb[0].mxu0
      %v6080 = vadd.f32 0.0, %v6079
      %v6081 = vpop.f32.mrb[0].mxu0
      %v6082 = vadd.f32 0.0, %v6081
      %v6083 = vpop.f32.mrb[0].mxu0
      %v6084 = vadd.f32 0.0, %v6083
      %v6085 = vpop.f32.mrb[0].mxu0
      %v6086 = vadd.f32 0.0, %v6085
      %6087 = vmatprep.mubr.bf16.mxu0 %v1299
      %6088 = vmatmul.mubr.bf16.gmra.mrb[0].mxu0 %v1298
      %v6089 = vpop.f32.mrb[0].mxu0
      %v6090 = vadd.f32 0.0, %v6089
      %v6091 = vpop.f32.mrb[0].mxu0
      %v6092 = vadd.f32 0.0, %v6091
      %v6093 = vpop.f32.mrb[0].mxu0
      %v6094 = vadd.f32 0.0, %v6093
      %v6095 = vpop.f32.mrb[0].mxu0
      %v6096 = vadd.f32 0.0, %v6095
      %6097 = vmatprep.mubr.bf16.mxu0 %v1305
      %6098 = vmatmul.mubr.bf16.gmra.mrb[0].mxu0 %v1304
      %v6099 = vpop.f32.mrb[0].mxu0
      %v6100 = vadd.f32 0.0, %v6099
      %v6101 = vpop.f32.mrb[0].mxu0
      %v6102 = vadd.f32 0.0, %v6101
      %v6103 = vpop.f32.mrb[0].mxu0
      %v6104 = vadd.f32 0.0, %v6103
      %v6105 = vpop.f32.mrb[0].mxu0
      %v6106 = vadd.f32 0.0, %v6105
      %6107 = vmatprep.mubr.bf16.mxu0 %v1311
      %6108 = vmatmul.mubr.bf16.gmra.mrb[0].mxu0 %v1310
      %v6109 = vpop.f32.mrb[0].mxu0
      %v6110 = vadd.f32 0.0, %v6109
      %v6111 = vpop.f32.mrb[0].mxu0
      %v6112 = vadd.f32 0.0, %v6111
      %v6113 = vpop.f32.mrb[0].mxu0
      %v6114 = vpop.f32.mrb[0].mxu0
      %6115 = vmatprep.mubr.bf16.mxu0 %v1317
      %6116 = vmatmul.mubr.bf16.gmra.mrb[0].mxu0 %v1316
      %v6117 = vpop.f32.mrb[0].mxu0
      %v6118 = vpop.f32.mrb[0].mxu0
      %v6119 = vpop.f32.mrb[0].mxu0
      %v6120 = vadd.f32 0.0, %v6119
      %v6121 = vpop.f32.mrb[0].mxu0
      %v6122 = vadd.f32 0.0, %v6121
      %6123 = vmatprep.mubr.bf16.mxu0 %v1323
      %6124 = vmatmul.mubr.bf16.gmra.mrb[0].mxu0 %v1322
      %v6125 = vpop.f32.mrb[0].mxu0
      %v6126 = vadd.f32 0.0, %v6125
      %v6127 = vpop.f32.mrb[0].mxu0
      %v6128 = vadd.f32 0.0, %v6127
      %v6129 = vpop.f32.mrb[0].mxu0
      %v6130 = vadd.f32 0.0, %v6129
      %v6131 = vpop.f32.mrb[0].mxu0
      %v6132 = vadd.f32 0.0, %v6131
      %6133 = vmatprep.mubr.bf16.mxu0 %v1329
      %6134 = vmatmul.mubr.bf16.gmra.mrb[0].mxu0 %v1328
      %v6135 = vpop.f32.mrb[0].mxu0
      %v6136 = vadd.f32 0.0, %v6135
      %v6137 = vpop.f32.mrb[0].mxu0
      %v6138 = vadd.f32 0.0, %v6137
      %v6139 = vpop.f32.mrb[0].mxu0
      %v6140 = vadd.f32 0.0, %v6139
      %v6141 = vpop.f32.mrb[0].mxu0
      %v6142 = vadd.f32 0.0, %v6141
      %6143 = vmatprep.mubr.bf16.mxu0 %v1335
      %6144 = vmatmul.mubr.bf16.gmra.mrb[0].mxu0 %v1334
      %v6145 = vpop.f32.mrb[0].mxu0
      %v6146 = vadd.f32 0.0, %v6145
      %v6147 = vpop.f32.mrb[0].mxu0
      %v6148 = vadd.f32 0.0, %v6147
      %v6149 = vpop.f32.mrb[0].mxu0
      %v6150 = vadd.f32 0.0, %v6149
      %v6151 = vpop.f32.mrb[0].mxu0
      %v6152 = vadd.f32 0.0, %v6151
      %6153 = vmatprep.mubr.bf16.mxu0 %v1341
      %6154 = vmatmul.mubr.bf16.gmra.mrb[0].mxu0 %v1340
      %v6155 = vpop.f32.mrb[0].mxu0
      %v6156 = vpop.f32.mrb[0].mxu0
      %v6157 = vpop.f32.mrb[0].mxu0
      %v6158 = vpop.f32.mrb[0].mxu0
      %6159 = vmatprep.mubr.bf16.mxu0 %v1347
      %6160 = vmatmul.mubr.bf16.gmra.mrb[0].mxu0 %v1346
      %v6161 = vpop.f32.mrb[0].mxu0
      %v6162 = vadd.f32 0.0, %v6161
      %v6163 = vpop.f32.mrb[0].mxu0
      %v6164 = vadd.f32 0.0, %v6163
      %v6165 = vpop.f32.mrb[0].mxu0
      %v6166 = vadd.f32 0.0, %v6165
      %v6167 = vpop.f32.mrb[0].mxu0
      %v6168 = vadd.f32 0.0, %v6167
      %6169 = vmatprep.mubr.bf16.mxu0 %v1353
      %6170 = vmatmul.mubr.bf16.gmra.mrb[0].mxu0 %v1352
      %v6171 = vpop.f32.mrb[0].mxu0
      %v6172 = vadd.f32 0.0, %v6171
      %v6173 = vpop.f32.mrb[0].mxu0
      %v6174 = vadd.f32 0.0, %v6173
      %v6175 = vpop.f32.mrb[0].mxu0
      %v6176 = vadd.f32 0.0, %v6175
      %v6177 = vpop.f32.mrb[0].mxu0
      %v6178 = vadd.f32 0.0, %v6177
      %6179 = vmatprep.mubr.bf16.mxu0 %v1359
      %6180 = vmatmul.mubr.bf16.gmra.mrb[0].mxu0 %v1358
      %v6181 = vpop.f32.mrb[0].mxu0
      %v6182 = vadd.f32 0.0, %v6181
      %v6183 = vpop.f32.mrb[0].mxu0
      %v6184 = vadd.f32 0.0, %v6183
      %v6185 = vpop.f32.mrb[0].mxu0
      %v6186 = vadd.f32 0.0, %v6185
      %v6187 = vpop.f32.mrb[0].mxu0
      %v6188 = vadd.f32 0.0, %v6187
      %6189 = vmatprep.mubr.bf16.mxu0 %v1365
      %6190 = vmatmul.mubr.bf16.gmra.mrb[0].mxu0 %v1364
      %v6191 = vpop.f32.mrb[0].mxu0
      %v6192 = vadd.f32 0.0, %v6191
      %v6193 = vpop.f32.mrb[0].mxu0
      %v6194 = vadd.f32 0.0, %v6193
      %v6195 = vpop.f32.mrb[0].mxu0
      %v6196 = vpop.f32.mrb[0].mxu0
      %6197 = vmatprep.mubr.bf16.mxu0 %v1371
      %6198 = vmatmul.mubr.bf16.gmra.mrb[0].mxu0 %v1370
      %v6199 = vpop.f32.mrb[0].mxu0
      %v6200 = vpop.f32.mrb[0].mxu0
      %v6201 = vpop.f32.mrb[0].mxu0
      %v6202 = vadd.f32 0.0, %v6201
      %v6203 = vpop.f32.mrb[0].mxu0
      %v6204 = vadd.f32 0.0, %v6203
      %6205 = vmatprep.mubr.bf16.mxu0 %v1377
      %6206 = vmatmul.mubr.bf16.gmra.mrb[0].mxu0 %v1376
      %v6207 = vpop.f32.mrb[0].mxu0
      %v6208 = vadd.f32 0.0, %v6207
      %v6209 = vpop.f32.mrb[0].mxu0
      %v6210 = vadd.f32 0.0, %v6209
      %v6211 = vpop.f32.mrb[0].mxu0
      %v6212 = vadd.f32 0.0, %v6211
      %v6213 = vpop.f32.mrb[0].mxu0
      %v6214 = vadd.f32 0.0, %v6213
      %6215 = vmatprep.mubr.bf16.mxu0 %v1383
      %6216 = vmatmul.mubr.bf16.gmra.mrb[0].mxu0 %v1382
      %v6217 = vpop.f32.mrb[0].mxu0
      %v6218 = vadd.f32 0.0, %v6217
      %v6219 = vpop.f32.mrb[0].mxu0
      %v6220 = vadd.f32 0.0, %v6219
      %v6221 = vpop.f32.mrb[0].mxu0
      %v6222 = vadd.f32 0.0, %v6221
      %v6223 = vpop.f32.mrb[0].mxu0
      %v6224 = vadd.f32 0.0, %v6223
      %6225 = vmatprep.mubr.bf16.mxu0 %v1389
      %6226 = vmatmul.mubr.bf16.gmra.mrb[0].mxu0 %v1388
      %v6227 = vpop.f32.mrb[0].mxu0
      %v6228 = vadd.f32 0.0, %v6227
      %v6229 = vpop.f32.mrb[0].mxu0
      %v6230 = vadd.f32 0.0, %v6229
      %v6231 = vpop.f32.mrb[0].mxu0
      %v6232 = vadd.f32 0.0, %v6231
      %v6233 = vpop.f32.mrb[0].mxu0
      %v6234 = vadd.f32 0.0, %v6233
      %6235 = vmatprep.mubr.bf16.mxu0 %v1395
      %6236 = vmatmul.mubr.bf16.gmra.mrb[0].mxu0 %v1394
      %v6237 = vpop.f32.mrb[0].mxu0
      %v6238 = vpop.f32.mrb[0].mxu0
      %v6239 = vpop.f32.mrb[0].mxu0
      %v6240 = vpop.f32.mrb[0].mxu0
      %6241 = vmatprep.mubr.bf16.mxu0 %v1401
      %6242 = vmatmul.mubr.bf16.gmra.mrb[0].mxu0 %v1400
      %v6243 = vpop.f32.mrb[0].mxu0
      %v6244 = vadd.f32 0.0, %v6243
      %v6245 = vpop.f32.mrb[0].mxu0
      %v6246 = vadd.f32 0.0, %v6245
      %v6247 = vpop.f32.mrb[0].mxu0
      %v6248 = vadd.f32 0.0, %v6247
      %v6249 = vpop.f32.mrb[0].mxu0
      %v6250 = vadd.f32 0.0, %v6249
      %6251 = vmatprep.mubr.bf16.mxu0 %v1407
      %6252 = vmatmul.mubr.bf16.gmra.mrb[0].mxu0 %v1406
      %v6253 = vpop.f32.mrb[0].mxu0
      %v6254 = vadd.f32 0.0, %v6253
      %v6255 = vpop.f32.mrb[0].mxu0
      %v6256 = vadd.f32 0.0, %v6255
      %v6257 = vpop.f32.mrb[0].mxu0
      %v6258 = vadd.f32 0.0, %v6257
      %v6259 = vpop.f32.mrb[0].mxu0
      %v6260 = vadd.f32 0.0, %v6259
      %6261 = vmatprep.mubr.bf16.mxu0 %v1413
      %6262 = vmatmul.mubr.bf16.gmra.mrb[0].mxu0 %v1412
      %v6263 = vpop.f32.mrb[0].mxu0
      %v6264 = vadd.f32 0.0, %v6263
      %v6265 = vpop.f32.mrb[0].mxu0
      %v6266 = vadd.f32 0.0, %v6265
      %v6267 = vpop.f32.mrb[0].mxu0
      %v6268 = vadd.f32 0.0, %v6267
      %v6269 = vpop.f32.mrb[0].mxu0
      %v6270 = vadd.f32 0.0, %v6269
      %6271 = vmatprep.mubr.bf16.mxu0 %v1419
      %6272 = vmatmul.mubr.bf16.gmra.mrb[0].mxu0 %v1418
      %v6273 = vpop.f32.mrb[0].mxu0
      %v6274 = vadd.f32 0.0, %v6273
      %v6275 = vpop.f32.mrb[0].mxu0
      %v6276 = vadd.f32 0.0, %v6275
      %v6277 = vpop.f32.mrb[0].mxu0
      %v6278 = vpop.f32.mrb[0].mxu0
      %6279 = vdwg.mxu0
      %6280 = vmatprep.subr.bf16.mxu0 %v5600
      %6281 = vmatpush1.bf16.msra.mxu0 %v5599
      %6282 = vmatprep.subr.bf16.mxu0 %v5604
      %6283 = vmatpush1.bf16.msra.mxu0 %v5603
      %6284 = vmatprep.subr.bf16.mxu0 %v5608
      %6285 = vmatpush1.bf16.msra.mxu0 %v5607
      %6286 = vmatprep.subr.bf16.mxu0 %v5612
      %6287 = vmatpush1.bf16.msra.mxu0 %v5611
      %6288 = vmatprep.subr.bf16.mxu0 %v5616
      %6289 = vmatpush1.bf16.msra.mxu0 %v5615
      %6290 = vmatprep.subr.bf16.mxu0 %v5620
      %6291 = vmatpush1.bf16.msra.mxu0 %v5619
      %6292 = vmatprep.subr.bf16.mxu0 %v5624
      %6293 = vmatpush1.bf16.msra.mxu0 %v5623
      %6294 = vmatprep.subr.bf16.mxu0 %v5628
      %6295 = vmatpush1.bf16.msra.mxu0 %v5627
      %6296 = vmatprep.subr.bf16.mxu0 %v5632
      %6297 = vmatpush1.bf16.msra.mxu0 %v5631
      %6298 = vmatprep.subr.bf16.mxu0 %v5636
      %6299 = vmatpush1.bf16.msra.mxu0 %v5635
      %6300 = vmatprep.subr.bf16.mxu0 %v5640
      %6301 = vmatpush1.bf16.msra.mxu0 %v5639
      %6302 = vmatprep.subr.bf16.mxu0 %v5644
      %6303 = vmatpush1.bf16.msra.mxu0 %v5643
      %6304 = vmatprep.subr.bf16.mxu0 %v5648
      %6305 = vmatpush1.bf16.msra.mxu0 %v5647
      %6306 = vmatprep.subr.bf16.mxu0 %v5652
      %6307 = vmatpush1.bf16.msra.mxu0 %v5651
      %6308 = vmatprep.subr.bf16.mxu0 %v5656
      %6309 = vmatpush1.bf16.msra.mxu0 %v5655
      %6310 = vmatprep.subr.bf16.mxu0 %v5660
      %6311 = vmatpush1.bf16.msra.mxu0 %v5659
      %6312 = vmatprep.mubr.bf16.mxu0 %v1211
      %6313 = vmatmul.mubr.bf16.gmra.mrb[0].mxu0 %v1210
      %v6314 = vpop.f32.mrb[0].mxu0
      %v6315 = vpop.f32.mrb[0].mxu0
      %v6316 = vpop.f32.mrb[0].mxu0
      %v6317 = vadd.f32 %v5956, %v6316
      %v6318 = vpop.f32.mrb[0].mxu0
      %v6319 = vadd.f32 %v5958, %v6318
      %6320 = vmatprep.mubr.bf16.mxu0 %v1217
      %6321 = vmatmul.mubr.bf16.gmra.mrb[0].mxu0 %v1216
      %v6322 = vpop.f32.mrb[0].mxu0
      %v6323 = vadd.f32 %v5962, %v6322
      %v6324 = vpop.f32.mrb[0].mxu0
      %v6325 = vadd.f32 %v5964, %v6324
      %v6326 = vpop.f32.mrb[0].mxu0
      %v6327 = vadd.f32 %v5966, %v6326
      %v6328 = vpop.f32.mrb[0].mxu0
      %v6329 = vadd.f32 %v5968, %v6328
      %6330 = vmatprep.mubr.bf16.mxu0 %v1223
      %6331 = vmatmul.mubr.bf16.gmra.mrb[0].mxu0 %v1222
      %v6332 = vpop.f32.mrb[0].mxu0
      %v6333 = vadd.f32 %v5972, %v6332
      %v6334 = vpop.f32.mrb[0].mxu0
      %v6335 = vadd.f32 %v5974, %v6334
      %v6336 = vpop.f32.mrb[0].mxu0
      %v6337 = vadd.f32 %v5976, %v6336
      %v6338 = vpop.f32.mrb[0].mxu0
      %v6339 = vadd.f32 %v5978, %v6338
      %6340 = vmatprep.mubr.bf16.mxu0 %v1229
      %6341 = vmatmul.mubr.bf16.gmra.mrb[0].mxu0 %v1228
      %v6342 = vpop.f32.mrb[0].mxu0
      %v6343 = vadd.f32 %v5982, %v6342
      %v6344 = vpop.f32.mrb[0].mxu0
      %v6345 = vadd.f32 %v5984, %v6344
      %v6346 = vpop.f32.mrb[0].mxu0
      %v6347 = vadd.f32 %v5986, %v6346
      %v6348 = vpop.f32.mrb[0].mxu0
      %v6349 = vadd.f32 %v5988, %v6348
      %6350 = vmatprep.mubr.bf16.mxu0 %v1235
      %6351 = vmatmul.mubr.bf16.gmra.mrb[0].mxu0 %v1234
      %v6352 = vpop.f32.mrb[0].mxu0
      %v6353 = vpop.f32.mrb[0].mxu0
      %v6354 = vpop.f32.mrb[0].mxu0
      %v6355 = vpop.f32.mrb[0].mxu0
      %6356 = vmatprep.mubr.bf16.mxu0 %v1241
      %6357 = vmatmul.mubr.bf16.gmra.mrb[0].mxu0 %v1240
      %v6358 = vpop.f32.mrb[0].mxu0
      %v6359 = vadd.f32 %v5998, %v6358
      %v6360 = vpop.f32.mrb[0].mxu0
      %v6361 = vadd.f32 %v6000, %v6360
      %v6362 = vpop.f32.mrb[0].mxu0
      %v6363 = vadd.f32 %v6002, %v6362
      %v6364 = vpop.f32.mrb[0].mxu0
      %v6365 = vadd.f32 %v6004, %v6364
      %6366 = vmatprep.mubr.bf16.mxu0 %v1247
      %6367 = vmatmul.mubr.bf16.gmra.mrb[0].mxu0 %v1246
      %v6368 = vpop.f32.mrb[0].mxu0
      %v6369 = vadd.f32 %v6008, %v6368
      %v6370 = vpop.f32.mrb[0].mxu0
      %v6371 = vadd.f32 %v6010, %v6370
      %v6372 = vpop.f32.mrb[0].mxu0
      %v6373 = vadd.f32 %v6012, %v6372
      %v6374 = vpop.f32.mrb[0].mxu0
      %v6375 = vadd.f32 %v6014, %v6374
      %6376 = vmatprep.mubr.bf16.mxu0 %v1253
      %6377 = vmatmul.mubr.bf16.gmra.mrb[0].mxu0 %v1252
      %v6378 = vpop.f32.mrb[0].mxu0
      %v6379 = vadd.f32 %v6018, %v6378
      %v6380 = vpop.f32.mrb[0].mxu0
      %v6381 = vadd.f32 %v6020, %v6380
      %v6382 = vpop.f32.mrb[0].mxu0
      %v6383 = vadd.f32 %v6022, %v6382
      %v6384 = vpop.f32.mrb[0].mxu0
      %v6385 = vadd.f32 %v6024, %v6384
      %6386 = vmatprep.mubr.bf16.mxu0 %v1259
      %6387 = vmatmul.mubr.bf16.gmra.mrb[0].mxu0 %v1258
      %v6388 = vpop.f32.mrb[0].mxu0
      %v6389 = vadd.f32 %v6028, %v6388
      %v6390 = vpop.f32.mrb[0].mxu0
      %v6391 = vadd.f32 %v6030, %v6390
      %v6392 = vpop.f32.mrb[0].mxu0
      %v6393 = vpop.f32.mrb[0].mxu0
      %6394 = vmatprep.mubr.bf16.mxu0 %v1265
      %6395 = vmatmul.mubr.bf16.gmra.mrb[0].mxu0 %v1264
      %v6396 = vpop.f32.mrb[0].mxu0
      %v6397 = vpop.f32.mrb[0].mxu0
      %v6398 = vpop.f32.mrb[0].mxu0
      %v6399 = vadd.f32 %v6038, %v6398
      %v6400 = vpop.f32.mrb[0].mxu0
      %v6401 = vadd.f32 %v6040, %v6400
      %6402 = vmatprep.mubr.bf16.mxu0 %v1271
      %6403 = vmatmul.mubr.bf16.gmra.mrb[0].mxu0 %v1270
      %v6404 = vpop.f32.mrb[0].mxu0
      %v6405 = vadd.f32 %v6044, %v6404
      %v6406 = vpop.f32.mrb[0].mxu0
      %v6407 = vadd.f32 %v6046, %v6406
      %v6408 = vpop.f32.mrb[0].mxu0
      %v6409 = vadd.f32 %v6048, %v6408
      %v6410 = vpop.f32.mrb[0].mxu0
      %v6411 = vadd.f32 %v6050, %v6410
      %6412 = vmatprep.mubr.bf16.mxu0 %v1277
      %6413 = vmatmul.mubr.bf16.gmra.mrb[0].mxu0 %v1276
      %v6414 = vpop.f32.mrb[0].mxu0
      %v6415 = vadd.f32 %v6054, %v6414
      %v6416 = vpop.f32.mrb[0].mxu0
      %v6417 = vadd.f32 %v6056, %v6416
      %v6418 = vpop.f32.mrb[0].mxu0
      %v6419 = vadd.f32 %v6058, %v6418
      %v6420 = vpop.f32.mrb[0].mxu0
      %v6421 = vadd.f32 %v6060, %v6420
      %6422 = vmatprep.mubr.bf16.mxu0 %v1283
      %6423 = vmatmul.mubr.bf16.gmra.mrb[0].mxu0 %v1282
      %v6424 = vpop.f32.mrb[0].mxu0
      %v6425 = vadd.f32 %v6064, %v6424
      %v6426 = vpop.f32.mrb[0].mxu0
      %v6427 = vadd.f32 %v6066, %v6426
      %v6428 = vpop.f32.mrb[0].mxu0
      %v6429 = vadd.f32 %v6068, %v6428
      %v6430 = vpop.f32.mrb[0].mxu0
      %v6431 = vadd.f32 %v6070, %v6430
      %6432 = vmatprep.mubr.bf16.mxu0 %v1289
      %6433 = vmatmul.mubr.bf16.gmra.mrb[0].mxu0 %v1288
      %v6434 = vpop.f32.mrb[0].mxu0
      %v6435 = vpop.f32.mrb[0].mxu0
      %v6436 = vpop.f32.mrb[0].mxu0
      %v6437 = vpop.f32.mrb[0].mxu0
      %6438 = vmatprep.mubr.bf16.mxu0 %v1295
      %6439 = vmatmul.mubr.bf16.gmra.mrb[0].mxu0 %v1294
      %v6440 = vpop.f32.mrb[0].mxu0
      %v6441 = vadd.f32 %v6080, %v6440
      %v6442 = vpop.f32.mrb[0].mxu0
      %v6443 = vadd.f32 %v6082, %v6442
      %v6444 = vpop.f32.mrb[0].mxu0
      %v6445 = vadd.f32 %v6084, %v6444
      %v6446 = vpop.f32.mrb[0].mxu0
      %v6447 = vadd.f32 %v6086, %v6446
      %6448 = vmatprep.mubr.bf16.mxu0 %v1301
      %6449 = vmatmul.mubr.bf16.gmra.mrb[0].mxu0 %v1300
      %v6450 = vpop.f32.mrb[0].mxu0
      %v6451 = vadd.f32 %v6090, %v6450
      %v6452 = vpop.f32.mrb[0].mxu0
      %v6453 = vadd.f32 %v6092, %v6452
      %v6454 = vpop.f32.mrb[0].mxu0
      %v6455 = vadd.f32 %v6094, %v6454
      %v6456 = vpop.f32.mrb[0].mxu0
      %v6457 = vadd.f32 %v6096, %v6456
      %6458 = vmatprep.mubr.bf16.mxu0 %v1307
      %6459 = vmatmul.mubr.bf16.gmra.mrb[0].mxu0 %v1306
      %v6460 = vpop.f32.mrb[0].mxu0
      %v6461 = vadd.f32 %v6100, %v6460
      %v6462 = vpop.f32.mrb[0].mxu0
      %v6463 = vadd.f32 %v6102, %v6462
      %v6464 = vpop.f32.mrb[0].mxu0
      %v6465 = vadd.f32 %v6104, %v6464
      %v6466 = vpop.f32.mrb[0].mxu0
      %v6467 = vadd.f32 %v6106, %v6466
      %6468 = vmatprep.mubr.bf16.mxu0 %v1313
      %6469 = vmatmul.mubr.bf16.gmra.mrb[0].mxu0 %v1312
      %v6470 = vpop.f32.mrb[0].mxu0
      %v6471 = vadd.f32 %v6110, %v6470
      %v6472 = vpop.f32.mrb[0].mxu0
      %v6473 = vadd.f32 %v6112, %v6472
      %v6474 = vpop.f32.mrb[0].mxu0
      %v6475 = vpop.f32.mrb[0].mxu0
      %6476 = vmatprep.mubr.bf16.mxu0 %v1319
      %6477 = vmatmul.mubr.bf16.gmra.mrb[0].mxu0 %v1318
      %v6478 = vpop.f32.mrb[0].mxu0
      %v6479 = vpop.f32.mrb[0].mxu0
      %v6480 = vpop.f32.mrb[0].mxu0
      %v6481 = vadd.f32 %v6120, %v6480
      %v6482 = vpop.f32.mrb[0].mxu0
      %v6483 = vadd.f32 %v6122, %v6482
      %6484 = vmatprep.mubr.bf16.mxu0 %v1325
      %6485 = vmatmul.mubr.bf16.gmra.mrb[0].mxu0 %v1324
      %v6486 = vpop.f32.mrb[0].mxu0
      %v6487 = vadd.f32 %v6126, %v6486
      %v6488 = vpop.f32.mrb[0].mxu0
      %v6489 = vadd.f32 %v6128, %v6488
      %v6490 = vpop.f32.mrb[0].mxu0
      %v6491 = vadd.f32 %v6130, %v6490
      %v6492 = vpop.f32.mrb[0].mxu0
      %v6493 = vadd.f32 %v6132, %v6492
      %6494 = vmatprep.mubr.bf16.mxu0 %v1331
      %6495 = vmatmul.mubr.bf16.gmra.mrb[0].mxu0 %v1330
      %v6496 = vpop.f32.mrb[0].mxu0
      %v6497 = vadd.f32 %v6136, %v6496
      %v6498 = vpop.f32.mrb[0].mxu0
      %v6499 = vadd.f32 %v6138, %v6498
      %v6500 = vpop.f32.mrb[0].mxu0
      %v6501 = vadd.f32 %v6140, %v6500
      %v6502 = vpop.f32.mrb[0].mxu0
      %v6503 = vadd.f32 %v6142, %v6502
      %6504 = vmatprep.mubr.bf16.mxu0 %v1337
      %6505 = vmatmul.mubr.bf16.gmra.mrb[0].mxu0 %v1336
      %v6506 = vpop.f32.mrb[0].mxu0
      %v6507 = vadd.f32 %v6146, %v6506
      %v6508 = vpop.f32.mrb[0].mxu0
      %v6509 = vadd.f32 %v6148, %v6508
      %v6510 = vpop.f32.mrb[0].mxu0
      %v6511 = vadd.f32 %v6150, %v6510
      %v6512 = vpop.f32.mrb[0].mxu0
      %v6513 = vadd.f32 %v6152, %v6512
      %6514 = vmatprep.mubr.bf16.mxu0 %v1343
      %6515 = vmatmul.mubr.bf16.gmra.mrb[0].mxu0 %v1342
      %v6516 = vpop.f32.mrb[0].mxu0
      %v6517 = vpop.f32.mrb[0].mxu0
      %v6518 = vpop.f32.mrb[0].mxu0
      %v6519 = vpop.f32.mrb[0].mxu0
      %6520 = vmatprep.mubr.bf16.mxu0 %v1349
      %6521 = vmatmul.mubr.bf16.gmra.mrb[0].mxu0 %v1348
      %v6522 = vpop.f32.mrb[0].mxu0
      %v6523 = vadd.f32 %v6162, %v6522
      %v6524 = vpop.f32.mrb[0].mxu0
      %v6525 = vadd.f32 %v6164, %v6524
      %v6526 = vpop.f32.mrb[0].mxu0
      %v6527 = vadd.f32 %v6166, %v6526
      %v6528 = vpop.f32.mrb[0].mxu0
      %v6529 = vadd.f32 %v6168, %v6528
      %6530 = vmatprep.mubr.bf16.mxu0 %v1355
      %6531 = vmatmul.mubr.bf16.gmra.mrb[0].mxu0 %v1354
      %v6532 = vpop.f32.mrb[0].mxu0
      %v6533 = vadd.f32 %v6172, %v6532
      %v6534 = vpop.f32.mrb[0].mxu0
      %v6535 = vadd.f32 %v6174, %v6534
      %v6536 = vpop.f32.mrb[0].mxu0
      %v6537 = vadd.f32 %v6176, %v6536
      %v6538 = vpop.f32.mrb[0].mxu0
      %v6539 = vadd.f32 %v6178, %v6538
      %6540 = vmatprep.mubr.bf16.mxu0 %v1361
      %6541 = vmatmul.mubr.bf16.gmra.mrb[0].mxu0 %v1360
      %v6542 = vpop.f32.mrb[0].mxu0
      %v6543 = vadd.f32 %v6182, %v6542
      %v6544 = vpop.f32.mrb[0].mxu0
      %v6545 = vadd.f32 %v6184, %v6544
      %v6546 = vpop.f32.mrb[0].mxu0
      %v6547 = vadd.f32 %v6186, %v6546
      %v6548 = vpop.f32.mrb[0].mxu0
      %v6549 = vadd.f32 %v6188, %v6548
      %6550 = vmatprep.mubr.bf16.mxu0 %v1367
      %6551 = vmatmul.mubr.bf16.gmra.mrb[0].mxu0 %v1366
      %v6552 = vpop.f32.mrb[0].mxu0
      %v6553 = vadd.f32 %v6192, %v6552
      %v6554 = vpop.f32.mrb[0].mxu0
      %v6555 = vadd.f32 %v6194, %v6554
      %v6556 = vpop.f32.mrb[0].mxu0
      %v6557 = vpop.f32.mrb[0].mxu0
      %6558 = vmatprep.mubr.bf16.mxu0 %v1373
      %6559 = vmatmul.mubr.bf16.gmra.mrb[0].mxu0 %v1372
      %v6560 = vpop.f32.mrb[0].mxu0
      %v6561 = vpop.f32.mrb[0].mxu0
      %v6562 = vpop.f32.mrb[0].mxu0
      %v6563 = vadd.f32 %v6202, %v6562
      %v6564 = vpop.f32.mrb[0].mxu0
      %v6565 = vadd.f32 %v6204, %v6564
      %6566 = vmatprep.mubr.bf16.mxu0 %v1379
      %6567 = vmatmul.mubr.bf16.gmra.mrb[0].mxu0 %v1378
      %v6568 = vpop.f32.mrb[0].mxu0
      %v6569 = vadd.f32 %v6208, %v6568
      %v6570 = vpop.f32.mrb[0].mxu0
      %v6571 = vadd.f32 %v6210, %v6570
      %v6572 = vpop.f32.mrb[0].mxu0
      %v6573 = vadd.f32 %v6212, %v6572
      %v6574 = vpop.f32.mrb[0].mxu0
      %v6575 = vadd.f32 %v6214, %v6574
      %6576 = vmatprep.mubr.bf16.mxu0 %v1385
      %6577 = vmatmul.mubr.bf16.gmra.mrb[0].mxu0 %v1384
      %v6578 = vpop.f32.mrb[0].mxu0
      %v6579 = vadd.f32 %v6218, %v6578
      %v6580 = vpop.f32.mrb[0].mxu0
      %v6581 = vadd.f32 %v6220, %v6580
      %v6582 = vpop.f32.mrb[0].mxu0
      %v6583 = vadd.f32 %v6222, %v6582
      %v6584 = vpop.f32.mrb[0].mxu0
      %v6585 = vadd.f32 %v6224, %v6584
      %6586 = vmatprep.mubr.bf16.mxu0 %v1391
      %6587 = vmatmul.mubr.bf16.gmra.mrb[0].mxu0 %v1390
      %v6588 = vpop.f32.mrb[0].mxu0
      %v6589 = vadd.f32 %v6228, %v6588
      %v6590 = vpop.f32.mrb[0].mxu0
      %v6591 = vadd.f32 %v6230, %v6590
      %v6592 = vpop.f32.mrb[0].mxu0
      %v6593 = vadd.f32 %v6232, %v6592
      %v6594 = vpop.f32.mrb[0].mxu0
      %v6595 = vadd.f32 %v6234, %v6594
      %6596 = vmatprep.mubr.bf16.mxu0 %v1397
      %6597 = vmatmul.mubr.bf16.gmra.mrb[0].mxu0 %v1396
      %v6598 = vpop.f32.mrb[0].mxu0
      %v6599 = vpop.f32.mrb[0].mxu0
      %v6600 = vpop.f32.mrb[0].mxu0
      %v6601 = vpop.f32.mrb[0].mxu0
      %6602 = vmatprep.mubr.bf16.mxu0 %v1403
      %6603 = vmatmul.mubr.bf16.gmra.mrb[0].mxu0 %v1402
      %v6604 = vpop.f32.mrb[0].mxu0
      %v6605 = vadd.f32 %v6244, %v6604
      %v6606 = vpop.f32.mrb[0].mxu0
      %v6607 = vadd.f32 %v6246, %v6606
      %v6608 = vpop.f32.mrb[0].mxu0
      %v6609 = vadd.f32 %v6248, %v6608
      %v6610 = vpop.f32.mrb[0].mxu0
      %v6611 = vadd.f32 %v6250, %v6610
      %6612 = vmatprep.mubr.bf16.mxu0 %v1409
      %6613 = vmatmul.mubr.bf16.gmra.mrb[0].mxu0 %v1408
      %v6614 = vpop.f32.mrb[0].mxu0
      %v6615 = vadd.f32 %v6254, %v6614
      %v6616 = vpop.f32.mrb[0].mxu0
      %v6617 = vadd.f32 %v6256, %v6616
      %v6618 = vpop.f32.mrb[0].mxu0
      %v6619 = vadd.f32 %v6258, %v6618
      %v6620 = vpop.f32.mrb[0].mxu0
      %v6621 = vadd.f32 %v6260, %v6620
      %6622 = vmatprep.mubr.bf16.mxu0 %v1415
      %6623 = vmatmul.mubr.bf16.gmra.mrb[0].mxu0 %v1414
      %v6624 = vpop.f32.mrb[0].mxu0
      %v6625 = vadd.f32 %v6264, %v6624
      %v6626 = vpop.f32.mrb[0].mxu0
      %v6627 = vadd.f32 %v6266, %v6626
      %v6628 = vpop.f32.mrb[0].mxu0
      %v6629 = vadd.f32 %v6268, %v6628
      %v6630 = vpop.f32.mrb[0].mxu0
      %v6631 = vadd.f32 %v6270, %v6630
      %6632 = vmatprep.mubr.bf16.mxu0 %v1421
      %6633 = vmatmul.mubr.bf16.gmra.mrb[0].mxu0 %v1420
      %v6634 = vpop.f32.mrb[0].mxu0
      %v6635 = vadd.f32 %v6274, %v6634
      %v6636 = vpop.f32.mrb[0].mxu0
      %v6637 = vadd.f32 %v6276, %v6636
      %v6638 = vpop.f32.mrb[0].mxu0
      %v6639 = vpop.f32.mrb[0].mxu0
      %6640 = vdwg.mxu0
      %6641 = vmatprep.subr.bf16.mxu0 %v5664
      %6642 = vmatpush1.bf16.msra.mxu0 %v5663
      %6643 = vmatprep.subr.bf16.mxu0 %v5668
      %6644 = vmatpush1.bf16.msra.mxu0 %v5667
      %6645 = vmatprep.subr.bf16.mxu0 %v5672
      %6646 = vmatpush1.bf16.msra.mxu0 %v5671
      %6647 = vmatprep.subr.bf16.mxu0 %v5676
      %6648 = vmatpush1.bf16.msra.mxu0 %v5675
      %6649 = vmatprep.subr.bf16.mxu0 %v5680
      %6650 = vmatpush1.bf16.msra.mxu0 %v5679
      %6651 = vmatprep.subr.bf16.mxu0 %v5684
      %6652 = vmatpush1.bf16.msra.mxu0 %v5683
      %6653 = vmatprep.subr.bf16.mxu0 %v5688
      %6654 = vmatpush1.bf16.msra.mxu0 %v5687
      %6655 = vmatprep.subr.bf16.mxu0 %v5692
      %6656 = vmatpush1.bf16.msra.mxu0 %v5691
      %6657 = vmatprep.subr.bf16.mxu0 %v5696
      %6658 = vmatpush1.bf16.msra.mxu0 %v5695
      %6659 = vmatprep.subr.bf16.mxu0 %v5700
      %6660 = vmatpush1.bf16.msra.mxu0 %v5699
      %6661 = vmatprep.subr.bf16.mxu0 %v5704
      %6662 = vmatpush1.bf16.msra.mxu0 %v5703
      %6663 = vmatprep.subr.bf16.mxu0 %v5708
      %6664 = vmatpush1.bf16.msra.mxu0 %v5707
      %6665 = vmatprep.subr.bf16.mxu0 %v5712
      %6666 = vmatpush1.bf16.msra.mxu0 %v5711
      %6667 = vmatprep.subr.bf16.mxu0 %v5716
      %6668 = vmatpush1.bf16.msra.mxu0 %v5715
      %6669 = vmatprep.subr.bf16.mxu0 %v5720
      %6670 = vmatpush1.bf16.msra.mxu0 %v5719
      %6671 = vmatprep.subr.bf16.mxu0 %v5724
      %6672 = vmatpush1.bf16.msra.mxu0 %v5723
      %6673 = vmatprep.mubr.bf16.mxu0 %v1213
      %6674 = vmatmul.mubr.bf16.gmra.mrb[0].mxu0 %v1212
      %v6675 = vpop.f32.mrb[0].mxu0
      %v6676 = vpop.f32.mrb[0].mxu0
      %v6677 = vpop.f32.mrb[0].mxu0
      %v6678 = vadd.f32 %v6317, %v6677
      %v6679 = vpop.f32.mrb[0].mxu0
      %v6680 = vadd.f32 %v6319, %v6679
      %6681 = vmatprep.mubr.bf16.mxu0 %v1219
      %6682 = vmatmul.mubr.bf16.gmra.mrb[0].mxu0 %v1218
      %v6683 = vpop.f32.mrb[0].mxu0
      %v6684 = vadd.f32 %v6323, %v6683
      %v6685 = vpop.f32.mrb[0].mxu0
      %v6686 = vadd.f32 %v6325, %v6685
      %v6687 = vpop.f32.mrb[0].mxu0
      %v6688 = vadd.f32 %v6327, %v6687
      %v6689 = vpop.f32.mrb[0].mxu0
      %v6690 = vadd.f32 %v6329, %v6689
      %6691 = vmatprep.mubr.bf16.mxu0 %v1225
      %6692 = vmatmul.mubr.bf16.gmra.mrb[0].mxu0 %v1224
      %v6693 = vpop.f32.mrb[0].mxu0
      %v6694 = vadd.f32 %v6333, %v6693
      %v6695 = vpop.f32.mrb[0].mxu0
      %v6696 = vadd.f32 %v6335, %v6695
      %v6697 = vpop.f32.mrb[0].mxu0
      %v6698 = vadd.f32 %v6337, %v6697
      %v6699 = vpop.f32.mrb[0].mxu0
      %v6700 = vadd.f32 %v6339, %v6699
      %6701 = vmatprep.mubr.bf16.mxu0 %v1231
      %6702 = vmatmul.mubr.bf16.gmra.mrb[0].mxu0 %v1230
      %v6703 = vpop.f32.mrb[0].mxu0
      %v6704 = vadd.f32 %v6343, %v6703
      %v6705 = vpop.f32.mrb[0].mxu0
      %v6706 = vadd.f32 %v6345, %v6705
      %v6707 = vpop.f32.mrb[0].mxu0
      %v6708 = vadd.f32 %v6347, %v6707
      %v6709 = vpop.f32.mrb[0].mxu0
      %v6710 = vadd.f32 %v6349, %v6709
      %6711 = vmatprep.mubr.bf16.mxu0 %v1237
      %6712 = vmatmul.mubr.bf16.gmra.mrb[0].mxu0 %v1236
      %v6713 = vpop.f32.mrb[0].mxu0
      %v6714 = vpop.f32.mrb[0].mxu0
      %v6715 = vpop.f32.mrb[0].mxu0
      %v6716 = vpop.f32.mrb[0].mxu0
      %6717 = vmatprep.mubr.bf16.mxu0 %v1243
      %6718 = vmatmul.mubr.bf16.gmra.mrb[0].mxu0 %v1242
      %v6719 = vpop.f32.mrb[0].mxu0
      %v6720 = vadd.f32 %v6359, %v6719
      %v6721 = vpop.f32.mrb[0].mxu0
      %v6722 = vadd.f32 %v6361, %v6721
      %v6723 = vpop.f32.mrb[0].mxu0
      %v6724 = vadd.f32 %v6363, %v6723
      %v6725 = vpop.f32.mrb[0].mxu0
      %v6726 = vadd.f32 %v6365, %v6725
      %6727 = vmatprep.mubr.bf16.mxu0 %v1249
      %6728 = vmatmul.mubr.bf16.gmra.mrb[0].mxu0 %v1248
      %v6729 = vpop.f32.mrb[0].mxu0
      %v6730 = vadd.f32 %v6369, %v6729
      %v6731 = vpop.f32.mrb[0].mxu0
      %v6732 = vadd.f32 %v6371, %v6731
      %v6733 = vpop.f32.mrb[0].mxu0
      %v6734 = vadd.f32 %v6373, %v6733
      %v6735 = vpop.f32.mrb[0].mxu0
      %v6736 = vadd.f32 %v6375, %v6735
      %6737 = vmatprep.mubr.bf16.mxu0 %v1255
      %6738 = vmatmul.mubr.bf16.gmra.mrb[0].mxu0 %v1254
      %v6739 = vpop.f32.mrb[0].mxu0
      %v6740 = vadd.f32 %v6379, %v6739
      %v6741 = vpop.f32.mrb[0].mxu0
      %v6742 = vadd.f32 %v6381, %v6741
      %v6743 = vpop.f32.mrb[0].mxu0
      %v6744 = vadd.f32 %v6383, %v6743
      %v6745 = vpop.f32.mrb[0].mxu0
      %v6746 = vadd.f32 %v6385, %v6745
      %6747 = vmatprep.mubr.bf16.mxu0 %v1261
      %6748 = vmatmul.mubr.bf16.gmra.mrb[0].mxu0 %v1260
      %v6749 = vpop.f32.mrb[0].mxu0
      %v6750 = vadd.f32 %v6389, %v6749
      %v6751 = vpop.f32.mrb[0].mxu0
      %v6752 = vadd.f32 %v6391, %v6751
      %v6753 = vpop.f32.mrb[0].mxu0
      %v6754 = vpop.f32.mrb[0].mxu0
      %6755 = vmatprep.mubr.bf16.mxu0 %v1267
      %6756 = vmatmul.mubr.bf16.gmra.mrb[0].mxu0 %v1266
      %v6757 = vpop.f32.mrb[0].mxu0
      %v6758 = vpop.f32.mrb[0].mxu0
      %v6759 = vpop.f32.mrb[0].mxu0
      %v6760 = vadd.f32 %v6399, %v6759
      %v6761 = vpop.f32.mrb[0].mxu0
      %v6762 = vadd.f32 %v6401, %v6761
      %6763 = vmatprep.mubr.bf16.mxu0 %v1273
      %6764 = vmatmul.mubr.bf16.gmra.mrb[0].mxu0 %v1272
      %v6765 = vpop.f32.mrb[0].mxu0
      %v6766 = vadd.f32 %v6405, %v6765
      %v6767 = vpop.f32.mrb[0].mxu0
      %v6768 = vadd.f32 %v6407, %v6767
      %v6769 = vpop.f32.mrb[0].mxu0
      %v6770 = vadd.f32 %v6409, %v6769
      %v6771 = vpop.f32.mrb[0].mxu0
      %v6772 = vadd.f32 %v6411, %v6771
      %6773 = vmatprep.mubr.bf16.mxu0 %v1279
      %6774 = vmatmul.mubr.bf16.gmra.mrb[0].mxu0 %v1278
      %v6775 = vpop.f32.mrb[0].mxu0
      %v6776 = vadd.f32 %v6415, %v6775
      %v6777 = vpop.f32.mrb[0].mxu0
      %v6778 = vadd.f32 %v6417, %v6777
      %v6779 = vpop.f32.mrb[0].mxu0
      %v6780 = vadd.f32 %v6419, %v6779
      %v6781 = vpop.f32.mrb[0].mxu0
      %v6782 = vadd.f32 %v6421, %v6781
      %6783 = vmatprep.mubr.bf16.mxu0 %v1285
      %6784 = vmatmul.mubr.bf16.gmra.mrb[0].mxu0 %v1284
      %v6785 = vpop.f32.mrb[0].mxu0
      %v6786 = vadd.f32 %v6425, %v6785
      %v6787 = vpop.f32.mrb[0].mxu0
      %v6788 = vadd.f32 %v6427, %v6787
      %v6789 = vpop.f32.mrb[0].mxu0
      %v6790 = vadd.f32 %v6429, %v6789
      %v6791 = vpop.f32.mrb[0].mxu0
      %v6792 = vadd.f32 %v6431, %v6791
      %6793 = vmatprep.mubr.bf16.mxu0 %v1291
      %6794 = vmatmul.mubr.bf16.gmra.mrb[0].mxu0 %v1290
      %v6795 = vpop.f32.mrb[0].mxu0
      %v6796 = vpop.f32.mrb[0].mxu0
      %v6797 = vpop.f32.mrb[0].mxu0
      %v6798 = vpop.f32.mrb[0].mxu0
      %6799 = vmatprep.mubr.bf16.mxu0 %v1297
      %6800 = vmatmul.mubr.bf16.gmra.mrb[0].mxu0 %v1296
      %v6801 = vpop.f32.mrb[0].mxu0
      %v6802 = vadd.f32 %v6441, %v6801
      %v6803 = vpop.f32.mrb[0].mxu0
      %v6804 = vadd.f32 %v6443, %v6803
      %v6805 = vpop.f32.mrb[0].mxu0
      %v6806 = vadd.f32 %v6445, %v6805
      %v6807 = vpop.f32.mrb[0].mxu0
      %v6808 = vadd.f32 %v6447, %v6807
      %6809 = vmatprep.mubr.bf16.mxu0 %v1303
      %6810 = vmatmul.mubr.bf16.gmra.mrb[0].mxu0 %v1302
      %v6811 = vpop.f32.mrb[0].mxu0
      %v6812 = vadd.f32 %v6451, %v6811
      %v6813 = vpop.f32.mrb[0].mxu0
      %v6814 = vadd.f32 %v6453, %v6813
      %v6815 = vpop.f32.mrb[0].mxu0
      %v6816 = vadd.f32 %v6455, %v6815
      %v6817 = vpop.f32.mrb[0].mxu0
      %v6818 = vadd.f32 %v6457, %v6817
      %6819 = vmatprep.mubr.bf16.mxu0 %v1309
      %6820 = vmatmul.mubr.bf16.gmra.mrb[0].mxu0 %v1308
      %v6821 = vpop.f32.mrb[0].mxu0
      %v6822 = vadd.f32 %v6461, %v6821
      %v6823 = vpop.f32.mrb[0].mxu0
      %v6824 = vadd.f32 %v6463, %v6823
      %v6825 = vpop.f32.mrb[0].mxu0
      %v6826 = vadd.f32 %v6465, %v6825
      %v6827 = vpop.f32.mrb[0].mxu0
      %v6828 = vadd.f32 %v6467, %v6827
      %6829 = vmatprep.mubr.bf16.mxu0 %v1315
      %6830 = vmatmul.mubr.bf16.gmra.mrb[0].mxu0 %v1314
      %v6831 = vpop.f32.mrb[0].mxu0
      %v6832 = vadd.f32 %v6471, %v6831
      %v6833 = vpop.f32.mrb[0].mxu0
      %v6834 = vadd.f32 %v6473, %v6833
      %v6835 = vpop.f32.mrb[0].mxu0
      %v6836 = vpop.f32.mrb[0].mxu0
      %6837 = vmatprep.mubr.bf16.mxu0 %v1321
      %6838 = vmatmul.mubr.bf16.gmra.mrb[0].mxu0 %v1320
      %v6839 = vpop.f32.mrb[0].mxu0
      %v6840 = vpop.f32.mrb[0].mxu0
      %v6841 = vpop.f32.mrb[0].mxu0
      %v6842 = vadd.f32 %v6481, %v6841
      %v6843 = vpop.f32.mrb[0].mxu0
      %v6844 = vadd.f32 %v6483, %v6843
      %6845 = vmatprep.mubr.bf16.mxu0 %v1327
      %6846 = vmatmul.mubr.bf16.gmra.mrb[0].mxu0 %v1326
      %v6847 = vpop.f32.mrb[0].mxu0
      %v6848 = vadd.f32 %v6487, %v6847
      %v6849 = vpop.f32.mrb[0].mxu0
      %v6850 = vadd.f32 %v6489, %v6849
      %v6851 = vpop.f32.mrb[0].mxu0
      %v6852 = vadd.f32 %v6491, %v6851
      %v6853 = vpop.f32.mrb[0].mxu0
      %v6854 = vadd.f32 %v6493, %v6853
      %6855 = vmatprep.mubr.bf16.mxu0 %v1333
      %6856 = vmatmul.mubr.bf16.gmra.mrb[0].mxu0 %v1332
      %v6857 = vpop.f32.mrb[0].mxu0
      %v6858 = vadd.f32 %v6497, %v6857
      %v6859 = vpop.f32.mrb[0].mxu0
      %v6860 = vadd.f32 %v6499, %v6859
      %v6861 = vpop.f32.mrb[0].mxu0
      %v6862 = vadd.f32 %v6501, %v6861
      %v6863 = vpop.f32.mrb[0].mxu0
      %v6864 = vadd.f32 %v6503, %v6863
      %6865 = vmatprep.mubr.bf16.mxu0 %v1339
      %6866 = vmatmul.mubr.bf16.gmra.mrb[0].mxu0 %v1338
      %v6867 = vpop.f32.mrb[0].mxu0
      %v6868 = vadd.f32 %v6507, %v6867
      %v6869 = vpop.f32.mrb[0].mxu0
      %v6870 = vadd.f32 %v6509, %v6869
      %v6871 = vpop.f32.mrb[0].mxu0
      %v6872 = vadd.f32 %v6511, %v6871
      %v6873 = vpop.f32.mrb[0].mxu0
      %v6874 = vadd.f32 %v6513, %v6873
      %6875 = vmatprep.mubr.bf16.mxu0 %v1345
      %6876 = vmatmul.mubr.bf16.gmra.mrb[0].mxu0 %v1344
      %v6877 = vpop.f32.mrb[0].mxu0
      %v6878 = vpop.f32.mrb[0].mxu0
      %v6879 = vpop.f32.mrb[0].mxu0
      %v6880 = vpop.f32.mrb[0].mxu0
      %6881 = vmatprep.mubr.bf16.mxu0 %v1351
      %6882 = vmatmul.mubr.bf16.gmra.mrb[0].mxu0 %v1350
      %v6883 = vpop.f32.mrb[0].mxu0
      %v6884 = vadd.f32 %v6523, %v6883
      %v6885 = vpop.f32.mrb[0].mxu0
      %v6886 = vadd.f32 %v6525, %v6885
      %v6887 = vpop.f32.mrb[0].mxu0
      %v6888 = vadd.f32 %v6527, %v6887
      %v6889 = vpop.f32.mrb[0].mxu0
      %v6890 = vadd.f32 %v6529, %v6889
      %6891 = vmatprep.mubr.bf16.mxu0 %v1357
      %6892 = vmatmul.mubr.bf16.gmra.mrb[0].mxu0 %v1356
      %v6893 = vpop.f32.mrb[0].mxu0
      %v6894 = vadd.f32 %v6533, %v6893
      %v6895 = vpop.f32.mrb[0].mxu0
      %v6896 = vadd.f32 %v6535, %v6895
      %v6897 = vpop.f32.mrb[0].mxu0
      %v6898 = vadd.f32 %v6537, %v6897
      %v6899 = vpop.f32.mrb[0].mxu0
      %v6900 = vadd.f32 %v6539, %v6899
      %6901 = vmatprep.mubr.bf16.mxu0 %v1363
      %6902 = vmatmul.mubr.bf16.gmra.mrb[0].mxu0 %v1362
      %v6903 = vpop.f32.mrb[0].mxu0
      %v6904 = vadd.f32 %v6543, %v6903
      %v6905 = vpop.f32.mrb[0].mxu0
      %v6906 = vadd.f32 %v6545, %v6905
      %v6907 = vpop.f32.mrb[0].mxu0
      %v6908 = vadd.f32 %v6547, %v6907
      %v6909 = vpop.f32.mrb[0].mxu0
      %v6910 = vadd.f32 %v6549, %v6909
      %6911 = vmatprep.mubr.bf16.mxu0 %v1369
      %6912 = vmatmul.mubr.bf16.gmra.mrb[0].mxu0 %v1368
      %v6913 = vpop.f32.mrb[0].mxu0
      %v6914 = vadd.f32 %v6553, %v6913
      %v6915 = vpop.f32.mrb[0].mxu0
      %v6916 = vadd.f32 %v6555, %v6915
      %v6917 = vpop.f32.mrb[0].mxu0
      %v6918 = vpop.f32.mrb[0].mxu0
      %6919 = vmatprep.mubr.bf16.mxu0 %v1375
      %6920 = vmatmul.mubr.bf16.gmra.mrb[0].mxu0 %v1374
      %v6921 = vpop.f32.mrb[0].mxu0
      %v6922 = vpop.f32.mrb[0].mxu0
      %v6923 = vpop.f32.mrb[0].mxu0
      %v6924 = vadd.f32 %v6563, %v6923
      %v6925 = vpop.f32.mrb[0].mxu0
      %v6926 = vadd.f32 %v6565, %v6925
      %6927 = vmatprep.mubr.bf16.mxu0 %v1381
      %6928 = vmatmul.mubr.bf16.gmra.mrb[0].mxu0 %v1380
      %v6929 = vpop.f32.mrb[0].mxu0
      %v6930 = vadd.f32 %v6569, %v6929
      %v6931 = vpop.f32.mrb[0].mxu0
      %v6932 = vadd.f32 %v6571, %v6931
      %v6933 = vpop.f32.mrb[0].mxu0
      %v6934 = vadd.f32 %v6573, %v6933
      %v6935 = vpop.f32.mrb[0].mxu0
      %v6936 = vadd.f32 %v6575, %v6935
      %6937 = vmatprep.mubr.bf16.mxu0 %v1387
      %6938 = vmatmul.mubr.bf16.gmra.mrb[0].mxu0 %v1386
      %v6939 = vpop.f32.mrb[0].mxu0
      %v6940 = vadd.f32 %v6579, %v6939
      %v6941 = vpop.f32.mrb[0].mxu0
      %v6942 = vadd.f32 %v6581, %v6941
      %v6943 = vpop.f32.mrb[0].mxu0
      %v6944 = vadd.f32 %v6583, %v6943
      %v6945 = vpop.f32.mrb[0].mxu0
      %v6946 = vadd.f32 %v6585, %v6945
      %6947 = vmatprep.mubr.bf16.mxu0 %v1393
      %6948 = vmatmul.mubr.bf16.gmra.mrb[0].mxu0 %v1392
      %v6949 = vpop.f32.mrb[0].mxu0
      %v6950 = vadd.f32 %v6589, %v6949
      %v6951 = vpop.f32.mrb[0].mxu0
      %v6952 = vadd.f32 %v6591, %v6951
      %v6953 = vpop.f32.mrb[0].mxu0
      %v6954 = vadd.f32 %v6593, %v6953
      %v6955 = vpop.f32.mrb[0].mxu0
      %v6956 = vadd.f32 %v6595, %v6955
      %6957 = vmatprep.mubr.bf16.mxu0 %v1399
      %6958 = vmatmul.mubr.bf16.gmra.mrb[0].mxu0 %v1398
      %v6959 = vpop.f32.mrb[0].mxu0
      %v6960 = vpop.f32.mrb[0].mxu0
      %v6961 = vpop.f32.mrb[0].mxu0
      %v6962 = vpop.f32.mrb[0].mxu0
      %6963 = vmatprep.mubr.bf16.mxu0 %v1405
      %6964 = vmatmul.mubr.bf16.gmra.mrb[0].mxu0 %v1404
      %v6965 = vpop.f32.mrb[0].mxu0
      %v6966 = vadd.f32 %v6605, %v6965
      %v6967 = vpop.f32.mrb[0].mxu0
      %v6968 = vadd.f32 %v6607, %v6967
      %v6969 = vpop.f32.mrb[0].mxu0
      %v6970 = vadd.f32 %v6609, %v6969
      %v6971 = vpop.f32.mrb[0].mxu0
      %v6972 = vadd.f32 %v6611, %v6971
      %6973 = vmatprep.mubr.bf16.mxu0 %v1411
      %6974 = vmatmul.mubr.bf16.gmra.mrb[0].mxu0 %v1410
      %v6975 = vpop.f32.mrb[0].mxu0
      %v6976 = vadd.f32 %v6615, %v6975
      %v6977 = vpop.f32.mrb[0].mxu0
      %v6978 = vadd.f32 %v6617, %v6977
      %v6979 = vpop.f32.mrb[0].mxu0
      %v6980 = vadd.f32 %v6619, %v6979
      %v6981 = vpop.f32.mrb[0].mxu0
      %v6982 = vadd.f32 %v6621, %v6981
      %6983 = vmatprep.mubr.bf16.mxu0 %v1417
      %6984 = vmatmul.mubr.bf16.gmra.mrb[0].mxu0 %v1416
      %v6985 = vpop.f32.mrb[0].mxu0
      %v6986 = vadd.f32 %v6625, %v6985
      %v6987 = vpop.f32.mrb[0].mxu0
      %v6988 = vadd.f32 %v6627, %v6987
      %v6989 = vpop.f32.mrb[0].mxu0
      %v6990 = vadd.f32 %v6629, %v6989
      %v6991 = vpop.f32.mrb[0].mxu0
      %v6992 = vadd.f32 %v6631, %v6991
      %6993 = vmatprep.mubr.bf16.mxu0 %v1423
      %6994 = vmatmul.mubr.bf16.gmra.mrb[0].mxu0 %v1422
      %v6995 = vpop.f32.mrb[0].mxu0
      %v6996 = vadd.f32 %v6635, %v6995
      %v6997 = vpop.f32.mrb[0].mxu0
      %v6998 = vadd.f32 %v6637, %v6997
      %v6999 = vpop.f32.mrb[0].mxu0
      %v7000 = vpop.f32.mrb[0].mxu0
      %7001 = vdwg.mxu0
      %7002 = vmatprep.subr.bf16.mxu0 %v5538
      %7003 = vmatpush1.bf16.msra.mxu0 %v5537
      %7004 = vmatprep.subr.bf16.mxu0 %v5542
      %7005 = vmatpush1.bf16.msra.mxu0 %v5541
      %7006 = vmatprep.subr.bf16.mxu0 %v5546
      %7007 = vmatpush1.bf16.msra.mxu0 %v5545
      %7008 = vmatprep.subr.bf16.mxu0 %v5550
      %7009 = vmatpush1.bf16.msra.mxu0 %v5549
      %7010 = vmatprep.subr.bf16.mxu0 %v5554
      %7011 = vmatpush1.bf16.msra.mxu0 %v5553
      %7012 = vmatprep.subr.bf16.mxu0 %v5558
      %7013 = vmatpush1.bf16.msra.mxu0 %v5557
      %7014 = vmatprep.subr.bf16.mxu0 %v5562
      %7015 = vmatpush1.bf16.msra.mxu0 %v5561
      %7016 = vmatprep.subr.bf16.mxu0 %v5566
      %7017 = vmatpush1.bf16.msra.mxu0 %v5565
      %7018 = vmatprep.subr.bf16.mxu0 %v5570
      %7019 = vmatpush1.bf16.msra.mxu0 %v5569
      %7020 = vmatprep.subr.bf16.mxu0 %v5574
      %7021 = vmatpush1.bf16.msra.mxu0 %v5573
      %7022 = vmatprep.subr.bf16.mxu0 %v5578
      %7023 = vmatpush1.bf16.msra.mxu0 %v5577
      %7024 = vmatprep.subr.bf16.mxu0 %v5582
      %7025 = vmatpush1.bf16.msra.mxu0 %v5581
      %7026 = vmatprep.subr.bf16.mxu0 %v5586
      %7027 = vmatpush1.bf16.msra.mxu0 %v5585
      %7028 = vmatprep.subr.bf16.mxu0 %v5590
      %7029 = vmatpush1.bf16.msra.mxu0 %v5589
      %7030 = vmatprep.subr.bf16.mxu0 %v5594
      %7031 = vmatpush1.bf16.msra.mxu0 %v5593
      %7032 = vmatprep.subr.bf16.mxu0 %v5598
      %7033 = vmatpush1.bf16.msra.mxu0 %v5597
      %7034 = vmatprep.mubr.bf16.mxu0 %v1209
      %7035 = vmatmul.mubr.bf16.gmra.mrb[0].mxu0 %v1208
      %v7036 = vpop.f32.mrb[0].mxu0
      %v7037 = vpop.f32.mrb[0].mxu0
      %v7038 = vpop.f32.mrb[0].mxu0
      %v7039 = vadd.f32 0.0, %v7038
      %v7040 = vpop.f32.mrb[0].mxu0
      %v7041 = vadd.f32 0.0, %v7040
      %7042 = vmatprep.mubr.bf16.mxu0 %v1215
      %7043 = vmatmul.mubr.bf16.gmra.mrb[0].mxu0 %v1214
      %v7044 = vpop.f32.mrb[0].mxu0
      %v7045 = vadd.f32 0.0, %v7044
      %v7046 = vpop.f32.mrb[0].mxu0
      %v7047 = vadd.f32 0.0, %v7046
      %v7048 = vpop.f32.mrb[0].mxu0
      %v7049 = vadd.f32 0.0, %v7048
      %v7050 = vpop.f32.mrb[0].mxu0
      %v7051 = vadd.f32 0.0, %v7050
      %7052 = vmatprep.mubr.bf16.mxu0 %v1221
      %7053 = vmatmul.mubr.bf16.gmra.mrb[0].mxu0 %v1220
      %v7054 = vpop.f32.mrb[0].mxu0
      %v7055 = vadd.f32 0.0, %v7054
      %v7056 = vpop.f32.mrb[0].mxu0
      %v7057 = vadd.f32 0.0, %v7056
      %v7058 = vpop.f32.mrb[0].mxu0
      %v7059 = vadd.f32 0.0, %v7058
      %v7060 = vpop.f32.mrb[0].mxu0
      %v7061 = vadd.f32 0.0, %v7060
      %7062 = vmatprep.mubr.bf16.mxu0 %v1227
      %7063 = vmatmul.mubr.bf16.gmra.mrb[0].mxu0 %v1226
      %v7064 = vpop.f32.mrb[0].mxu0
      %v7065 = vadd.f32 0.0, %v7064
      %v7066 = vpop.f32.mrb[0].mxu0
      %v7067 = vadd.f32 0.0, %v7066
      %v7068 = vpop.f32.mrb[0].mxu0
      %v7069 = vadd.f32 0.0, %v7068
      %v7070 = vpop.f32.mrb[0].mxu0
      %v7071 = vadd.f32 0.0, %v7070
      %7072 = vmatprep.mubr.bf16.mxu0 %v1233
      %7073 = vmatmul.mubr.bf16.gmra.mrb[0].mxu0 %v1232
      %v7074 = vpop.f32.mrb[0].mxu0
      %v7075 = vpop.f32.mrb[0].mxu0
      %v7076 = vpop.f32.mrb[0].mxu0
      %v7077 = vpop.f32.mrb[0].mxu0
      %7078 = vmatprep.mubr.bf16.mxu0 %v1239
      %7079 = vmatmul.mubr.bf16.gmra.mrb[0].mxu0 %v1238
      %v7080 = vpop.f32.mrb[0].mxu0
      %v7081 = vadd.f32 0.0, %v7080
      %v7082 = vpop.f32.mrb[0].mxu0
      %v7083 = vadd.f32 0.0, %v7082
      %v7084 = vpop.f32.mrb[0].mxu0
      %v7085 = vadd.f32 0.0, %v7084
      %v7086 = vpop.f32.mrb[0].mxu0
      %v7087 = vadd.f32 0.0, %v7086
      %7088 = vmatprep.mubr.bf16.mxu0 %v1245
      %7089 = vmatmul.mubr.bf16.gmra.mrb[0].mxu0 %v1244
      %v7090 = vpop.f32.mrb[0].mxu0
      %v7091 = vadd.f32 0.0, %v7090
      %v7092 = vpop.f32.mrb[0].mxu0
      %v7093 = vadd.f32 0.0, %v7092
      %v7094 = vpop.f32.mrb[0].mxu0
      %v7095 = vadd.f32 0.0, %v7094
      %v7096 = vpop.f32.mrb[0].mxu0
      %v7097 = vadd.f32 0.0, %v7096
      %7098 = vmatprep.mubr.bf16.mxu0 %v1251
      %7099 = vmatmul.mubr.bf16.gmra.mrb[0].mxu0 %v1250
      %v7100 = vpop.f32.mrb[0].mxu0
      %v7101 = vadd.f32 0.0, %v7100
      %v7102 = vpop.f32.mrb[0].mxu0
      %v7103 = vadd.f32 0.0, %v7102
      %v7104 = vpop.f32.mrb[0].mxu0
      %v7105 = vadd.f32 0.0, %v7104
      %v7106 = vpop.f32.mrb[0].mxu0
      %v7107 = vadd.f32 0.0, %v7106
      %7108 = vmatprep.mubr.bf16.mxu0 %v1257
      %7109 = vmatmul.mubr.bf16.gmra.mrb[0].mxu0 %v1256
      %v7110 = vpop.f32.mrb[0].mxu0
      %v7111 = vadd.f32 0.0, %v7110
      %v7112 = vpop.f32.mrb[0].mxu0
      %v7113 = vadd.f32 0.0, %v7112
      %v7114 = vpop.f32.mrb[0].mxu0
      %v7115 = vpop.f32.mrb[0].mxu0
      %7116 = vmatprep.mubr.bf16.mxu0 %v1263
      %7117 = vmatmul.mubr.bf16.gmra.mrb[0].mxu0 %v1262
      %v7118 = vpop.f32.mrb[0].mxu0
      %v7119 = vpop.f32.mrb[0].mxu0
      %v7120 = vpop.f32.mrb[0].mxu0
      %v7121 = vadd.f32 0.0, %v7120
      %v7122 = vpop.f32.mrb[0].mxu0
      %v7123 = vadd.f32 0.0, %v7122
      %7124 = vmatprep.mubr.bf16.mxu0 %v1269
      %7125 = vmatmul.mubr.bf16.gmra.mrb[0].mxu0 %v1268
      %v7126 = vpop.f32.mrb[0].mxu0
      %v7127 = vadd.f32 0.0, %v7126
      %v7128 = vpop.f32.mrb[0].mxu0
      %v7129 = vadd.f32 0.0, %v7128
      %v7130 = vpop.f32.mrb[0].mxu0
      %v7131 = vadd.f32 0.0, %v7130
      %v7132 = vpop.f32.mrb[0].mxu0
      %v7133 = vadd.f32 0.0, %v7132
      %7134 = vmatprep.mubr.bf16.mxu0 %v1275
      %7135 = vmatmul.mubr.bf16.gmra.mrb[0].mxu0 %v1274
      %v7136 = vpop.f32.mrb[0].mxu0
      %v7137 = vadd.f32 0.0, %v7136
      %v7138 = vpop.f32.mrb[0].mxu0
      %v7139 = vadd.f32 0.0, %v7138
      %v7140 = vpop.f32.mrb[0].mxu0
      %v7141 = vadd.f32 0.0, %v7140
      %v7142 = vpop.f32.mrb[0].mxu0
      %v7143 = vadd.f32 0.0, %v7142
      %7144 = vmatprep.mubr.bf16.mxu0 %v1281
      %7145 = vmatmul.mubr.bf16.gmra.mrb[0].mxu0 %v1280
      %v7146 = vpop.f32.mrb[0].mxu0
      %v7147 = vadd.f32 0.0, %v7146
      %v7148 = vpop.f32.mrb[0].mxu0
      %v7149 = vadd.f32 0.0, %v7148
      %v7150 = vpop.f32.mrb[0].mxu0
      %v7151 = vadd.f32 0.0, %v7150
      %v7152 = vpop.f32.mrb[0].mxu0
      %v7153 = vadd.f32 0.0, %v7152
      %7154 = vmatprep.mubr.bf16.mxu0 %v1287
      %7155 = vmatmul.mubr.bf16.gmra.mrb[0].mxu0 %v1286
      %v7156 = vpop.f32.mrb[0].mxu0
      %v7157 = vpop.f32.mrb[0].mxu0
      %v7158 = vpop.f32.mrb[0].mxu0
      %v7159 = vpop.f32.mrb[0].mxu0
      %7160 = vmatprep.mubr.bf16.mxu0 %v1293
      %7161 = vmatmul.mubr.bf16.gmra.mrb[0].mxu0 %v1292
      %v7162 = vpop.f32.mrb[0].mxu0
      %v7163 = vadd.f32 0.0, %v7162
      %v7164 = vpop.f32.mrb[0].mxu0
      %v7165 = vadd.f32 0.0, %v7164
      %v7166 = vpop.f32.mrb[0].mxu0
      %v7167 = vadd.f32 0.0, %v7166
      %v7168 = vpop.f32.mrb[0].mxu0
      %v7169 = vadd.f32 0.0, %v7168
      %7170 = vmatprep.mubr.bf16.mxu0 %v1299
      %7171 = vmatmul.mubr.bf16.gmra.mrb[0].mxu0 %v1298
      %v7172 = vpop.f32.mrb[0].mxu0
      %v7173 = vadd.f32 0.0, %v7172
      %v7174 = vpop.f32.mrb[0].mxu0
      %v7175 = vadd.f32 0.0, %v7174
      %v7176 = vpop.f32.mrb[0].mxu0
      %v7177 = vadd.f32 0.0, %v7176
      %v7178 = vpop.f32.mrb[0].mxu0
      %v7179 = vadd.f32 0.0, %v7178
      %7180 = vmatprep.mubr.bf16.mxu0 %v1305
      %7181 = vmatmul.mubr.bf16.gmra.mrb[0].mxu0 %v1304
      %v7182 = vpop.f32.mrb[0].mxu0
      %v7183 = vadd.f32 0.0, %v7182
      %v7184 = vpop.f32.mrb[0].mxu0
      %v7185 = vadd.f32 0.0, %v7184
      %v7186 = vpop.f32.mrb[0].mxu0
      %v7187 = vadd.f32 0.0, %v7186
      %v7188 = vpop.f32.mrb[0].mxu0
      %v7189 = vadd.f32 0.0, %v7188
      %7190 = vmatprep.mubr.bf16.mxu0 %v1311
      %7191 = vmatmul.mubr.bf16.gmra.mrb[0].mxu0 %v1310
      %v7192 = vpop.f32.mrb[0].mxu0
      %v7193 = vadd.f32 0.0, %v7192
      %v7194 = vpop.f32.mrb[0].mxu0
      %v7195 = vadd.f32 0.0, %v7194
      %v7196 = vpop.f32.mrb[0].mxu0
      %v7197 = vpop.f32.mrb[0].mxu0
      %7198 = vmatprep.mubr.bf16.mxu0 %v1317
      %7199 = vmatmul.mubr.bf16.gmra.mrb[0].mxu0 %v1316
      %v7200 = vpop.f32.mrb[0].mxu0
      %v7201 = vpop.f32.mrb[0].mxu0
      %v7202 = vpop.f32.mrb[0].mxu0
      %v7203 = vadd.f32 0.0, %v7202
      %v7204 = vpop.f32.mrb[0].mxu0
      %v7205 = vadd.f32 0.0, %v7204
      %7206 = vmatprep.mubr.bf16.mxu0 %v1323
      %7207 = vmatmul.mubr.bf16.gmra.mrb[0].mxu0 %v1322
      %v7208 = vpop.f32.mrb[0].mxu0
      %v7209 = vadd.f32 0.0, %v7208
      %v7210 = vpop.f32.mrb[0].mxu0
      %v7211 = vadd.f32 0.0, %v7210
      %v7212 = vpop.f32.mrb[0].mxu0
      %v7213 = vadd.f32 0.0, %v7212
      %v7214 = vpop.f32.mrb[0].mxu0
      %v7215 = vadd.f32 0.0, %v7214
      %7216 = vmatprep.mubr.bf16.mxu0 %v1329
      %7217 = vmatmul.mubr.bf16.gmra.mrb[0].mxu0 %v1328
      %v7218 = vpop.f32.mrb[0].mxu0
      %v7219 = vadd.f32 0.0, %v7218
      %v7220 = vpop.f32.mrb[0].mxu0
      %v7221 = vadd.f32 0.0, %v7220
      %v7222 = vpop.f32.mrb[0].mxu0
      %v7223 = vadd.f32 0.0, %v7222
      %v7224 = vpop.f32.mrb[0].mxu0
      %v7225 = vadd.f32 0.0, %v7224
      %7226 = vmatprep.mubr.bf16.mxu0 %v1335
      %7227 = vmatmul.mubr.bf16.gmra.mrb[0].mxu0 %v1334
      %v7228 = vpop.f32.mrb[0].mxu0
      %v7229 = vadd.f32 0.0, %v7228
      %v7230 = vpop.f32.mrb[0].mxu0
      %v7231 = vadd.f32 0.0, %v7230
      %v7232 = vpop.f32.mrb[0].mxu0
      %v7233 = vadd.f32 0.0, %v7232
      %v7234 = vpop.f32.mrb[0].mxu0
      %v7235 = vadd.f32 0.0, %v7234
      %7236 = vmatprep.mubr.bf16.mxu0 %v1341
      %7237 = vmatmul.mubr.bf16.gmra.mrb[0].mxu0 %v1340
      %v7238 = vpop.f32.mrb[0].mxu0
      %v7239 = vpop.f32.mrb[0].mxu0
      %v7240 = vpop.f32.mrb[0].mxu0
      %v7241 = vpop.f32.mrb[0].mxu0
      %7242 = vmatprep.mubr.bf16.mxu0 %v1347
      %7243 = vmatmul.mubr.bf16.gmra.mrb[0].mxu0 %v1346
      %v7244 = vpop.f32.mrb[0].mxu0
      %v7245 = vadd.f32 0.0, %v7244
      %v7246 = vpop.f32.mrb[0].mxu0
      %v7247 = vadd.f32 0.0, %v7246
      %v7248 = vpop.f32.mrb[0].mxu0
      %v7249 = vadd.f32 0.0, %v7248
      %v7250 = vpop.f32.mrb[0].mxu0
      %v7251 = vadd.f32 0.0, %v7250
      %7252 = vmatprep.mubr.bf16.mxu0 %v1353
      %7253 = vmatmul.mubr.bf16.gmra.mrb[0].mxu0 %v1352
      %v7254 = vpop.f32.mrb[0].mxu0
      %v7255 = vadd.f32 0.0, %v7254
      %v7256 = vpop.f32.mrb[0].mxu0
      %v7257 = vadd.f32 0.0, %v7256
      %v7258 = vpop.f32.mrb[0].mxu0
      %v7259 = vadd.f32 0.0, %v7258
      %v7260 = vpop.f32.mrb[0].mxu0
      %v7261 = vadd.f32 0.0, %v7260
      %7262 = vmatprep.mubr.bf16.mxu0 %v1359
      %7263 = vmatmul.mubr.bf16.gmra.mrb[0].mxu0 %v1358
      %v7264 = vpop.f32.mrb[0].mxu0
      %v7265 = vadd.f32 0.0, %v7264
      %v7266 = vpop.f32.mrb[0].mxu0
      %v7267 = vadd.f32 0.0, %v7266
      %v7268 = vpop.f32.mrb[0].mxu0
      %v7269 = vadd.f32 0.0, %v7268
      %v7270 = vpop.f32.mrb[0].mxu0
      %v7271 = vadd.f32 0.0, %v7270
      %7272 = vmatprep.mubr.bf16.mxu0 %v1365
      %7273 = vmatmul.mubr.bf16.gmra.mrb[0].mxu0 %v1364
      %v7274 = vpop.f32.mrb[0].mxu0
      %v7275 = vadd.f32 0.0, %v7274
      %v7276 = vpop.f32.mrb[0].mxu0
      %v7277 = vadd.f32 0.0, %v7276
      %v7278 = vpop.f32.mrb[0].mxu0
      %v7279 = vpop.f32.mrb[0].mxu0
      %7280 = vmatprep.mubr.bf16.mxu0 %v1371
      %7281 = vmatmul.mubr.bf16.gmra.mrb[0].mxu0 %v1370
      %v7282 = vpop.f32.mrb[0].mxu0
      %v7283 = vpop.f32.mrb[0].mxu0
      %v7284 = vpop.f32.mrb[0].mxu0
      %v7285 = vadd.f32 0.0, %v7284
      %v7286 = vpop.f32.mrb[0].mxu0
      %v7287 = vadd.f32 0.0, %v7286
      %7288 = vmatprep.mubr.bf16.mxu0 %v1377
      %7289 = vmatmul.mubr.bf16.gmra.mrb[0].mxu0 %v1376
      %v7290 = vpop.f32.mrb[0].mxu0
      %v7291 = vadd.f32 0.0, %v7290
      %v7292 = vpop.f32.mrb[0].mxu0
      %v7293 = vadd.f32 0.0, %v7292
      %v7294 = vpop.f32.mrb[0].mxu0
      %v7295 = vadd.f32 0.0, %v7294
      %v7296 = vpop.f32.mrb[0].mxu0
      %v7297 = vadd.f32 0.0, %v7296
      %7298 = vmatprep.mubr.bf16.mxu0 %v1383
      %7299 = vmatmul.mubr.bf16.gmra.mrb[0].mxu0 %v1382
      %v7300 = vpop.f32.mrb[0].mxu0
      %v7301 = vadd.f32 0.0, %v7300
      %v7302 = vpop.f32.mrb[0].mxu0
      %v7303 = vadd.f32 0.0, %v7302
      %v7304 = vpop.f32.mrb[0].mxu0
      %v7305 = vadd.f32 0.0, %v7304
      %v7306 = vpop.f32.mrb[0].mxu0
      %v7307 = vadd.f32 0.0, %v7306
      %7308 = vmatprep.mubr.bf16.mxu0 %v1389
      %7309 = vmatmul.mubr.bf16.gmra.mrb[0].mxu0 %v1388
      %v7310 = vpop.f32.mrb[0].mxu0
      %v7311 = vadd.f32 0.0, %v7310
      %v7312 = vpop.f32.mrb[0].mxu0
      %v7313 = vadd.f32 0.0, %v7312
      %v7314 = vpop.f32.mrb[0].mxu0
      %v7315 = vadd.f32 0.0, %v7314
      %v7316 = vpop.f32.mrb[0].mxu0
      %v7317 = vadd.f32 0.0, %v7316
      %7318 = vmatprep.mubr.bf16.mxu0 %v1395
      %7319 = vmatmul.mubr.bf16.gmra.mrb[0].mxu0 %v1394
      %v7320 = vpop.f32.mrb[0].mxu0
      %v7321 = vpop.f32.mrb[0].mxu0
      %v7322 = vpop.f32.mrb[0].mxu0
      %v7323 = vpop.f32.mrb[0].mxu0
      %7324 = vmatprep.mubr.bf16.mxu0 %v1401
      %7325 = vmatmul.mubr.bf16.gmra.mrb[0].mxu0 %v1400
      %v7326 = vpop.f32.mrb[0].mxu0
      %v7327 = vadd.f32 0.0, %v7326
      %v7328 = vpop.f32.mrb[0].mxu0
      %v7329 = vadd.f32 0.0, %v7328
      %v7330 = vpop.f32.mrb[0].mxu0
      %v7331 = vadd.f32 0.0, %v7330
      %v7332 = vpop.f32.mrb[0].mxu0
      %v7333 = vadd.f32 0.0, %v7332
      %7334 = vmatprep.mubr.bf16.mxu0 %v1407
      %7335 = vmatmul.mubr.bf16.gmra.mrb[0].mxu0 %v1406
      %v7336 = vpop.f32.mrb[0].mxu0
      %v7337 = vadd.f32 0.0, %v7336
      %v7338 = vpop.f32.mrb[0].mxu0
      %v7339 = vadd.f32 0.0, %v7338
      %v7340 = vpop.f32.mrb[0].mxu0
      %v7341 = vadd.f32 0.0, %v7340
      %v7342 = vpop.f32.mrb[0].mxu0
      %v7343 = vadd.f32 0.0, %v7342
      %7344 = vmatprep.mubr.bf16.mxu0 %v1413
      %7345 = vmatmul.mubr.bf16.gmra.mrb[0].mxu0 %v1412
      %v7346 = vpop.f32.mrb[0].mxu0
      %v7347 = vadd.f32 0.0, %v7346
      %v7348 = vpop.f32.mrb[0].mxu0
      %v7349 = vadd.f32 0.0, %v7348
      %v7350 = vpop.f32.mrb[0].mxu0
      %v7351 = vadd.f32 0.0, %v7350
      %v7352 = vpop.f32.mrb[0].mxu0
      %v7353 = vadd.f32 0.0, %v7352
      %7354 = vmatprep.mubr.bf16.mxu0 %v1419
      %7355 = vmatmul.mubr.bf16.gmra.mrb[0].mxu0 %v1418
      %v7356 = vpop.f32.mrb[0].mxu0
      %v7357 = vadd.f32 0.0, %v7356
      %v7358 = vpop.f32.mrb[0].mxu0
      %v7359 = vadd.f32 0.0, %v7358
      %v7360 = vpop.f32.mrb[0].mxu0
      %v7361 = vpop.f32.mrb[0].mxu0
      %7362 = vdwg.mxu0
      %7363 = vmatprep.subr.bf16.mxu0 %v5602
      %7364 = vmatpush1.bf16.msra.mxu0 %v5601
      %7365 = vmatprep.subr.bf16.mxu0 %v5606
      %7366 = vmatpush1.bf16.msra.mxu0 %v5605
      %7367 = vmatprep.subr.bf16.mxu0 %v5610
      %7368 = vmatpush1.bf16.msra.mxu0 %v5609
      %7369 = vmatprep.subr.bf16.mxu0 %v5614
      %7370 = vmatpush1.bf16.msra.mxu0 %v5613
      %7371 = vmatprep.subr.bf16.mxu0 %v5618
      %7372 = vmatpush1.bf16.msra.mxu0 %v5617
      %7373 = vmatprep.subr.bf16.mxu0 %v5622
      %7374 = vmatpush1.bf16.msra.mxu0 %v5621
      %7375 = vmatprep.subr.bf16.mxu0 %v5626
      %7376 = vmatpush1.bf16.msra.mxu0 %v5625
      %7377 = vmatprep.subr.bf16.mxu0 %v5630
      %7378 = vmatpush1.bf16.msra.mxu0 %v5629
      %7379 = vmatprep.subr.bf16.mxu0 %v5634
      %7380 = vmatpush1.bf16.msra.mxu0 %v5633
      %7381 = vmatprep.subr.bf16.mxu0 %v5638
      %7382 = vmatpush1.bf16.msra.mxu0 %v5637
      %7383 = vmatprep.subr.bf16.mxu0 %v5642
      %7384 = vmatpush1.bf16.msra.mxu0 %v5641
      %7385 = vmatprep.subr.bf16.mxu0 %v5646
      %7386 = vmatpush1.bf16.msra.mxu0 %v5645
      %7387 = vmatprep.subr.bf16.mxu0 %v5650
      %7388 = vmatpush1.bf16.msra.mxu0 %v5649
      %7389 = vmatprep.subr.bf16.mxu0 %v5654
      %7390 = vmatpush1.bf16.msra.mxu0 %v5653
      %7391 = vmatprep.subr.bf16.mxu0 %v5658
      %7392 = vmatpush1.bf16.msra.mxu0 %v5657
      %7393 = vmatprep.subr.bf16.mxu0 %v5662
      %7394 = vmatpush1.bf16.msra.mxu0 %v5661
      %7395 = vmatprep.mubr.bf16.mxu0 %v1211
      %7396 = vmatmul.mubr.bf16.gmra.mrb[0].mxu0 %v1210
      %v7397 = vpop.f32.mrb[0].mxu0
      %v7398 = vpop.f32.mrb[0].mxu0
      %v7399 = vpop.f32.mrb[0].mxu0
      %v7400 = vadd.f32 %v7039, %v7399
      %v7401 = vpop.f32.mrb[0].mxu0
      %v7402 = vadd.f32 %v7041, %v7401
      %7403 = vmatprep.mubr.bf16.mxu0 %v1217
      %7404 = vmatmul.mubr.bf16.gmra.mrb[0].mxu0 %v1216
      %v7405 = vpop.f32.mrb[0].mxu0
      %v7406 = vadd.f32 %v7045, %v7405
      %v7407 = vpop.f32.mrb[0].mxu0
      %v7408 = vadd.f32 %v7047, %v7407
      %v7409 = vpop.f32.mrb[0].mxu0
      %v7410 = vadd.f32 %v7049, %v7409
      %v7411 = vpop.f32.mrb[0].mxu0
      %v7412 = vadd.f32 %v7051, %v7411
      %7413 = vmatprep.mubr.bf16.mxu0 %v1223
      %7414 = vmatmul.mubr.bf16.gmra.mrb[0].mxu0 %v1222
      %v7415 = vpop.f32.mrb[0].mxu0
      %v7416 = vadd.f32 %v7055, %v7415
      %v7417 = vpop.f32.mrb[0].mxu0
      %v7418 = vadd.f32 %v7057, %v7417
      %v7419 = vpop.f32.mrb[0].mxu0
      %v7420 = vadd.f32 %v7059, %v7419
      %v7421 = vpop.f32.mrb[0].mxu0
      %v7422 = vadd.f32 %v7061, %v7421
      %7423 = vmatprep.mubr.bf16.mxu0 %v1229
      %7424 = vmatmul.mubr.bf16.gmra.mrb[0].mxu0 %v1228
      %v7425 = vpop.f32.mrb[0].mxu0
      %v7426 = vadd.f32 %v7065, %v7425
      %v7427 = vpop.f32.mrb[0].mxu0
      %v7428 = vadd.f32 %v7067, %v7427
      %v7429 = vpop.f32.mrb[0].mxu0
      %v7430 = vadd.f32 %v7069, %v7429
      %v7431 = vpop.f32.mrb[0].mxu0
      %v7432 = vadd.f32 %v7071, %v7431
      %7433 = vmatprep.mubr.bf16.mxu0 %v1235
      %7434 = vmatmul.mubr.bf16.gmra.mrb[0].mxu0 %v1234
      %v7435 = vpop.f32.mrb[0].mxu0
      %v7436 = vpop.f32.mrb[0].mxu0
      %v7437 = vpop.f32.mrb[0].mxu0
      %v7438 = vpop.f32.mrb[0].mxu0
      %7439 = vmatprep.mubr.bf16.mxu0 %v1241
      %7440 = vmatmul.mubr.bf16.gmra.mrb[0].mxu0 %v1240
      %v7441 = vpop.f32.mrb[0].mxu0
      %v7442 = vadd.f32 %v7081, %v7441
      %v7443 = vpop.f32.mrb[0].mxu0
      %v7444 = vadd.f32 %v7083, %v7443
      %v7445 = vpop.f32.mrb[0].mxu0
      %v7446 = vadd.f32 %v7085, %v7445
      %v7447 = vpop.f32.mrb[0].mxu0
      %v7448 = vadd.f32 %v7087, %v7447
      %7449 = vmatprep.mubr.bf16.mxu0 %v1247
      %7450 = vmatmul.mubr.bf16.gmra.mrb[0].mxu0 %v1246
      %v7451 = vpop.f32.mrb[0].mxu0
      %v7452 = vadd.f32 %v7091, %v7451
      %v7453 = vpop.f32.mrb[0].mxu0
      %v7454 = vadd.f32 %v7093, %v7453
      %v7455 = vpop.f32.mrb[0].mxu0
      %v7456 = vadd.f32 %v7095, %v7455
      %v7457 = vpop.f32.mrb[0].mxu0
      %v7458 = vadd.f32 %v7097, %v7457
      %7459 = vmatprep.mubr.bf16.mxu0 %v1253
      %7460 = vmatmul.mubr.bf16.gmra.mrb[0].mxu0 %v1252
      %v7461 = vpop.f32.mrb[0].mxu0
      %v7462 = vadd.f32 %v7101, %v7461
      %v7463 = vpop.f32.mrb[0].mxu0
      %v7464 = vadd.f32 %v7103, %v7463
      %v7465 = vpop.f32.mrb[0].mxu0
      %v7466 = vadd.f32 %v7105, %v7465
      %v7467 = vpop.f32.mrb[0].mxu0
      %v7468 = vadd.f32 %v7107, %v7467
      %7469 = vmatprep.mubr.bf16.mxu0 %v1259
      %7470 = vmatmul.mubr.bf16.gmra.mrb[0].mxu0 %v1258
      %v7471 = vpop.f32.mrb[0].mxu0
      %v7472 = vadd.f32 %v7111, %v7471
      %v7473 = vpop.f32.mrb[0].mxu0
      %v7474 = vadd.f32 %v7113, %v7473
      %v7475 = vpop.f32.mrb[0].mxu0
      %v7476 = vpop.f32.mrb[0].mxu0
      %7477 = vmatprep.mubr.bf16.mxu0 %v1265
      %7478 = vmatmul.mubr.bf16.gmra.mrb[0].mxu0 %v1264
      %v7479 = vpop.f32.mrb[0].mxu0
      %v7480 = vpop.f32.mrb[0].mxu0
      %v7481 = vpop.f32.mrb[0].mxu0
      %v7482 = vadd.f32 %v7121, %v7481
      %v7483 = vpop.f32.mrb[0].mxu0
      %v7484 = vadd.f32 %v7123, %v7483
      %7485 = vmatprep.mubr.bf16.mxu0 %v1271
      %7486 = vmatmul.mubr.bf16.gmra.mrb[0].mxu0 %v1270
      %v7487 = vpop.f32.mrb[0].mxu0
      %v7488 = vadd.f32 %v7127, %v7487
      %v7489 = vpop.f32.mrb[0].mxu0
      %v7490 = vadd.f32 %v7129, %v7489
      %v7491 = vpop.f32.mrb[0].mxu0
      %v7492 = vadd.f32 %v7131, %v7491
      %v7493 = vpop.f32.mrb[0].mxu0
      %v7494 = vadd.f32 %v7133, %v7493
      %7495 = vmatprep.mubr.bf16.mxu0 %v1277
      %7496 = vmatmul.mubr.bf16.gmra.mrb[0].mxu0 %v1276
      %v7497 = vpop.f32.mrb[0].mxu0
      %v7498 = vadd.f32 %v7137, %v7497
      %v7499 = vpop.f32.mrb[0].mxu0
      %v7500 = vadd.f32 %v7139, %v7499
      %v7501 = vpop.f32.mrb[0].mxu0
      %v7502 = vadd.f32 %v7141, %v7501
      %v7503 = vpop.f32.mrb[0].mxu0
      %v7504 = vadd.f32 %v7143, %v7503
      %7505 = vmatprep.mubr.bf16.mxu0 %v1283
      %7506 = vmatmul.mubr.bf16.gmra.mrb[0].mxu0 %v1282
      %v7507 = vpop.f32.mrb[0].mxu0
      %v7508 = vadd.f32 %v7147, %v7507
      %v7509 = vpop.f32.mrb[0].mxu0
      %v7510 = vadd.f32 %v7149, %v7509
      %v7511 = vpop.f32.mrb[0].mxu0
      %v7512 = vadd.f32 %v7151, %v7511
      %v7513 = vpop.f32.mrb[0].mxu0
      %v7514 = vadd.f32 %v7153, %v7513
      %7515 = vmatprep.mubr.bf16.mxu0 %v1289
      %7516 = vmatmul.mubr.bf16.gmra.mrb[0].mxu0 %v1288
      %v7517 = vpop.f32.mrb[0].mxu0
      %v7518 = vpop.f32.mrb[0].mxu0
      %v7519 = vpop.f32.mrb[0].mxu0
      %v7520 = vpop.f32.mrb[0].mxu0
      %7521 = vmatprep.mubr.bf16.mxu0 %v1295
      %7522 = vmatmul.mubr.bf16.gmra.mrb[0].mxu0 %v1294
      %v7523 = vpop.f32.mrb[0].mxu0
      %v7524 = vadd.f32 %v7163, %v7523
      %v7525 = vpop.f32.mrb[0].mxu0
      %v7526 = vadd.f32 %v7165, %v7525
      %v7527 = vpop.f32.mrb[0].mxu0
      %v7528 = vadd.f32 %v7167, %v7527
      %v7529 = vpop.f32.mrb[0].mxu0
      %v7530 = vadd.f32 %v7169, %v7529
      %7531 = vmatprep.mubr.bf16.mxu0 %v1301
      %7532 = vmatmul.mubr.bf16.gmra.mrb[0].mxu0 %v1300
      %v7533 = vpop.f32.mrb[0].mxu0
      %v7534 = vadd.f32 %v7173, %v7533
      %v7535 = vpop.f32.mrb[0].mxu0
      %v7536 = vadd.f32 %v7175, %v7535
      %v7537 = vpop.f32.mrb[0].mxu0
      %v7538 = vadd.f32 %v7177, %v7537
      %v7539 = vpop.f32.mrb[0].mxu0
      %v7540 = vadd.f32 %v7179, %v7539
      %7541 = vmatprep.mubr.bf16.mxu0 %v1307
      %7542 = vmatmul.mubr.bf16.gmra.mrb[0].mxu0 %v1306
      %v7543 = vpop.f32.mrb[0].mxu0
      %v7544 = vadd.f32 %v7183, %v7543
      %v7545 = vpop.f32.mrb[0].mxu0
      %v7546 = vadd.f32 %v7185, %v7545
      %v7547 = vpop.f32.mrb[0].mxu0
      %v7548 = vadd.f32 %v7187, %v7547
      %v7549 = vpop.f32.mrb[0].mxu0
      %v7550 = vadd.f32 %v7189, %v7549
      %7551 = vmatprep.mubr.bf16.mxu0 %v1313
      %7552 = vmatmul.mubr.bf16.gmra.mrb[0].mxu0 %v1312
      %v7553 = vpop.f32.mrb[0].mxu0
      %v7554 = vadd.f32 %v7193, %v7553
      %v7555 = vpop.f32.mrb[0].mxu0
      %v7556 = vadd.f32 %v7195, %v7555
      %v7557 = vpop.f32.mrb[0].mxu0
      %v7558 = vpop.f32.mrb[0].mxu0
      %7559 = vmatprep.mubr.bf16.mxu0 %v1319
      %7560 = vmatmul.mubr.bf16.gmra.mrb[0].mxu0 %v1318
      %v7561 = vpop.f32.mrb[0].mxu0
      %v7562 = vpop.f32.mrb[0].mxu0
      %v7563 = vpop.f32.mrb[0].mxu0
      %v7564 = vadd.f32 %v7203, %v7563
      %v7565 = vpop.f32.mrb[0].mxu0
      %v7566 = vadd.f32 %v7205, %v7565
      %7567 = vmatprep.mubr.bf16.mxu0 %v1325
      %7568 = vmatmul.mubr.bf16.gmra.mrb[0].mxu0 %v1324
      %v7569 = vpop.f32.mrb[0].mxu0
      %v7570 = vadd.f32 %v7209, %v7569
      %v7571 = vpop.f32.mrb[0].mxu0
      %v7572 = vadd.f32 %v7211, %v7571
      %v7573 = vpop.f32.mrb[0].mxu0
      %v7574 = vadd.f32 %v7213, %v7573
      %v7575 = vpop.f32.mrb[0].mxu0
      %v7576 = vadd.f32 %v7215, %v7575
      %7577 = vmatprep.mubr.bf16.mxu0 %v1331
      %7578 = vmatmul.mubr.bf16.gmra.mrb[0].mxu0 %v1330
      %v7579 = vpop.f32.mrb[0].mxu0
      %v7580 = vadd.f32 %v7219, %v7579
      %v7581 = vpop.f32.mrb[0].mxu0
      %v7582 = vadd.f32 %v7221, %v7581
      %v7583 = vpop.f32.mrb[0].mxu0
      %v7584 = vadd.f32 %v7223, %v7583
      %v7585 = vpop.f32.mrb[0].mxu0
      %v7586 = vadd.f32 %v7225, %v7585
      %7587 = vmatprep.mubr.bf16.mxu0 %v1337
      %7588 = vmatmul.mubr.bf16.gmra.mrb[0].mxu0 %v1336
      %v7589 = vpop.f32.mrb[0].mxu0
      %v7590 = vadd.f32 %v7229, %v7589
      %v7591 = vpop.f32.mrb[0].mxu0
      %v7592 = vadd.f32 %v7231, %v7591
      %v7593 = vpop.f32.mrb[0].mxu0
      %v7594 = vadd.f32 %v7233, %v7593
      %v7595 = vpop.f32.mrb[0].mxu0
      %v7596 = vadd.f32 %v7235, %v7595
      %7597 = vmatprep.mubr.bf16.mxu0 %v1343
      %7598 = vmatmul.mubr.bf16.gmra.mrb[0].mxu0 %v1342
      %v7599 = vpop.f32.mrb[0].mxu0
      %v7600 = vpop.f32.mrb[0].mxu0
      %v7601 = vpop.f32.mrb[0].mxu0
      %v7602 = vpop.f32.mrb[0].mxu0
      %7603 = vmatprep.mubr.bf16.mxu0 %v1349
      %7604 = vmatmul.mubr.bf16.gmra.mrb[0].mxu0 %v1348
      %v7605 = vpop.f32.mrb[0].mxu0
      %v7606 = vadd.f32 %v7245, %v7605
      %v7607 = vpop.f32.mrb[0].mxu0
      %v7608 = vadd.f32 %v7247, %v7607
      %v7609 = vpop.f32.mrb[0].mxu0
      %v7610 = vadd.f32 %v7249, %v7609
      %v7611 = vpop.f32.mrb[0].mxu0
      %v7612 = vadd.f32 %v7251, %v7611
      %7613 = vmatprep.mubr.bf16.mxu0 %v1355
      %7614 = vmatmul.mubr.bf16.gmra.mrb[0].mxu0 %v1354
      %v7615 = vpop.f32.mrb[0].mxu0
      %v7616 = vadd.f32 %v7255, %v7615
      %v7617 = vpop.f32.mrb[0].mxu0
      %v7618 = vadd.f32 %v7257, %v7617
      %v7619 = vpop.f32.mrb[0].mxu0
      %v7620 = vadd.f32 %v7259, %v7619
      %v7621 = vpop.f32.mrb[0].mxu0
      %v7622 = vadd.f32 %v7261, %v7621
      %7623 = vmatprep.mubr.bf16.mxu0 %v1361
      %7624 = vmatmul.mubr.bf16.gmra.mrb[0].mxu0 %v1360
      %v7625 = vpop.f32.mrb[0].mxu0
      %v7626 = vadd.f32 %v7265, %v7625
      %v7627 = vpop.f32.mrb[0].mxu0
      %v7628 = vadd.f32 %v7267, %v7627
      %v7629 = vpop.f32.mrb[0].mxu0
      %v7630 = vadd.f32 %v7269, %v7629
      %v7631 = vpop.f32.mrb[0].mxu0
      %v7632 = vadd.f32 %v7271, %v7631
      %7633 = vmatprep.mubr.bf16.mxu0 %v1367
      %7634 = vmatmul.mubr.bf16.gmra.mrb[0].mxu0 %v1366
      %v7635 = vpop.f32.mrb[0].mxu0
      %v7636 = vadd.f32 %v7275, %v7635
      %v7637 = vpop.f32.mrb[0].mxu0
      %v7638 = vadd.f32 %v7277, %v7637
      %v7639 = vpop.f32.mrb[0].mxu0
      %v7640 = vpop.f32.mrb[0].mxu0
      %7641 = vmatprep.mubr.bf16.mxu0 %v1373
      %7642 = vmatmul.mubr.bf16.gmra.mrb[0].mxu0 %v1372
      %v7643 = vpop.f32.mrb[0].mxu0
      %v7644 = vpop.f32.mrb[0].mxu0
      %v7645 = vpop.f32.mrb[0].mxu0
      %v7646 = vadd.f32 %v7285, %v7645
      %v7647 = vpop.f32.mrb[0].mxu0
      %v7648 = vadd.f32 %v7287, %v7647
      %7649 = vmatprep.mubr.bf16.mxu0 %v1379
      %7650 = vmatmul.mubr.bf16.gmra.mrb[0].mxu0 %v1378
      %v7651 = vpop.f32.mrb[0].mxu0
      %v7652 = vadd.f32 %v7291, %v7651
      %v7653 = vpop.f32.mrb[0].mxu0
      %v7654 = vadd.f32 %v7293, %v7653
      %v7655 = vpop.f32.mrb[0].mxu0
      %v7656 = vadd.f32 %v7295, %v7655
      %v7657 = vpop.f32.mrb[0].mxu0
      %v7658 = vadd.f32 %v7297, %v7657
      %7659 = vmatprep.mubr.bf16.mxu0 %v1385
      %7660 = vmatmul.mubr.bf16.gmra.mrb[0].mxu0 %v1384
      %v7661 = vpop.f32.mrb[0].mxu0
      %v7662 = vadd.f32 %v7301, %v7661
      %v7663 = vpop.f32.mrb[0].mxu0
      %v7664 = vadd.f32 %v7303, %v7663
      %v7665 = vpop.f32.mrb[0].mxu0
      %v7666 = vadd.f32 %v7305, %v7665
      %v7667 = vpop.f32.mrb[0].mxu0
      %v7668 = vadd.f32 %v7307, %v7667
      %7669 = vmatprep.mubr.bf16.mxu0 %v1391
      %7670 = vmatmul.mubr.bf16.gmra.mrb[0].mxu0 %v1390
      %v7671 = vpop.f32.mrb[0].mxu0
      %v7672 = vadd.f32 %v7311, %v7671
      %v7673 = vpop.f32.mrb[0].mxu0
      %v7674 = vadd.f32 %v7313, %v7673
      %v7675 = vpop.f32.mrb[0].mxu0
      %v7676 = vadd.f32 %v7315, %v7675
      %v7677 = vpop.f32.mrb[0].mxu0
      %v7678 = vadd.f32 %v7317, %v7677
      %7679 = vmatprep.mubr.bf16.mxu0 %v1397
      %7680 = vmatmul.mubr.bf16.gmra.mrb[0].mxu0 %v1396
      %v7681 = vpop.f32.mrb[0].mxu0
      %v7682 = vpop.f32.mrb[0].mxu0
      %v7683 = vpop.f32.mrb[0].mxu0
      %v7684 = vpop.f32.mrb[0].mxu0
      %7685 = vmatprep.mubr.bf16.mxu0 %v1403
      %7686 = vmatmul.mubr.bf16.gmra.mrb[0].mxu0 %v1402
      %v7687 = vpop.f32.mrb[0].mxu0
      %v7688 = vadd.f32 %v7327, %v7687
      %v7689 = vpop.f32.mrb[0].mxu0
      %v7690 = vadd.f32 %v7329, %v7689
      %v7691 = vpop.f32.mrb[0].mxu0
      %v7692 = vadd.f32 %v7331, %v7691
      %v7693 = vpop.f32.mrb[0].mxu0
      %v7694 = vadd.f32 %v7333, %v7693
      %7695 = vmatprep.mubr.bf16.mxu0 %v1409
      %7696 = vmatmul.mubr.bf16.gmra.mrb[0].mxu0 %v1408
      %v7697 = vpop.f32.mrb[0].mxu0
      %v7698 = vadd.f32 %v7337, %v7697
      %v7699 = vpop.f32.mrb[0].mxu0
      %v7700 = vadd.f32 %v7339, %v7699
      %v7701 = vpop.f32.mrb[0].mxu0
      %v7702 = vadd.f32 %v7341, %v7701
      %v7703 = vpop.f32.mrb[0].mxu0
      %v7704 = vadd.f32 %v7343, %v7703
      %7705 = vmatprep.mubr.bf16.mxu0 %v1415
      %7706 = vmatmul.mubr.bf16.gmra.mrb[0].mxu0 %v1414
      %v7707 = vpop.f32.mrb[0].mxu0
      %v7708 = vadd.f32 %v7347, %v7707
      %v7709 = vpop.f32.mrb[0].mxu0
      %v7710 = vadd.f32 %v7349, %v7709
      %v7711 = vpop.f32.mrb[0].mxu0
      %v7712 = vadd.f32 %v7351, %v7711
      %v7713 = vpop.f32.mrb[0].mxu0
      %v7714 = vadd.f32 %v7353, %v7713
      %7715 = vmatprep.mubr.bf16.mxu0 %v1421
      %7716 = vmatmul.mubr.bf16.gmra.mrb[0].mxu0 %v1420
      %v7717 = vpop.f32.mrb[0].mxu0
      %v7718 = vadd.f32 %v7357, %v7717
      %v7719 = vpop.f32.mrb[0].mxu0
      %v7720 = vadd.f32 %v7359, %v7719
      %v7721 = vpop.f32.mrb[0].mxu0
      %v7722 = vpop.f32.mrb[0].mxu0
      %7723 = vdwg.mxu0
      %7724 = vmatprep.subr.bf16.mxu0 %v5666
      %7725 = vmatpush1.bf16.msra.mxu0 %v5665
      %7726 = vmatprep.subr.bf16.mxu0 %v5670
      %7727 = vmatpush1.bf16.msra.mxu0 %v5669
      %7728 = vmatprep.subr.bf16.mxu0 %v5674
      %7729 = vmatpush1.bf16.msra.mxu0 %v5673
      %7730 = vmatprep.subr.bf16.mxu0 %v5678
      %7731 = vmatpush1.bf16.msra.mxu0 %v5677
      %7732 = vmatprep.subr.bf16.mxu0 %v5682
      %7733 = vmatpush1.bf16.msra.mxu0 %v5681
      %7734 = vmatprep.subr.bf16.mxu0 %v5686
      %7735 = vmatpush1.bf16.msra.mxu0 %v5685
      %7736 = vmatprep.subr.bf16.mxu0 %v5690
      %7737 = vmatpush1.bf16.msra.mxu0 %v5689
      %7738 = vmatprep.subr.bf16.mxu0 %v5694
      %7739 = vmatpush1.bf16.msra.mxu0 %v5693
      %7740 = vmatprep.subr.bf16.mxu0 %v5698
      %7741 = vmatpush1.bf16.msra.mxu0 %v5697
      %7742 = vmatprep.subr.bf16.mxu0 %v5702
      %7743 = vmatpush1.bf16.msra.mxu0 %v5701
      %7744 = vmatprep.subr.bf16.mxu0 %v5706
      %7745 = vmatpush1.bf16.msra.mxu0 %v5705
      %7746 = vmatprep.subr.bf16.mxu0 %v5710
      %7747 = vmatpush1.bf16.msra.mxu0 %v5709
      %7748 = vmatprep.subr.bf16.mxu0 %v5714
      %7749 = vmatpush1.bf16.msra.mxu0 %v5713
      %7750 = vmatprep.subr.bf16.mxu0 %v5718
      %7751 = vmatpush1.bf16.msra.mxu0 %v5717
      %7752 = vmatprep.subr.bf16.mxu0 %v5722
      %7753 = vmatpush1.bf16.msra.mxu0 %v5721
      %7754 = vmatprep.subr.bf16.mxu0 %v5726
      %7755 = vmatpush1.bf16.msra.mxu0 %v5725
      %7756 = vmatprep.mubr.bf16.mxu0 %v1213
      %7757 = vmatmul.mubr.bf16.gmra.mrb[0].mxu0 %v1212
      %v7758 = vpop.f32.mrb[0].mxu0
      %v7759 = vpop.f32.mrb[0].mxu0
      %v7760 = vpop.f32.mrb[0].mxu0
      %v7761 = vadd.f32 %v7400, %v7760
      %v7762 = vpop.f32.mrb[0].mxu0
      %v7763 = vadd.f32 %v7402, %v7762
      %7764 = vmatprep.mubr.bf16.mxu0 %v1219
      %7765 = vmatmul.mubr.bf16.gmra.mrb[0].mxu0 %v1218
      %v7766 = vpop.f32.mrb[0].mxu0
      %v7767 = vadd.f32 %v7406, %v7766
      %v7768 = vpop.f32.mrb[0].mxu0
      %v7769 = vadd.f32 %v7408, %v7768
      %v7770 = vpop.f32.mrb[0].mxu0
      %v7771 = vadd.f32 %v7410, %v7770
      %v7772 = vpop.f32.mrb[0].mxu0
      %v7773 = vadd.f32 %v7412, %v7772
      %7774 = vmatprep.mubr.bf16.mxu0 %v1225
      %7775 = vmatmul.mubr.bf16.gmra.mrb[0].mxu0 %v1224
      %v7776 = vpop.f32.mrb[0].mxu0
      %v7777 = vadd.f32 %v7416, %v7776
      %v7778 = vpop.f32.mrb[0].mxu0
      %v7779 = vadd.f32 %v7418, %v7778
      %v7780 = vpop.f32.mrb[0].mxu0
      %v7781 = vadd.f32 %v7420, %v7780
      %v7782 = vpop.f32.mrb[0].mxu0
      %v7783 = vadd.f32 %v7422, %v7782
      %7784 = vmatprep.mubr.bf16.mxu0 %v1231
      %7785 = vmatmul.mubr.bf16.gmra.mrb[0].mxu0 %v1230
      %v7786 = vpop.f32.mrb[0].mxu0
      %v7787 = vadd.f32 %v7426, %v7786
      %v7788 = vpop.f32.mrb[0].mxu0
      %v7789 = vadd.f32 %v7428, %v7788
      %v7790 = vpop.f32.mrb[0].mxu0
      %v7791 = vadd.f32 %v7430, %v7790
      %v7792 = vpop.f32.mrb[0].mxu0
      %v7793 = vadd.f32 %v7432, %v7792
      %7794 = vmatprep.mubr.bf16.mxu0 %v1237
      %7795 = vmatmul.mubr.bf16.gmra.mrb[0].mxu0 %v1236
      %v7796 = vpop.f32.mrb[0].mxu0
      %v7797 = vpop.f32.mrb[0].mxu0
      %v7798 = vpop.f32.mrb[0].mxu0
      %v7799 = vpop.f32.mrb[0].mxu0
      %7800 = vmatprep.mubr.bf16.mxu0 %v1243
      %7801 = vmatmul.mubr.bf16.gmra.mrb[0].mxu0 %v1242
      %v7802 = vpop.f32.mrb[0].mxu0
      %v7803 = vadd.f32 %v7442, %v7802
      %v7804 = vpop.f32.mrb[0].mxu0
      %v7805 = vadd.f32 %v7444, %v7804
      %v7806 = vpop.f32.mrb[0].mxu0
      %v7807 = vadd.f32 %v7446, %v7806
      %v7808 = vpop.f32.mrb[0].mxu0
      %v7809 = vadd.f32 %v7448, %v7808
      %7810 = vmatprep.mubr.bf16.mxu0 %v1249
      %7811 = vmatmul.mubr.bf16.gmra.mrb[0].mxu0 %v1248
      %v7812 = vpop.f32.mrb[0].mxu0
      %v7813 = vadd.f32 %v7452, %v7812
      %v7814 = vpop.f32.mrb[0].mxu0
      %v7815 = vadd.f32 %v7454, %v7814
      %v7816 = vpop.f32.mrb[0].mxu0
      %v7817 = vadd.f32 %v7456, %v7816
      %v7818 = vpop.f32.mrb[0].mxu0
      %v7819 = vadd.f32 %v7458, %v7818
      %7820 = vmatprep.mubr.bf16.mxu0 %v1255
      %7821 = vmatmul.mubr.bf16.gmra.mrb[0].mxu0 %v1254
      %v7822 = vpop.f32.mrb[0].mxu0
      %v7823 = vadd.f32 %v7462, %v7822
      %v7824 = vpop.f32.mrb[0].mxu0
      %v7825 = vadd.f32 %v7464, %v7824
      %v7826 = vpop.f32.mrb[0].mxu0
      %v7827 = vadd.f32 %v7466, %v7826
      %v7828 = vpop.f32.mrb[0].mxu0
      %v7829 = vadd.f32 %v7468, %v7828
      %7830 = vmatprep.mubr.bf16.mxu0 %v1261
      %7831 = vmatmul.mubr.bf16.gmra.mrb[0].mxu0 %v1260
      %v7832 = vpop.f32.mrb[0].mxu0
      %v7833 = vadd.f32 %v7472, %v7832
      %v7834 = vpop.f32.mrb[0].mxu0
      %v7835 = vadd.f32 %v7474, %v7834
      %v7836 = vpop.f32.mrb[0].mxu0
      %v7837 = vpop.f32.mrb[0].mxu0
      %7838 = vmatprep.mubr.bf16.mxu0 %v1267
      %7839 = vmatmul.mubr.bf16.gmra.mrb[0].mxu0 %v1266
      %v7840 = vpop.f32.mrb[0].mxu0
      %v7841 = vpop.f32.mrb[0].mxu0
      %v7842 = vpop.f32.mrb[0].mxu0
      %v7843 = vadd.f32 %v7482, %v7842
      %v7844 = vpop.f32.mrb[0].mxu0
      %v7845 = vadd.f32 %v7484, %v7844
      %7846 = vmatprep.mubr.bf16.mxu0 %v1273
      %7847 = vmatmul.mubr.bf16.gmra.mrb[0].mxu0 %v1272
      %v7848 = vpop.f32.mrb[0].mxu0
      %v7849 = vadd.f32 %v7488, %v7848
      %v7850 = vpop.f32.mrb[0].mxu0
      %v7851 = vadd.f32 %v7490, %v7850
      %v7852 = vpop.f32.mrb[0].mxu0
      %v7853 = vadd.f32 %v7492, %v7852
      %v7854 = vpop.f32.mrb[0].mxu0
      %v7855 = vadd.f32 %v7494, %v7854
      %7856 = vmatprep.mubr.bf16.mxu0 %v1279
      %7857 = vmatmul.mubr.bf16.gmra.mrb[0].mxu0 %v1278
      %v7858 = vpop.f32.mrb[0].mxu0
      %v7859 = vadd.f32 %v7498, %v7858
      %v7860 = vpop.f32.mrb[0].mxu0
      %v7861 = vadd.f32 %v7500, %v7860
      %v7862 = vpop.f32.mrb[0].mxu0
      %v7863 = vadd.f32 %v7502, %v7862
      %v7864 = vpop.f32.mrb[0].mxu0
      %v7865 = vadd.f32 %v7504, %v7864
      %7866 = vmatprep.mubr.bf16.mxu0 %v1285
      %7867 = vmatmul.mubr.bf16.gmra.mrb[0].mxu0 %v1284
      %v7868 = vpop.f32.mrb[0].mxu0
      %v7869 = vadd.f32 %v7508, %v7868
      %v7870 = vpop.f32.mrb[0].mxu0
      %v7871 = vadd.f32 %v7510, %v7870
      %v7872 = vpop.f32.mrb[0].mxu0
      %v7873 = vadd.f32 %v7512, %v7872
      %v7874 = vpop.f32.mrb[0].mxu0
      %v7875 = vadd.f32 %v7514, %v7874
      %7876 = vmatprep.mubr.bf16.mxu0 %v1291
      %7877 = vmatmul.mubr.bf16.gmra.mrb[0].mxu0 %v1290
      %v7878 = vpop.f32.mrb[0].mxu0
      %v7879 = vpop.f32.mrb[0].mxu0
      %v7880 = vpop.f32.mrb[0].mxu0
      %v7881 = vpop.f32.mrb[0].mxu0
      %7882 = vmatprep.mubr.bf16.mxu0 %v1297
      %7883 = vmatmul.mubr.bf16.gmra.mrb[0].mxu0 %v1296
      %v7884 = vpop.f32.mrb[0].mxu0
      %v7885 = vadd.f32 %v7524, %v7884
      %v7886 = vpop.f32.mrb[0].mxu0
      %v7887 = vadd.f32 %v7526, %v7886
      %v7888 = vpop.f32.mrb[0].mxu0
      %v7889 = vadd.f32 %v7528, %v7888
      %v7890 = vpop.f32.mrb[0].mxu0
      %v7891 = vadd.f32 %v7530, %v7890
      %7892 = vmatprep.mubr.bf16.mxu0 %v1303
      %7893 = vmatmul.mubr.bf16.gmra.mrb[0].mxu0 %v1302
      %v7894 = vpop.f32.mrb[0].mxu0
      %v7895 = vadd.f32 %v7534, %v7894
      %v7896 = vpop.f32.mrb[0].mxu0
      %v7897 = vadd.f32 %v7536, %v7896
      %v7898 = vpop.f32.mrb[0].mxu0
      %v7899 = vadd.f32 %v7538, %v7898
      %v7900 = vpop.f32.mrb[0].mxu0
      %v7901 = vadd.f32 %v7540, %v7900
      %7902 = vmatprep.mubr.bf16.mxu0 %v1309
      %7903 = vmatmul.mubr.bf16.gmra.mrb[0].mxu0 %v1308
      %v7904 = vpop.f32.mrb[0].mxu0
      %v7905 = vadd.f32 %v7544, %v7904
      %v7906 = vpop.f32.mrb[0].mxu0
      %v7907 = vadd.f32 %v7546, %v7906
      %v7908 = vpop.f32.mrb[0].mxu0
      %v7909 = vadd.f32 %v7548, %v7908
      %v7910 = vpop.f32.mrb[0].mxu0
      %v7911 = vadd.f32 %v7550, %v7910
      %7912 = vmatprep.mubr.bf16.mxu0 %v1315
      %7913 = vmatmul.mubr.bf16.gmra.mrb[0].mxu0 %v1314
      %v7914 = vpop.f32.mrb[0].mxu0
      %v7915 = vadd.f32 %v7554, %v7914
      %v7916 = vpop.f32.mrb[0].mxu0
      %v7917 = vadd.f32 %v7556, %v7916
      %v7918 = vpop.f32.mrb[0].mxu0
      %v7919 = vpop.f32.mrb[0].mxu0
      %7920 = vmatprep.mubr.bf16.mxu0 %v1321
      %7921 = vmatmul.mubr.bf16.gmra.mrb[0].mxu0 %v1320
      %v7922 = vpop.f32.mrb[0].mxu0
      %v7923 = vpop.f32.mrb[0].mxu0
      %v7924 = vpop.f32.mrb[0].mxu0
      %v7925 = vadd.f32 %v7564, %v7924
      %v7926 = vpop.f32.mrb[0].mxu0
      %v7927 = vadd.f32 %v7566, %v7926
      %7928 = vmatprep.mubr.bf16.mxu0 %v1327
      %7929 = vmatmul.mubr.bf16.gmra.mrb[0].mxu0 %v1326
      %v7930 = vpop.f32.mrb[0].mxu0
      %v7931 = vadd.f32 %v7570, %v7930
      %v7932 = vpop.f32.mrb[0].mxu0
      %v7933 = vadd.f32 %v7572, %v7932
      %v7934 = vpop.f32.mrb[0].mxu0
      %v7935 = vadd.f32 %v7574, %v7934
      %v7936 = vpop.f32.mrb[0].mxu0
      %v7937 = vadd.f32 %v7576, %v7936
      %7938 = vmatprep.mubr.bf16.mxu0 %v1333
      %7939 = vmatmul.mubr.bf16.gmra.mrb[0].mxu0 %v1332
      %v7940 = vpop.f32.mrb[0].mxu0
      %v7941 = vadd.f32 %v7580, %v7940
      %v7942 = vpop.f32.mrb[0].mxu0
      %v7943 = vadd.f32 %v7582, %v7942
      %v7944 = vpop.f32.mrb[0].mxu0
      %v7945 = vadd.f32 %v7584, %v7944
      %v7946 = vpop.f32.mrb[0].mxu0
      %v7947 = vadd.f32 %v7586, %v7946
      %7948 = vmatprep.mubr.bf16.mxu0 %v1339
      %7949 = vmatmul.mubr.bf16.gmra.mrb[0].mxu0 %v1338
      %v7950 = vpop.f32.mrb[0].mxu0
      %v7951 = vadd.f32 %v7590, %v7950
      %v7952 = vpop.f32.mrb[0].mxu0
      %v7953 = vadd.f32 %v7592, %v7952
      %v7954 = vpop.f32.mrb[0].mxu0
      %v7955 = vadd.f32 %v7594, %v7954
      %v7956 = vpop.f32.mrb[0].mxu0
      %v7957 = vadd.f32 %v7596, %v7956
      %7958 = vmatprep.mubr.bf16.mxu0 %v1345
      %7959 = vmatmul.mubr.bf16.gmra.mrb[0].mxu0 %v1344
      %v7960 = vpop.f32.mrb[0].mxu0
      %v7961 = vpop.f32.mrb[0].mxu0
      %v7962 = vpop.f32.mrb[0].mxu0
      %v7963 = vpop.f32.mrb[0].mxu0
      %7964 = vmatprep.mubr.bf16.mxu0 %v1351
      %7965 = vmatmul.mubr.bf16.gmra.mrb[0].mxu0 %v1350
      %v7966 = vpop.f32.mrb[0].mxu0
      %v7967 = vadd.f32 %v7606, %v7966
      %v7968 = vpop.f32.mrb[0].mxu0
      %v7969 = vadd.f32 %v7608, %v7968
      %v7970 = vpop.f32.mrb[0].mxu0
      %v7971 = vadd.f32 %v7610, %v7970
      %v7972 = vpop.f32.mrb[0].mxu0
      %v7973 = vadd.f32 %v7612, %v7972
      %7974 = vmatprep.mubr.bf16.mxu0 %v1357
      %7975 = vmatmul.mubr.bf16.gmra.mrb[0].mxu0 %v1356
      %v7976 = vpop.f32.mrb[0].mxu0
      %v7977 = vadd.f32 %v7616, %v7976
      %v7978 = vpop.f32.mrb[0].mxu0
      %v7979 = vadd.f32 %v7618, %v7978
      %v7980 = vpop.f32.mrb[0].mxu0
      %v7981 = vadd.f32 %v7620, %v7980
      %v7982 = vpop.f32.mrb[0].mxu0
      %v7983 = vadd.f32 %v7622, %v7982
      %7984 = vmatprep.mubr.bf16.mxu0 %v1363
      %7985 = vmatmul.mubr.bf16.gmra.mrb[0].mxu0 %v1362
      %v7986 = vpop.f32.mrb[0].mxu0
      %v7987 = vadd.f32 %v7626, %v7986
      %v7988 = vpop.f32.mrb[0].mxu0
      %v7989 = vadd.f32 %v7628, %v7988
      %v7990 = vpop.f32.mrb[0].mxu0
      %v7991 = vadd.f32 %v7630, %v7990
      %v7992 = vpop.f32.mrb[0].mxu0
      %v7993 = vadd.f32 %v7632, %v7992
      %7994 = vmatprep.mubr.bf16.mxu0 %v1369
      %7995 = vmatmul.mubr.bf16.gmra.mrb[0].mxu0 %v1368
      %v7996 = vpop.f32.mrb[0].mxu0
      %v7997 = vadd.f32 %v7636, %v7996
      %v7998 = vpop.f32.mrb[0].mxu0
      %v7999 = vadd.f32 %v7638, %v7998
      %v8000 = vpop.f32.mrb[0].mxu0
      %v8001 = vpop.f32.mrb[0].mxu0
      %8002 = vmatprep.mubr.bf16.mxu0 %v1375
      %8003 = vmatmul.mubr.bf16.gmra.mrb[0].mxu0 %v1374
      %v8004 = vpop.f32.mrb[0].mxu0
      %v8005 = vpop.f32.mrb[0].mxu0
      %v8006 = vpop.f32.mrb[0].mxu0
      %v8007 = vadd.f32 %v7646, %v8006
      %v8008 = vpop.f32.mrb[0].mxu0
      %v8009 = vadd.f32 %v7648, %v8008
      %8010 = vmatprep.mubr.bf16.mxu0 %v1381
      %8011 = vmatmul.mubr.bf16.gmra.mrb[0].mxu0 %v1380
      %v8012 = vpop.f32.mrb[0].mxu0
      %v8013 = vadd.f32 %v7652, %v8012
      %v8014 = vpop.f32.mrb[0].mxu0
      %v8015 = vadd.f32 %v7654, %v8014
      %v8016 = vpop.f32.mrb[0].mxu0
      %v8017 = vadd.f32 %v7656, %v8016
      %v8018 = vpop.f32.mrb[0].mxu0
      %v8019 = vadd.f32 %v7658, %v8018
      %8020 = vmatprep.mubr.bf16.mxu0 %v1387
      %8021 = vmatmul.mubr.bf16.gmra.mrb[0].mxu0 %v1386
      %v8022 = vpop.f32.mrb[0].mxu0
      %v8023 = vadd.f32 %v7662, %v8022
      %v8024 = vpop.f32.mrb[0].mxu0
      %v8025 = vadd.f32 %v7664, %v8024
      %v8026 = vpop.f32.mrb[0].mxu0
      %v8027 = vadd.f32 %v7666, %v8026
      %v8028 = vpop.f32.mrb[0].mxu0
      %v8029 = vadd.f32 %v7668, %v8028
      %8030 = vmatprep.mubr.bf16.mxu0 %v1393
      %8031 = vmatmul.mubr.bf16.gmra.mrb[0].mxu0 %v1392
      %v8032 = vpop.f32.mrb[0].mxu0
      %v8033 = vadd.f32 %v7672, %v8032
      %v8034 = vpop.f32.mrb[0].mxu0
      %v8035 = vadd.f32 %v7674, %v8034
      %v8036 = vpop.f32.mrb[0].mxu0
      %v8037 = vadd.f32 %v7676, %v8036
      %v8038 = vpop.f32.mrb[0].mxu0
      %v8039 = vadd.f32 %v7678, %v8038
      %8040 = vmatprep.mubr.bf16.mxu0 %v1399
      %8041 = vmatmul.mubr.bf16.gmra.mrb[0].mxu0 %v1398
      %v8042 = vpop.f32.mrb[0].mxu0
      %v8043 = vpop.f32.mrb[0].mxu0
      %v8044 = vpop.f32.mrb[0].mxu0
      %v8045 = vpop.f32.mrb[0].mxu0
      %8046 = vmatprep.mubr.bf16.mxu0 %v1405
      %8047 = vmatmul.mubr.bf16.gmra.mrb[0].mxu0 %v1404
      %v8048 = vpop.f32.mrb[0].mxu0
      %v8049 = vadd.f32 %v7688, %v8048
      %v8050 = vpop.f32.mrb[0].mxu0
      %v8051 = vadd.f32 %v7690, %v8050
      %v8052 = vpop.f32.mrb[0].mxu0
      %v8053 = vadd.f32 %v7692, %v8052
      %v8054 = vpop.f32.mrb[0].mxu0
      %v8055 = vadd.f32 %v7694, %v8054
      %8056 = vmatprep.mubr.bf16.mxu0 %v1411
      %8057 = vmatmul.mubr.bf16.gmra.mrb[0].mxu0 %v1410
      %v8058 = vpop.f32.mrb[0].mxu0
      %v8059 = vadd.f32 %v7698, %v8058
      %v8060 = vpop.f32.mrb[0].mxu0
      %v8061 = vadd.f32 %v7700, %v8060
      %v8062 = vpop.f32.mrb[0].mxu0
      %v8063 = vadd.f32 %v7702, %v8062
      %v8064 = vpop.f32.mrb[0].mxu0
      %v8065 = vadd.f32 %v7704, %v8064
      %8066 = vmatprep.mubr.bf16.mxu0 %v1417
      %8067 = vmatmul.mubr.bf16.gmra.mrb[0].mxu0 %v1416
      %v8068 = vpop.f32.mrb[0].mxu0
      %v8069 = vadd.f32 %v7708, %v8068
      %v8070 = vpop.f32.mrb[0].mxu0
      %v8071 = vadd.f32 %v7710, %v8070
      %v8072 = vpop.f32.mrb[0].mxu0
      %v8073 = vadd.f32 %v7712, %v8072
      %v8074 = vpop.f32.mrb[0].mxu0
      %v8075 = vadd.f32 %v7714, %v8074
      %8076 = vmatprep.mubr.bf16.mxu0 %v1423
      %8077 = vmatmul.mubr.bf16.gmra.mrb[0].mxu0 %v1422
      %v8078 = vpop.f32.mrb[0].mxu0
      %v8079 = vadd.f32 %v7718, %v8078
      %v8080 = vpop.f32.mrb[0].mxu0
      %v8081 = vadd.f32 %v7720, %v8080
      %v8082 = vpop.f32.mrb[0].mxu0
      %v8083 = vpop.f32.mrb[0].mxu0
      %8084 = vdwg.mxu0
      %s8085 = scalar_lea.vmem %s1, 3072
      %v8086 = vld [vmem:[%s8085] sm:$0xff]
      %v8087 = vld [vmem:[%s8085 + $0x8] sm:$0xff]
      %v8088 = vld [vmem:[%s8085 + $0x10] sm:$0xff]
      %v8089 = vld [vmem:[%s8085 + $0x18] sm:$0xff]
      %v8090 = vld [vmem:[%s8085 + $0x20] sm:$0xff]
      %v8091 = vld [vmem:[%s8085 + $0x28] sm:$0xff]
      %v8092 = vld [vmem:[%s8085 + $0x30] sm:$0xff]
      %v8093 = vld [vmem:[%s8085 + $0x38] sm:$0xff]
      %v8094 = vld [vmem:[%s8085 + $0x40] sm:$0xff]
      %v8095 = vld [vmem:[%s8085 + $0x48] sm:$0xff]
      %v8096 = vld [vmem:[%s8085 + $0x50] sm:$0xff]
      %v8097 = vld [vmem:[%s8085 + $0x58] sm:$0xff]
      %v8098 = vld [vmem:[%s8085 + $0x60] sm:$0xff]
      %v8099 = vld [vmem:[%s8085 + $0x68] sm:$0xff]
      %v8100 = vld [vmem:[%s8085 + $0x70] sm:$0xff]
      %v8101 = vld [vmem:[%s8085 + $0x78] sm:$0xff]
      %v8102 = vld [vmem:[%s8085 + $0x80] sm:$0xff]
      %v8103 = vld [vmem:[%s8085 + $0x88] sm:$0xff]
      %v8104 = vld [vmem:[%s8085 + $0x90] sm:$0xff]
      %v8105 = vld [vmem:[%s8085 + $0x98] sm:$0xff]
      %v8106 = vld [vmem:[%s8085 + $0xa0] sm:$0xff]
      %v8107 = vld [vmem:[%s8085 + $0xa8] sm:$0xff]
      %v8108 = vld [vmem:[%s8085 + $0xb0] sm:$0xff]
      %v8109 = vld [vmem:[%s8085 + $0xb8] sm:$0xff]
      %v8110 = vld [vmem:[%s8085 + $0xc0] sm:$0xff]
      %v8111 = vld [vmem:[%s8085 + $0xc8] sm:$0xff]
      %v8112 = vld [vmem:[%s8085 + $0xd0] sm:$0xff]
      %v8113 = vld [vmem:[%s8085 + $0xd8] sm:$0xff]
      %v8114 = vld [vmem:[%s8085 + $0xe0] sm:$0xff]
      %v8115 = vld [vmem:[%s8085 + $0xe8] sm:$0xff]
      %v8116 = vld [vmem:[%s8085 + $0xf0] sm:$0xff]
      %v8117 = vld [vmem:[%s8085 + $0xf8] sm:$0xff]
      %v8118 = vld [vmem:[%s8085 + $0x100] sm:$0xff]
      %v8119 = vld [vmem:[%s8085 + $0x108] sm:$0xff]
      %v8120 = vld [vmem:[%s8085 + $0x110] sm:$0xff]
      %v8121 = vld [vmem:[%s8085 + $0x118] sm:$0xff]
      %v8122 = vld [vmem:[%s8085 + $0x120] sm:$0xff]
      %v8123 = vld [vmem:[%s8085 + $0x128] sm:$0xff]
      %v8124 = vld [vmem:[%s8085 + $0x130] sm:$0xff]
      %v8125 = vld [vmem:[%s8085 + $0x138] sm:$0xff]
      %v8126 = vld [vmem:[%s8085 + $0x140] sm:$0xff]
      %v8127 = vld [vmem:[%s8085 + $0x148] sm:$0xff]
      %v8128 = vld [vmem:[%s8085 + $0x150] sm:$0xff]
      %v8129 = vld [vmem:[%s8085 + $0x158] sm:$0xff]
      %v8130 = vld [vmem:[%s8085 + $0x160] sm:$0xff]
      %v8131 = vld [vmem:[%s8085 + $0x168] sm:$0xff]
      %v8132 = vld [vmem:[%s8085 + $0x170] sm:$0xff]
      %v8133 = vld [vmem:[%s8085 + $0x178] sm:$0xff]
      %v8134 = vld [vmem:[%s8085 + $0x180] sm:$0xff]
      %v8135 = vld [vmem:[%s8085 + $0x188] sm:$0xff]
      %v8136 = vld [vmem:[%s8085 + $0x190] sm:$0xff]
      %v8137 = vld [vmem:[%s8085 + $0x198] sm:$0xff]
      %v8138 = vld [vmem:[%s8085 + $0x1a0] sm:$0xff]
      %v8139 = vld [vmem:[%s8085 + $0x1a8] sm:$0xff]
      %v8140 = vld [vmem:[%s8085 + $0x1b0] sm:$0xff]
      %v8141 = vld [vmem:[%s8085 + $0x1b8] sm:$0xff]
      %v8142 = vld [vmem:[%s8085 + $0x1c0] sm:$0xff]
      %v8143 = vld [vmem:[%s8085 + $0x1c8] sm:$0xff]
      %v8144 = vld [vmem:[%s8085 + $0x1d0] sm:$0xff]
      %v8145 = vld [vmem:[%s8085 + $0x1d8] sm:$0xff]
      %v8146 = vld [vmem:[%s8085 + $0x1e0] sm:$0xff]
      %v8147 = vld [vmem:[%s8085 + $0x1e8] sm:$0xff]
      %v8148 = vld [vmem:[%s8085 + $0x1f0] sm:$0xff]
      %v8149 = vld [vmem:[%s8085 + $0x1f8] sm:$0xff]
      %v8150 = vld [vmem:[%s8085 + $0x200] sm:$0xff]
      %v8151 = vld [vmem:[%s8085 + $0x208] sm:$0xff]
      %v8152 = vld [vmem:[%s8085 + $0x210] sm:$0xff]
      %v8153 = vld [vmem:[%s8085 + $0x218] sm:$0xff]
      %v8154 = vld [vmem:[%s8085 + $0x220] sm:$0xff]
      %v8155 = vld [vmem:[%s8085 + $0x228] sm:$0xff]
      %v8156 = vld [vmem:[%s8085 + $0x230] sm:$0xff]
      %v8157 = vld [vmem:[%s8085 + $0x238] sm:$0xff]
      %v8158 = vld [vmem:[%s8085 + $0x240] sm:$0xff]
      %v8159 = vld [vmem:[%s8085 + $0x248] sm:$0xff]
      %v8160 = vld [vmem:[%s8085 + $0x250] sm:$0xff]
      %v8161 = vld [vmem:[%s8085 + $0x258] sm:$0xff]
      %v8162 = vld [vmem:[%s8085 + $0x260] sm:$0xff]
      %v8163 = vld [vmem:[%s8085 + $0x268] sm:$0xff]
      %v8164 = vld [vmem:[%s8085 + $0x270] sm:$0xff]
      %v8165 = vld [vmem:[%s8085 + $0x278] sm:$0xff]
      %v8166 = vld [vmem:[%s8085 + $0x280] sm:$0xff]
      %v8167 = vld [vmem:[%s8085 + $0x288] sm:$0xff]
      %v8168 = vld [vmem:[%s8085 + $0x290] sm:$0xff]
      %v8169 = vld [vmem:[%s8085 + $0x298] sm:$0xff]
      %v8170 = vld [vmem:[%s8085 + $0x2a0] sm:$0xff]
      %v8171 = vld [vmem:[%s8085 + $0x2a8] sm:$0xff]
      %v8172 = vld [vmem:[%s8085 + $0x2b0] sm:$0xff]
      %v8173 = vld [vmem:[%s8085 + $0x2b8] sm:$0xff]
      %v8174 = vld [vmem:[%s8085 + $0x2c0] sm:$0xff]
      %v8175 = vld [vmem:[%s8085 + $0x2c8] sm:$0xff]
      %v8176 = vld [vmem:[%s8085 + $0x2d0] sm:$0xff]
      %v8177 = vld [vmem:[%s8085 + $0x2d8] sm:$0xff]
      %v8178 = vld [vmem:[%s8085 + $0x2e0] sm:$0xff]
      %v8179 = vld [vmem:[%s8085 + $0x2e8] sm:$0xff]
      %v8180 = vld [vmem:[%s8085 + $0x2f0] sm:$0xff]
      %v8181 = vld [vmem:[%s8085 + $0x2f8] sm:$0xff]
      %v8182 = vld [vmem:[%s8085 + $0x300] sm:$0xff]
      %v8183 = vld [vmem:[%s8085 + $0x308] sm:$0xff]
      %v8184 = vld [vmem:[%s8085 + $0x310] sm:$0xff]
      %v8185 = vld [vmem:[%s8085 + $0x318] sm:$0xff]
      %v8186 = vld [vmem:[%s8085 + $0x320] sm:$0xff]
      %v8187 = vld [vmem:[%s8085 + $0x328] sm:$0xff]
      %v8188 = vld [vmem:[%s8085 + $0x330] sm:$0xff]
      %v8189 = vld [vmem:[%s8085 + $0x338] sm:$0xff]
      %v8190 = vld [vmem:[%s8085 + $0x340] sm:$0xff]
      %v8191 = vld [vmem:[%s8085 + $0x348] sm:$0xff]
      %v8192 = vld [vmem:[%s8085 + $0x350] sm:$0xff]
      %v8193 = vld [vmem:[%s8085 + $0x358] sm:$0xff]
      %v8194 = vld [vmem:[%s8085 + $0x360] sm:$0xff]
      %v8195 = vld [vmem:[%s8085 + $0x368] sm:$0xff]
      %v8196 = vld [vmem:[%s8085 + $0x370] sm:$0xff]
      %v8197 = vld [vmem:[%s8085 + $0x378] sm:$0xff]
      %v8198 = vld [vmem:[%s8085 + $0x380] sm:$0xff]
      %v8199 = vld [vmem:[%s8085 + $0x388] sm:$0xff]
      %v8200 = vld [vmem:[%s8085 + $0x390] sm:$0xff]
      %v8201 = vld [vmem:[%s8085 + $0x398] sm:$0xff]
      %v8202 = vld [vmem:[%s8085 + $0x3a0] sm:$0xff]
      %v8203 = vld [vmem:[%s8085 + $0x3a8] sm:$0xff]
      %v8204 = vld [vmem:[%s8085 + $0x3b0] sm:$0xff]
      %v8205 = vld [vmem:[%s8085 + $0x3b8] sm:$0xff]
      %v8206 = vld [vmem:[%s8085 + $0x3c0] sm:$0xff]
      %v8207 = vld [vmem:[%s8085 + $0x3c8] sm:$0xff]
      %v8208 = vld [vmem:[%s8085 + $0x3d0] sm:$0xff]
      %v8209 = vld [vmem:[%s8085 + $0x3d8] sm:$0xff]
      %v8210 = vld [vmem:[%s8085 + $0x3e0] sm:$0xff]
      %v8211 = vld [vmem:[%s8085 + $0x3e8] sm:$0xff]
      %v8212 = vld [vmem:[%s8085 + $0x3f0] sm:$0xff]
      %v8213 = vld [vmem:[%s8085 + $0x3f8] sm:$0xff]
      %v8214 = vld [vmem:[%s8085 + $0x400] sm:$0xff]
      %v8215 = vld [vmem:[%s8085 + $0x408] sm:$0xff]
      %v8216 = vld [vmem:[%s8085 + $0x410] sm:$0xff]
      %v8217 = vld [vmem:[%s8085 + $0x418] sm:$0xff]
      %v8218 = vld [vmem:[%s8085 + $0x420] sm:$0xff]
      %v8219 = vld [vmem:[%s8085 + $0x428] sm:$0xff]
      %v8220 = vld [vmem:[%s8085 + $0x430] sm:$0xff]
      %v8221 = vld [vmem:[%s8085 + $0x438] sm:$0xff]
      %v8222 = vld [vmem:[%s8085 + $0x440] sm:$0xff]
      %v8223 = vld [vmem:[%s8085 + $0x448] sm:$0xff]
      %v8224 = vld [vmem:[%s8085 + $0x450] sm:$0xff]
      %v8225 = vld [vmem:[%s8085 + $0x458] sm:$0xff]
      %v8226 = vld [vmem:[%s8085 + $0x460] sm:$0xff]
      %v8227 = vld [vmem:[%s8085 + $0x468] sm:$0xff]
      %v8228 = vld [vmem:[%s8085 + $0x470] sm:$0xff]
      %v8229 = vld [vmem:[%s8085 + $0x478] sm:$0xff]
      %v8230 = vld [vmem:[%s8085 + $0x480] sm:$0xff]
      %v8231 = vld [vmem:[%s8085 + $0x488] sm:$0xff]
      %v8232 = vld [vmem:[%s8085 + $0x490] sm:$0xff]
      %v8233 = vld [vmem:[%s8085 + $0x498] sm:$0xff]
      %v8234 = vld [vmem:[%s8085 + $0x4a0] sm:$0xff]
      %v8235 = vld [vmem:[%s8085 + $0x4a8] sm:$0xff]
      %v8236 = vld [vmem:[%s8085 + $0x4b0] sm:$0xff]
      %v8237 = vld [vmem:[%s8085 + $0x4b8] sm:$0xff]
      %v8238 = vld [vmem:[%s8085 + $0x4c0] sm:$0xff]
      %v8239 = vld [vmem:[%s8085 + $0x4c8] sm:$0xff]
      %v8240 = vld [vmem:[%s8085 + $0x4d0] sm:$0xff]
      %v8241 = vld [vmem:[%s8085 + $0x4d8] sm:$0xff]
      %v8242 = vld [vmem:[%s8085 + $0x4e0] sm:$0xff]
      %v8243 = vld [vmem:[%s8085 + $0x4e8] sm:$0xff]
      %v8244 = vld [vmem:[%s8085 + $0x4f0] sm:$0xff]
      %v8245 = vld [vmem:[%s8085 + $0x4f8] sm:$0xff]
      %v8246 = vld [vmem:[%s8085 + $0x500] sm:$0xff]
      %v8247 = vld [vmem:[%s8085 + $0x508] sm:$0xff]
      %v8248 = vld [vmem:[%s8085 + $0x510] sm:$0xff]
      %v8249 = vld [vmem:[%s8085 + $0x518] sm:$0xff]
      %v8250 = vld [vmem:[%s8085 + $0x520] sm:$0xff]
      %v8251 = vld [vmem:[%s8085 + $0x528] sm:$0xff]
      %v8252 = vld [vmem:[%s8085 + $0x530] sm:$0xff]
      %v8253 = vld [vmem:[%s8085 + $0x538] sm:$0xff]
      %v8254 = vld [vmem:[%s8085 + $0x540] sm:$0xff]
      %v8255 = vld [vmem:[%s8085 + $0x548] sm:$0xff]
      %v8256 = vld [vmem:[%s8085 + $0x550] sm:$0xff]
      %v8257 = vld [vmem:[%s8085 + $0x558] sm:$0xff]
      %v8258 = vld [vmem:[%s8085 + $0x560] sm:$0xff]
      %v8259 = vld [vmem:[%s8085 + $0x568] sm:$0xff]
      %v8260 = vld [vmem:[%s8085 + $0x570] sm:$0xff]
      %v8261 = vld [vmem:[%s8085 + $0x578] sm:$0xff]
      %v8262 = vld [vmem:[%s8085 + $0x580] sm:$0xff]
      %v8263 = vld [vmem:[%s8085 + $0x588] sm:$0xff]
      %v8264 = vld [vmem:[%s8085 + $0x590] sm:$0xff]
      %v8265 = vld [vmem:[%s8085 + $0x598] sm:$0xff]
      %v8266 = vld [vmem:[%s8085 + $0x5a0] sm:$0xff]
      %v8267 = vld [vmem:[%s8085 + $0x5a8] sm:$0xff]
      %v8268 = vld [vmem:[%s8085 + $0x5b0] sm:$0xff]
      %v8269 = vld [vmem:[%s8085 + $0x5b8] sm:$0xff]
      %v8270 = vld [vmem:[%s8085 + $0x5c0] sm:$0xff]
      %v8271 = vld [vmem:[%s8085 + $0x5c8] sm:$0xff]
      %v8272 = vld [vmem:[%s8085 + $0x5d0] sm:$0xff]
      %v8273 = vld [vmem:[%s8085 + $0x5d8] sm:$0xff]
      %v8274 = vld [vmem:[%s8085 + $0x5e0] sm:$0xff]
      %v8275 = vld [vmem:[%s8085 + $0x5e8] sm:$0xff]
      %v8276 = vld [vmem:[%s8085 + $0x5f0] sm:$0xff]
      %v8277 = vld [vmem:[%s8085 + $0x5f8] sm:$0xff]
      %v8470 = vunpack.c.l.b16 %v8086
      %v8471 = vunpack.c.h.b16 %v8086
      %v8472 = vunpack.c.l.b16 %v8087
      %v8473 = vunpack.c.h.b16 %v8087
      %v8474 = vunpack.c.l.b16 %v8088
      %v8475 = vunpack.c.h.b16 %v8088
      %v8476 = vunpack.c.l.b16 %v8089
      %v8477 = vunpack.c.h.b16 %v8089
      %v8478 = vunpack.c.l.b16 %v8090
      %v8479 = vunpack.c.h.b16 %v8090
      %v8480 = vunpack.c.l.b16 %v8091
      %v8481 = vunpack.c.h.b16 %v8091
      %v8482 = vunpack.c.l.b16 %v8092
      %v8483 = vunpack.c.h.b16 %v8092
      %v8484 = vunpack.c.l.b16 %v8093
      %v8485 = vunpack.c.h.b16 %v8093
      %v8486 = vunpack.c.l.b16 %v8094
      %v8487 = vunpack.c.h.b16 %v8094
      %v8488 = vunpack.c.l.b16 %v8095
      %v8489 = vunpack.c.h.b16 %v8095
      %v8490 = vunpack.c.l.b16 %v8096
      %v8491 = vunpack.c.h.b16 %v8096
      %v8492 = vunpack.c.l.b16 %v8097
      %v8493 = vunpack.c.h.b16 %v8097
      %v8494 = vunpack.c.l.b16 %v8098
      %v8495 = vunpack.c.h.b16 %v8098
      %v8496 = vunpack.c.l.b16 %v8099
      %v8497 = vunpack.c.h.b16 %v8099
      %v8498 = vunpack.c.l.b16 %v8100
      %v8499 = vunpack.c.h.b16 %v8100
      %v8500 = vunpack.c.l.b16 %v8101
      %v8501 = vunpack.c.h.b16 %v8101
      %v8502 = vunpack.c.l.b16 %v8102
      %v8503 = vunpack.c.h.b16 %v8102
      %v8504 = vunpack.c.l.b16 %v8103
      %v8505 = vunpack.c.h.b16 %v8103
      %v8506 = vunpack.c.l.b16 %v8104
      %v8507 = vunpack.c.h.b16 %v8104
      %v8508 = vunpack.c.l.b16 %v8105
      %v8509 = vunpack.c.h.b16 %v8105
      %v8510 = vunpack.c.l.b16 %v8106
      %v8511 = vunpack.c.h.b16 %v8106
      %v8512 = vunpack.c.l.b16 %v8107
      %v8513 = vunpack.c.h.b16 %v8107
      %v8514 = vunpack.c.l.b16 %v8108
      %v8515 = vunpack.c.h.b16 %v8108
      %v8516 = vunpack.c.l.b16 %v8109
      %v8517 = vunpack.c.h.b16 %v8109
      %v8518 = vunpack.c.l.b16 %v8110
      %v8519 = vunpack.c.h.b16 %v8110
      %v8520 = vunpack.c.l.b16 %v8111
      %v8521 = vunpack.c.h.b16 %v8111
      %v8522 = vunpack.c.l.b16 %v8112
      %v8523 = vunpack.c.h.b16 %v8112
      %v8524 = vunpack.c.l.b16 %v8113
      %v8525 = vunpack.c.h.b16 %v8113
      %v8526 = vunpack.c.l.b16 %v8114
      %v8527 = vunpack.c.h.b16 %v8114
      %v8528 = vunpack.c.l.b16 %v8115
      %v8529 = vunpack.c.h.b16 %v8115
      %v8530 = vunpack.c.l.b16 %v8116
      %v8531 = vunpack.c.h.b16 %v8116
      %v8532 = vunpack.c.l.b16 %v8117
      %v8533 = vunpack.c.h.b16 %v8117
      %v8534 = vunpack.c.l.b16 %v8118
      %v8535 = vunpack.c.h.b16 %v8118
      %v8536 = vunpack.c.l.b16 %v8119
      %v8537 = vunpack.c.h.b16 %v8119
      %v8538 = vunpack.c.l.b16 %v8120
      %v8539 = vunpack.c.h.b16 %v8120
      %v8540 = vunpack.c.l.b16 %v8121
      %v8541 = vunpack.c.h.b16 %v8121
      %v8542 = vunpack.c.l.b16 %v8122
      %v8543 = vunpack.c.h.b16 %v8122
      %v8544 = vunpack.c.l.b16 %v8123
      %v8545 = vunpack.c.h.b16 %v8123
      %v8546 = vunpack.c.l.b16 %v8124
      %v8547 = vunpack.c.h.b16 %v8124
      %v8548 = vunpack.c.l.b16 %v8125
      %v8549 = vunpack.c.h.b16 %v8125
      %v8550 = vunpack.c.l.b16 %v8126
      %v8551 = vunpack.c.h.b16 %v8126
      %v8552 = vunpack.c.l.b16 %v8127
      %v8553 = vunpack.c.h.b16 %v8127
      %v8554 = vunpack.c.l.b16 %v8128
      %v8555 = vunpack.c.h.b16 %v8128
      %v8556 = vunpack.c.l.b16 %v8129
      %v8557 = vunpack.c.h.b16 %v8129
      %v8558 = vunpack.c.l.b16 %v8130
      %v8559 = vunpack.c.h.b16 %v8130
      %v8560 = vunpack.c.l.b16 %v8131
      %v8561 = vunpack.c.h.b16 %v8131
      %v8562 = vunpack.c.l.b16 %v8132
      %v8563 = vunpack.c.h.b16 %v8132
      %v8564 = vunpack.c.l.b16 %v8133
      %v8565 = vunpack.c.h.b16 %v8133
      %v8566 = vunpack.c.l.b16 %v8134
      %v8567 = vunpack.c.h.b16 %v8134
      %v8568 = vunpack.c.l.b16 %v8135
      %v8569 = vunpack.c.h.b16 %v8135
      %v8570 = vunpack.c.l.b16 %v8136
      %v8571 = vunpack.c.h.b16 %v8136
      %v8572 = vunpack.c.l.b16 %v8137
      %v8573 = vunpack.c.h.b16 %v8137
      %v8574 = vunpack.c.l.b16 %v8138
      %v8575 = vunpack.c.h.b16 %v8138
      %v8576 = vunpack.c.l.b16 %v8139
      %v8577 = vunpack.c.h.b16 %v8139
      %v8578 = vunpack.c.l.b16 %v8140
      %v8579 = vunpack.c.h.b16 %v8140
      %v8580 = vunpack.c.l.b16 %v8141
      %v8581 = vunpack.c.h.b16 %v8141
      %v8582 = vunpack.c.l.b16 %v8142
      %v8583 = vunpack.c.h.b16 %v8142
      %v8584 = vunpack.c.l.b16 %v8143
      %v8585 = vunpack.c.h.b16 %v8143
      %v8586 = vunpack.c.l.b16 %v8144
      %v8587 = vunpack.c.h.b16 %v8144
      %v8588 = vunpack.c.l.b16 %v8145
      %v8589 = vunpack.c.h.b16 %v8145
      %v8590 = vunpack.c.l.b16 %v8146
      %v8591 = vunpack.c.h.b16 %v8146
      %v8592 = vunpack.c.l.b16 %v8147
      %v8593 = vunpack.c.h.b16 %v8147
      %v8594 = vunpack.c.l.b16 %v8148
      %v8595 = vunpack.c.h.b16 %v8148
      %v8596 = vunpack.c.l.b16 %v8149
      %v8597 = vunpack.c.h.b16 %v8149
      %v8598 = vunpack.c.l.b16 %v8150
      %v8599 = vunpack.c.h.b16 %v8150
      %v8600 = vunpack.c.l.b16 %v8151
      %v8601 = vunpack.c.h.b16 %v8151
      %v8602 = vunpack.c.l.b16 %v8152
      %v8603 = vunpack.c.h.b16 %v8152
      %v8604 = vunpack.c.l.b16 %v8153
      %v8605 = vunpack.c.h.b16 %v8153
      %v8606 = vunpack.c.l.b16 %v8154
      %v8607 = vunpack.c.h.b16 %v8154
      %v8608 = vunpack.c.l.b16 %v8155
      %v8609 = vunpack.c.h.b16 %v8155
      %v8610 = vunpack.c.l.b16 %v8156
      %v8611 = vunpack.c.h.b16 %v8156
      %v8612 = vunpack.c.l.b16 %v8157
      %v8613 = vunpack.c.h.b16 %v8157
      %v8614 = vunpack.c.l.b16 %v8158
      %v8615 = vunpack.c.h.b16 %v8158
      %v8616 = vunpack.c.l.b16 %v8159
      %v8617 = vunpack.c.h.b16 %v8159
      %v8618 = vunpack.c.l.b16 %v8160
      %v8619 = vunpack.c.h.b16 %v8160
      %v8620 = vunpack.c.l.b16 %v8161
      %v8621 = vunpack.c.h.b16 %v8161
      %v8622 = vunpack.c.l.b16 %v8162
      %v8623 = vunpack.c.h.b16 %v8162
      %v8624 = vunpack.c.l.b16 %v8163
      %v8625 = vunpack.c.h.b16 %v8163
      %v8626 = vunpack.c.l.b16 %v8164
      %v8627 = vunpack.c.h.b16 %v8164
      %v8628 = vunpack.c.l.b16 %v8165
      %v8629 = vunpack.c.h.b16 %v8165
      %v8630 = vunpack.c.l.b16 %v8166
      %v8631 = vunpack.c.h.b16 %v8166
      %v8632 = vunpack.c.l.b16 %v8167
      %v8633 = vunpack.c.h.b16 %v8167
      %v8634 = vunpack.c.l.b16 %v8168
      %v8635 = vunpack.c.h.b16 %v8168
      %v8636 = vunpack.c.l.b16 %v8169
      %v8637 = vunpack.c.h.b16 %v8169
      %v8638 = vunpack.c.l.b16 %v8170
      %v8639 = vunpack.c.h.b16 %v8170
      %v8640 = vunpack.c.l.b16 %v8171
      %v8641 = vunpack.c.h.b16 %v8171
      %v8642 = vunpack.c.l.b16 %v8172
      %v8643 = vunpack.c.h.b16 %v8172
      %v8644 = vunpack.c.l.b16 %v8173
      %v8645 = vunpack.c.h.b16 %v8173
      %v8646 = vunpack.c.l.b16 %v8174
      %v8647 = vunpack.c.h.b16 %v8174
      %v8648 = vunpack.c.l.b16 %v8175
      %v8649 = vunpack.c.h.b16 %v8175
      %v8650 = vunpack.c.l.b16 %v8176
      %v8651 = vunpack.c.h.b16 %v8176
      %v8652 = vunpack.c.l.b16 %v8177
      %v8653 = vunpack.c.h.b16 %v8177
      %v8654 = vunpack.c.l.b16 %v8178
      %v8655 = vunpack.c.h.b16 %v8178
      %v8656 = vunpack.c.l.b16 %v8179
      %v8657 = vunpack.c.h.b16 %v8179
      %v8658 = vunpack.c.l.b16 %v8180
      %v8659 = vunpack.c.h.b16 %v8180
      %v8660 = vunpack.c.l.b16 %v8181
      %v8661 = vunpack.c.h.b16 %v8181
      %v8662 = vunpack.c.l.b16 %v8182
      %v8663 = vunpack.c.h.b16 %v8182
      %v8664 = vunpack.c.l.b16 %v8183
      %v8665 = vunpack.c.h.b16 %v8183
      %v8666 = vunpack.c.l.b16 %v8184
      %v8667 = vunpack.c.h.b16 %v8184
      %v8668 = vunpack.c.l.b16 %v8185
      %v8669 = vunpack.c.h.b16 %v8185
      %v8670 = vunpack.c.l.b16 %v8186
      %v8671 = vunpack.c.h.b16 %v8186
      %v8672 = vunpack.c.l.b16 %v8187
      %v8673 = vunpack.c.h.b16 %v8187
      %v8674 = vunpack.c.l.b16 %v8188
      %v8675 = vunpack.c.h.b16 %v8188
      %v8676 = vunpack.c.l.b16 %v8189
      %v8677 = vunpack.c.h.b16 %v8189
      %v8678 = vunpack.c.l.b16 %v8190
      %v8679 = vunpack.c.h.b16 %v8190
      %v8680 = vunpack.c.l.b16 %v8191
      %v8681 = vunpack.c.h.b16 %v8191
      %v8682 = vunpack.c.l.b16 %v8192
      %v8683 = vunpack.c.h.b16 %v8192
      %v8684 = vunpack.c.l.b16 %v8193
      %v8685 = vunpack.c.h.b16 %v8193
      %v8686 = vunpack.c.l.b16 %v8194
      %v8687 = vunpack.c.h.b16 %v8194
      %v8688 = vunpack.c.l.b16 %v8195
      %v8689 = vunpack.c.h.b16 %v8195
      %v8690 = vunpack.c.l.b16 %v8196
      %v8691 = vunpack.c.h.b16 %v8196
      %v8692 = vunpack.c.l.b16 %v8197
      %v8693 = vunpack.c.h.b16 %v8197
      %v8694 = vunpack.c.l.b16 %v8198
      %v8695 = vunpack.c.h.b16 %v8198
      %v8696 = vunpack.c.l.b16 %v8199
      %v8697 = vunpack.c.h.b16 %v8199
      %v8698 = vunpack.c.l.b16 %v8200
      %v8699 = vunpack.c.h.b16 %v8200
      %v8700 = vunpack.c.l.b16 %v8201
      %v8701 = vunpack.c.h.b16 %v8201
      %v8702 = vunpack.c.l.b16 %v8202
      %v8703 = vunpack.c.h.b16 %v8202
      %v8704 = vunpack.c.l.b16 %v8203
      %v8705 = vunpack.c.h.b16 %v8203
      %v8706 = vunpack.c.l.b16 %v8204
      %v8707 = vunpack.c.h.b16 %v8204
      %v8708 = vunpack.c.l.b16 %v8205
      %v8709 = vunpack.c.h.b16 %v8205
      %v8710 = vunpack.c.l.b16 %v8206
      %v8711 = vunpack.c.h.b16 %v8206
      %v8712 = vunpack.c.l.b16 %v8207
      %v8713 = vunpack.c.h.b16 %v8207
      %v8714 = vunpack.c.l.b16 %v8208
      %v8715 = vunpack.c.h.b16 %v8208
      %v8716 = vunpack.c.l.b16 %v8209
      %v8717 = vunpack.c.h.b16 %v8209
      %v8718 = vunpack.c.l.b16 %v8210
      %v8719 = vunpack.c.h.b16 %v8210
      %v8720 = vunpack.c.l.b16 %v8211
      %v8721 = vunpack.c.h.b16 %v8211
      %v8722 = vunpack.c.l.b16 %v8212
      %v8723 = vunpack.c.h.b16 %v8212
      %v8724 = vunpack.c.l.b16 %v8213
      %v8725 = vunpack.c.h.b16 %v8213
      %v8726 = vunpack.c.l.b16 %v8214
      %v8727 = vunpack.c.h.b16 %v8214
      %v8728 = vunpack.c.l.b16 %v8215
      %v8729 = vunpack.c.h.b16 %v8215
      %v8730 = vunpack.c.l.b16 %v8216
      %v8731 = vunpack.c.h.b16 %v8216
      %v8732 = vunpack.c.l.b16 %v8217
      %v8733 = vunpack.c.h.b16 %v8217
      %v8734 = vunpack.c.l.b16 %v8218
      %v8735 = vunpack.c.h.b16 %v8218
      %v8736 = vunpack.c.l.b16 %v8219
      %v8737 = vunpack.c.h.b16 %v8219
      %v8738 = vunpack.c.l.b16 %v8220
      %v8739 = vunpack.c.h.b16 %v8220
      %v8740 = vunpack.c.l.b16 %v8221
      %v8741 = vunpack.c.h.b16 %v8221
      %v8742 = vunpack.c.l.b16 %v8222
      %v8743 = vunpack.c.h.b16 %v8222
      %v8744 = vunpack.c.l.b16 %v8223
      %v8745 = vunpack.c.h.b16 %v8223
      %v8746 = vunpack.c.l.b16 %v8224
      %v8747 = vunpack.c.h.b16 %v8224
      %v8748 = vunpack.c.l.b16 %v8225
      %v8749 = vunpack.c.h.b16 %v8225
      %v8750 = vunpack.c.l.b16 %v8226
      %v8751 = vunpack.c.h.b16 %v8226
      %v8752 = vunpack.c.l.b16 %v8227
      %v8753 = vunpack.c.h.b16 %v8227
      %v8754 = vunpack.c.l.b16 %v8228
      %v8755 = vunpack.c.h.b16 %v8228
      %v8756 = vunpack.c.l.b16 %v8229
      %v8757 = vunpack.c.h.b16 %v8229
      %v8758 = vunpack.c.l.b16 %v8230
      %v8759 = vunpack.c.h.b16 %v8230
      %v8760 = vunpack.c.l.b16 %v8231
      %v8761 = vunpack.c.h.b16 %v8231
      %v8762 = vunpack.c.l.b16 %v8232
      %v8763 = vunpack.c.h.b16 %v8232
      %v8764 = vunpack.c.l.b16 %v8233
      %v8765 = vunpack.c.h.b16 %v8233
      %v8766 = vunpack.c.l.b16 %v8234
      %v8767 = vunpack.c.h.b16 %v8234
      %v8768 = vunpack.c.l.b16 %v8235
      %v8769 = vunpack.c.h.b16 %v8235
      %v8770 = vunpack.c.l.b16 %v8236
      %v8771 = vunpack.c.h.b16 %v8236
      %v8772 = vunpack.c.l.b16 %v8237
      %v8773 = vunpack.c.h.b16 %v8237
      %v8774 = vunpack.c.l.b16 %v8238
      %v8775 = vunpack.c.h.b16 %v8238
      %v8776 = vunpack.c.l.b16 %v8239
      %v8777 = vunpack.c.h.b16 %v8239
      %v8778 = vunpack.c.l.b16 %v8240
      %v8779 = vunpack.c.h.b16 %v8240
      %v8780 = vunpack.c.l.b16 %v8241
      %v8781 = vunpack.c.h.b16 %v8241
      %v8782 = vunpack.c.l.b16 %v8242
      %v8783 = vunpack.c.h.b16 %v8242
      %v8784 = vunpack.c.l.b16 %v8243
      %v8785 = vunpack.c.h.b16 %v8243
      %v8786 = vunpack.c.l.b16 %v8244
      %v8787 = vunpack.c.h.b16 %v8244
      %v8788 = vunpack.c.l.b16 %v8245
      %v8789 = vunpack.c.h.b16 %v8245
      %v8790 = vunpack.c.l.b16 %v8246
      %v8791 = vunpack.c.h.b16 %v8246
      %v8792 = vunpack.c.l.b16 %v8247
      %v8793 = vunpack.c.h.b16 %v8247
      %v8794 = vunpack.c.l.b16 %v8248
      %v8795 = vunpack.c.h.b16 %v8248
      %v8796 = vunpack.c.l.b16 %v8249
      %v8797 = vunpack.c.h.b16 %v8249
      %v8798 = vunpack.c.l.b16 %v8250
      %v8799 = vunpack.c.h.b16 %v8250
      %v8800 = vunpack.c.l.b16 %v8251
      %v8801 = vunpack.c.h.b16 %v8251
      %v8802 = vunpack.c.l.b16 %v8252
      %v8803 = vunpack.c.h.b16 %v8252
      %v8804 = vunpack.c.l.b16 %v8253
      %v8805 = vunpack.c.h.b16 %v8253
      %v8806 = vunpack.c.l.b16 %v8254
      %v8807 = vunpack.c.h.b16 %v8254
      %v8808 = vunpack.c.l.b16 %v8255
      %v8809 = vunpack.c.h.b16 %v8255
      %v8810 = vunpack.c.l.b16 %v8256
      %v8811 = vunpack.c.h.b16 %v8256
      %v8812 = vunpack.c.l.b16 %v8257
      %v8813 = vunpack.c.h.b16 %v8257
      %v8814 = vunpack.c.l.b16 %v8258
      %v8815 = vunpack.c.h.b16 %v8258
      %v8816 = vunpack.c.l.b16 %v8259
      %v8817 = vunpack.c.h.b16 %v8259
      %v8818 = vunpack.c.l.b16 %v8260
      %v8819 = vunpack.c.h.b16 %v8260
      %v8820 = vunpack.c.l.b16 %v8261
      %v8821 = vunpack.c.h.b16 %v8261
      %v8822 = vunpack.c.l.b16 %v8262
      %v8823 = vunpack.c.h.b16 %v8262
      %v8824 = vunpack.c.l.b16 %v8263
      %v8825 = vunpack.c.h.b16 %v8263
      %v8826 = vunpack.c.l.b16 %v8264
      %v8827 = vunpack.c.h.b16 %v8264
      %v8828 = vunpack.c.l.b16 %v8265
      %v8829 = vunpack.c.h.b16 %v8265
      %v8830 = vunpack.c.l.b16 %v8266
      %v8831 = vunpack.c.h.b16 %v8266
      %v8832 = vunpack.c.l.b16 %v8267
      %v8833 = vunpack.c.h.b16 %v8267
      %v8834 = vunpack.c.l.b16 %v8268
      %v8835 = vunpack.c.h.b16 %v8268
      %v8836 = vunpack.c.l.b16 %v8269
      %v8837 = vunpack.c.h.b16 %v8269
      %v8838 = vunpack.c.l.b16 %v8270
      %v8839 = vunpack.c.h.b16 %v8270
      %v8840 = vunpack.c.l.b16 %v8271
      %v8841 = vunpack.c.h.b16 %v8271
      %v8842 = vunpack.c.l.b16 %v8272
      %v8843 = vunpack.c.h.b16 %v8272
      %v8844 = vunpack.c.l.b16 %v8273
      %v8845 = vunpack.c.h.b16 %v8273
      %v8846 = vunpack.c.l.b16 %v8274
      %v8847 = vunpack.c.h.b16 %v8274
      %v8848 = vunpack.c.l.b16 %v8275
      %v8849 = vunpack.c.h.b16 %v8275
      %v8850 = vunpack.c.l.b16 %v8276
      %v8851 = vunpack.c.h.b16 %v8276
      %v8852 = vunpack.c.l.b16 %v8277
      %v8853 = vunpack.c.h.b16 %v8277
      %v8854 = vpack.c.b16 %v8474, %v8470
      %v8855 = vpack.c.b16 %v8475, %v8471
      %v8856 = vpack.c.b16 %v8476, %v8472
      %v8857 = vpack.c.b16 %v8477, %v8473
      %v8858 = vpack.c.b16 %v8482, %v8478
      %v8859 = vpack.c.b16 %v8483, %v8479
      %v8860 = vpack.c.b16 %v8484, %v8480
      %v8861 = vpack.c.b16 %v8485, %v8481
      %v8862 = vpack.c.b16 %v8490, %v8486
      %v8863 = vpack.c.b16 %v8491, %v8487
      %v8864 = vpack.c.b16 %v8492, %v8488
      %v8865 = vpack.c.b16 %v8493, %v8489
      %v8866 = vpack.c.b16 %v8498, %v8494
      %v8867 = vpack.c.b16 %v8499, %v8495
      %v8868 = vpack.c.b16 %v8500, %v8496
      %v8869 = vpack.c.b16 %v8501, %v8497
      %v8870 = vpack.c.b16 %v8506, %v8502
      %v8871 = vpack.c.b16 %v8507, %v8503
      %v8872 = vpack.c.b16 %v8508, %v8504
      %v8873 = vpack.c.b16 %v8509, %v8505
      %v8874 = vpack.c.b16 %v8514, %v8510
      %v8875 = vpack.c.b16 %v8515, %v8511
      %v8876 = vpack.c.b16 %v8516, %v8512
      %v8877 = vpack.c.b16 %v8517, %v8513
      %v8878 = vpack.c.b16 %v8522, %v8518
      %v8879 = vpack.c.b16 %v8523, %v8519
      %v8880 = vpack.c.b16 %v8524, %v8520
      %v8881 = vpack.c.b16 %v8525, %v8521
      %v8882 = vpack.c.b16 %v8530, %v8526
      %v8883 = vpack.c.b16 %v8531, %v8527
      %v8884 = vpack.c.b16 %v8532, %v8528
      %v8885 = vpack.c.b16 %v8533, %v8529
      %v8886 = vpack.c.b16 %v8538, %v8534
      %v8887 = vpack.c.b16 %v8539, %v8535
      %v8888 = vpack.c.b16 %v8540, %v8536
      %v8889 = vpack.c.b16 %v8541, %v8537
      %v8890 = vpack.c.b16 %v8546, %v8542
      %v8891 = vpack.c.b16 %v8547, %v8543
      %v8892 = vpack.c.b16 %v8548, %v8544
      %v8893 = vpack.c.b16 %v8549, %v8545
      %v8894 = vpack.c.b16 %v8554, %v8550
      %v8895 = vpack.c.b16 %v8555, %v8551
      %v8896 = vpack.c.b16 %v8556, %v8552
      %v8897 = vpack.c.b16 %v8557, %v8553
      %v8898 = vpack.c.b16 %v8562, %v8558
      %v8899 = vpack.c.b16 %v8563, %v8559
      %v8900 = vpack.c.b16 %v8564, %v8560
      %v8901 = vpack.c.b16 %v8565, %v8561
      %v8902 = vpack.c.b16 %v8570, %v8566
      %v8903 = vpack.c.b16 %v8571, %v8567
      %v8904 = vpack.c.b16 %v8572, %v8568
      %v8905 = vpack.c.b16 %v8573, %v8569
      %v8906 = vpack.c.b16 %v8578, %v8574
      %v8907 = vpack.c.b16 %v8579, %v8575
      %v8908 = vpack.c.b16 %v8580, %v8576
      %v8909 = vpack.c.b16 %v8581, %v8577
      %v8910 = vpack.c.b16 %v8586, %v8582
      %v8911 = vpack.c.b16 %v8587, %v8583
      %v8912 = vpack.c.b16 %v8588, %v8584
      %v8913 = vpack.c.b16 %v8589, %v8585
      %v8914 = vpack.c.b16 %v8594, %v8590
      %v8915 = vpack.c.b16 %v8595, %v8591
      %v8916 = vpack.c.b16 %v8596, %v8592
      %v8917 = vpack.c.b16 %v8597, %v8593
      %v8918 = vpack.c.b16 %v8602, %v8598
      %v8919 = vpack.c.b16 %v8603, %v8599
      %v8920 = vpack.c.b16 %v8604, %v8600
      %v8921 = vpack.c.b16 %v8605, %v8601
      %v8922 = vpack.c.b16 %v8610, %v8606
      %v8923 = vpack.c.b16 %v8611, %v8607
      %v8924 = vpack.c.b16 %v8612, %v8608
      %v8925 = vpack.c.b16 %v8613, %v8609
      %v8926 = vpack.c.b16 %v8618, %v8614
      %v8927 = vpack.c.b16 %v8619, %v8615
      %v8928 = vpack.c.b16 %v8620, %v8616
      %v8929 = vpack.c.b16 %v8621, %v8617
      %v8930 = vpack.c.b16 %v8626, %v8622
      %v8931 = vpack.c.b16 %v8627, %v8623
      %v8932 = vpack.c.b16 %v8628, %v8624
      %v8933 = vpack.c.b16 %v8629, %v8625
      %v8934 = vpack.c.b16 %v8634, %v8630
      %v8935 = vpack.c.b16 %v8635, %v8631
      %v8936 = vpack.c.b16 %v8636, %v8632
      %v8937 = vpack.c.b16 %v8637, %v8633
      %v8938 = vpack.c.b16 %v8642, %v8638
      %v8939 = vpack.c.b16 %v8643, %v8639
      %v8940 = vpack.c.b16 %v8644, %v8640
      %v8941 = vpack.c.b16 %v8645, %v8641
      %v8942 = vpack.c.b16 %v8650, %v8646
      %v8943 = vpack.c.b16 %v8651, %v8647
      %v8944 = vpack.c.b16 %v8652, %v8648
      %v8945 = vpack.c.b16 %v8653, %v8649
      %v8946 = vpack.c.b16 %v8658, %v8654
      %v8947 = vpack.c.b16 %v8659, %v8655
      %v8948 = vpack.c.b16 %v8660, %v8656
      %v8949 = vpack.c.b16 %v8661, %v8657
      %v8950 = vpack.c.b16 %v8666, %v8662
      %v8951 = vpack.c.b16 %v8667, %v8663
      %v8952 = vpack.c.b16 %v8668, %v8664
      %v8953 = vpack.c.b16 %v8669, %v8665
      %v8954 = vpack.c.b16 %v8674, %v8670
      %v8955 = vpack.c.b16 %v8675, %v8671
      %v8956 = vpack.c.b16 %v8676, %v8672
      %v8957 = vpack.c.b16 %v8677, %v8673
      %v8958 = vpack.c.b16 %v8682, %v8678
      %v8959 = vpack.c.b16 %v8683, %v8679
      %v8960 = vpack.c.b16 %v8684, %v8680
      %v8961 = vpack.c.b16 %v8685, %v8681
      %v8962 = vpack.c.b16 %v8690, %v8686
      %v8963 = vpack.c.b16 %v8691, %v8687
      %v8964 = vpack.c.b16 %v8692, %v8688
      %v8965 = vpack.c.b16 %v8693, %v8689
      %v8966 = vpack.c.b16 %v8698, %v8694
      %v8967 = vpack.c.b16 %v8699, %v8695
      %v8968 = vpack.c.b16 %v8700, %v8696
      %v8969 = vpack.c.b16 %v8701, %v8697
      %v8970 = vpack.c.b16 %v8706, %v8702
      %v8971 = vpack.c.b16 %v8707, %v8703
      %v8972 = vpack.c.b16 %v8708, %v8704
      %v8973 = vpack.c.b16 %v8709, %v8705
      %v8974 = vpack.c.b16 %v8714, %v8710
      %v8975 = vpack.c.b16 %v8715, %v8711
      %v8976 = vpack.c.b16 %v8716, %v8712
      %v8977 = vpack.c.b16 %v8717, %v8713
      %v8978 = vpack.c.b16 %v8722, %v8718
      %v8979 = vpack.c.b16 %v8723, %v8719
      %v8980 = vpack.c.b16 %v8724, %v8720
      %v8981 = vpack.c.b16 %v8725, %v8721
      %v8982 = vpack.c.b16 %v8730, %v8726
      %v8983 = vpack.c.b16 %v8731, %v8727
      %v8984 = vpack.c.b16 %v8732, %v8728
      %v8985 = vpack.c.b16 %v8733, %v8729
      %v8986 = vpack.c.b16 %v8738, %v8734
      %v8987 = vpack.c.b16 %v8739, %v8735
      %v8988 = vpack.c.b16 %v8740, %v8736
      %v8989 = vpack.c.b16 %v8741, %v8737
      %v8990 = vpack.c.b16 %v8746, %v8742
      %v8991 = vpack.c.b16 %v8747, %v8743
      %v8992 = vpack.c.b16 %v8748, %v8744
      %v8993 = vpack.c.b16 %v8749, %v8745
      %v8994 = vpack.c.b16 %v8754, %v8750
      %v8995 = vpack.c.b16 %v8755, %v8751
      %v8996 = vpack.c.b16 %v8756, %v8752
      %v8997 = vpack.c.b16 %v8757, %v8753
      %v8998 = vpack.c.b16 %v8762, %v8758
      %v8999 = vpack.c.b16 %v8763, %v8759
      %v9000 = vpack.c.b16 %v8764, %v8760
      %v9001 = vpack.c.b16 %v8765, %v8761
      %v9002 = vpack.c.b16 %v8770, %v8766
      %v9003 = vpack.c.b16 %v8771, %v8767
      %v9004 = vpack.c.b16 %v8772, %v8768
      %v9005 = vpack.c.b16 %v8773, %v8769
      %v9006 = vpack.c.b16 %v8778, %v8774
      %v9007 = vpack.c.b16 %v8779, %v8775
      %v9008 = vpack.c.b16 %v8780, %v8776
      %v9009 = vpack.c.b16 %v8781, %v8777
      %v9010 = vpack.c.b16 %v8786, %v8782
      %v9011 = vpack.c.b16 %v8787, %v8783
      %v9012 = vpack.c.b16 %v8788, %v8784
      %v9013 = vpack.c.b16 %v8789, %v8785
      %v9014 = vpack.c.b16 %v8794, %v8790
      %v9015 = vpack.c.b16 %v8795, %v8791
      %v9016 = vpack.c.b16 %v8796, %v8792
      %v9017 = vpack.c.b16 %v8797, %v8793
      %v9018 = vpack.c.b16 %v8802, %v8798
      %v9019 = vpack.c.b16 %v8803, %v8799
      %v9020 = vpack.c.b16 %v8804, %v8800
      %v9021 = vpack.c.b16 %v8805, %v8801
      %v9022 = vpack.c.b16 %v8810, %v8806
      %v9023 = vpack.c.b16 %v8811, %v8807
      %v9024 = vpack.c.b16 %v8812, %v8808
      %v9025 = vpack.c.b16 %v8813, %v8809
      %v9026 = vpack.c.b16 %v8818, %v8814
      %v9027 = vpack.c.b16 %v8819, %v8815
      %v9028 = vpack.c.b16 %v8820, %v8816
      %v9029 = vpack.c.b16 %v8821, %v8817
      %v9030 = vpack.c.b16 %v8826, %v8822
      %v9031 = vpack.c.b16 %v8827, %v8823
      %v9032 = vpack.c.b16 %v8828, %v8824
      %v9033 = vpack.c.b16 %v8829, %v8825
      %v9034 = vpack.c.b16 %v8834, %v8830
      %v9035 = vpack.c.b16 %v8835, %v8831
      %v9036 = vpack.c.b16 %v8836, %v8832
      %v9037 = vpack.c.b16 %v8837, %v8833
      %v9038 = vpack.c.b16 %v8842, %v8838
      %v9039 = vpack.c.b16 %v8843, %v8839
      %v9040 = vpack.c.b16 %v8844, %v8840
      %v9041 = vpack.c.b16 %v8845, %v8841
      %v9042 = vpack.c.b16 %v8850, %v8846
      %v9043 = vpack.c.b16 %v8851, %v8847
      %v9044 = vpack.c.b16 %v8852, %v8848
      %v9045 = vpack.c.b16 %v8853, %v8849
      %9238 = vmatprep.subr.bf16.mxu0 %v8855
      %9239 = vmatpush1.bf16.msra.mxu0 %v8854
      %9240 = vmatprep.subr.bf16.mxu0 %v8859
      %9241 = vmatpush1.bf16.msra.mxu0 %v8858
      %9242 = vmatprep.subr.bf16.mxu0 %v8863
      %9243 = vmatpush1.bf16.msra.mxu0 %v8862
      %9244 = vmatprep.subr.bf16.mxu0 %v8867
      %9245 = vmatpush1.bf16.msra.mxu0 %v8866
      %9246 = vmatprep.subr.bf16.mxu0 %v8871
      %9247 = vmatpush1.bf16.msra.mxu0 %v8870
      %9248 = vmatprep.subr.bf16.mxu0 %v8875
      %9249 = vmatpush1.bf16.msra.mxu0 %v8874
      %9250 = vmatprep.subr.bf16.mxu0 %v8879
      %9251 = vmatpush1.bf16.msra.mxu0 %v8878
      %9252 = vmatprep.subr.bf16.mxu0 %v8883
      %9253 = vmatpush1.bf16.msra.mxu0 %v8882
      %9254 = vmatprep.subr.bf16.mxu0 %v8887
      %9255 = vmatpush1.bf16.msra.mxu0 %v8886
      %9256 = vmatprep.subr.bf16.mxu0 %v8891
      %9257 = vmatpush1.bf16.msra.mxu0 %v8890
      %9258 = vmatprep.subr.bf16.mxu0 %v8895
      %9259 = vmatpush1.bf16.msra.mxu0 %v8894
      %9260 = vmatprep.subr.bf16.mxu0 %v8899
      %9261 = vmatpush1.bf16.msra.mxu0 %v8898
      %9262 = vmatprep.subr.bf16.mxu0 %v8903
      %9263 = vmatpush1.bf16.msra.mxu0 %v8902
      %9264 = vmatprep.subr.bf16.mxu0 %v8907
      %9265 = vmatpush1.bf16.msra.mxu0 %v8906
      %9266 = vmatprep.subr.bf16.mxu0 %v8911
      %9267 = vmatpush1.bf16.msra.mxu0 %v8910
      %9268 = vmatprep.subr.bf16.mxu0 %v8915
      %9269 = vmatpush1.bf16.msra.mxu0 %v8914
      %9270 = vmatprep.mubr.bf16.mxu0 %v1209
      %9271 = vmatmul.mubr.bf16.gmra.mrb[0].mxu0 %v1208
      %v9272 = vpop.f32.mrb[0].mxu0
      %v9273 = vpop.f32.mrb[0].mxu0
      %v9274 = vpop.f32.mrb[0].mxu0
      %v9275 = vpop.f32.mrb[0].mxu0
      %9276 = vmatprep.mubr.bf16.mxu0 %v1215
      %9277 = vmatmul.mubr.bf16.gmra.mrb[0].mxu0 %v1214
      %v9278 = vpop.f32.mrb[0].mxu0
      %v9279 = vadd.f32 0.0, %v9278
      %v9280 = vpop.f32.mrb[0].mxu0
      %v9281 = vadd.f32 0.0, %v9280
      %v9282 = vpop.f32.mrb[0].mxu0
      %v9283 = vadd.f32 0.0, %v9282
      %v9284 = vpop.f32.mrb[0].mxu0
      %v9285 = vadd.f32 0.0, %v9284
      %9286 = vmatprep.mubr.bf16.mxu0 %v1221
      %9287 = vmatmul.mubr.bf16.gmra.mrb[0].mxu0 %v1220
      %v9288 = vpop.f32.mrb[0].mxu0
      %v9289 = vadd.f32 0.0, %v9288
      %v9290 = vpop.f32.mrb[0].mxu0
      %v9291 = vadd.f32 0.0, %v9290
      %v9292 = vpop.f32.mrb[0].mxu0
      %v9293 = vadd.f32 0.0, %v9292
      %v9294 = vpop.f32.mrb[0].mxu0
      %v9295 = vadd.f32 0.0, %v9294
      %9296 = vmatprep.mubr.bf16.mxu0 %v1227
      %9297 = vmatmul.mubr.bf16.gmra.mrb[0].mxu0 %v1226
      %v9298 = vpop.f32.mrb[0].mxu0
      %v9299 = vadd.f32 0.0, %v9298
      %v9300 = vpop.f32.mrb[0].mxu0
      %v9301 = vadd.f32 0.0, %v9300
      %v9302 = vpop.f32.mrb[0].mxu0
      %v9303 = vadd.f32 0.0, %v9302
      %v9304 = vpop.f32.mrb[0].mxu0
      %v9305 = vadd.f32 0.0, %v9304
      %9306 = vmatprep.mubr.bf16.mxu0 %v1233
      %9307 = vmatmul.mubr.bf16.gmra.mrb[0].mxu0 %v1232
      %v9308 = vpop.f32.mrb[0].mxu0
      %v9309 = vadd.f32 0.0, %v9308
      %v9310 = vpop.f32.mrb[0].mxu0
      %v9311 = vadd.f32 0.0, %v9310
      %v9312 = vpop.f32.mrb[0].mxu0
      %v9313 = vpop.f32.mrb[0].mxu0
      %9314 = vmatprep.mubr.bf16.mxu0 %v1239
      %9315 = vmatmul.mubr.bf16.gmra.mrb[0].mxu0 %v1238
      %v9316 = vpop.f32.mrb[0].mxu0
      %v9317 = vpop.f32.mrb[0].mxu0
      %v9318 = vpop.f32.mrb[0].mxu0
      %v9319 = vadd.f32 0.0, %v9318
      %v9320 = vpop.f32.mrb[0].mxu0
      %v9321 = vadd.f32 0.0, %v9320
      %9322 = vmatprep.mubr.bf16.mxu0 %v1245
      %9323 = vmatmul.mubr.bf16.gmra.mrb[0].mxu0 %v1244
      %v9324 = vpop.f32.mrb[0].mxu0
      %v9325 = vadd.f32 0.0, %v9324
      %v9326 = vpop.f32.mrb[0].mxu0
      %v9327 = vadd.f32 0.0, %v9326
      %v9328 = vpop.f32.mrb[0].mxu0
      %v9329 = vadd.f32 0.0, %v9328
      %v9330 = vpop.f32.mrb[0].mxu0
      %v9331 = vadd.f32 0.0, %v9330
      %9332 = vmatprep.mubr.bf16.mxu0 %v1251
      %9333 = vmatmul.mubr.bf16.gmra.mrb[0].mxu0 %v1250
      %v9334 = vpop.f32.mrb[0].mxu0
      %v9335 = vadd.f32 0.0, %v9334
      %v9336 = vpop.f32.mrb[0].mxu0
      %v9337 = vadd.f32 0.0, %v9336
      %v9338 = vpop.f32.mrb[0].mxu0
      %v9339 = vadd.f32 0.0, %v9338
      %v9340 = vpop.f32.mrb[0].mxu0
      %v9341 = vadd.f32 0.0, %v9340
      %9342 = vmatprep.mubr.bf16.mxu0 %v1257
      %9343 = vmatmul.mubr.bf16.gmra.mrb[0].mxu0 %v1256
      %v9344 = vpop.f32.mrb[0].mxu0
      %v9345 = vadd.f32 0.0, %v9344
      %v9346 = vpop.f32.mrb[0].mxu0
      %v9347 = vadd.f32 0.0, %v9346
      %v9348 = vpop.f32.mrb[0].mxu0
      %v9349 = vadd.f32 0.0, %v9348
      %v9350 = vpop.f32.mrb[0].mxu0
      %v9351 = vadd.f32 0.0, %v9350
      %9352 = vmatprep.mubr.bf16.mxu0 %v1263
      %9353 = vmatmul.mubr.bf16.gmra.mrb[0].mxu0 %v1262
      %v9354 = vpop.f32.mrb[0].mxu0
      %v9355 = vpop.f32.mrb[0].mxu0
      %v9356 = vpop.f32.mrb[0].mxu0
      %v9357 = vpop.f32.mrb[0].mxu0
      %9358 = vmatprep.mubr.bf16.mxu0 %v1269
      %9359 = vmatmul.mubr.bf16.gmra.mrb[0].mxu0 %v1268
      %v9360 = vpop.f32.mrb[0].mxu0
      %v9361 = vadd.f32 0.0, %v9360
      %v9362 = vpop.f32.mrb[0].mxu0
      %v9363 = vadd.f32 0.0, %v9362
      %v9364 = vpop.f32.mrb[0].mxu0
      %v9365 = vadd.f32 0.0, %v9364
      %v9366 = vpop.f32.mrb[0].mxu0
      %v9367 = vadd.f32 0.0, %v9366
      %9368 = vmatprep.mubr.bf16.mxu0 %v1275
      %9369 = vmatmul.mubr.bf16.gmra.mrb[0].mxu0 %v1274
      %v9370 = vpop.f32.mrb[0].mxu0
      %v9371 = vadd.f32 0.0, %v9370
      %v9372 = vpop.f32.mrb[0].mxu0
      %v9373 = vadd.f32 0.0, %v9372
      %v9374 = vpop.f32.mrb[0].mxu0
      %v9375 = vadd.f32 0.0, %v9374
      %v9376 = vpop.f32.mrb[0].mxu0
      %v9377 = vadd.f32 0.0, %v9376
      %9378 = vmatprep.mubr.bf16.mxu0 %v1281
      %9379 = vmatmul.mubr.bf16.gmra.mrb[0].mxu0 %v1280
      %v9380 = vpop.f32.mrb[0].mxu0
      %v9381 = vadd.f32 0.0, %v9380
      %v9382 = vpop.f32.mrb[0].mxu0
      %v9383 = vadd.f32 0.0, %v9382
      %v9384 = vpop.f32.mrb[0].mxu0
      %v9385 = vadd.f32 0.0, %v9384
      %v9386 = vpop.f32.mrb[0].mxu0
      %v9387 = vadd.f32 0.0, %v9386
      %9388 = vmatprep.mubr.bf16.mxu0 %v1287
      %9389 = vmatmul.mubr.bf16.gmra.mrb[0].mxu0 %v1286
      %v9390 = vpop.f32.mrb[0].mxu0
      %v9391 = vadd.f32 0.0, %v9390
      %v9392 = vpop.f32.mrb[0].mxu0
      %v9393 = vadd.f32 0.0, %v9392
      %v9394 = vpop.f32.mrb[0].mxu0
      %v9395 = vpop.f32.mrb[0].mxu0
      %9396 = vmatprep.mubr.bf16.mxu0 %v1293
      %9397 = vmatmul.mubr.bf16.gmra.mrb[0].mxu0 %v1292
      %v9398 = vpop.f32.mrb[0].mxu0
      %v9399 = vpop.f32.mrb[0].mxu0
      %v9400 = vpop.f32.mrb[0].mxu0
      %v9401 = vadd.f32 0.0, %v9400
      %v9402 = vpop.f32.mrb[0].mxu0
      %v9403 = vadd.f32 0.0, %v9402
      %9404 = vmatprep.mubr.bf16.mxu0 %v1299
      %9405 = vmatmul.mubr.bf16.gmra.mrb[0].mxu0 %v1298
      %v9406 = vpop.f32.mrb[0].mxu0
      %v9407 = vadd.f32 0.0, %v9406
      %v9408 = vpop.f32.mrb[0].mxu0
      %v9409 = vadd.f32 0.0, %v9408
      %v9410 = vpop.f32.mrb[0].mxu0
      %v9411 = vadd.f32 0.0, %v9410
      %v9412 = vpop.f32.mrb[0].mxu0
      %v9413 = vadd.f32 0.0, %v9412
      %9414 = vmatprep.mubr.bf16.mxu0 %v1305
      %9415 = vmatmul.mubr.bf16.gmra.mrb[0].mxu0 %v1304
      %v9416 = vpop.f32.mrb[0].mxu0
      %v9417 = vadd.f32 0.0, %v9416
      %v9418 = vpop.f32.mrb[0].mxu0
      %v9419 = vadd.f32 0.0, %v9418
      %v9420 = vpop.f32.mrb[0].mxu0
      %v9421 = vadd.f32 0.0, %v9420
      %v9422 = vpop.f32.mrb[0].mxu0
      %v9423 = vadd.f32 0.0, %v9422
      %9424 = vmatprep.mubr.bf16.mxu0 %v1311
      %9425 = vmatmul.mubr.bf16.gmra.mrb[0].mxu0 %v1310
      %v9426 = vpop.f32.mrb[0].mxu0
      %v9427 = vadd.f32 0.0, %v9426
      %v9428 = vpop.f32.mrb[0].mxu0
      %v9429 = vadd.f32 0.0, %v9428
      %v9430 = vpop.f32.mrb[0].mxu0
      %v9431 = vadd.f32 0.0, %v9430
      %v9432 = vpop.f32.mrb[0].mxu0
      %v9433 = vadd.f32 0.0, %v9432
      %9434 = vmatprep.mubr.bf16.mxu0 %v1317
      %9435 = vmatmul.mubr.bf16.gmra.mrb[0].mxu0 %v1316
      %v9436 = vpop.f32.mrb[0].mxu0
      %v9437 = vpop.f32.mrb[0].mxu0
      %v9438 = vpop.f32.mrb[0].mxu0
      %v9439 = vpop.f32.mrb[0].mxu0
      %9440 = vmatprep.mubr.bf16.mxu0 %v1323
      %9441 = vmatmul.mubr.bf16.gmra.mrb[0].mxu0 %v1322
      %v9442 = vpop.f32.mrb[0].mxu0
      %v9443 = vadd.f32 0.0, %v9442
      %v9444 = vpop.f32.mrb[0].mxu0
      %v9445 = vadd.f32 0.0, %v9444
      %v9446 = vpop.f32.mrb[0].mxu0
      %v9447 = vadd.f32 0.0, %v9446
      %v9448 = vpop.f32.mrb[0].mxu0
      %v9449 = vadd.f32 0.0, %v9448
      %9450 = vmatprep.mubr.bf16.mxu0 %v1329
      %9451 = vmatmul.mubr.bf16.gmra.mrb[0].mxu0 %v1328
      %v9452 = vpop.f32.mrb[0].mxu0
      %v9453 = vadd.f32 0.0, %v9452
      %v9454 = vpop.f32.mrb[0].mxu0
      %v9455 = vadd.f32 0.0, %v9454
      %v9456 = vpop.f32.mrb[0].mxu0
      %v9457 = vadd.f32 0.0, %v9456
      %v9458 = vpop.f32.mrb[0].mxu0
      %v9459 = vadd.f32 0.0, %v9458
      %9460 = vmatprep.mubr.bf16.mxu0 %v1335
      %9461 = vmatmul.mubr.bf16.gmra.mrb[0].mxu0 %v1334
      %v9462 = vpop.f32.mrb[0].mxu0
      %v9463 = vadd.f32 0.0, %v9462
      %v9464 = vpop.f32.mrb[0].mxu0
      %v9465 = vadd.f32 0.0, %v9464
      %v9466 = vpop.f32.mrb[0].mxu0
      %v9467 = vadd.f32 0.0, %v9466
      %v9468 = vpop.f32.mrb[0].mxu0
      %v9469 = vadd.f32 0.0, %v9468
      %9470 = vmatprep.mubr.bf16.mxu0 %v1341
      %9471 = vmatmul.mubr.bf16.gmra.mrb[0].mxu0 %v1340
      %v9472 = vpop.f32.mrb[0].mxu0
      %v9473 = vadd.f32 0.0, %v9472
      %v9474 = vpop.f32.mrb[0].mxu0
      %v9475 = vadd.f32 0.0, %v9474
      %v9476 = vpop.f32.mrb[0].mxu0
      %v9477 = vpop.f32.mrb[0].mxu0
      %9478 = vmatprep.mubr.bf16.mxu0 %v1347
      %9479 = vmatmul.mubr.bf16.gmra.mrb[0].mxu0 %v1346
      %v9480 = vpop.f32.mrb[0].mxu0
      %v9481 = vpop.f32.mrb[0].mxu0
      %v9482 = vpop.f32.mrb[0].mxu0
      %v9483 = vadd.f32 0.0, %v9482
      %v9484 = vpop.f32.mrb[0].mxu0
      %v9485 = vadd.f32 0.0, %v9484
      %9486 = vmatprep.mubr.bf16.mxu0 %v1353
      %9487 = vmatmul.mubr.bf16.gmra.mrb[0].mxu0 %v1352
      %v9488 = vpop.f32.mrb[0].mxu0
      %v9489 = vadd.f32 0.0, %v9488
      %v9490 = vpop.f32.mrb[0].mxu0
      %v9491 = vadd.f32 0.0, %v9490
      %v9492 = vpop.f32.mrb[0].mxu0
      %v9493 = vadd.f32 0.0, %v9492
      %v9494 = vpop.f32.mrb[0].mxu0
      %v9495 = vadd.f32 0.0, %v9494
      %9496 = vmatprep.mubr.bf16.mxu0 %v1359
      %9497 = vmatmul.mubr.bf16.gmra.mrb[0].mxu0 %v1358
      %v9498 = vpop.f32.mrb[0].mxu0
      %v9499 = vadd.f32 0.0, %v9498
      %v9500 = vpop.f32.mrb[0].mxu0
      %v9501 = vadd.f32 0.0, %v9500
      %v9502 = vpop.f32.mrb[0].mxu0
      %v9503 = vadd.f32 0.0, %v9502
      %v9504 = vpop.f32.mrb[0].mxu0
      %v9505 = vadd.f32 0.0, %v9504
      %9506 = vmatprep.mubr.bf16.mxu0 %v1365
      %9507 = vmatmul.mubr.bf16.gmra.mrb[0].mxu0 %v1364
      %v9508 = vpop.f32.mrb[0].mxu0
      %v9509 = vadd.f32 0.0, %v9508
      %v9510 = vpop.f32.mrb[0].mxu0
      %v9511 = vadd.f32 0.0, %v9510
      %v9512 = vpop.f32.mrb[0].mxu0
      %v9513 = vadd.f32 0.0, %v9512
      %v9514 = vpop.f32.mrb[0].mxu0
      %v9515 = vadd.f32 0.0, %v9514
      %9516 = vmatprep.mubr.bf16.mxu0 %v1371
      %9517 = vmatmul.mubr.bf16.gmra.mrb[0].mxu0 %v1370
      %v9518 = vpop.f32.mrb[0].mxu0
      %v9519 = vpop.f32.mrb[0].mxu0
      %v9520 = vpop.f32.mrb[0].mxu0
      %v9521 = vpop.f32.mrb[0].mxu0
      %9522 = vmatprep.mubr.bf16.mxu0 %v1377
      %9523 = vmatmul.mubr.bf16.gmra.mrb[0].mxu0 %v1376
      %v9524 = vpop.f32.mrb[0].mxu0
      %v9525 = vadd.f32 0.0, %v9524
      %v9526 = vpop.f32.mrb[0].mxu0
      %v9527 = vadd.f32 0.0, %v9526
      %v9528 = vpop.f32.mrb[0].mxu0
      %v9529 = vadd.f32 0.0, %v9528
      %v9530 = vpop.f32.mrb[0].mxu0
      %v9531 = vadd.f32 0.0, %v9530
      %9532 = vmatprep.mubr.bf16.mxu0 %v1383
      %9533 = vmatmul.mubr.bf16.gmra.mrb[0].mxu0 %v1382
      %v9534 = vpop.f32.mrb[0].mxu0
      %v9535 = vadd.f32 0.0, %v9534
      %v9536 = vpop.f32.mrb[0].mxu0
      %v9537 = vadd.f32 0.0, %v9536
      %v9538 = vpop.f32.mrb[0].mxu0
      %v9539 = vadd.f32 0.0, %v9538
      %v9540 = vpop.f32.mrb[0].mxu0
      %v9541 = vadd.f32 0.0, %v9540
      %9542 = vmatprep.mubr.bf16.mxu0 %v1389
      %9543 = vmatmul.mubr.bf16.gmra.mrb[0].mxu0 %v1388
      %v9544 = vpop.f32.mrb[0].mxu0
      %v9545 = vadd.f32 0.0, %v9544
      %v9546 = vpop.f32.mrb[0].mxu0
      %v9547 = vadd.f32 0.0, %v9546
      %v9548 = vpop.f32.mrb[0].mxu0
      %v9549 = vadd.f32 0.0, %v9548
      %v9550 = vpop.f32.mrb[0].mxu0
      %v9551 = vadd.f32 0.0, %v9550
      %9552 = vmatprep.mubr.bf16.mxu0 %v1395
      %9553 = vmatmul.mubr.bf16.gmra.mrb[0].mxu0 %v1394
      %v9554 = vpop.f32.mrb[0].mxu0
      %v9555 = vadd.f32 0.0, %v9554
      %v9556 = vpop.f32.mrb[0].mxu0
      %v9557 = vadd.f32 0.0, %v9556
      %v9558 = vpop.f32.mrb[0].mxu0
      %v9559 = vpop.f32.mrb[0].mxu0
      %9560 = vmatprep.mubr.bf16.mxu0 %v1401
      %9561 = vmatmul.mubr.bf16.gmra.mrb[0].mxu0 %v1400
      %v9562 = vpop.f32.mrb[0].mxu0
      %v9563 = vpop.f32.mrb[0].mxu0
      %v9564 = vpop.f32.mrb[0].mxu0
      %v9565 = vadd.f32 0.0, %v9564
      %v9566 = vpop.f32.mrb[0].mxu0
      %v9567 = vadd.f32 0.0, %v9566
      %9568 = vmatprep.mubr.bf16.mxu0 %v1407
      %9569 = vmatmul.mubr.bf16.gmra.mrb[0].mxu0 %v1406
      %v9570 = vpop.f32.mrb[0].mxu0
      %v9571 = vadd.f32 0.0, %v9570
      %v9572 = vpop.f32.mrb[0].mxu0
      %v9573 = vadd.f32 0.0, %v9572
      %v9574 = vpop.f32.mrb[0].mxu0
      %v9575 = vadd.f32 0.0, %v9574
      %v9576 = vpop.f32.mrb[0].mxu0
      %v9577 = vadd.f32 0.0, %v9576
      %9578 = vmatprep.mubr.bf16.mxu0 %v1413
      %9579 = vmatmul.mubr.bf16.gmra.mrb[0].mxu0 %v1412
      %v9580 = vpop.f32.mrb[0].mxu0
      %v9581 = vadd.f32 0.0, %v9580
      %v9582 = vpop.f32.mrb[0].mxu0
      %v9583 = vadd.f32 0.0, %v9582
      %v9584 = vpop.f32.mrb[0].mxu0
      %v9585 = vadd.f32 0.0, %v9584
      %v9586 = vpop.f32.mrb[0].mxu0
      %v9587 = vadd.f32 0.0, %v9586
      %9588 = vmatprep.mubr.bf16.mxu0 %v1419
      %9589 = vmatmul.mubr.bf16.gmra.mrb[0].mxu0 %v1418
      %v9590 = vpop.f32.mrb[0].mxu0
      %v9591 = vadd.f32 0.0, %v9590
      %v9592 = vpop.f32.mrb[0].mxu0
      %v9593 = vadd.f32 0.0, %v9592
      %v9594 = vpop.f32.mrb[0].mxu0
      %v9595 = vadd.f32 0.0, %v9594
      %v9596 = vpop.f32.mrb[0].mxu0
      %v9597 = vadd.f32 0.0, %v9596
      %9598 = vdwg.mxu0
      %9599 = vmatprep.subr.bf16.mxu0 %v8919
      %9600 = vmatpush1.bf16.msra.mxu0 %v8918
      %9601 = vmatprep.subr.bf16.mxu0 %v8923
      %9602 = vmatpush1.bf16.msra.mxu0 %v8922
      %9603 = vmatprep.subr.bf16.mxu0 %v8927
      %9604 = vmatpush1.bf16.msra.mxu0 %v8926
      %9605 = vmatprep.subr.bf16.mxu0 %v8931
      %9606 = vmatpush1.bf16.msra.mxu0 %v8930
      %9607 = vmatprep.subr.bf16.mxu0 %v8935
      %9608 = vmatpush1.bf16.msra.mxu0 %v8934
      %9609 = vmatprep.subr.bf16.mxu0 %v8939
      %9610 = vmatpush1.bf16.msra.mxu0 %v8938
      %9611 = vmatprep.subr.bf16.mxu0 %v8943
      %9612 = vmatpush1.bf16.msra.mxu0 %v8942
      %9613 = vmatprep.subr.bf16.mxu0 %v8947
      %9614 = vmatpush1.bf16.msra.mxu0 %v8946
      %9615 = vmatprep.subr.bf16.mxu0 %v8951
      %9616 = vmatpush1.bf16.msra.mxu0 %v8950
      %9617 = vmatprep.subr.bf16.mxu0 %v8955
      %9618 = vmatpush1.bf16.msra.mxu0 %v8954
      %9619 = vmatprep.subr.bf16.mxu0 %v8959
      %9620 = vmatpush1.bf16.msra.mxu0 %v8958
      %9621 = vmatprep.subr.bf16.mxu0 %v8963
      %9622 = vmatpush1.bf16.msra.mxu0 %v8962
      %9623 = vmatprep.subr.bf16.mxu0 %v8967
      %9624 = vmatpush1.bf16.msra.mxu0 %v8966
      %9625 = vmatprep.subr.bf16.mxu0 %v8971
      %9626 = vmatpush1.bf16.msra.mxu0 %v8970
      %9627 = vmatprep.subr.bf16.mxu0 %v8975
      %9628 = vmatpush1.bf16.msra.mxu0 %v8974
      %9629 = vmatprep.subr.bf16.mxu0 %v8979
      %9630 = vmatpush1.bf16.msra.mxu0 %v8978
      %9631 = vmatprep.mubr.bf16.mxu0 %v1211
      %9632 = vmatmul.mubr.bf16.gmra.mrb[0].mxu0 %v1210
      %v9633 = vpop.f32.mrb[0].mxu0
      %v9634 = vpop.f32.mrb[0].mxu0
      %v9635 = vpop.f32.mrb[0].mxu0
      %v9636 = vpop.f32.mrb[0].mxu0
      %9637 = vmatprep.mubr.bf16.mxu0 %v1217
      %9638 = vmatmul.mubr.bf16.gmra.mrb[0].mxu0 %v1216
      %v9639 = vpop.f32.mrb[0].mxu0
      %v9640 = vadd.f32 %v9279, %v9639
      %v9641 = vpop.f32.mrb[0].mxu0
      %v9642 = vadd.f32 %v9281, %v9641
      %v9643 = vpop.f32.mrb[0].mxu0
      %v9644 = vadd.f32 %v9283, %v9643
      %v9645 = vpop.f32.mrb[0].mxu0
      %v9646 = vadd.f32 %v9285, %v9645
      %9647 = vmatprep.mubr.bf16.mxu0 %v1223
      %9648 = vmatmul.mubr.bf16.gmra.mrb[0].mxu0 %v1222
      %v9649 = vpop.f32.mrb[0].mxu0
      %v9650 = vadd.f32 %v9289, %v9649
      %v9651 = vpop.f32.mrb[0].mxu0
      %v9652 = vadd.f32 %v9291, %v9651
      %v9653 = vpop.f32.mrb[0].mxu0
      %v9654 = vadd.f32 %v9293, %v9653
      %v9655 = vpop.f32.mrb[0].mxu0
      %v9656 = vadd.f32 %v9295, %v9655
      %9657 = vmatprep.mubr.bf16.mxu0 %v1229
      %9658 = vmatmul.mubr.bf16.gmra.mrb[0].mxu0 %v1228
      %v9659 = vpop.f32.mrb[0].mxu0
      %v9660 = vadd.f32 %v9299, %v9659
      %v9661 = vpop.f32.mrb[0].mxu0
      %v9662 = vadd.f32 %v9301, %v9661
      %v9663 = vpop.f32.mrb[0].mxu0
      %v9664 = vadd.f32 %v9303, %v9663
      %v9665 = vpop.f32.mrb[0].mxu0
      %v9666 = vadd.f32 %v9305, %v9665
      %9667 = vmatprep.mubr.bf16.mxu0 %v1235
      %9668 = vmatmul.mubr.bf16.gmra.mrb[0].mxu0 %v1234
      %v9669 = vpop.f32.mrb[0].mxu0
      %v9670 = vadd.f32 %v9309, %v9669
      %v9671 = vpop.f32.mrb[0].mxu0
      %v9672 = vadd.f32 %v9311, %v9671
      %v9673 = vpop.f32.mrb[0].mxu0
      %v9674 = vpop.f32.mrb[0].mxu0
      %9675 = vmatprep.mubr.bf16.mxu0 %v1241
      %9676 = vmatmul.mubr.bf16.gmra.mrb[0].mxu0 %v1240
      %v9677 = vpop.f32.mrb[0].mxu0
      %v9678 = vpop.f32.mrb[0].mxu0
      %v9679 = vpop.f32.mrb[0].mxu0
      %v9680 = vadd.f32 %v9319, %v9679
      %v9681 = vpop.f32.mrb[0].mxu0
      %v9682 = vadd.f32 %v9321, %v9681
      %9683 = vmatprep.mubr.bf16.mxu0 %v1247
      %9684 = vmatmul.mubr.bf16.gmra.mrb[0].mxu0 %v1246
      %v9685 = vpop.f32.mrb[0].mxu0
      %v9686 = vadd.f32 %v9325, %v9685
      %v9687 = vpop.f32.mrb[0].mxu0
      %v9688 = vadd.f32 %v9327, %v9687
      %v9689 = vpop.f32.mrb[0].mxu0
      %v9690 = vadd.f32 %v9329, %v9689
      %v9691 = vpop.f32.mrb[0].mxu0
      %v9692 = vadd.f32 %v9331, %v9691
      %9693 = vmatprep.mubr.bf16.mxu0 %v1253
      %9694 = vmatmul.mubr.bf16.gmra.mrb[0].mxu0 %v1252
      %v9695 = vpop.f32.mrb[0].mxu0
      %v9696 = vadd.f32 %v9335, %v9695
      %v9697 = vpop.f32.mrb[0].mxu0
      %v9698 = vadd.f32 %v9337, %v9697
      %v9699 = vpop.f32.mrb[0].mxu0
      %v9700 = vadd.f32 %v9339, %v9699
      %v9701 = vpop.f32.mrb[0].mxu0
      %v9702 = vadd.f32 %v9341, %v9701
      %9703 = vmatprep.mubr.bf16.mxu0 %v1259
      %9704 = vmatmul.mubr.bf16.gmra.mrb[0].mxu0 %v1258
      %v9705 = vpop.f32.mrb[0].mxu0
      %v9706 = vadd.f32 %v9345, %v9705
      %v9707 = vpop.f32.mrb[0].mxu0
      %v9708 = vadd.f32 %v9347, %v9707
      %v9709 = vpop.f32.mrb[0].mxu0
      %v9710 = vadd.f32 %v9349, %v9709
      %v9711 = vpop.f32.mrb[0].mxu0
      %v9712 = vadd.f32 %v9351, %v9711
      %9713 = vmatprep.mubr.bf16.mxu0 %v1265
      %9714 = vmatmul.mubr.bf16.gmra.mrb[0].mxu0 %v1264
      %v9715 = vpop.f32.mrb[0].mxu0
      %v9716 = vpop.f32.mrb[0].mxu0
      %v9717 = vpop.f32.mrb[0].mxu0
      %v9718 = vpop.f32.mrb[0].mxu0
      %9719 = vmatprep.mubr.bf16.mxu0 %v1271
      %9720 = vmatmul.mubr.bf16.gmra.mrb[0].mxu0 %v1270
      %v9721 = vpop.f32.mrb[0].mxu0
      %v9722 = vadd.f32 %v9361, %v9721
      %v9723 = vpop.f32.mrb[0].mxu0
      %v9724 = vadd.f32 %v9363, %v9723
      %v9725 = vpop.f32.mrb[0].mxu0
      %v9726 = vadd.f32 %v9365, %v9725
      %v9727 = vpop.f32.mrb[0].mxu0
      %v9728 = vadd.f32 %v9367, %v9727
      %9729 = vmatprep.mubr.bf16.mxu0 %v1277
      %9730 = vmatmul.mubr.bf16.gmra.mrb[0].mxu0 %v1276
      %v9731 = vpop.f32.mrb[0].mxu0
      %v9732 = vadd.f32 %v9371, %v9731
      %v9733 = vpop.f32.mrb[0].mxu0
      %v9734 = vadd.f32 %v9373, %v9733
      %v9735 = vpop.f32.mrb[0].mxu0
      %v9736 = vadd.f32 %v9375, %v9735
      %v9737 = vpop.f32.mrb[0].mxu0
      %v9738 = vadd.f32 %v9377, %v9737
      %9739 = vmatprep.mubr.bf16.mxu0 %v1283
      %9740 = vmatmul.mubr.bf16.gmra.mrb[0].mxu0 %v1282
      %v9741 = vpop.f32.mrb[0].mxu0
      %v9742 = vadd.f32 %v9381, %v9741
      %v9743 = vpop.f32.mrb[0].mxu0
      %v9744 = vadd.f32 %v9383, %v9743
      %v9745 = vpop.f32.mrb[0].mxu0
      %v9746 = vadd.f32 %v9385, %v9745
      %v9747 = vpop.f32.mrb[0].mxu0
      %v9748 = vadd.f32 %v9387, %v9747
      %9749 = vmatprep.mubr.bf16.mxu0 %v1289
      %9750 = vmatmul.mubr.bf16.gmra.mrb[0].mxu0 %v1288
      %v9751 = vpop.f32.mrb[0].mxu0
      %v9752 = vadd.f32 %v9391, %v9751
      %v9753 = vpop.f32.mrb[0].mxu0
      %v9754 = vadd.f32 %v9393, %v9753
      %v9755 = vpop.f32.mrb[0].mxu0
      %v9756 = vpop.f32.mrb[0].mxu0
      %9757 = vmatprep.mubr.bf16.mxu0 %v1295
      %9758 = vmatmul.mubr.bf16.gmra.mrb[0].mxu0 %v1294
      %v9759 = vpop.f32.mrb[0].mxu0
      %v9760 = vpop.f32.mrb[0].mxu0
      %v9761 = vpop.f32.mrb[0].mxu0
      %v9762 = vadd.f32 %v9401, %v9761
      %v9763 = vpop.f32.mrb[0].mxu0
      %v9764 = vadd.f32 %v9403, %v9763
      %9765 = vmatprep.mubr.bf16.mxu0 %v1301
      %9766 = vmatmul.mubr.bf16.gmra.mrb[0].mxu0 %v1300
      %v9767 = vpop.f32.mrb[0].mxu0
      %v9768 = vadd.f32 %v9407, %v9767
      %v9769 = vpop.f32.mrb[0].mxu0
      %v9770 = vadd.f32 %v9409, %v9769
      %v9771 = vpop.f32.mrb[0].mxu0
      %v9772 = vadd.f32 %v9411, %v9771
      %v9773 = vpop.f32.mrb[0].mxu0
      %v9774 = vadd.f32 %v9413, %v9773
      %9775 = vmatprep.mubr.bf16.mxu0 %v1307
      %9776 = vmatmul.mubr.bf16.gmra.mrb[0].mxu0 %v1306
      %v9777 = vpop.f32.mrb[0].mxu0
      %v9778 = vadd.f32 %v9417, %v9777
      %v9779 = vpop.f32.mrb[0].mxu0
      %v9780 = vadd.f32 %v9419, %v9779
      %v9781 = vpop.f32.mrb[0].mxu0
      %v9782 = vadd.f32 %v9421, %v9781
      %v9783 = vpop.f32.mrb[0].mxu0
      %v9784 = vadd.f32 %v9423, %v9783
      %9785 = vmatprep.mubr.bf16.mxu0 %v1313
      %9786 = vmatmul.mubr.bf16.gmra.mrb[0].mxu0 %v1312
      %v9787 = vpop.f32.mrb[0].mxu0
      %v9788 = vadd.f32 %v9427, %v9787
      %v9789 = vpop.f32.mrb[0].mxu0
      %v9790 = vadd.f32 %v9429, %v9789
      %v9791 = vpop.f32.mrb[0].mxu0
      %v9792 = vadd.f32 %v9431, %v9791
      %v9793 = vpop.f32.mrb[0].mxu0
      %v9794 = vadd.f32 %v9433, %v9793
      %9795 = vmatprep.mubr.bf16.mxu0 %v1319
      %9796 = vmatmul.mubr.bf16.gmra.mrb[0].mxu0 %v1318
      %v9797 = vpop.f32.mrb[0].mxu0
      %v9798 = vpop.f32.mrb[0].mxu0
      %v9799 = vpop.f32.mrb[0].mxu0
      %v9800 = vpop.f32.mrb[0].mxu0
      %9801 = vmatprep.mubr.bf16.mxu0 %v1325
      %9802 = vmatmul.mubr.bf16.gmra.mrb[0].mxu0 %v1324
      %v9803 = vpop.f32.mrb[0].mxu0
      %v9804 = vadd.f32 %v9443, %v9803
      %v9805 = vpop.f32.mrb[0].mxu0
      %v9806 = vadd.f32 %v9445, %v9805
      %v9807 = vpop.f32.mrb[0].mxu0
      %v9808 = vadd.f32 %v9447, %v9807
      %v9809 = vpop.f32.mrb[0].mxu0
      %v9810 = vadd.f32 %v9449, %v9809
      %9811 = vmatprep.mubr.bf16.mxu0 %v1331
      %9812 = vmatmul.mubr.bf16.gmra.mrb[0].mxu0 %v1330
      %v9813 = vpop.f32.mrb[0].mxu0
      %v9814 = vadd.f32 %v9453, %v9813
      %v9815 = vpop.f32.mrb[0].mxu0
      %v9816 = vadd.f32 %v9455, %v9815
      %v9817 = vpop.f32.mrb[0].mxu0
      %v9818 = vadd.f32 %v9457, %v9817
      %v9819 = vpop.f32.mrb[0].mxu0
      %v9820 = vadd.f32 %v9459, %v9819
      %9821 = vmatprep.mubr.bf16.mxu0 %v1337
      %9822 = vmatmul.mubr.bf16.gmra.mrb[0].mxu0 %v1336
      %v9823 = vpop.f32.mrb[0].mxu0
      %v9824 = vadd.f32 %v9463, %v9823
      %v9825 = vpop.f32.mrb[0].mxu0
      %v9826 = vadd.f32 %v9465, %v9825
      %v9827 = vpop.f32.mrb[0].mxu0
      %v9828 = vadd.f32 %v9467, %v9827
      %v9829 = vpop.f32.mrb[0].mxu0
      %v9830 = vadd.f32 %v9469, %v9829
      %9831 = vmatprep.mubr.bf16.mxu0 %v1343
      %9832 = vmatmul.mubr.bf16.gmra.mrb[0].mxu0 %v1342
      %v9833 = vpop.f32.mrb[0].mxu0
      %v9834 = vadd.f32 %v9473, %v9833
      %v9835 = vpop.f32.mrb[0].mxu0
      %v9836 = vadd.f32 %v9475, %v9835
      %v9837 = vpop.f32.mrb[0].mxu0
      %v9838 = vpop.f32.mrb[0].mxu0
      %9839 = vmatprep.mubr.bf16.mxu0 %v1349
      %9840 = vmatmul.mubr.bf16.gmra.mrb[0].mxu0 %v1348
      %v9841 = vpop.f32.mrb[0].mxu0
      %v9842 = vpop.f32.mrb[0].mxu0
      %v9843 = vpop.f32.mrb[0].mxu0
      %v9844 = vadd.f32 %v9483, %v9843
      %v9845 = vpop.f32.mrb[0].mxu0
      %v9846 = vadd.f32 %v9485, %v9845
      %9847 = vmatprep.mubr.bf16.mxu0 %v1355
      %9848 = vmatmul.mubr.bf16.gmra.mrb[0].mxu0 %v1354
      %v9849 = vpop.f32.mrb[0].mxu0
      %v9850 = vadd.f32 %v9489, %v9849
      %v9851 = vpop.f32.mrb[0].mxu0
      %v9852 = vadd.f32 %v9491, %v9851
      %v9853 = vpop.f32.mrb[0].mxu0
      %v9854 = vadd.f32 %v9493, %v9853
      %v9855 = vpop.f32.mrb[0].mxu0
      %v9856 = vadd.f32 %v9495, %v9855
      %9857 = vmatprep.mubr.bf16.mxu0 %v1361
      %9858 = vmatmul.mubr.bf16.gmra.mrb[0].mxu0 %v1360
      %v9859 = vpop.f32.mrb[0].mxu0
      %v9860 = vadd.f32 %v9499, %v9859
      %v9861 = vpop.f32.mrb[0].mxu0
      %v9862 = vadd.f32 %v9501, %v9861
      %v9863 = vpop.f32.mrb[0].mxu0
      %v9864 = vadd.f32 %v9503, %v9863
      %v9865 = vpop.f32.mrb[0].mxu0
      %v9866 = vadd.f32 %v9505, %v9865
      %9867 = vmatprep.mubr.bf16.mxu0 %v1367
      %9868 = vmatmul.mubr.bf16.gmra.mrb[0].mxu0 %v1366
      %v9869 = vpop.f32.mrb[0].mxu0
      %v9870 = vadd.f32 %v9509, %v9869
      %v9871 = vpop.f32.mrb[0].mxu0
      %v9872 = vadd.f32 %v9511, %v9871
      %v9873 = vpop.f32.mrb[0].mxu0
      %v9874 = vadd.f32 %v9513, %v9873
      %v9875 = vpop.f32.mrb[0].mxu0
      %v9876 = vadd.f32 %v9515, %v9875
      %9877 = vmatprep.mubr.bf16.mxu0 %v1373
      %9878 = vmatmul.mubr.bf16.gmra.mrb[0].mxu0 %v1372
      %v9879 = vpop.f32.mrb[0].mxu0
      %v9880 = vpop.f32.mrb[0].mxu0
      %v9881 = vpop.f32.mrb[0].mxu0
      %v9882 = vpop.f32.mrb[0].mxu0
      %9883 = vmatprep.mubr.bf16.mxu0 %v1379
      %9884 = vmatmul.mubr.bf16.gmra.mrb[0].mxu0 %v1378
      %v9885 = vpop.f32.mrb[0].mxu0
      %v9886 = vadd.f32 %v9525, %v9885
      %v9887 = vpop.f32.mrb[0].mxu0
      %v9888 = vadd.f32 %v9527, %v9887
      %v9889 = vpop.f32.mrb[0].mxu0
      %v9890 = vadd.f32 %v9529, %v9889
      %v9891 = vpop.f32.mrb[0].mxu0
      %v9892 = vadd.f32 %v9531, %v9891
      %9893 = vmatprep.mubr.bf16.mxu0 %v1385
      %9894 = vmatmul.mubr.bf16.gmra.mrb[0].mxu0 %v1384
      %v9895 = vpop.f32.mrb[0].mxu0
      %v9896 = vadd.f32 %v9535, %v9895
      %v9897 = vpop.f32.mrb[0].mxu0
      %v9898 = vadd.f32 %v9537, %v9897
      %v9899 = vpop.f32.mrb[0].mxu0
      %v9900 = vadd.f32 %v9539, %v9899
      %v9901 = vpop.f32.mrb[0].mxu0
      %v9902 = vadd.f32 %v9541, %v9901
      %9903 = vmatprep.mubr.bf16.mxu0 %v1391
      %9904 = vmatmul.mubr.bf16.gmra.mrb[0].mxu0 %v1390
      %v9905 = vpop.f32.mrb[0].mxu0
      %v9906 = vadd.f32 %v9545, %v9905
      %v9907 = vpop.f32.mrb[0].mxu0
      %v9908 = vadd.f32 %v9547, %v9907
      %v9909 = vpop.f32.mrb[0].mxu0
      %v9910 = vadd.f32 %v9549, %v9909
      %v9911 = vpop.f32.mrb[0].mxu0
      %v9912 = vadd.f32 %v9551, %v9911
      %9913 = vmatprep.mubr.bf16.mxu0 %v1397
      %9914 = vmatmul.mubr.bf16.gmra.mrb[0].mxu0 %v1396
      %v9915 = vpop.f32.mrb[0].mxu0
      %v9916 = vadd.f32 %v9555, %v9915
      %v9917 = vpop.f32.mrb[0].mxu0
      %v9918 = vadd.f32 %v9557, %v9917
      %v9919 = vpop.f32.mrb[0].mxu0
      %v9920 = vpop.f32.mrb[0].mxu0
      %9921 = vmatprep.mubr.bf16.mxu0 %v1403
      %9922 = vmatmul.mubr.bf16.gmra.mrb[0].mxu0 %v1402
      %v9923 = vpop.f32.mrb[0].mxu0
      %v9924 = vpop.f32.mrb[0].mxu0
      %v9925 = vpop.f32.mrb[0].mxu0
      %v9926 = vadd.f32 %v9565, %v9925
      %v9927 = vpop.f32.mrb[0].mxu0
      %v9928 = vadd.f32 %v9567, %v9927
      %9929 = vmatprep.mubr.bf16.mxu0 %v1409
      %9930 = vmatmul.mubr.bf16.gmra.mrb[0].mxu0 %v1408
      %v9931 = vpop.f32.mrb[0].mxu0
      %v9932 = vadd.f32 %v9571, %v9931
      %v9933 = vpop.f32.mrb[0].mxu0
      %v9934 = vadd.f32 %v9573, %v9933
      %v9935 = vpop.f32.mrb[0].mxu0
      %v9936 = vadd.f32 %v9575, %v9935
      %v9937 = vpop.f32.mrb[0].mxu0
      %v9938 = vadd.f32 %v9577, %v9937
      %9939 = vmatprep.mubr.bf16.mxu0 %v1415
      %9940 = vmatmul.mubr.bf16.gmra.mrb[0].mxu0 %v1414
      %v9941 = vpop.f32.mrb[0].mxu0
      %v9942 = vadd.f32 %v9581, %v9941
      %v9943 = vpop.f32.mrb[0].mxu0
      %v9944 = vadd.f32 %v9583, %v9943
      %v9945 = vpop.f32.mrb[0].mxu0
      %v9946 = vadd.f32 %v9585, %v9945
      %v9947 = vpop.f32.mrb[0].mxu0
      %v9948 = vadd.f32 %v9587, %v9947
      %9949 = vmatprep.mubr.bf16.mxu0 %v1421
      %9950 = vmatmul.mubr.bf16.gmra.mrb[0].mxu0 %v1420
      %v9951 = vpop.f32.mrb[0].mxu0
      %v9952 = vadd.f32 %v9591, %v9951
      %v9953 = vpop.f32.mrb[0].mxu0
      %v9954 = vadd.f32 %v9593, %v9953
      %v9955 = vpop.f32.mrb[0].mxu0
      %v9956 = vadd.f32 %v9595, %v9955
      %v9957 = vpop.f32.mrb[0].mxu0
      %v9958 = vadd.f32 %v9597, %v9957
      %9959 = vdwg.mxu0
      %9960 = vmatprep.subr.bf16.mxu0 %v8983
      %9961 = vmatpush1.bf16.msra.mxu0 %v8982
      %9962 = vmatprep.subr.bf16.mxu0 %v8987
      %9963 = vmatpush1.bf16.msra.mxu0 %v8986
      %9964 = vmatprep.subr.bf16.mxu0 %v8991
      %9965 = vmatpush1.bf16.msra.mxu0 %v8990
      %9966 = vmatprep.subr.bf16.mxu0 %v8995
      %9967 = vmatpush1.bf16.msra.mxu0 %v8994
      %9968 = vmatprep.subr.bf16.mxu0 %v8999
      %9969 = vmatpush1.bf16.msra.mxu0 %v8998
      %9970 = vmatprep.subr.bf16.mxu0 %v9003
      %9971 = vmatpush1.bf16.msra.mxu0 %v9002
      %9972 = vmatprep.subr.bf16.mxu0 %v9007
      %9973 = vmatpush1.bf16.msra.mxu0 %v9006
      %9974 = vmatprep.subr.bf16.mxu0 %v9011
      %9975 = vmatpush1.bf16.msra.mxu0 %v9010
      %9976 = vmatprep.subr.bf16.mxu0 %v9015
      %9977 = vmatpush1.bf16.msra.mxu0 %v9014
      %9978 = vmatprep.subr.bf16.mxu0 %v9019
      %9979 = vmatpush1.bf16.msra.mxu0 %v9018
      %9980 = vmatprep.subr.bf16.mxu0 %v9023
      %9981 = vmatpush1.bf16.msra.mxu0 %v9022
      %9982 = vmatprep.subr.bf16.mxu0 %v9027
      %9983 = vmatpush1.bf16.msra.mxu0 %v9026
      %9984 = vmatprep.subr.bf16.mxu0 %v9031
      %9985 = vmatpush1.bf16.msra.mxu0 %v9030
      %9986 = vmatprep.subr.bf16.mxu0 %v9035
      %9987 = vmatpush1.bf16.msra.mxu0 %v9034
      %9988 = vmatprep.subr.bf16.mxu0 %v9039
      %9989 = vmatpush1.bf16.msra.mxu0 %v9038
      %9990 = vmatprep.subr.bf16.mxu0 %v9043
      %9991 = vmatpush1.bf16.msra.mxu0 %v9042
      %9992 = vmatprep.mubr.bf16.mxu0 %v1213
      %9993 = vmatmul.mubr.bf16.gmra.mrb[0].mxu0 %v1212
      %v9994 = vpop.f32.mrb[0].mxu0
      %v9995 = vpop.f32.mrb[0].mxu0
      %v9996 = vpop.f32.mrb[0].mxu0
      %v9997 = vpop.f32.mrb[0].mxu0
      %9998 = vmatprep.mubr.bf16.mxu0 %v1219
      %9999 = vmatmul.mubr.bf16.gmra.mrb[0].mxu0 %v1218
      %v10000 = vpop.f32.mrb[0].mxu0
      %v10001 = vadd.f32 %v9640, %v10000
      %v10002 = vpop.f32.mrb[0].mxu0
      %v10003 = vadd.f32 %v9642, %v10002
      %v10004 = vpop.f32.mrb[0].mxu0
      %v10005 = vadd.f32 %v9644, %v10004
      %v10006 = vpop.f32.mrb[0].mxu0
      %v10007 = vadd.f32 %v9646, %v10006
      %10008 = vmatprep.mubr.bf16.mxu0 %v1225
      %10009 = vmatmul.mubr.bf16.gmra.mrb[0].mxu0 %v1224
      %v10010 = vpop.f32.mrb[0].mxu0
      %v10011 = vadd.f32 %v9650, %v10010
      %v10012 = vpop.f32.mrb[0].mxu0
      %v10013 = vadd.f32 %v9652, %v10012
      %v10014 = vpop.f32.mrb[0].mxu0
      %v10015 = vadd.f32 %v9654, %v10014
      %v10016 = vpop.f32.mrb[0].mxu0
      %v10017 = vadd.f32 %v9656, %v10016
      %10018 = vmatprep.mubr.bf16.mxu0 %v1231
      %10019 = vmatmul.mubr.bf16.gmra.mrb[0].mxu0 %v1230
      %v10020 = vpop.f32.mrb[0].mxu0
      %v10021 = vadd.f32 %v9660, %v10020
      %v10022 = vpop.f32.mrb[0].mxu0
      %v10023 = vadd.f32 %v9662, %v10022
      %v10024 = vpop.f32.mrb[0].mxu0
      %v10025 = vadd.f32 %v9664, %v10024
      %v10026 = vpop.f32.mrb[0].mxu0
      %v10027 = vadd.f32 %v9666, %v10026
      %10028 = vmatprep.mubr.bf16.mxu0 %v1237
      %10029 = vmatmul.mubr.bf16.gmra.mrb[0].mxu0 %v1236
      %v10030 = vpop.f32.mrb[0].mxu0
      %v10031 = vadd.f32 %v9670, %v10030
      %v10032 = vpop.f32.mrb[0].mxu0
      %v10033 = vadd.f32 %v9672, %v10032
      %v10034 = vpop.f32.mrb[0].mxu0
      %v10035 = vpop.f32.mrb[0].mxu0
      %10036 = vmatprep.mubr.bf16.mxu0 %v1243
      %10037 = vmatmul.mubr.bf16.gmra.mrb[0].mxu0 %v1242
      %v10038 = vpop.f32.mrb[0].mxu0
      %v10039 = vpop.f32.mrb[0].mxu0
      %v10040 = vpop.f32.mrb[0].mxu0
      %v10041 = vadd.f32 %v9680, %v10040
      %v10042 = vpop.f32.mrb[0].mxu0
      %v10043 = vadd.f32 %v9682, %v10042
      %10044 = vmatprep.mubr.bf16.mxu0 %v1249
      %10045 = vmatmul.mubr.bf16.gmra.mrb[0].mxu0 %v1248
      %v10046 = vpop.f32.mrb[0].mxu0
      %v10047 = vadd.f32 %v9686, %v10046
      %v10048 = vpop.f32.mrb[0].mxu0
      %v10049 = vadd.f32 %v9688, %v10048
      %v10050 = vpop.f32.mrb[0].mxu0
      %v10051 = vadd.f32 %v9690, %v10050
      %v10052 = vpop.f32.mrb[0].mxu0
      %v10053 = vadd.f32 %v9692, %v10052
      %10054 = vmatprep.mubr.bf16.mxu0 %v1255
      %10055 = vmatmul.mubr.bf16.gmra.mrb[0].mxu0 %v1254
      %v10056 = vpop.f32.mrb[0].mxu0
      %v10057 = vadd.f32 %v9696, %v10056
      %v10058 = vpop.f32.mrb[0].mxu0
      %v10059 = vadd.f32 %v9698, %v10058
      %v10060 = vpop.f32.mrb[0].mxu0
      %v10061 = vadd.f32 %v9700, %v10060
      %v10062 = vpop.f32.mrb[0].mxu0
      %v10063 = vadd.f32 %v9702, %v10062
      %10064 = vmatprep.mubr.bf16.mxu0 %v1261
      %10065 = vmatmul.mubr.bf16.gmra.mrb[0].mxu0 %v1260
      %v10066 = vpop.f32.mrb[0].mxu0
      %v10067 = vadd.f32 %v9706, %v10066
      %v10068 = vpop.f32.mrb[0].mxu0
      %v10069 = vadd.f32 %v9708, %v10068
      %v10070 = vpop.f32.mrb[0].mxu0
      %v10071 = vadd.f32 %v9710, %v10070
      %v10072 = vpop.f32.mrb[0].mxu0
      %v10073 = vadd.f32 %v9712, %v10072
      %10074 = vmatprep.mubr.bf16.mxu0 %v1267
      %10075 = vmatmul.mubr.bf16.gmra.mrb[0].mxu0 %v1266
      %v10076 = vpop.f32.mrb[0].mxu0
      %v10077 = vpop.f32.mrb[0].mxu0
      %v10078 = vpop.f32.mrb[0].mxu0
      %v10079 = vpop.f32.mrb[0].mxu0
      %10080 = vmatprep.mubr.bf16.mxu0 %v1273
      %10081 = vmatmul.mubr.bf16.gmra.mrb[0].mxu0 %v1272
      %v10082 = vpop.f32.mrb[0].mxu0
      %v10083 = vadd.f32 %v9722, %v10082
      %v10084 = vpop.f32.mrb[0].mxu0
      %v10085 = vadd.f32 %v9724, %v10084
      %v10086 = vpop.f32.mrb[0].mxu0
      %v10087 = vadd.f32 %v9726, %v10086
      %v10088 = vpop.f32.mrb[0].mxu0
      %v10089 = vadd.f32 %v9728, %v10088
      %10090 = vmatprep.mubr.bf16.mxu0 %v1279
      %10091 = vmatmul.mubr.bf16.gmra.mrb[0].mxu0 %v1278
      %v10092 = vpop.f32.mrb[0].mxu0
      %v10093 = vadd.f32 %v9732, %v10092
      %v10094 = vpop.f32.mrb[0].mxu0
      %v10095 = vadd.f32 %v9734, %v10094
      %v10096 = vpop.f32.mrb[0].mxu0
      %v10097 = vadd.f32 %v9736, %v10096
      %v10098 = vpop.f32.mrb[0].mxu0
      %v10099 = vadd.f32 %v9738, %v10098
      %10100 = vmatprep.mubr.bf16.mxu0 %v1285
      %10101 = vmatmul.mubr.bf16.gmra.mrb[0].mxu0 %v1284
      %v10102 = vpop.f32.mrb[0].mxu0
      %v10103 = vadd.f32 %v9742, %v10102
      %v10104 = vpop.f32.mrb[0].mxu0
      %v10105 = vadd.f32 %v9744, %v10104
      %v10106 = vpop.f32.mrb[0].mxu0
      %v10107 = vadd.f32 %v9746, %v10106
      %v10108 = vpop.f32.mrb[0].mxu0
      %v10109 = vadd.f32 %v9748, %v10108
      %10110 = vmatprep.mubr.bf16.mxu0 %v1291
      %10111 = vmatmul.mubr.bf16.gmra.mrb[0].mxu0 %v1290
      %v10112 = vpop.f32.mrb[0].mxu0
      %v10113 = vadd.f32 %v9752, %v10112
      %v10114 = vpop.f32.mrb[0].mxu0
      %v10115 = vadd.f32 %v9754, %v10114
      %v10116 = vpop.f32.mrb[0].mxu0
      %v10117 = vpop.f32.mrb[0].mxu0
      %10118 = vmatprep.mubr.bf16.mxu0 %v1297
      %10119 = vmatmul.mubr.bf16.gmra.mrb[0].mxu0 %v1296
      %v10120 = vpop.f32.mrb[0].mxu0
      %v10121 = vpop.f32.mrb[0].mxu0
      %v10122 = vpop.f32.mrb[0].mxu0
      %v10123 = vadd.f32 %v9762, %v10122
      %v10124 = vpop.f32.mrb[0].mxu0
      %v10125 = vadd.f32 %v9764, %v10124
      %10126 = vmatprep.mubr.bf16.mxu0 %v1303
      %10127 = vmatmul.mubr.bf16.gmra.mrb[0].mxu0 %v1302
      %v10128 = vpop.f32.mrb[0].mxu0
      %v10129 = vadd.f32 %v9768, %v10128
      %v10130 = vpop.f32.mrb[0].mxu0
      %v10131 = vadd.f32 %v9770, %v10130
      %v10132 = vpop.f32.mrb[0].mxu0
      %v10133 = vadd.f32 %v9772, %v10132
      %v10134 = vpop.f32.mrb[0].mxu0
      %v10135 = vadd.f32 %v9774, %v10134
      %10136 = vmatprep.mubr.bf16.mxu0 %v1309
      %10137 = vmatmul.mubr.bf16.gmra.mrb[0].mxu0 %v1308
      %v10138 = vpop.f32.mrb[0].mxu0
      %v10139 = vadd.f32 %v9778, %v10138
      %v10140 = vpop.f32.mrb[0].mxu0
      %v10141 = vadd.f32 %v9780, %v10140
      %v10142 = vpop.f32.mrb[0].mxu0
      %v10143 = vadd.f32 %v9782, %v10142
      %v10144 = vpop.f32.mrb[0].mxu0
      %v10145 = vadd.f32 %v9784, %v10144
      %10146 = vmatprep.mubr.bf16.mxu0 %v1315
      %10147 = vmatmul.mubr.bf16.gmra.mrb[0].mxu0 %v1314
      %v10148 = vpop.f32.mrb[0].mxu0
      %v10149 = vadd.f32 %v9788, %v10148
      %v10150 = vpop.f32.mrb[0].mxu0
      %v10151 = vadd.f32 %v9790, %v10150
      %v10152 = vpop.f32.mrb[0].mxu0
      %v10153 = vadd.f32 %v9792, %v10152
      %v10154 = vpop.f32.mrb[0].mxu0
      %v10155 = vadd.f32 %v9794, %v10154
      %10156 = vmatprep.mubr.bf16.mxu0 %v1321
      %10157 = vmatmul.mubr.bf16.gmra.mrb[0].mxu0 %v1320
      %v10158 = vpop.f32.mrb[0].mxu0
      %v10159 = vpop.f32.mrb[0].mxu0
      %v10160 = vpop.f32.mrb[0].mxu0
      %v10161 = vpop.f32.mrb[0].mxu0
      %10162 = vmatprep.mubr.bf16.mxu0 %v1327
      %10163 = vmatmul.mubr.bf16.gmra.mrb[0].mxu0 %v1326
      %v10164 = vpop.f32.mrb[0].mxu0
      %v10165 = vadd.f32 %v9804, %v10164
      %v10166 = vpop.f32.mrb[0].mxu0
      %v10167 = vadd.f32 %v9806, %v10166
      %v10168 = vpop.f32.mrb[0].mxu0
      %v10169 = vadd.f32 %v9808, %v10168
      %v10170 = vpop.f32.mrb[0].mxu0
      %v10171 = vadd.f32 %v9810, %v10170
      %10172 = vmatprep.mubr.bf16.mxu0 %v1333
      %10173 = vmatmul.mubr.bf16.gmra.mrb[0].mxu0 %v1332
      %v10174 = vpop.f32.mrb[0].mxu0
      %v10175 = vadd.f32 %v9814, %v10174
      %v10176 = vpop.f32.mrb[0].mxu0
      %v10177 = vadd.f32 %v9816, %v10176
      %v10178 = vpop.f32.mrb[0].mxu0
      %v10179 = vadd.f32 %v9818, %v10178
      %v10180 = vpop.f32.mrb[0].mxu0
      %v10181 = vadd.f32 %v9820, %v10180
      %10182 = vmatprep.mubr.bf16.mxu0 %v1339
      %10183 = vmatmul.mubr.bf16.gmra.mrb[0].mxu0 %v1338
      %v10184 = vpop.f32.mrb[0].mxu0
      %v10185 = vadd.f32 %v9824, %v10184
      %v10186 = vpop.f32.mrb[0].mxu0
      %v10187 = vadd.f32 %v9826, %v10186
      %v10188 = vpop.f32.mrb[0].mxu0
      %v10189 = vadd.f32 %v9828, %v10188
      %v10190 = vpop.f32.mrb[0].mxu0
      %v10191 = vadd.f32 %v9830, %v10190
      %10192 = vmatprep.mubr.bf16.mxu0 %v1345
      %10193 = vmatmul.mubr.bf16.gmra.mrb[0].mxu0 %v1344
      %v10194 = vpop.f32.mrb[0].mxu0
      %v10195 = vadd.f32 %v9834, %v10194
      %v10196 = vpop.f32.mrb[0].mxu0
      %v10197 = vadd.f32 %v9836, %v10196
      %v10198 = vpop.f32.mrb[0].mxu0
      %v10199 = vpop.f32.mrb[0].mxu0
      %10200 = vmatprep.mubr.bf16.mxu0 %v1351
      %10201 = vmatmul.mubr.bf16.gmra.mrb[0].mxu0 %v1350
      %v10202 = vpop.f32.mrb[0].mxu0
      %v10203 = vpop.f32.mrb[0].mxu0
      %v10204 = vpop.f32.mrb[0].mxu0
      %v10205 = vadd.f32 %v9844, %v10204
      %v10206 = vpop.f32.mrb[0].mxu0
      %v10207 = vadd.f32 %v9846, %v10206
      %10208 = vmatprep.mubr.bf16.mxu0 %v1357
      %10209 = vmatmul.mubr.bf16.gmra.mrb[0].mxu0 %v1356
      %v10210 = vpop.f32.mrb[0].mxu0
      %v10211 = vadd.f32 %v9850, %v10210
      %v10212 = vpop.f32.mrb[0].mxu0
      %v10213 = vadd.f32 %v9852, %v10212
      %v10214 = vpop.f32.mrb[0].mxu0
      %v10215 = vadd.f32 %v9854, %v10214
      %v10216 = vpop.f32.mrb[0].mxu0
      %v10217 = vadd.f32 %v9856, %v10216
      %10218 = vmatprep.mubr.bf16.mxu0 %v1363
      %10219 = vmatmul.mubr.bf16.gmra.mrb[0].mxu0 %v1362
      %v10220 = vpop.f32.mrb[0].mxu0
      %v10221 = vadd.f32 %v9860, %v10220
      %v10222 = vpop.f32.mrb[0].mxu0
      %v10223 = vadd.f32 %v9862, %v10222
      %v10224 = vpop.f32.mrb[0].mxu0
      %v10225 = vadd.f32 %v9864, %v10224
      %v10226 = vpop.f32.mrb[0].mxu0
      %v10227 = vadd.f32 %v9866, %v10226
      %10228 = vmatprep.mubr.bf16.mxu0 %v1369
      %10229 = vmatmul.mubr.bf16.gmra.mrb[0].mxu0 %v1368
      %v10230 = vpop.f32.mrb[0].mxu0
      %v10231 = vadd.f32 %v9870, %v10230
      %v10232 = vpop.f32.mrb[0].mxu0
      %v10233 = vadd.f32 %v9872, %v10232
      %v10234 = vpop.f32.mrb[0].mxu0
      %v10235 = vadd.f32 %v9874, %v10234
      %v10236 = vpop.f32.mrb[0].mxu0
      %v10237 = vadd.f32 %v9876, %v10236
      %10238 = vmatprep.mubr.bf16.mxu0 %v1375
      %10239 = vmatmul.mubr.bf16.gmra.mrb[0].mxu0 %v1374
      %v10240 = vpop.f32.mrb[0].mxu0
      %v10241 = vpop.f32.mrb[0].mxu0
      %v10242 = vpop.f32.mrb[0].mxu0
      %v10243 = vpop.f32.mrb[0].mxu0
      %10244 = vmatprep.mubr.bf16.mxu0 %v1381
      %10245 = vmatmul.mubr.bf16.gmra.mrb[0].mxu0 %v1380
      %v10246 = vpop.f32.mrb[0].mxu0
      %v10247 = vadd.f32 %v9886, %v10246
      %v10248 = vpop.f32.mrb[0].mxu0
      %v10249 = vadd.f32 %v9888, %v10248
      %v10250 = vpop.f32.mrb[0].mxu0
      %v10251 = vadd.f32 %v9890, %v10250
      %v10252 = vpop.f32.mrb[0].mxu0
      %v10253 = vadd.f32 %v9892, %v10252
      %10254 = vmatprep.mubr.bf16.mxu0 %v1387
      %10255 = vmatmul.mubr.bf16.gmra.mrb[0].mxu0 %v1386
      %v10256 = vpop.f32.mrb[0].mxu0
      %v10257 = vadd.f32 %v9896, %v10256
      %v10258 = vpop.f32.mrb[0].mxu0
      %v10259 = vadd.f32 %v9898, %v10258
      %v10260 = vpop.f32.mrb[0].mxu0
      %v10261 = vadd.f32 %v9900, %v10260
      %v10262 = vpop.f32.mrb[0].mxu0
      %v10263 = vadd.f32 %v9902, %v10262
      %10264 = vmatprep.mubr.bf16.mxu0 %v1393
      %10265 = vmatmul.mubr.bf16.gmra.mrb[0].mxu0 %v1392
      %v10266 = vpop.f32.mrb[0].mxu0
      %v10267 = vadd.f32 %v9906, %v10266
      %v10268 = vpop.f32.mrb[0].mxu0
      %v10269 = vadd.f32 %v9908, %v10268
      %v10270 = vpop.f32.mrb[0].mxu0
      %v10271 = vadd.f32 %v9910, %v10270
      %v10272 = vpop.f32.mrb[0].mxu0
      %v10273 = vadd.f32 %v9912, %v10272
      %10274 = vmatprep.mubr.bf16.mxu0 %v1399
      %10275 = vmatmul.mubr.bf16.gmra.mrb[0].mxu0 %v1398
      %v10276 = vpop.f32.mrb[0].mxu0
      %v10277 = vadd.f32 %v9916, %v10276
      %v10278 = vpop.f32.mrb[0].mxu0
      %v10279 = vadd.f32 %v9918, %v10278
      %v10280 = vpop.f32.mrb[0].mxu0
      %v10281 = vpop.f32.mrb[0].mxu0
      %10282 = vmatprep.mubr.bf16.mxu0 %v1405
      %10283 = vmatmul.mubr.bf16.gmra.mrb[0].mxu0 %v1404
      %v10284 = vpop.f32.mrb[0].mxu0
      %v10285 = vpop.f32.mrb[0].mxu0
      %v10286 = vpop.f32.mrb[0].mxu0
      %v10287 = vadd.f32 %v9926, %v10286
      %v10288 = vpop.f32.mrb[0].mxu0
      %v10289 = vadd.f32 %v9928, %v10288
      %10290 = vmatprep.mubr.bf16.mxu0 %v1411
      %10291 = vmatmul.mubr.bf16.gmra.mrb[0].mxu0 %v1410
      %v10292 = vpop.f32.mrb[0].mxu0
      %v10293 = vadd.f32 %v9932, %v10292
      %v10294 = vpop.f32.mrb[0].mxu0
      %v10295 = vadd.f32 %v9934, %v10294
      %v10296 = vpop.f32.mrb[0].mxu0
      %v10297 = vadd.f32 %v9936, %v10296
      %v10298 = vpop.f32.mrb[0].mxu0
      %v10299 = vadd.f32 %v9938, %v10298
      %10300 = vmatprep.mubr.bf16.mxu0 %v1417
      %10301 = vmatmul.mubr.bf16.gmra.mrb[0].mxu0 %v1416
      %v10302 = vpop.f32.mrb[0].mxu0
      %v10303 = vadd.f32 %v9942, %v10302
      %v10304 = vpop.f32.mrb[0].mxu0
      %v10305 = vadd.f32 %v9944, %v10304
      %v10306 = vpop.f32.mrb[0].mxu0
      %v10307 = vadd.f32 %v9946, %v10306
      %v10308 = vpop.f32.mrb[0].mxu0
      %v10309 = vadd.f32 %v9948, %v10308
      %10310 = vmatprep.mubr.bf16.mxu0 %v1423
      %10311 = vmatmul.mubr.bf16.gmra.mrb[0].mxu0 %v1422
      %v10312 = vpop.f32.mrb[0].mxu0
      %v10313 = vadd.f32 %v9952, %v10312
      %v10314 = vpop.f32.mrb[0].mxu0
      %v10315 = vadd.f32 %v9954, %v10314
      %v10316 = vpop.f32.mrb[0].mxu0
      %v10317 = vadd.f32 %v9956, %v10316
      %v10318 = vpop.f32.mrb[0].mxu0
      %v10319 = vadd.f32 %v9958, %v10318
      %10320 = vdwg.mxu0
      %10321 = vmatprep.subr.bf16.mxu0 %v8857
      %10322 = vmatpush1.bf16.msra.mxu0 %v8856
      %10323 = vmatprep.subr.bf16.mxu0 %v8861
      %10324 = vmatpush1.bf16.msra.mxu0 %v8860
      %10325 = vmatprep.subr.bf16.mxu0 %v8865
      %10326 = vmatpush1.bf16.msra.mxu0 %v8864
      %10327 = vmatprep.subr.bf16.mxu0 %v8869
      %10328 = vmatpush1.bf16.msra.mxu0 %v8868
      %10329 = vmatprep.subr.bf16.mxu0 %v8873
      %10330 = vmatpush1.bf16.msra.mxu0 %v8872
      %10331 = vmatprep.subr.bf16.mxu0 %v8877
      %10332 = vmatpush1.bf16.msra.mxu0 %v8876
      %10333 = vmatprep.subr.bf16.mxu0 %v8881
      %10334 = vmatpush1.bf16.msra.mxu0 %v8880
      %10335 = vmatprep.subr.bf16.mxu0 %v8885
      %10336 = vmatpush1.bf16.msra.mxu0 %v8884
      %10337 = vmatprep.subr.bf16.mxu0 %v8889
      %10338 = vmatpush1.bf16.msra.mxu0 %v8888
      %10339 = vmatprep.subr.bf16.mxu0 %v8893
      %10340 = vmatpush1.bf16.msra.mxu0 %v8892
      %10341 = vmatprep.subr.bf16.mxu0 %v8897
      %10342 = vmatpush1.bf16.msra.mxu0 %v8896
      %10343 = vmatprep.subr.bf16.mxu0 %v8901
      %10344 = vmatpush1.bf16.msra.mxu0 %v8900
      %10345 = vmatprep.subr.bf16.mxu0 %v8905
      %10346 = vmatpush1.bf16.msra.mxu0 %v8904
      %10347 = vmatprep.subr.bf16.mxu0 %v8909
      %10348 = vmatpush1.bf16.msra.mxu0 %v8908
      %10349 = vmatprep.subr.bf16.mxu0 %v8913
      %10350 = vmatpush1.bf16.msra.mxu0 %v8912
      %10351 = vmatprep.subr.bf16.mxu0 %v8917
      %10352 = vmatpush1.bf16.msra.mxu0 %v8916
      %10353 = vmatprep.mubr.bf16.mxu0 %v1209
      %10354 = vmatmul.mubr.bf16.gmra.mrb[0].mxu0 %v1208
      %v10355 = vpop.f32.mrb[0].mxu0
      %v10356 = vpop.f32.mrb[0].mxu0
      %v10357 = vpop.f32.mrb[0].mxu0
      %v10358 = vpop.f32.mrb[0].mxu0
      %10359 = vmatprep.mubr.bf16.mxu0 %v1215
      %10360 = vmatmul.mubr.bf16.gmra.mrb[0].mxu0 %v1214
      %v10361 = vpop.f32.mrb[0].mxu0
      %v10362 = vadd.f32 0.0, %v10361
      %v10363 = vpop.f32.mrb[0].mxu0
      %v10364 = vadd.f32 0.0, %v10363
      %v10365 = vpop.f32.mrb[0].mxu0
      %v10366 = vadd.f32 0.0, %v10365
      %v10367 = vpop.f32.mrb[0].mxu0
      %v10368 = vadd.f32 0.0, %v10367
      %10369 = vmatprep.mubr.bf16.mxu0 %v1221
      %10370 = vmatmul.mubr.bf16.gmra.mrb[0].mxu0 %v1220
      %v10371 = vpop.f32.mrb[0].mxu0
      %v10372 = vadd.f32 0.0, %v10371
      %v10373 = vpop.f32.mrb[0].mxu0
      %v10374 = vadd.f32 0.0, %v10373
      %v10375 = vpop.f32.mrb[0].mxu0
      %v10376 = vadd.f32 0.0, %v10375
      %v10377 = vpop.f32.mrb[0].mxu0
      %v10378 = vadd.f32 0.0, %v10377
      %10379 = vmatprep.mubr.bf16.mxu0 %v1227
      %10380 = vmatmul.mubr.bf16.gmra.mrb[0].mxu0 %v1226
      %v10381 = vpop.f32.mrb[0].mxu0
      %v10382 = vadd.f32 0.0, %v10381
      %v10383 = vpop.f32.mrb[0].mxu0
      %v10384 = vadd.f32 0.0, %v10383
      %v10385 = vpop.f32.mrb[0].mxu0
      %v10386 = vadd.f32 0.0, %v10385
      %v10387 = vpop.f32.mrb[0].mxu0
      %v10388 = vadd.f32 0.0, %v10387
      %10389 = vmatprep.mubr.bf16.mxu0 %v1233
      %10390 = vmatmul.mubr.bf16.gmra.mrb[0].mxu0 %v1232
      %v10391 = vpop.f32.mrb[0].mxu0
      %v10392 = vadd.f32 0.0, %v10391
      %v10393 = vpop.f32.mrb[0].mxu0
      %v10394 = vadd.f32 0.0, %v10393
      %v10395 = vpop.f32.mrb[0].mxu0
      %v10396 = vpop.f32.mrb[0].mxu0
      %10397 = vmatprep.mubr.bf16.mxu0 %v1239
      %10398 = vmatmul.mubr.bf16.gmra.mrb[0].mxu0 %v1238
      %v10399 = vpop.f32.mrb[0].mxu0
      %v10400 = vpop.f32.mrb[0].mxu0
      %v10401 = vpop.f32.mrb[0].mxu0
      %v10402 = vadd.f32 0.0, %v10401
      %v10403 = vpop.f32.mrb[0].mxu0
      %v10404 = vadd.f32 0.0, %v10403
      %10405 = vmatprep.mubr.bf16.mxu0 %v1245
      %10406 = vmatmul.mubr.bf16.gmra.mrb[0].mxu0 %v1244
      %v10407 = vpop.f32.mrb[0].mxu0
      %v10408 = vadd.f32 0.0, %v10407
      %v10409 = vpop.f32.mrb[0].mxu0
      %v10410 = vadd.f32 0.0, %v10409
      %v10411 = vpop.f32.mrb[0].mxu0
      %v10412 = vadd.f32 0.0, %v10411
      %v10413 = vpop.f32.mrb[0].mxu0
      %v10414 = vadd.f32 0.0, %v10413
      %10415 = vmatprep.mubr.bf16.mxu0 %v1251
      %10416 = vmatmul.mubr.bf16.gmra.mrb[0].mxu0 %v1250
      %v10417 = vpop.f32.mrb[0].mxu0
      %v10418 = vadd.f32 0.0, %v10417
      %v10419 = vpop.f32.mrb[0].mxu0
      %v10420 = vadd.f32 0.0, %v10419
      %v10421 = vpop.f32.mrb[0].mxu0
      %v10422 = vadd.f32 0.0, %v10421
      %v10423 = vpop.f32.mrb[0].mxu0
      %v10424 = vadd.f32 0.0, %v10423
      %10425 = vmatprep.mubr.bf16.mxu0 %v1257
      %10426 = vmatmul.mubr.bf16.gmra.mrb[0].mxu0 %v1256
      %v10427 = vpop.f32.mrb[0].mxu0
      %v10428 = vadd.f32 0.0, %v10427
      %v10429 = vpop.f32.mrb[0].mxu0
      %v10430 = vadd.f32 0.0, %v10429
      %v10431 = vpop.f32.mrb[0].mxu0
      %v10432 = vadd.f32 0.0, %v10431
      %v10433 = vpop.f32.mrb[0].mxu0
      %v10434 = vadd.f32 0.0, %v10433
      %10435 = vmatprep.mubr.bf16.mxu0 %v1263
      %10436 = vmatmul.mubr.bf16.gmra.mrb[0].mxu0 %v1262
      %v10437 = vpop.f32.mrb[0].mxu0
      %v10438 = vpop.f32.mrb[0].mxu0
      %v10439 = vpop.f32.mrb[0].mxu0
      %v10440 = vpop.f32.mrb[0].mxu0
      %10441 = vmatprep.mubr.bf16.mxu0 %v1269
      %10442 = vmatmul.mubr.bf16.gmra.mrb[0].mxu0 %v1268
      %v10443 = vpop.f32.mrb[0].mxu0
      %v10444 = vadd.f32 0.0, %v10443
      %v10445 = vpop.f32.mrb[0].mxu0
      %v10446 = vadd.f32 0.0, %v10445
      %v10447 = vpop.f32.mrb[0].mxu0
      %v10448 = vadd.f32 0.0, %v10447
      %v10449 = vpop.f32.mrb[0].mxu0
      %v10450 = vadd.f32 0.0, %v10449
      %10451 = vmatprep.mubr.bf16.mxu0 %v1275
      %10452 = vmatmul.mubr.bf16.gmra.mrb[0].mxu0 %v1274
      %v10453 = vpop.f32.mrb[0].mxu0
      %v10454 = vadd.f32 0.0, %v10453
      %v10455 = vpop.f32.mrb[0].mxu0
      %v10456 = vadd.f32 0.0, %v10455
      %v10457 = vpop.f32.mrb[0].mxu0
      %v10458 = vadd.f32 0.0, %v10457
      %v10459 = vpop.f32.mrb[0].mxu0
      %v10460 = vadd.f32 0.0, %v10459
      %10461 = vmatprep.mubr.bf16.mxu0 %v1281
      %10462 = vmatmul.mubr.bf16.gmra.mrb[0].mxu0 %v1280
      %v10463 = vpop.f32.mrb[0].mxu0
      %v10464 = vadd.f32 0.0, %v10463
      %v10465 = vpop.f32.mrb[0].mxu0
      %v10466 = vadd.f32 0.0, %v10465
      %v10467 = vpop.f32.mrb[0].mxu0
      %v10468 = vadd.f32 0.0, %v10467
      %v10469 = vpop.f32.mrb[0].mxu0
      %v10470 = vadd.f32 0.0, %v10469
      %10471 = vmatprep.mubr.bf16.mxu0 %v1287
      %10472 = vmatmul.mubr.bf16.gmra.mrb[0].mxu0 %v1286
      %v10473 = vpop.f32.mrb[0].mxu0
      %v10474 = vadd.f32 0.0, %v10473
      %v10475 = vpop.f32.mrb[0].mxu0
      %v10476 = vadd.f32 0.0, %v10475
      %v10477 = vpop.f32.mrb[0].mxu0
      %v10478 = vpop.f32.mrb[0].mxu0
      %10479 = vmatprep.mubr.bf16.mxu0 %v1293
      %10480 = vmatmul.mubr.bf16.gmra.mrb[0].mxu0 %v1292
      %v10481 = vpop.f32.mrb[0].mxu0
      %v10482 = vpop.f32.mrb[0].mxu0
      %v10483 = vpop.f32.mrb[0].mxu0
      %v10484 = vadd.f32 0.0, %v10483
      %v10485 = vpop.f32.mrb[0].mxu0
      %v10486 = vadd.f32 0.0, %v10485
      %10487 = vmatprep.mubr.bf16.mxu0 %v1299
      %10488 = vmatmul.mubr.bf16.gmra.mrb[0].mxu0 %v1298
      %v10489 = vpop.f32.mrb[0].mxu0
      %v10490 = vadd.f32 0.0, %v10489
      %v10491 = vpop.f32.mrb[0].mxu0
      %v10492 = vadd.f32 0.0, %v10491
      %v10493 = vpop.f32.mrb[0].mxu0
      %v10494 = vadd.f32 0.0, %v10493
      %v10495 = vpop.f32.mrb[0].mxu0
      %v10496 = vadd.f32 0.0, %v10495
      %10497 = vmatprep.mubr.bf16.mxu0 %v1305
      %10498 = vmatmul.mubr.bf16.gmra.mrb[0].mxu0 %v1304
      %v10499 = vpop.f32.mrb[0].mxu0
      %v10500 = vadd.f32 0.0, %v10499
      %v10501 = vpop.f32.mrb[0].mxu0
      %v10502 = vadd.f32 0.0, %v10501
      %v10503 = vpop.f32.mrb[0].mxu0
      %v10504 = vadd.f32 0.0, %v10503
      %v10505 = vpop.f32.mrb[0].mxu0
      %v10506 = vadd.f32 0.0, %v10505
      %10507 = vmatprep.mubr.bf16.mxu0 %v1311
      %10508 = vmatmul.mubr.bf16.gmra.mrb[0].mxu0 %v1310
      %v10509 = vpop.f32.mrb[0].mxu0
      %v10510 = vadd.f32 0.0, %v10509
      %v10511 = vpop.f32.mrb[0].mxu0
      %v10512 = vadd.f32 0.0, %v10511
      %v10513 = vpop.f32.mrb[0].mxu0
      %v10514 = vadd.f32 0.0, %v10513
      %v10515 = vpop.f32.mrb[0].mxu0
      %v10516 = vadd.f32 0.0, %v10515
      %10517 = vmatprep.mubr.bf16.mxu0 %v1317
      %10518 = vmatmul.mubr.bf16.gmra.mrb[0].mxu0 %v1316
      %v10519 = vpop.f32.mrb[0].mxu0
      %v10520 = vpop.f32.mrb[0].mxu0
      %v10521 = vpop.f32.mrb[0].mxu0
      %v10522 = vpop.f32.mrb[0].mxu0
      %10523 = vmatprep.mubr.bf16.mxu0 %v1323
      %10524 = vmatmul.mubr.bf16.gmra.mrb[0].mxu0 %v1322
      %v10525 = vpop.f32.mrb[0].mxu0
      %v10526 = vadd.f32 0.0, %v10525
      %v10527 = vpop.f32.mrb[0].mxu0
      %v10528 = vadd.f32 0.0, %v10527
      %v10529 = vpop.f32.mrb[0].mxu0
      %v10530 = vadd.f32 0.0, %v10529
      %v10531 = vpop.f32.mrb[0].mxu0
      %v10532 = vadd.f32 0.0, %v10531
      %10533 = vmatprep.mubr.bf16.mxu0 %v1329
      %10534 = vmatmul.mubr.bf16.gmra.mrb[0].mxu0 %v1328
      %v10535 = vpop.f32.mrb[0].mxu0
      %v10536 = vadd.f32 0.0, %v10535
      %v10537 = vpop.f32.mrb[0].mxu0
      %v10538 = vadd.f32 0.0, %v10537
      %v10539 = vpop.f32.mrb[0].mxu0
      %v10540 = vadd.f32 0.0, %v10539
      %v10541 = vpop.f32.mrb[0].mxu0
      %v10542 = vadd.f32 0.0, %v10541
      %10543 = vmatprep.mubr.bf16.mxu0 %v1335
      %10544 = vmatmul.mubr.bf16.gmra.mrb[0].mxu0 %v1334
      %v10545 = vpop.f32.mrb[0].mxu0
      %v10546 = vadd.f32 0.0, %v10545
      %v10547 = vpop.f32.mrb[0].mxu0
      %v10548 = vadd.f32 0.0, %v10547
      %v10549 = vpop.f32.mrb[0].mxu0
      %v10550 = vadd.f32 0.0, %v10549
      %v10551 = vpop.f32.mrb[0].mxu0
      %v10552 = vadd.f32 0.0, %v10551
      %10553 = vmatprep.mubr.bf16.mxu0 %v1341
      %10554 = vmatmul.mubr.bf16.gmra.mrb[0].mxu0 %v1340
      %v10555 = vpop.f32.mrb[0].mxu0
      %v10556 = vadd.f32 0.0, %v10555
      %v10557 = vpop.f32.mrb[0].mxu0
      %v10558 = vadd.f32 0.0, %v10557
      %v10559 = vpop.f32.mrb[0].mxu0
      %v10560 = vpop.f32.mrb[0].mxu0
      %10561 = vmatprep.mubr.bf16.mxu0 %v1347
      %10562 = vmatmul.mubr.bf16.gmra.mrb[0].mxu0 %v1346
      %v10563 = vpop.f32.mrb[0].mxu0
      %v10564 = vpop.f32.mrb[0].mxu0
      %v10565 = vpop.f32.mrb[0].mxu0
      %v10566 = vadd.f32 0.0, %v10565
      %v10567 = vpop.f32.mrb[0].mxu0
      %v10568 = vadd.f32 0.0, %v10567
      %10569 = vmatprep.mubr.bf16.mxu0 %v1353
      %10570 = vmatmul.mubr.bf16.gmra.mrb[0].mxu0 %v1352
      %v10571 = vpop.f32.mrb[0].mxu0
      %v10572 = vadd.f32 0.0, %v10571
      %v10573 = vpop.f32.mrb[0].mxu0
      %v10574 = vadd.f32 0.0, %v10573
      %v10575 = vpop.f32.mrb[0].mxu0
      %v10576 = vadd.f32 0.0, %v10575
      %v10577 = vpop.f32.mrb[0].mxu0
      %v10578 = vadd.f32 0.0, %v10577
      %10579 = vmatprep.mubr.bf16.mxu0 %v1359
      %10580 = vmatmul.mubr.bf16.gmra.mrb[0].mxu0 %v1358
      %v10581 = vpop.f32.mrb[0].mxu0
      %v10582 = vadd.f32 0.0, %v10581
      %v10583 = vpop.f32.mrb[0].mxu0
      %v10584 = vadd.f32 0.0, %v10583
      %v10585 = vpop.f32.mrb[0].mxu0
      %v10586 = vadd.f32 0.0, %v10585
      %v10587 = vpop.f32.mrb[0].mxu0
      %v10588 = vadd.f32 0.0, %v10587
      %10589 = vmatprep.mubr.bf16.mxu0 %v1365
      %10590 = vmatmul.mubr.bf16.gmra.mrb[0].mxu0 %v1364
      %v10591 = vpop.f32.mrb[0].mxu0
      %v10592 = vadd.f32 0.0, %v10591
      %v10593 = vpop.f32.mrb[0].mxu0
      %v10594 = vadd.f32 0.0, %v10593
      %v10595 = vpop.f32.mrb[0].mxu0
      %v10596 = vadd.f32 0.0, %v10595
      %v10597 = vpop.f32.mrb[0].mxu0
      %v10598 = vadd.f32 0.0, %v10597
      %10599 = vmatprep.mubr.bf16.mxu0 %v1371
      %10600 = vmatmul.mubr.bf16.gmra.mrb[0].mxu0 %v1370
      %v10601 = vpop.f32.mrb[0].mxu0
      %v10602 = vpop.f32.mrb[0].mxu0
      %v10603 = vpop.f32.mrb[0].mxu0
      %v10604 = vpop.f32.mrb[0].mxu0
      %10605 = vmatprep.mubr.bf16.mxu0 %v1377
      %10606 = vmatmul.mubr.bf16.gmra.mrb[0].mxu0 %v1376
      %v10607 = vpop.f32.mrb[0].mxu0
      %v10608 = vadd.f32 0.0, %v10607
      %v10609 = vpop.f32.mrb[0].mxu0
      %v10610 = vadd.f32 0.0, %v10609
      %v10611 = vpop.f32.mrb[0].mxu0
      %v10612 = vadd.f32 0.0, %v10611
      %v10613 = vpop.f32.mrb[0].mxu0
      %v10614 = vadd.f32 0.0, %v10613
      %10615 = vmatprep.mubr.bf16.mxu0 %v1383
      %10616 = vmatmul.mubr.bf16.gmra.mrb[0].mxu0 %v1382
      %v10617 = vpop.f32.mrb[0].mxu0
      %v10618 = vadd.f32 0.0, %v10617
      %v10619 = vpop.f32.mrb[0].mxu0
      %v10620 = vadd.f32 0.0, %v10619
      %v10621 = vpop.f32.mrb[0].mxu0
      %v10622 = vadd.f32 0.0, %v10621
      %v10623 = vpop.f32.mrb[0].mxu0
      %v10624 = vadd.f32 0.0, %v10623
      %10625 = vmatprep.mubr.bf16.mxu0 %v1389
      %10626 = vmatmul.mubr.bf16.gmra.mrb[0].mxu0 %v1388
      %v10627 = vpop.f32.mrb[0].mxu0
      %v10628 = vadd.f32 0.0, %v10627
      %v10629 = vpop.f32.mrb[0].mxu0
      %v10630 = vadd.f32 0.0, %v10629
      %v10631 = vpop.f32.mrb[0].mxu0
      %v10632 = vadd.f32 0.0, %v10631
      %v10633 = vpop.f32.mrb[0].mxu0
      %v10634 = vadd.f32 0.0, %v10633
      %10635 = vmatprep.mubr.bf16.mxu0 %v1395
      %10636 = vmatmul.mubr.bf16.gmra.mrb[0].mxu0 %v1394
      %v10637 = vpop.f32.mrb[0].mxu0
      %v10638 = vadd.f32 0.0, %v10637
      %v10639 = vpop.f32.mrb[0].mxu0
      %v10640 = vadd.f32 0.0, %v10639
      %v10641 = vpop.f32.mrb[0].mxu0
      %v10642 = vpop.f32.mrb[0].mxu0
      %10643 = vmatprep.mubr.bf16.mxu0 %v1401
      %10644 = vmatmul.mubr.bf16.gmra.mrb[0].mxu0 %v1400
      %v10645 = vpop.f32.mrb[0].mxu0
      %v10646 = vpop.f32.mrb[0].mxu0
      %v10647 = vpop.f32.mrb[0].mxu0
      %v10648 = vadd.f32 0.0, %v10647
      %v10649 = vpop.f32.mrb[0].mxu0
      %v10650 = vadd.f32 0.0, %v10649
      %10651 = vmatprep.mubr.bf16.mxu0 %v1407
      %10652 = vmatmul.mubr.bf16.gmra.mrb[0].mxu0 %v1406
      %v10653 = vpop.f32.mrb[0].mxu0
      %v10654 = vadd.f32 0.0, %v10653
      %v10655 = vpop.f32.mrb[0].mxu0
      %v10656 = vadd.f32 0.0, %v10655
      %v10657 = vpop.f32.mrb[0].mxu0
      %v10658 = vadd.f32 0.0, %v10657
      %v10659 = vpop.f32.mrb[0].mxu0
      %v10660 = vadd.f32 0.0, %v10659
      %10661 = vmatprep.mubr.bf16.mxu0 %v1413
      %10662 = vmatmul.mubr.bf16.gmra.mrb[0].mxu0 %v1412
      %v10663 = vpop.f32.mrb[0].mxu0
      %v10664 = vadd.f32 0.0, %v10663
      %v10665 = vpop.f32.mrb[0].mxu0
      %v10666 = vadd.f32 0.0, %v10665
      %v10667 = vpop.f32.mrb[0].mxu0
      %v10668 = vadd.f32 0.0, %v10667
      %v10669 = vpop.f32.mrb[0].mxu0
      %v10670 = vadd.f32 0.0, %v10669
      %10671 = vmatprep.mubr.bf16.mxu0 %v1419
      %10672 = vmatmul.mubr.bf16.gmra.mrb[0].mxu0 %v1418
      %v10673 = vpop.f32.mrb[0].mxu0
      %v10674 = vadd.f32 0.0, %v10673
      %v10675 = vpop.f32.mrb[0].mxu0
      %v10676 = vadd.f32 0.0, %v10675
      %v10677 = vpop.f32.mrb[0].mxu0
      %v10678 = vadd.f32 0.0, %v10677
      %v10679 = vpop.f32.mrb[0].mxu0
      %v10680 = vadd.f32 0.0, %v10679
      %10681 = vdwg.mxu0
      %10682 = vmatprep.subr.bf16.mxu0 %v8921
      %10683 = vmatpush1.bf16.msra.mxu0 %v8920
      %10684 = vmatprep.subr.bf16.mxu0 %v8925
      %10685 = vmatpush1.bf16.msra.mxu0 %v8924
      %10686 = vmatprep.subr.bf16.mxu0 %v8929
      %10687 = vmatpush1.bf16.msra.mxu0 %v8928
      %10688 = vmatprep.subr.bf16.mxu0 %v8933
      %10689 = vmatpush1.bf16.msra.mxu0 %v8932
      %10690 = vmatprep.subr.bf16.mxu0 %v8937
      %10691 = vmatpush1.bf16.msra.mxu0 %v8936
      %10692 = vmatprep.subr.bf16.mxu0 %v8941
      %10693 = vmatpush1.bf16.msra.mxu0 %v8940
      %10694 = vmatprep.subr.bf16.mxu0 %v8945
      %10695 = vmatpush1.bf16.msra.mxu0 %v8944
      %10696 = vmatprep.subr.bf16.mxu0 %v8949
      %10697 = vmatpush1.bf16.msra.mxu0 %v8948
      %10698 = vmatprep.subr.bf16.mxu0 %v8953
      %10699 = vmatpush1.bf16.msra.mxu0 %v8952
      %10700 = vmatprep.subr.bf16.mxu0 %v8957
      %10701 = vmatpush1.bf16.msra.mxu0 %v8956
      %10702 = vmatprep.subr.bf16.mxu0 %v8961
      %10703 = vmatpush1.bf16.msra.mxu0 %v8960
      %10704 = vmatprep.subr.bf16.mxu0 %v8965
      %10705 = vmatpush1.bf16.msra.mxu0 %v8964
      %10706 = vmatprep.subr.bf16.mxu0 %v8969
      %10707 = vmatpush1.bf16.msra.mxu0 %v8968
      %10708 = vmatprep.subr.bf16.mxu0 %v8973
      %10709 = vmatpush1.bf16.msra.mxu0 %v8972
      %10710 = vmatprep.subr.bf16.mxu0 %v8977
      %10711 = vmatpush1.bf16.msra.mxu0 %v8976
      %10712 = vmatprep.subr.bf16.mxu0 %v8981
      %10713 = vmatpush1.bf16.msra.mxu0 %v8980
      %10714 = vmatprep.mubr.bf16.mxu0 %v1211
      %10715 = vmatmul.mubr.bf16.gmra.mrb[0].mxu0 %v1210
      %v10716 = vpop.f32.mrb[0].mxu0
      %v10717 = vpop.f32.mrb[0].mxu0
      %v10718 = vpop.f32.mrb[0].mxu0
      %v10719 = vpop.f32.mrb[0].mxu0
      %10720 = vmatprep.mubr.bf16.mxu0 %v1217
      %10721 = vmatmul.mubr.bf16.gmra.mrb[0].mxu0 %v1216
      %v10722 = vpop.f32.mrb[0].mxu0
      %v10723 = vadd.f32 %v10362, %v10722
      %v10724 = vpop.f32.mrb[0].mxu0
      %v10725 = vadd.f32 %v10364, %v10724
      %v10726 = vpop.f32.mrb[0].mxu0
      %v10727 = vadd.f32 %v10366, %v10726
      %v10728 = vpop.f32.mrb[0].mxu0
      %v10729 = vadd.f32 %v10368, %v10728
      %10730 = vmatprep.mubr.bf16.mxu0 %v1223
      %10731 = vmatmul.mubr.bf16.gmra.mrb[0].mxu0 %v1222
      %v10732 = vpop.f32.mrb[0].mxu0
      %v10733 = vadd.f32 %v10372, %v10732
      %v10734 = vpop.f32.mrb[0].mxu0
      %v10735 = vadd.f32 %v10374, %v10734
      %v10736 = vpop.f32.mrb[0].mxu0
      %v10737 = vadd.f32 %v10376, %v10736
      %v10738 = vpop.f32.mrb[0].mxu0
      %v10739 = vadd.f32 %v10378, %v10738
      %10740 = vmatprep.mubr.bf16.mxu0 %v1229
      %10741 = vmatmul.mubr.bf16.gmra.mrb[0].mxu0 %v1228
      %v10742 = vpop.f32.mrb[0].mxu0
      %v10743 = vadd.f32 %v10382, %v10742
      %v10744 = vpop.f32.mrb[0].mxu0
      %v10745 = vadd.f32 %v10384, %v10744
      %v10746 = vpop.f32.mrb[0].mxu0
      %v10747 = vadd.f32 %v10386, %v10746
      %v10748 = vpop.f32.mrb[0].mxu0
      %v10749 = vadd.f32 %v10388, %v10748
      %10750 = vmatprep.mubr.bf16.mxu0 %v1235
      %10751 = vmatmul.mubr.bf16.gmra.mrb[0].mxu0 %v1234
      %v10752 = vpop.f32.mrb[0].mxu0
      %v10753 = vadd.f32 %v10392, %v10752
      %v10754 = vpop.f32.mrb[0].mxu0
      %v10755 = vadd.f32 %v10394, %v10754
      %v10756 = vpop.f32.mrb[0].mxu0
      %v10757 = vpop.f32.mrb[0].mxu0
      %10758 = vmatprep.mubr.bf16.mxu0 %v1241
      %10759 = vmatmul.mubr.bf16.gmra.mrb[0].mxu0 %v1240
      %v10760 = vpop.f32.mrb[0].mxu0
      %v10761 = vpop.f32.mrb[0].mxu0
      %v10762 = vpop.f32.mrb[0].mxu0
      %v10763 = vadd.f32 %v10402, %v10762
      %v10764 = vpop.f32.mrb[0].mxu0
      %v10765 = vadd.f32 %v10404, %v10764
      %10766 = vmatprep.mubr.bf16.mxu0 %v1247
      %10767 = vmatmul.mubr.bf16.gmra.mrb[0].mxu0 %v1246
      %v10768 = vpop.f32.mrb[0].mxu0
      %v10769 = vadd.f32 %v10408, %v10768
      %v10770 = vpop.f32.mrb[0].mxu0
      %v10771 = vadd.f32 %v10410, %v10770
      %v10772 = vpop.f32.mrb[0].mxu0
      %v10773 = vadd.f32 %v10412, %v10772
      %v10774 = vpop.f32.mrb[0].mxu0
      %v10775 = vadd.f32 %v10414, %v10774
      %10776 = vmatprep.mubr.bf16.mxu0 %v1253
      %10777 = vmatmul.mubr.bf16.gmra.mrb[0].mxu0 %v1252
      %v10778 = vpop.f32.mrb[0].mxu0
      %v10779 = vadd.f32 %v10418, %v10778
      %v10780 = vpop.f32.mrb[0].mxu0
      %v10781 = vadd.f32 %v10420, %v10780
      %v10782 = vpop.f32.mrb[0].mxu0
      %v10783 = vadd.f32 %v10422, %v10782
      %v10784 = vpop.f32.mrb[0].mxu0
      %v10785 = vadd.f32 %v10424, %v10784
      %10786 = vmatprep.mubr.bf16.mxu0 %v1259
      %10787 = vmatmul.mubr.bf16.gmra.mrb[0].mxu0 %v1258
      %v10788 = vpop.f32.mrb[0].mxu0
      %v10789 = vadd.f32 %v10428, %v10788
      %v10790 = vpop.f32.mrb[0].mxu0
      %v10791 = vadd.f32 %v10430, %v10790
      %v10792 = vpop.f32.mrb[0].mxu0
      %v10793 = vadd.f32 %v10432, %v10792
      %v10794 = vpop.f32.mrb[0].mxu0
      %v10795 = vadd.f32 %v10434, %v10794
      %10796 = vmatprep.mubr.bf16.mxu0 %v1265
      %10797 = vmatmul.mubr.bf16.gmra.mrb[0].mxu0 %v1264
      %v10798 = vpop.f32.mrb[0].mxu0
      %v10799 = vpop.f32.mrb[0].mxu0
      %v10800 = vpop.f32.mrb[0].mxu0
      %v10801 = vpop.f32.mrb[0].mxu0
      %10802 = vmatprep.mubr.bf16.mxu0 %v1271
      %10803 = vmatmul.mubr.bf16.gmra.mrb[0].mxu0 %v1270
      %v10804 = vpop.f32.mrb[0].mxu0
      %v10805 = vadd.f32 %v10444, %v10804
      %v10806 = vpop.f32.mrb[0].mxu0
      %v10807 = vadd.f32 %v10446, %v10806
      %v10808 = vpop.f32.mrb[0].mxu0
      %v10809 = vadd.f32 %v10448, %v10808
      %v10810 = vpop.f32.mrb[0].mxu0
      %v10811 = vadd.f32 %v10450, %v10810
      %10812 = vmatprep.mubr.bf16.mxu0 %v1277
      %10813 = vmatmul.mubr.bf16.gmra.mrb[0].mxu0 %v1276
      %v10814 = vpop.f32.mrb[0].mxu0
      %v10815 = vadd.f32 %v10454, %v10814
      %v10816 = vpop.f32.mrb[0].mxu0
      %v10817 = vadd.f32 %v10456, %v10816
      %v10818 = vpop.f32.mrb[0].mxu0
      %v10819 = vadd.f32 %v10458, %v10818
      %v10820 = vpop.f32.mrb[0].mxu0
      %v10821 = vadd.f32 %v10460, %v10820
      %10822 = vmatprep.mubr.bf16.mxu0 %v1283
      %10823 = vmatmul.mubr.bf16.gmra.mrb[0].mxu0 %v1282
      %v10824 = vpop.f32.mrb[0].mxu0
      %v10825 = vadd.f32 %v10464, %v10824
      %v10826 = vpop.f32.mrb[0].mxu0
      %v10827 = vadd.f32 %v10466, %v10826
      %v10828 = vpop.f32.mrb[0].mxu0
      %v10829 = vadd.f32 %v10468, %v10828
      %v10830 = vpop.f32.mrb[0].mxu0
      %v10831 = vadd.f32 %v10470, %v10830
      %10832 = vmatprep.mubr.bf16.mxu0 %v1289
      %10833 = vmatmul.mubr.bf16.gmra.mrb[0].mxu0 %v1288
      %v10834 = vpop.f32.mrb[0].mxu0
      %v10835 = vadd.f32 %v10474, %v10834
      %v10836 = vpop.f32.mrb[0].mxu0
      %v10837 = vadd.f32 %v10476, %v10836
      %v10838 = vpop.f32.mrb[0].mxu0
      %v10839 = vpop.f32.mrb[0].mxu0
      %10840 = vmatprep.mubr.bf16.mxu0 %v1295
      %10841 = vmatmul.mubr.bf16.gmra.mrb[0].mxu0 %v1294
      %v10842 = vpop.f32.mrb[0].mxu0
      %v10843 = vpop.f32.mrb[0].mxu0
      %v10844 = vpop.f32.mrb[0].mxu0
      %v10845 = vadd.f32 %v10484, %v10844
      %v10846 = vpop.f32.mrb[0].mxu0
      %v10847 = vadd.f32 %v10486, %v10846
      %10848 = vmatprep.mubr.bf16.mxu0 %v1301
      %10849 = vmatmul.mubr.bf16.gmra.mrb[0].mxu0 %v1300
      %v10850 = vpop.f32.mrb[0].mxu0
      %v10851 = vadd.f32 %v10490, %v10850
      %v10852 = vpop.f32.mrb[0].mxu0
      %v10853 = vadd.f32 %v10492, %v10852
      %v10854 = vpop.f32.mrb[0].mxu0
      %v10855 = vadd.f32 %v10494, %v10854
      %v10856 = vpop.f32.mrb[0].mxu0
      %v10857 = vadd.f32 %v10496, %v10856
      %10858 = vmatprep.mubr.bf16.mxu0 %v1307
      %10859 = vmatmul.mubr.bf16.gmra.mrb[0].mxu0 %v1306
      %v10860 = vpop.f32.mrb[0].mxu0
      %v10861 = vadd.f32 %v10500, %v10860
      %v10862 = vpop.f32.mrb[0].mxu0
      %v10863 = vadd.f32 %v10502, %v10862
      %v10864 = vpop.f32.mrb[0].mxu0
      %v10865 = vadd.f32 %v10504, %v10864
      %v10866 = vpop.f32.mrb[0].mxu0
      %v10867 = vadd.f32 %v10506, %v10866
      %10868 = vmatprep.mubr.bf16.mxu0 %v1313
      %10869 = vmatmul.mubr.bf16.gmra.mrb[0].mxu0 %v1312
      %v10870 = vpop.f32.mrb[0].mxu0
      %v10871 = vadd.f32 %v10510, %v10870
      %v10872 = vpop.f32.mrb[0].mxu0
      %v10873 = vadd.f32 %v10512, %v10872
      %v10874 = vpop.f32.mrb[0].mxu0
      %v10875 = vadd.f32 %v10514, %v10874
      %v10876 = vpop.f32.mrb[0].mxu0
      %v10877 = vadd.f32 %v10516, %v10876
      %10878 = vmatprep.mubr.bf16.mxu0 %v1319
      %10879 = vmatmul.mubr.bf16.gmra.mrb[0].mxu0 %v1318
      %v10880 = vpop.f32.mrb[0].mxu0
      %v10881 = vpop.f32.mrb[0].mxu0
      %v10882 = vpop.f32.mrb[0].mxu0
      %v10883 = vpop.f32.mrb[0].mxu0
      %10884 = vmatprep.mubr.bf16.mxu0 %v1325
      %10885 = vmatmul.mubr.bf16.gmra.mrb[0].mxu0 %v1324
      %v10886 = vpop.f32.mrb[0].mxu0
      %v10887 = vadd.f32 %v10526, %v10886
      %v10888 = vpop.f32.mrb[0].mxu0
      %v10889 = vadd.f32 %v10528, %v10888
      %v10890 = vpop.f32.mrb[0].mxu0
      %v10891 = vadd.f32 %v10530, %v10890
      %v10892 = vpop.f32.mrb[0].mxu0
      %v10893 = vadd.f32 %v10532, %v10892
      %10894 = vmatprep.mubr.bf16.mxu0 %v1331
      %10895 = vmatmul.mubr.bf16.gmra.mrb[0].mxu0 %v1330
      %v10896 = vpop.f32.mrb[0].mxu0
      %v10897 = vadd.f32 %v10536, %v10896
      %v10898 = vpop.f32.mrb[0].mxu0
      %v10899 = vadd.f32 %v10538, %v10898
      %v10900 = vpop.f32.mrb[0].mxu0
      %v10901 = vadd.f32 %v10540, %v10900
      %v10902 = vpop.f32.mrb[0].mxu0
      %v10903 = vadd.f32 %v10542, %v10902
      %10904 = vmatprep.mubr.bf16.mxu0 %v1337
      %10905 = vmatmul.mubr.bf16.gmra.mrb[0].mxu0 %v1336
      %v10906 = vpop.f32.mrb[0].mxu0
      %v10907 = vadd.f32 %v10546, %v10906
      %v10908 = vpop.f32.mrb[0].mxu0
      %v10909 = vadd.f32 %v10548, %v10908
      %v10910 = vpop.f32.mrb[0].mxu0
      %v10911 = vadd.f32 %v10550, %v10910
      %v10912 = vpop.f32.mrb[0].mxu0
      %v10913 = vadd.f32 %v10552, %v10912
      %10914 = vmatprep.mubr.bf16.mxu0 %v1343
      %10915 = vmatmul.mubr.bf16.gmra.mrb[0].mxu0 %v1342
      %v10916 = vpop.f32.mrb[0].mxu0
      %v10917 = vadd.f32 %v10556, %v10916
      %v10918 = vpop.f32.mrb[0].mxu0
      %v10919 = vadd.f32 %v10558, %v10918
      %v10920 = vpop.f32.mrb[0].mxu0
      %v10921 = vpop.f32.mrb[0].mxu0
      %10922 = vmatprep.mubr.bf16.mxu0 %v1349
      %10923 = vmatmul.mubr.bf16.gmra.mrb[0].mxu0 %v1348
      %v10924 = vpop.f32.mrb[0].mxu0
      %v10925 = vpop.f32.mrb[0].mxu0
      %v10926 = vpop.f32.mrb[0].mxu0
      %v10927 = vadd.f32 %v10566, %v10926
      %v10928 = vpop.f32.mrb[0].mxu0
      %v10929 = vadd.f32 %v10568, %v10928
      %10930 = vmatprep.mubr.bf16.mxu0 %v1355
      %10931 = vmatmul.mubr.bf16.gmra.mrb[0].mxu0 %v1354
      %v10932 = vpop.f32.mrb[0].mxu0
      %v10933 = vadd.f32 %v10572, %v10932
      %v10934 = vpop.f32.mrb[0].mxu0
      %v10935 = vadd.f32 %v10574, %v10934
      %v10936 = vpop.f32.mrb[0].mxu0
      %v10937 = vadd.f32 %v10576, %v10936
      %v10938 = vpop.f32.mrb[0].mxu0
      %v10939 = vadd.f32 %v10578, %v10938
      %10940 = vmatprep.mubr.bf16.mxu0 %v1361
      %10941 = vmatmul.mubr.bf16.gmra.mrb[0].mxu0 %v1360
      %v10942 = vpop.f32.mrb[0].mxu0
      %v10943 = vadd.f32 %v10582, %v10942
      %v10944 = vpop.f32.mrb[0].mxu0
      %v10945 = vadd.f32 %v10584, %v10944
      %v10946 = vpop.f32.mrb[0].mxu0
      %v10947 = vadd.f32 %v10586, %v10946
      %v10948 = vpop.f32.mrb[0].mxu0
      %v10949 = vadd.f32 %v10588, %v10948
      %10950 = vmatprep.mubr.bf16.mxu0 %v1367
      %10951 = vmatmul.mubr.bf16.gmra.mrb[0].mxu0 %v1366
      %v10952 = vpop.f32.mrb[0].mxu0
      %v10953 = vadd.f32 %v10592, %v10952
      %v10954 = vpop.f32.mrb[0].mxu0
      %v10955 = vadd.f32 %v10594, %v10954
      %v10956 = vpop.f32.mrb[0].mxu0
      %v10957 = vadd.f32 %v10596, %v10956
      %v10958 = vpop.f32.mrb[0].mxu0
      %v10959 = vadd.f32 %v10598, %v10958
      %10960 = vmatprep.mubr.bf16.mxu0 %v1373
      %10961 = vmatmul.mubr.bf16.gmra.mrb[0].mxu0 %v1372
      %v10962 = vpop.f32.mrb[0].mxu0
      %v10963 = vpop.f32.mrb[0].mxu0
      %v10964 = vpop.f32.mrb[0].mxu0
      %v10965 = vpop.f32.mrb[0].mxu0
      %10966 = vmatprep.mubr.bf16.mxu0 %v1379
      %10967 = vmatmul.mubr.bf16.gmra.mrb[0].mxu0 %v1378
      %v10968 = vpop.f32.mrb[0].mxu0
      %v10969 = vadd.f32 %v10608, %v10968
      %v10970 = vpop.f32.mrb[0].mxu0
      %v10971 = vadd.f32 %v10610, %v10970
      %v10972 = vpop.f32.mrb[0].mxu0
      %v10973 = vadd.f32 %v10612, %v10972
      %v10974 = vpop.f32.mrb[0].mxu0
      %v10975 = vadd.f32 %v10614, %v10974
      %10976 = vmatprep.mubr.bf16.mxu0 %v1385
      %10977 = vmatmul.mubr.bf16.gmra.mrb[0].mxu0 %v1384
      %v10978 = vpop.f32.mrb[0].mxu0
      %v10979 = vadd.f32 %v10618, %v10978
      %v10980 = vpop.f32.mrb[0].mxu0
      %v10981 = vadd.f32 %v10620, %v10980
      %v10982 = vpop.f32.mrb[0].mxu0
      %v10983 = vadd.f32 %v10622, %v10982
      %v10984 = vpop.f32.mrb[0].mxu0
      %v10985 = vadd.f32 %v10624, %v10984
      %10986 = vmatprep.mubr.bf16.mxu0 %v1391
      %10987 = vmatmul.mubr.bf16.gmra.mrb[0].mxu0 %v1390
      %v10988 = vpop.f32.mrb[0].mxu0
      %v10989 = vadd.f32 %v10628, %v10988
      %v10990 = vpop.f32.mrb[0].mxu0
      %v10991 = vadd.f32 %v10630, %v10990
      %v10992 = vpop.f32.mrb[0].mxu0
      %v10993 = vadd.f32 %v10632, %v10992
      %v10994 = vpop.f32.mrb[0].mxu0
      %v10995 = vadd.f32 %v10634, %v10994
      %10996 = vmatprep.mubr.bf16.mxu0 %v1397
      %10997 = vmatmul.mubr.bf16.gmra.mrb[0].mxu0 %v1396
      %v10998 = vpop.f32.mrb[0].mxu0
      %v10999 = vadd.f32 %v10638, %v10998
      %v11000 = vpop.f32.mrb[0].mxu0
      %v11001 = vadd.f32 %v10640, %v11000
      %v11002 = vpop.f32.mrb[0].mxu0
      %v11003 = vpop.f32.mrb[0].mxu0
      %11004 = vmatprep.mubr.bf16.mxu0 %v1403
      %11005 = vmatmul.mubr.bf16.gmra.mrb[0].mxu0 %v1402
      %v11006 = vpop.f32.mrb[0].mxu0
      %v11007 = vpop.f32.mrb[0].mxu0
      %v11008 = vpop.f32.mrb[0].mxu0
      %v11009 = vadd.f32 %v10648, %v11008
      %v11010 = vpop.f32.mrb[0].mxu0
      %v11011 = vadd.f32 %v10650, %v11010
      %11012 = vmatprep.mubr.bf16.mxu0 %v1409
      %11013 = vmatmul.mubr.bf16.gmra.mrb[0].mxu0 %v1408
      %v11014 = vpop.f32.mrb[0].mxu0
      %v11015 = vadd.f32 %v10654, %v11014
      %v11016 = vpop.f32.mrb[0].mxu0
      %v11017 = vadd.f32 %v10656, %v11016
      %v11018 = vpop.f32.mrb[0].mxu0
      %v11019 = vadd.f32 %v10658, %v11018
      %v11020 = vpop.f32.mrb[0].mxu0
      %v11021 = vadd.f32 %v10660, %v11020
      %11022 = vmatprep.mubr.bf16.mxu0 %v1415
      %11023 = vmatmul.mubr.bf16.gmra.mrb[0].mxu0 %v1414
      %v11024 = vpop.f32.mrb[0].mxu0
      %v11025 = vadd.f32 %v10664, %v11024
      %v11026 = vpop.f32.mrb[0].mxu0
      %v11027 = vadd.f32 %v10666, %v11026
      %v11028 = vpop.f32.mrb[0].mxu0
      %v11029 = vadd.f32 %v10668, %v11028
      %v11030 = vpop.f32.mrb[0].mxu0
      %v11031 = vadd.f32 %v10670, %v11030
      %11032 = vmatprep.mubr.bf16.mxu0 %v1421
      %11033 = vmatmul.mubr.bf16.gmra.mrb[0].mxu0 %v1420
      %v11034 = vpop.f32.mrb[0].mxu0
      %v11035 = vadd.f32 %v10674, %v11034
      %v11036 = vpop.f32.mrb[0].mxu0
      %v11037 = vadd.f32 %v10676, %v11036
      %v11038 = vpop.f32.mrb[0].mxu0
      %v11039 = vadd.f32 %v10678, %v11038
      %v11040 = vpop.f32.mrb[0].mxu0
      %v11041 = vadd.f32 %v10680, %v11040
      %11042 = vdwg.mxu0
      %11043 = vmatprep.subr.bf16.mxu0 %v8985
      %11044 = vmatpush1.bf16.msra.mxu0 %v8984
      %11045 = vmatprep.subr.bf16.mxu0 %v8989
      %11046 = vmatpush1.bf16.msra.mxu0 %v8988
      %11047 = vmatprep.subr.bf16.mxu0 %v8993
      %11048 = vmatpush1.bf16.msra.mxu0 %v8992
      %11049 = vmatprep.subr.bf16.mxu0 %v8997
      %11050 = vmatpush1.bf16.msra.mxu0 %v8996
      %11051 = vmatprep.subr.bf16.mxu0 %v9001
      %11052 = vmatpush1.bf16.msra.mxu0 %v9000
      %11053 = vmatprep.subr.bf16.mxu0 %v9005
      %11054 = vmatpush1.bf16.msra.mxu0 %v9004
      %11055 = vmatprep.subr.bf16.mxu0 %v9009
      %11056 = vmatpush1.bf16.msra.mxu0 %v9008
      %11057 = vmatprep.subr.bf16.mxu0 %v9013
      %11058 = vmatpush1.bf16.msra.mxu0 %v9012
      %11059 = vmatprep.subr.bf16.mxu0 %v9017
      %11060 = vmatpush1.bf16.msra.mxu0 %v9016
      %11061 = vmatprep.subr.bf16.mxu0 %v9021
      %11062 = vmatpush1.bf16.msra.mxu0 %v9020
      %11063 = vmatprep.subr.bf16.mxu0 %v9025
      %11064 = vmatpush1.bf16.msra.mxu0 %v9024
      %11065 = vmatprep.subr.bf16.mxu0 %v9029
      %11066 = vmatpush1.bf16.msra.mxu0 %v9028
      %11067 = vmatprep.subr.bf16.mxu0 %v9033
      %11068 = vmatpush1.bf16.msra.mxu0 %v9032
      %11069 = vmatprep.subr.bf16.mxu0 %v9037
      %11070 = vmatpush1.bf16.msra.mxu0 %v9036
      %11071 = vmatprep.subr.bf16.mxu0 %v9041
      %11072 = vmatpush1.bf16.msra.mxu0 %v9040
      %11073 = vmatprep.subr.bf16.mxu0 %v9045
      %11074 = vmatpush1.bf16.msra.mxu0 %v9044
      %11075 = vmatprep.mubr.bf16.mxu0 %v1213
      %11076 = vmatmul.mubr.bf16.gmra.mrb[0].mxu0 %v1212
      %v11077 = vpop.f32.mrb[0].mxu0
      %v11078 = vpop.f32.mrb[0].mxu0
      %v11079 = vpop.f32.mrb[0].mxu0
      %v11080 = vpop.f32.mrb[0].mxu0
      %11081 = vmatprep.mubr.bf16.mxu0 %v1219
      %11082 = vmatmul.mubr.bf16.gmra.mrb[0].mxu0 %v1218
      %v11083 = vpop.f32.mrb[0].mxu0
      %v11084 = vadd.f32 %v10723, %v11083
      %v11085 = vpop.f32.mrb[0].mxu0
      %v11086 = vadd.f32 %v10725, %v11085
      %v11087 = vpop.f32.mrb[0].mxu0
      %v11088 = vadd.f32 %v10727, %v11087
      %v11089 = vpop.f32.mrb[0].mxu0
      %v11090 = vadd.f32 %v10729, %v11089
      %11091 = vmatprep.mubr.bf16.mxu0 %v1225
      %11092 = vmatmul.mubr.bf16.gmra.mrb[0].mxu0 %v1224
      %v11093 = vpop.f32.mrb[0].mxu0
      %v11094 = vadd.f32 %v10733, %v11093
      %v11095 = vpop.f32.mrb[0].mxu0
      %v11096 = vadd.f32 %v10735, %v11095
      %v11097 = vpop.f32.mrb[0].mxu0
      %v11098 = vadd.f32 %v10737, %v11097
      %v11099 = vpop.f32.mrb[0].mxu0
      %v11100 = vadd.f32 %v10739, %v11099
      %11101 = vmatprep.mubr.bf16.mxu0 %v1231
      %11102 = vmatmul.mubr.bf16.gmra.mrb[0].mxu0 %v1230
      %v11103 = vpop.f32.mrb[0].mxu0
      %v11104 = vadd.f32 %v10743, %v11103
      %v11105 = vpop.f32.mrb[0].mxu0
      %v11106 = vadd.f32 %v10745, %v11105
      %v11107 = vpop.f32.mrb[0].mxu0
      %v11108 = vadd.f32 %v10747, %v11107
      %v11109 = vpop.f32.mrb[0].mxu0
      %v11110 = vadd.f32 %v10749, %v11109
      %11111 = vmatprep.mubr.bf16.mxu0 %v1237
      %11112 = vmatmul.mubr.bf16.gmra.mrb[0].mxu0 %v1236
      %v11113 = vpop.f32.mrb[0].mxu0
      %v11114 = vadd.f32 %v10753, %v11113
      %v11115 = vpop.f32.mrb[0].mxu0
      %v11116 = vadd.f32 %v10755, %v11115
      %v11117 = vpop.f32.mrb[0].mxu0
      %v11118 = vpop.f32.mrb[0].mxu0
      %11119 = vmatprep.mubr.bf16.mxu0 %v1243
      %11120 = vmatmul.mubr.bf16.gmra.mrb[0].mxu0 %v1242
      %v11121 = vpop.f32.mrb[0].mxu0
      %v11122 = vpop.f32.mrb[0].mxu0
      %v11123 = vpop.f32.mrb[0].mxu0
      %v11124 = vadd.f32 %v10763, %v11123
      %v11125 = vpop.f32.mrb[0].mxu0
      %v11126 = vadd.f32 %v10765, %v11125
      %11127 = vmatprep.mubr.bf16.mxu0 %v1249
      %11128 = vmatmul.mubr.bf16.gmra.mrb[0].mxu0 %v1248
      %v11129 = vpop.f32.mrb[0].mxu0
      %v11130 = vadd.f32 %v10769, %v11129
      %v11131 = vpop.f32.mrb[0].mxu0
      %v11132 = vadd.f32 %v10771, %v11131
      %v11133 = vpop.f32.mrb[0].mxu0
      %v11134 = vadd.f32 %v10773, %v11133
      %v11135 = vpop.f32.mrb[0].mxu0
      %v11136 = vadd.f32 %v10775, %v11135
      %11137 = vmatprep.mubr.bf16.mxu0 %v1255
      %11138 = vmatmul.mubr.bf16.gmra.mrb[0].mxu0 %v1254
      %v11139 = vpop.f32.mrb[0].mxu0
      %v11140 = vadd.f32 %v10779, %v11139
      %v11141 = vpop.f32.mrb[0].mxu0
      %v11142 = vadd.f32 %v10781, %v11141
      %v11143 = vpop.f32.mrb[0].mxu0
      %v11144 = vadd.f32 %v10783, %v11143
      %v11145 = vpop.f32.mrb[0].mxu0
      %v11146 = vadd.f32 %v10785, %v11145
      %11147 = vmatprep.mubr.bf16.mxu0 %v1261
      %11148 = vmatmul.mubr.bf16.gmra.mrb[0].mxu0 %v1260
      %v11149 = vpop.f32.mrb[0].mxu0
      %v11150 = vadd.f32 %v10789, %v11149
      %v11151 = vpop.f32.mrb[0].mxu0
      %v11152 = vadd.f32 %v10791, %v11151
      %v11153 = vpop.f32.mrb[0].mxu0
      %v11154 = vadd.f32 %v10793, %v11153
      %v11155 = vpop.f32.mrb[0].mxu0
      %v11156 = vadd.f32 %v10795, %v11155
      %11157 = vmatprep.mubr.bf16.mxu0 %v1267
      %11158 = vmatmul.mubr.bf16.gmra.mrb[0].mxu0 %v1266
      %v11159 = vpop.f32.mrb[0].mxu0
      %v11160 = vpop.f32.mrb[0].mxu0
      %v11161 = vpop.f32.mrb[0].mxu0
      %v11162 = vpop.f32.mrb[0].mxu0
      %11163 = vmatprep.mubr.bf16.mxu0 %v1273
      %11164 = vmatmul.mubr.bf16.gmra.mrb[0].mxu0 %v1272
      %v11165 = vpop.f32.mrb[0].mxu0
      %v11166 = vadd.f32 %v10805, %v11165
      %v11167 = vpop.f32.mrb[0].mxu0
      %v11168 = vadd.f32 %v10807, %v11167
      %v11169 = vpop.f32.mrb[0].mxu0
      %v11170 = vadd.f32 %v10809, %v11169
      %v11171 = vpop.f32.mrb[0].mxu0
      %v11172 = vadd.f32 %v10811, %v11171
      %11173 = vmatprep.mubr.bf16.mxu0 %v1279
      %11174 = vmatmul.mubr.bf16.gmra.mrb[0].mxu0 %v1278
      %v11175 = vpop.f32.mrb[0].mxu0
      %v11176 = vadd.f32 %v10815, %v11175
      %v11177 = vpop.f32.mrb[0].mxu0
      %v11178 = vadd.f32 %v10817, %v11177
      %v11179 = vpop.f32.mrb[0].mxu0
      %v11180 = vadd.f32 %v10819, %v11179
      %v11181 = vpop.f32.mrb[0].mxu0
      %v11182 = vadd.f32 %v10821, %v11181
      %11183 = vmatprep.mubr.bf16.mxu0 %v1285
      %11184 = vmatmul.mubr.bf16.gmra.mrb[0].mxu0 %v1284
      %v11185 = vpop.f32.mrb[0].mxu0
      %v11186 = vadd.f32 %v10825, %v11185
      %v11187 = vpop.f32.mrb[0].mxu0
      %v11188 = vadd.f32 %v10827, %v11187
      %v11189 = vpop.f32.mrb[0].mxu0
      %v11190 = vadd.f32 %v10829, %v11189
      %v11191 = vpop.f32.mrb[0].mxu0
      %v11192 = vadd.f32 %v10831, %v11191
      %11193 = vmatprep.mubr.bf16.mxu0 %v1291
      %11194 = vmatmul.mubr.bf16.gmra.mrb[0].mxu0 %v1290
      %v11195 = vpop.f32.mrb[0].mxu0
      %v11196 = vadd.f32 %v10835, %v11195
      %v11197 = vpop.f32.mrb[0].mxu0
      %v11198 = vadd.f32 %v10837, %v11197
      %v11199 = vpop.f32.mrb[0].mxu0
      %v11200 = vpop.f32.mrb[0].mxu0
      %11201 = vmatprep.mubr.bf16.mxu0 %v1297
      %11202 = vmatmul.mubr.bf16.gmra.mrb[0].mxu0 %v1296
      %v11203 = vpop.f32.mrb[0].mxu0
      %v11204 = vpop.f32.mrb[0].mxu0
      %v11205 = vpop.f32.mrb[0].mxu0
      %v11206 = vadd.f32 %v10845, %v11205
      %v11207 = vpop.f32.mrb[0].mxu0
      %v11208 = vadd.f32 %v10847, %v11207
      %11209 = vmatprep.mubr.bf16.mxu0 %v1303
      %11210 = vmatmul.mubr.bf16.gmra.mrb[0].mxu0 %v1302
      %v11211 = vpop.f32.mrb[0].mxu0
      %v11212 = vadd.f32 %v10851, %v11211
      %v11213 = vpop.f32.mrb[0].mxu0
      %v11214 = vadd.f32 %v10853, %v11213
      %v11215 = vpop.f32.mrb[0].mxu0
      %v11216 = vadd.f32 %v10855, %v11215
      %v11217 = vpop.f32.mrb[0].mxu0
      %v11218 = vadd.f32 %v10857, %v11217
      %11219 = vmatprep.mubr.bf16.mxu0 %v1309
      %11220 = vmatmul.mubr.bf16.gmra.mrb[0].mxu0 %v1308
      %v11221 = vpop.f32.mrb[0].mxu0
      %v11222 = vadd.f32 %v10861, %v11221
      %v11223 = vpop.f32.mrb[0].mxu0
      %v11224 = vadd.f32 %v10863, %v11223
      %v11225 = vpop.f32.mrb[0].mxu0
      %v11226 = vadd.f32 %v10865, %v11225
      %v11227 = vpop.f32.mrb[0].mxu0
      %v11228 = vadd.f32 %v10867, %v11227
      %11229 = vmatprep.mubr.bf16.mxu0 %v1315
      %11230 = vmatmul.mubr.bf16.gmra.mrb[0].mxu0 %v1314
      %v11231 = vpop.f32.mrb[0].mxu0
      %v11232 = vadd.f32 %v10871, %v11231
      %v11233 = vpop.f32.mrb[0].mxu0
      %v11234 = vadd.f32 %v10873, %v11233
      %v11235 = vpop.f32.mrb[0].mxu0
      %v11236 = vadd.f32 %v10875, %v11235
      %v11237 = vpop.f32.mrb[0].mxu0
      %v11238 = vadd.f32 %v10877, %v11237
      %11239 = vmatprep.mubr.bf16.mxu0 %v1321
      %11240 = vmatmul.mubr.bf16.gmra.mrb[0].mxu0 %v1320
      %v11241 = vpop.f32.mrb[0].mxu0
      %v11242 = vpop.f32.mrb[0].mxu0
      %v11243 = vpop.f32.mrb[0].mxu0
      %v11244 = vpop.f32.mrb[0].mxu0
      %11245 = vmatprep.mubr.bf16.mxu0 %v1327
      %11246 = vmatmul.mubr.bf16.gmra.mrb[0].mxu0 %v1326
      %v11247 = vpop.f32.mrb[0].mxu0
      %v11248 = vadd.f32 %v10887, %v11247
      %v11249 = vpop.f32.mrb[0].mxu0
      %v11250 = vadd.f32 %v10889, %v11249
      %v11251 = vpop.f32.mrb[0].mxu0
      %v11252 = vadd.f32 %v10891, %v11251
      %v11253 = vpop.f32.mrb[0].mxu0
      %v11254 = vadd.f32 %v10893, %v11253
      %11255 = vmatprep.mubr.bf16.mxu0 %v1333
      %11256 = vmatmul.mubr.bf16.gmra.mrb[0].mxu0 %v1332
      %v11257 = vpop.f32.mrb[0].mxu0
      %v11258 = vadd.f32 %v10897, %v11257
      %v11259 = vpop.f32.mrb[0].mxu0
      %v11260 = vadd.f32 %v10899, %v11259
      %v11261 = vpop.f32.mrb[0].mxu0
      %v11262 = vadd.f32 %v10901, %v11261
      %v11263 = vpop.f32.mrb[0].mxu0
      %v11264 = vadd.f32 %v10903, %v11263
      %11265 = vmatprep.mubr.bf16.mxu0 %v1339
      %11266 = vmatmul.mubr.bf16.gmra.mrb[0].mxu0 %v1338
      %v11267 = vpop.f32.mrb[0].mxu0
      %v11268 = vadd.f32 %v10907, %v11267
      %v11269 = vpop.f32.mrb[0].mxu0
      %v11270 = vadd.f32 %v10909, %v11269
      %v11271 = vpop.f32.mrb[0].mxu0
      %v11272 = vadd.f32 %v10911, %v11271
      %v11273 = vpop.f32.mrb[0].mxu0
      %v11274 = vadd.f32 %v10913, %v11273
      %11275 = vmatprep.mubr.bf16.mxu0 %v1345
      %11276 = vmatmul.mubr.bf16.gmra.mrb[0].mxu0 %v1344
      %v11277 = vpop.f32.mrb[0].mxu0
      %v11278 = vadd.f32 %v10917, %v11277
      %v11279 = vpop.f32.mrb[0].mxu0
      %v11280 = vadd.f32 %v10919, %v11279
      %v11281 = vpop.f32.mrb[0].mxu0
      %v11282 = vpop.f32.mrb[0].mxu0
      %11283 = vmatprep.mubr.bf16.mxu0 %v1351
      %11284 = vmatmul.mubr.bf16.gmra.mrb[0].mxu0 %v1350
      %v11285 = vpop.f32.mrb[0].mxu0
      %v11286 = vpop.f32.mrb[0].mxu0
      %v11287 = vpop.f32.mrb[0].mxu0
      %v11288 = vadd.f32 %v10927, %v11287
      %v11289 = vpop.f32.mrb[0].mxu0
      %v11290 = vadd.f32 %v10929, %v11289
      %11291 = vmatprep.mubr.bf16.mxu0 %v1357
      %11292 = vmatmul.mubr.bf16.gmra.mrb[0].mxu0 %v1356
      %v11293 = vpop.f32.mrb[0].mxu0
      %v11294 = vadd.f32 %v10933, %v11293
      %v11295 = vpop.f32.mrb[0].mxu0
      %v11296 = vadd.f32 %v10935, %v11295
      %v11297 = vpop.f32.mrb[0].mxu0
      %v11298 = vadd.f32 %v10937, %v11297
      %v11299 = vpop.f32.mrb[0].mxu0
      %v11300 = vadd.f32 %v10939, %v11299
      %11301 = vmatprep.mubr.bf16.mxu0 %v1363
      %11302 = vmatmul.mubr.bf16.gmra.mrb[0].mxu0 %v1362
      %v11303 = vpop.f32.mrb[0].mxu0
      %v11304 = vadd.f32 %v10943, %v11303
      %v11305 = vpop.f32.mrb[0].mxu0
      %v11306 = vadd.f32 %v10945, %v11305
      %v11307 = vpop.f32.mrb[0].mxu0
      %v11308 = vadd.f32 %v10947, %v11307
      %v11309 = vpop.f32.mrb[0].mxu0
      %v11310 = vadd.f32 %v10949, %v11309
      %11311 = vmatprep.mubr.bf16.mxu0 %v1369
      %11312 = vmatmul.mubr.bf16.gmra.mrb[0].mxu0 %v1368
      %v11313 = vpop.f32.mrb[0].mxu0
      %v11314 = vadd.f32 %v10953, %v11313
      %v11315 = vpop.f32.mrb[0].mxu0
      %v11316 = vadd.f32 %v10955, %v11315
      %v11317 = vpop.f32.mrb[0].mxu0
      %v11318 = vadd.f32 %v10957, %v11317
      %v11319 = vpop.f32.mrb[0].mxu0
      %v11320 = vadd.f32 %v10959, %v11319
      %11321 = vmatprep.mubr.bf16.mxu0 %v1375
      %11322 = vmatmul.mubr.bf16.gmra.mrb[0].mxu0 %v1374
      %v11323 = vpop.f32.mrb[0].mxu0
      %v11324 = vpop.f32.mrb[0].mxu0
      %v11325 = vpop.f32.mrb[0].mxu0
      %v11326 = vpop.f32.mrb[0].mxu0
      %11327 = vmatprep.mubr.bf16.mxu0 %v1381
      %11328 = vmatmul.mubr.bf16.gmra.mrb[0].mxu0 %v1380
      %v11329 = vpop.f32.mrb[0].mxu0
      %v11330 = vadd.f32 %v10969, %v11329
      %v11331 = vpop.f32.mrb[0].mxu0
      %v11332 = vadd.f32 %v10971, %v11331
      %v11333 = vpop.f32.mrb[0].mxu0
      %v11334 = vadd.f32 %v10973, %v11333
      %v11335 = vpop.f32.mrb[0].mxu0
      %v11336 = vadd.f32 %v10975, %v11335
      %11337 = vmatprep.mubr.bf16.mxu0 %v1387
      %11338 = vmatmul.mubr.bf16.gmra.mrb[0].mxu0 %v1386
      %v11339 = vpop.f32.mrb[0].mxu0
      %v11340 = vadd.f32 %v10979, %v11339
      %v11341 = vpop.f32.mrb[0].mxu0
      %v11342 = vadd.f32 %v10981, %v11341
      %v11343 = vpop.f32.mrb[0].mxu0
      %v11344 = vadd.f32 %v10983, %v11343
      %v11345 = vpop.f32.mrb[0].mxu0
      %v11346 = vadd.f32 %v10985, %v11345
      %11347 = vmatprep.mubr.bf16.mxu0 %v1393
      %11348 = vmatmul.mubr.bf16.gmra.mrb[0].mxu0 %v1392
      %v11349 = vpop.f32.mrb[0].mxu0
      %v11350 = vadd.f32 %v10989, %v11349
      %v11351 = vpop.f32.mrb[0].mxu0
      %v11352 = vadd.f32 %v10991, %v11351
      %v11353 = vpop.f32.mrb[0].mxu0
      %v11354 = vadd.f32 %v10993, %v11353
      %v11355 = vpop.f32.mrb[0].mxu0
      %v11356 = vadd.f32 %v10995, %v11355
      %11357 = vmatprep.mubr.bf16.mxu0 %v1399
      %11358 = vmatmul.mubr.bf16.gmra.mrb[0].mxu0 %v1398
      %v11359 = vpop.f32.mrb[0].mxu0
      %v11360 = vadd.f32 %v10999, %v11359
      %v11361 = vpop.f32.mrb[0].mxu0
      %v11362 = vadd.f32 %v11001, %v11361
      %v11363 = vpop.f32.mrb[0].mxu0
      %v11364 = vpop.f32.mrb[0].mxu0
      %11365 = vmatprep.mubr.bf16.mxu0 %v1405
      %11366 = vmatmul.mubr.bf16.gmra.mrb[0].mxu0 %v1404
      %v11367 = vpop.f32.mrb[0].mxu0
      %v11368 = vpop.f32.mrb[0].mxu0
      %v11369 = vpop.f32.mrb[0].mxu0
      %v11370 = vadd.f32 %v11009, %v11369
      %v11371 = vpop.f32.mrb[0].mxu0
      %v11372 = vadd.f32 %v11011, %v11371
      %11373 = vmatprep.mubr.bf16.mxu0 %v1411
      %11374 = vmatmul.mubr.bf16.gmra.mrb[0].mxu0 %v1410
      %v11375 = vpop.f32.mrb[0].mxu0
      %v11376 = vadd.f32 %v11015, %v11375
      %v11377 = vpop.f32.mrb[0].mxu0
      %v11378 = vadd.f32 %v11017, %v11377
      %v11379 = vpop.f32.mrb[0].mxu0
      %v11380 = vadd.f32 %v11019, %v11379
      %v11381 = vpop.f32.mrb[0].mxu0
      %v11382 = vadd.f32 %v11021, %v11381
      %11383 = vmatprep.mubr.bf16.mxu0 %v1417
      %11384 = vmatmul.mubr.bf16.gmra.mrb[0].mxu0 %v1416
      %v11385 = vpop.f32.mrb[0].mxu0
      %v11386 = vadd.f32 %v11025, %v11385
      %v11387 = vpop.f32.mrb[0].mxu0
      %v11388 = vadd.f32 %v11027, %v11387
      %v11389 = vpop.f32.mrb[0].mxu0
      %v11390 = vadd.f32 %v11029, %v11389
      %v11391 = vpop.f32.mrb[0].mxu0
      %v11392 = vadd.f32 %v11031, %v11391
      %11393 = vmatprep.mubr.bf16.mxu0 %v1423
      %11394 = vmatmul.mubr.bf16.gmra.mrb[0].mxu0 %v1422
      %v11395 = vpop.f32.mrb[0].mxu0
      %v11396 = vadd.f32 %v11035, %v11395
      %v11397 = vpop.f32.mrb[0].mxu0
      %v11398 = vadd.f32 %v11037, %v11397
      %v11399 = vpop.f32.mrb[0].mxu0
      %v11400 = vadd.f32 %v11039, %v11399
      %v11401 = vpop.f32.mrb[0].mxu0
      %v11402 = vadd.f32 %v11041, %v11401
      %11403 = vdwg.mxu0
      %v11404 = vadd.f32 %v3357, %v6678
      %v11405 = vadd.f32 %v3359, %v6680
      %v11406 = vadd.f32 %v4440, %v7761
      %v11407 = vadd.f32 %v4442, %v7763
      %v11408 = vadd.f32 %v3361, %v6684
      %v11409 = vadd.f32 %v3363, %v6686
      %v11410 = vadd.f32 %v4444, %v7767
      %v11411 = vadd.f32 %v4446, %v7769
      %v11412 = vadd.f32 %v3367, %v6688
      %v11413 = vadd.f32 %v3369, %v6690
      %v11414 = vadd.f32 %v4450, %v7771
      %v11415 = vadd.f32 %v4452, %v7773
      %v11416 = vadd.f32 %v3371, %v6694
      %v11417 = vadd.f32 %v3373, %v6696
      %v11418 = vadd.f32 %v4454, %v7777
      %v11419 = vadd.f32 %v4456, %v7779
      %v11420 = vadd.f32 %v3377, %v6698
      %v11421 = vadd.f32 %v3379, %v6700
      %v11422 = vadd.f32 %v4460, %v7781
      %v11423 = vadd.f32 %v4462, %v7783
      %v11424 = vadd.f32 %v3381, %v6704
      %v11425 = vadd.f32 %v3383, %v6706
      %v11426 = vadd.f32 %v4464, %v7787
      %v11427 = vadd.f32 %v4466, %v7789
      %v11428 = vadd.f32 %v3387, %v6708
      %v11429 = vadd.f32 %v3389, %v6710
      %v11430 = vadd.f32 %v4470, %v7791
      %v11431 = vadd.f32 %v4472, %v7793
      %v11432 = vadd.f32 %v11404, %v10001
      %v11433 = vadd.f32 %v11405, %v10003
      %v11434 = vadd.f32 %v11406, %v11084
      %v11435 = vadd.f32 %v11407, %v11086
      %v11436 = vadd.f32 %v11408, %v10005
      %v11437 = vadd.f32 %v11409, %v10007
      %v11438 = vadd.f32 %v11410, %v11088
      %v11439 = vadd.f32 %v11411, %v11090
      %v11440 = vadd.f32 %v11412, %v10011
      %v11441 = vadd.f32 %v11413, %v10013
      %v11442 = vadd.f32 %v11414, %v11094
      %v11443 = vadd.f32 %v11415, %v11096
      %v11444 = vadd.f32 %v11416, %v10015
      %v11445 = vadd.f32 %v11417, %v10017
      %v11446 = vadd.f32 %v11418, %v11098
      %v11447 = vadd.f32 %v11419, %v11100
      %v11448 = vadd.f32 %v11420, %v10021
      %v11449 = vadd.f32 %v11421, %v10023
      %v11450 = vadd.f32 %v11422, %v11104
      %v11451 = vadd.f32 %v11423, %v11106
      %v11452 = vadd.f32 %v11424, %v10025
      %v11453 = vadd.f32 %v11425, %v10027
      %v11454 = vadd.f32 %v11426, %v11108
      %v11455 = vadd.f32 %v11427, %v11110
      %v11456 = vadd.f32 %v11428, %v10031
      %v11457 = vadd.f32 %v11429, %v10033
      %v11458 = vadd.f32 %v11430, %v11114
      %v11459 = vadd.f32 %v11431, %v11116
      %11460 = vst [vmem:[%s150] sm:$0xff] %v11432
      %11461 = vst [vmem:[%s150 + $0x8] sm:$0xff] %v11433
      %11462 = vst [vmem:[%s150 + $0x10] sm:$0xff] %v11434
      %11463 = vst [vmem:[%s150 + $0x18] sm:$0xff] %v11435
      %11464 = vst [vmem:[%s150 + $0x20] sm:$0xff] %v11436
      %11465 = vst [vmem:[%s150 + $0x28] sm:$0xff] %v11437
      %11466 = vst [vmem:[%s150 + $0x30] sm:$0xff] %v11438
      %11467 = vst [vmem:[%s150 + $0x38] sm:$0xff] %v11439
      %11468 = vst [vmem:[%s150 + $0x40] sm:$0xff] %v11440
      %11469 = vst [vmem:[%s150 + $0x48] sm:$0xff] %v11441
      %11470 = vst [vmem:[%s150 + $0x50] sm:$0xff] %v11442
      %11471 = vst [vmem:[%s150 + $0x58] sm:$0xff] %v11443
      %11472 = vst [vmem:[%s150 + $0x60] sm:$0xff] %v11444
      %11473 = vst [vmem:[%s150 + $0x68] sm:$0xff] %v11445
      %11474 = vst [vmem:[%s150 + $0x70] sm:$0xff] %v11446
      %11475 = vst [vmem:[%s150 + $0x78] sm:$0xff] %v11447
      %11476 = vst [vmem:[%s150 + $0x80] sm:$0xff] %v11448
      %11477 = vst [vmem:[%s150 + $0x88] sm:$0xff] %v11449
      %11478 = vst [vmem:[%s150 + $0x90] sm:$0xff] %v11450
      %11479 = vst [vmem:[%s150 + $0x98] sm:$0xff] %v11451
      %11480 = vst [vmem:[%s150 + $0xa0] sm:$0xff] %v11452
      %11481 = vst [vmem:[%s150 + $0xa8] sm:$0xff] %v11453
      %11482 = vst [vmem:[%s150 + $0xb0] sm:$0xff] %v11454
      %11483 = vst [vmem:[%s150 + $0xb8] sm:$0xff] %v11455
      %11484 = vst [vmem:[%s150 + $0xc0] sm:$0xff] %v11456
      %11485 = vst [vmem:[%s150 + $0xc8] sm:$0xff] %v11457
      %11486 = vst [vmem:[%s150 + $0xd0] sm:$0xff] %v11458
      %11487 = vst [vmem:[%s150 + $0xd8] sm:$0xff] %v11459
      %v11488 = vadd.f32 %v3397, %v6720
      %v11489 = vadd.f32 %v3399, %v6722
      %v11490 = vadd.f32 %v4480, %v7803
      %v11491 = vadd.f32 %v4482, %v7805
      %v11492 = vadd.f32 %v3403, %v6724
      %v11493 = vadd.f32 %v3405, %v6726
      %v11494 = vadd.f32 %v4486, %v7807
      %v11495 = vadd.f32 %v4488, %v7809
      %v11496 = vadd.f32 %v3407, %v6730
      %v11497 = vadd.f32 %v3409, %v6732
      %v11498 = vadd.f32 %v4490, %v7813
      %v11499 = vadd.f32 %v4492, %v7815
      %v11500 = vadd.f32 %v3413, %v6734
      %v11501 = vadd.f32 %v3415, %v6736
      %v11502 = vadd.f32 %v4496, %v7817
      %v11503 = vadd.f32 %v4498, %v7819
      %v11504 = vadd.f32 %v3417, %v6740
      %v11505 = vadd.f32 %v3419, %v6742
      %v11506 = vadd.f32 %v4500, %v7823
      %v11507 = vadd.f32 %v4502, %v7825
      %v11508 = vadd.f32 %v3423, %v6744
      %v11509 = vadd.f32 %v3425, %v6746
      %v11510 = vadd.f32 %v4506, %v7827
      %v11511 = vadd.f32 %v4508, %v7829
      %v11512 = vadd.f32 %v3427, %v6750
      %v11513 = vadd.f32 %v3429, %v6752
      %v11514 = vadd.f32 %v4510, %v7833
      %v11515 = vadd.f32 %v4512, %v7835
      %v11516 = vadd.f32 %v11488, %v10041
      %v11517 = vadd.f32 %v11489, %v10043
      %v11518 = vadd.f32 %v11490, %v11124
      %v11519 = vadd.f32 %v11491, %v11126
      %v11520 = vadd.f32 %v11492, %v10047
      %v11521 = vadd.f32 %v11493, %v10049
      %v11522 = vadd.f32 %v11494, %v11130
      %v11523 = vadd.f32 %v11495, %v11132
      %v11524 = vadd.f32 %v11496, %v10051
      %v11525 = vadd.f32 %v11497, %v10053
      %v11526 = vadd.f32 %v11498, %v11134
      %v11527 = vadd.f32 %v11499, %v11136
      %v11528 = vadd.f32 %v11500, %v10057
      %v11529 = vadd.f32 %v11501, %v10059
      %v11530 = vadd.f32 %v11502, %v11140
      %v11531 = vadd.f32 %v11503, %v11142
      %v11532 = vadd.f32 %v11504, %v10061
      %v11533 = vadd.f32 %v11505, %v10063
      %v11534 = vadd.f32 %v11506, %v11144
      %v11535 = vadd.f32 %v11507, %v11146
      %v11536 = vadd.f32 %v11508, %v10067
      %v11537 = vadd.f32 %v11509, %v10069
      %v11538 = vadd.f32 %v11510, %v11150
      %v11539 = vadd.f32 %v11511, %v11152
      %v11540 = vadd.f32 %v11512, %v10071
      %v11541 = vadd.f32 %v11513, %v10073
      %v11542 = vadd.f32 %v11514, %v11154
      %v11543 = vadd.f32 %v11515, %v11156
      %s11544 = scalar_lea.vmem %s150, 224
      %11545 = vst [vmem:[%s11544] sm:$0xff] %v11516
      %11546 = vst [vmem:[%s11544 + $0x8] sm:$0xff] %v11517
      %11547 = vst [vmem:[%s11544 + $0x10] sm:$0xff] %v11518
      %11548 = vst [vmem:[%s11544 + $0x18] sm:$0xff] %v11519
      %11549 = vst [vmem:[%s11544 + $0x20] sm:$0xff] %v11520
      %11550 = vst [vmem:[%s11544 + $0x28] sm:$0xff] %v11521
      %11551 = vst [vmem:[%s11544 + $0x30] sm:$0xff] %v11522
      %11552 = vst [vmem:[%s11544 + $0x38] sm:$0xff] %v11523
      %11553 = vst [vmem:[%s11544 + $0x40] sm:$0xff] %v11524
      %11554 = vst [vmem:[%s11544 + $0x48] sm:$0xff] %v11525
      %11555 = vst [vmem:[%s11544 + $0x50] sm:$0xff] %v11526
      %11556 = vst [vmem:[%s11544 + $0x58] sm:$0xff] %v11527
      %11557 = vst [vmem:[%s11544 + $0x60] sm:$0xff] %v11528
      %11558 = vst [vmem:[%s11544 + $0x68] sm:$0xff] %v11529
      %11559 = vst [vmem:[%s11544 + $0x70] sm:$0xff] %v11530
      %11560 = vst [vmem:[%s11544 + $0x78] sm:$0xff] %v11531
      %11561 = vst [vmem:[%s11544 + $0x80] sm:$0xff] %v11532
      %11562 = vst [vmem:[%s11544 + $0x88] sm:$0xff] %v11533
      %11563 = vst [vmem:[%s11544 + $0x90] sm:$0xff] %v11534
      %11564 = vst [vmem:[%s11544 + $0x98] sm:$0xff] %v11535
      %11565 = vst [vmem:[%s11544 + $0xa0] sm:$0xff] %v11536
      %11566 = vst [vmem:[%s11544 + $0xa8] sm:$0xff] %v11537
      %11567 = vst [vmem:[%s11544 + $0xb0] sm:$0xff] %v11538
      %11568 = vst [vmem:[%s11544 + $0xb8] sm:$0xff] %v11539
      %11569 = vst [vmem:[%s11544 + $0xc0] sm:$0xff] %v11540
      %11570 = vst [vmem:[%s11544 + $0xc8] sm:$0xff] %v11541
      %11571 = vst [vmem:[%s11544 + $0xd0] sm:$0xff] %v11542
      %11572 = vst [vmem:[%s11544 + $0xd8] sm:$0xff] %v11543
      %v11573 = vadd.f32 %v3439, %v6760
      %v11574 = vadd.f32 %v3441, %v6762
      %v11575 = vadd.f32 %v4522, %v7843
      %v11576 = vadd.f32 %v4524, %v7845
      %v11577 = vadd.f32 %v3443, %v6766
      %v11578 = vadd.f32 %v3445, %v6768
      %v11579 = vadd.f32 %v4526, %v7849
      %v11580 = vadd.f32 %v4528, %v7851
      %v11581 = vadd.f32 %v3449, %v6770
      %v11582 = vadd.f32 %v3451, %v6772
      %v11583 = vadd.f32 %v4532, %v7853
      %v11584 = vadd.f32 %v4534, %v7855
      %v11585 = vadd.f32 %v3453, %v6776
      %v11586 = vadd.f32 %v3455, %v6778
      %v11587 = vadd.f32 %v4536, %v7859
      %v11588 = vadd.f32 %v4538, %v7861
      %v11589 = vadd.f32 %v3459, %v6780
      %v11590 = vadd.f32 %v3461, %v6782
      %v11591 = vadd.f32 %v4542, %v7863
      %v11592 = vadd.f32 %v4544, %v7865
      %v11593 = vadd.f32 %v3463, %v6786
      %v11594 = vadd.f32 %v3465, %v6788
      %v11595 = vadd.f32 %v4546, %v7869
      %v11596 = vadd.f32 %v4548, %v7871
      %v11597 = vadd.f32 %v3469, %v6790
      %v11598 = vadd.f32 %v3471, %v6792
      %v11599 = vadd.f32 %v4552, %v7873
      %v11600 = vadd.f32 %v4554, %v7875
      %v11601 = vadd.f32 %v11573, %v10083
      %v11602 = vadd.f32 %v11574, %v10085
      %v11603 = vadd.f32 %v11575, %v11166
      %v11604 = vadd.f32 %v11576, %v11168
      %v11605 = vadd.f32 %v11577, %v10087
      %v11606 = vadd.f32 %v11578, %v10089
      %v11607 = vadd.f32 %v11579, %v11170
      %v11608 = vadd.f32 %v11580, %v11172
      %v11609 = vadd.f32 %v11581, %v10093
      %v11610 = vadd.f32 %v11582, %v10095
      %v11611 = vadd.f32 %v11583, %v11176
      %v11612 = vadd.f32 %v11584, %v11178
      %v11613 = vadd.f32 %v11585, %v10097
      %v11614 = vadd.f32 %v11586, %v10099
      %v11615 = vadd.f32 %v11587, %v11180
      %v11616 = vadd.f32 %v11588, %v11182
      %v11617 = vadd.f32 %v11589, %v10103
      %v11618 = vadd.f32 %v11590, %v10105
      %v11619 = vadd.f32 %v11591, %v11186
      %v11620 = vadd.f32 %v11592, %v11188
      %v11621 = vadd.f32 %v11593, %v10107
      %v11622 = vadd.f32 %v11594, %v10109
      %v11623 = vadd.f32 %v11595, %v11190
      %v11624 = vadd.f32 %v11596, %v11192
      %v11625 = vadd.f32 %v11597, %v10113
      %v11626 = vadd.f32 %v11598, %v10115
      %v11627 = vadd.f32 %v11599, %v11196
      %v11628 = vadd.f32 %v11600, %v11198
      %s11629 = scalar_lea.vmem %s150, 448
      %11630 = vst [vmem:[%s11629] sm:$0xff] %v11601
      %11631 = vst [vmem:[%s11629 + $0x8] sm:$0xff] %v11602
      %11632 = vst [vmem:[%s11629 + $0x10] sm:$0xff] %v11603
      %11633 = vst [vmem:[%s11629 + $0x18] sm:$0xff] %v11604
      %11634 = vst [vmem:[%s11629 + $0x20] sm:$0xff] %v11605
      %11635 = vst [vmem:[%s11629 + $0x28] sm:$0xff] %v11606
      %11636 = vst [vmem:[%s11629 + $0x30] sm:$0xff] %v11607
      %11637 = vst [vmem:[%s11629 + $0x38] sm:$0xff] %v11608
      %11638 = vst [vmem:[%s11629 + $0x40] sm:$0xff] %v11609
      %11639 = vst [vmem:[%s11629 + $0x48] sm:$0xff] %v11610
      %11640 = vst [vmem:[%s11629 + $0x50] sm:$0xff] %v11611
      %11641 = vst [vmem:[%s11629 + $0x58] sm:$0xff] %v11612
      %11642 = vst [vmem:[%s11629 + $0x60] sm:$0xff] %v11613
      %11643 = vst [vmem:[%s11629 + $0x68] sm:$0xff] %v11614
      %11644 = vst [vmem:[%s11629 + $0x70] sm:$0xff] %v11615
      %11645 = vst [vmem:[%s11629 + $0x78] sm:$0xff] %v11616
      %11646 = vst [vmem:[%s11629 + $0x80] sm:$0xff] %v11617
      %11647 = vst [vmem:[%s11629 + $0x88] sm:$0xff] %v11618
      %11648 = vst [vmem:[%s11629 + $0x90] sm:$0xff] %v11619
      %11649 = vst [vmem:[%s11629 + $0x98] sm:$0xff] %v11620
      %11650 = vst [vmem:[%s11629 + $0xa0] sm:$0xff] %v11621
      %11651 = vst [vmem:[%s11629 + $0xa8] sm:$0xff] %v11622
      %11652 = vst [vmem:[%s11629 + $0xb0] sm:$0xff] %v11623
      %11653 = vst [vmem:[%s11629 + $0xb8] sm:$0xff] %v11624
      %11654 = vst [vmem:[%s11629 + $0xc0] sm:$0xff] %v11625
      %11655 = vst [vmem:[%s11629 + $0xc8] sm:$0xff] %v11626
      %11656 = vst [vmem:[%s11629 + $0xd0] sm:$0xff] %v11627
      %11657 = vst [vmem:[%s11629 + $0xd8] sm:$0xff] %v11628
      %v11658 = vadd.f32 %v3479, %v6802
      %v11659 = vadd.f32 %v3481, %v6804
      %v11660 = vadd.f32 %v4562, %v7885
      %v11661 = vadd.f32 %v4564, %v7887
      %v11662 = vadd.f32 %v3485, %v6806
      %v11663 = vadd.f32 %v3487, %v6808
      %v11664 = vadd.f32 %v4568, %v7889
      %v11665 = vadd.f32 %v4570, %v7891
      %v11666 = vadd.f32 %v3489, %v6812
      %v11667 = vadd.f32 %v3491, %v6814
      %v11668 = vadd.f32 %v4572, %v7895
      %v11669 = vadd.f32 %v4574, %v7897
      %v11670 = vadd.f32 %v3495, %v6816
      %v11671 = vadd.f32 %v3497, %v6818
      %v11672 = vadd.f32 %v4578, %v7899
      %v11673 = vadd.f32 %v4580, %v7901
      %v11674 = vadd.f32 %v3499, %v6822
      %v11675 = vadd.f32 %v3501, %v6824
      %v11676 = vadd.f32 %v4582, %v7905
      %v11677 = vadd.f32 %v4584, %v7907
      %v11678 = vadd.f32 %v3505, %v6826
      %v11679 = vadd.f32 %v3507, %v6828
      %v11680 = vadd.f32 %v4588, %v7909
      %v11681 = vadd.f32 %v4590, %v7911
      %v11682 = vadd.f32 %v3509, %v6832
      %v11683 = vadd.f32 %v3511, %v6834
      %v11684 = vadd.f32 %v4592, %v7915
      %v11685 = vadd.f32 %v4594, %v7917
      %v11686 = vadd.f32 %v11658, %v10123
      %v11687 = vadd.f32 %v11659, %v10125
      %v11688 = vadd.f32 %v11660, %v11206
      %v11689 = vadd.f32 %v11661, %v11208
      %v11690 = vadd.f32 %v11662, %v10129
      %v11691 = vadd.f32 %v11663, %v10131
      %v11692 = vadd.f32 %v11664, %v11212
      %v11693 = vadd.f32 %v11665, %v11214
      %v11694 = vadd.f32 %v11666, %v10133
      %v11695 = vadd.f32 %v11667, %v10135
      %v11696 = vadd.f32 %v11668, %v11216
      %v11697 = vadd.f32 %v11669, %v11218
      %v11698 = vadd.f32 %v11670, %v10139
      %v11699 = vadd.f32 %v11671, %v10141
      %v11700 = vadd.f32 %v11672, %v11222
      %v11701 = vadd.f32 %v11673, %v11224
      %v11702 = vadd.f32 %v11674, %v10143
      %v11703 = vadd.f32 %v11675, %v10145
      %v11704 = vadd.f32 %v11676, %v11226
      %v11705 = vadd.f32 %v11677, %v11228
      %v11706 = vadd.f32 %v11678, %v10149
      %v11707 = vadd.f32 %v11679, %v10151
      %v11708 = vadd.f32 %v11680, %v11232
      %v11709 = vadd.f32 %v11681, %v11234
      %v11710 = vadd.f32 %v11682, %v10153
      %v11711 = vadd.f32 %v11683, %v10155
      %v11712 = vadd.f32 %v11684, %v11236
      %v11713 = vadd.f32 %v11685, %v11238
      %s11714 = scalar_lea.vmem %s150, 672
      %11715 = vst [vmem:[%s11714] sm:$0xff] %v11686
      %11716 = vst [vmem:[%s11714 + $0x8] sm:$0xff] %v11687
      %11717 = vst [vmem:[%s11714 + $0x10] sm:$0xff] %v11688
      %11718 = vst [vmem:[%s11714 + $0x18] sm:$0xff] %v11689
      %11719 = vst [vmem:[%s11714 + $0x20] sm:$0xff] %v11690
      %11720 = vst [vmem:[%s11714 + $0x28] sm:$0xff] %v11691
      %11721 = vst [vmem:[%s11714 + $0x30] sm:$0xff] %v11692
      %11722 = vst [vmem:[%s11714 + $0x38] sm:$0xff] %v11693
      %11723 = vst [vmem:[%s11714 + $0x40] sm:$0xff] %v11694
      %11724 = vst [vmem:[%s11714 + $0x48] sm:$0xff] %v11695
      %11725 = vst [vmem:[%s11714 + $0x50] sm:$0xff] %v11696
      %11726 = vst [vmem:[%s11714 + $0x58] sm:$0xff] %v11697
      %11727 = vst [vmem:[%s11714 + $0x60] sm:$0xff] %v11698
      %11728 = vst [vmem:[%s11714 + $0x68] sm:$0xff] %v11699
      %11729 = vst [vmem:[%s11714 + $0x70] sm:$0xff] %v11700
      %11730 = vst [vmem:[%s11714 + $0x78] sm:$0xff] %v11701
      %11731 = vst [vmem:[%s11714 + $0x80] sm:$0xff] %v11702
      %11732 = vst [vmem:[%s11714 + $0x88] sm:$0xff] %v11703
      %11733 = vst [vmem:[%s11714 + $0x90] sm:$0xff] %v11704
      %11734 = vst [vmem:[%s11714 + $0x98] sm:$0xff] %v11705
      %11735 = vst [vmem:[%s11714 + $0xa0] sm:$0xff] %v11706
      %11736 = vst [vmem:[%s11714 + $0xa8] sm:$0xff] %v11707
      %11737 = vst [vmem:[%s11714 + $0xb0] sm:$0xff] %v11708
      %11738 = vst [vmem:[%s11714 + $0xb8] sm:$0xff] %v11709
      %11739 = vst [vmem:[%s11714 + $0xc0] sm:$0xff] %v11710
      %11740 = vst [vmem:[%s11714 + $0xc8] sm:$0xff] %v11711
      %11741 = vst [vmem:[%s11714 + $0xd0] sm:$0xff] %v11712
      %11742 = vst [vmem:[%s11714 + $0xd8] sm:$0xff] %v11713
      %v11743 = vadd.f32 %v3521, %v6842
      %v11744 = vadd.f32 %v3523, %v6844
      %v11745 = vadd.f32 %v4604, %v7925
      %v11746 = vadd.f32 %v4606, %v7927
      %v11747 = vadd.f32 %v3525, %v6848
      %v11748 = vadd.f32 %v3527, %v6850
      %v11749 = vadd.f32 %v4608, %v7931
      %v11750 = vadd.f32 %v4610, %v7933
      %v11751 = vadd.f32 %v3531, %v6852
      %v11752 = vadd.f32 %v3533, %v6854
      %v11753 = vadd.f32 %v4614, %v7935
      %v11754 = vadd.f32 %v4616, %v7937
      %v11755 = vadd.f32 %v3535, %v6858
      %v11756 = vadd.f32 %v3537, %v6860
      %v11757 = vadd.f32 %v4618, %v7941
      %v11758 = vadd.f32 %v4620, %v7943
      %v11759 = vadd.f32 %v3541, %v6862
      %v11760 = vadd.f32 %v3543, %v6864
      %v11761 = vadd.f32 %v4624, %v7945
      %v11762 = vadd.f32 %v4626, %v7947
      %v11763 = vadd.f32 %v3545, %v6868
      %v11764 = vadd.f32 %v3547, %v6870
      %v11765 = vadd.f32 %v4628, %v7951
      %v11766 = vadd.f32 %v4630, %v7953
      %v11767 = vadd.f32 %v3551, %v6872
      %v11768 = vadd.f32 %v3553, %v6874
      %v11769 = vadd.f32 %v4634, %v7955
      %v11770 = vadd.f32 %v4636, %v7957
      %v11771 = vadd.f32 %v11743, %v10165
      %v11772 = vadd.f32 %v11744, %v10167
      %v11773 = vadd.f32 %v11745, %v11248
      %v11774 = vadd.f32 %v11746, %v11250
      %v11775 = vadd.f32 %v11747, %v10169
      %v11776 = vadd.f32 %v11748, %v10171
      %v11777 = vadd.f32 %v11749, %v11252
      %v11778 = vadd.f32 %v11750, %v11254
      %v11779 = vadd.f32 %v11751, %v10175
      %v11780 = vadd.f32 %v11752, %v10177
      %v11781 = vadd.f32 %v11753, %v11258
      %v11782 = vadd.f32 %v11754, %v11260
      %v11783 = vadd.f32 %v11755, %v10179
      %v11784 = vadd.f32 %v11756, %v10181
      %v11785 = vadd.f32 %v11757, %v11262
      %v11786 = vadd.f32 %v11758, %v11264
      %v11787 = vadd.f32 %v11759, %v10185
      %v11788 = vadd.f32 %v11760, %v10187
      %v11789 = vadd.f32 %v11761, %v11268
      %v11790 = vadd.f32 %v11762, %v11270
      %v11791 = vadd.f32 %v11763, %v10189
      %v11792 = vadd.f32 %v11764, %v10191
      %v11793 = vadd.f32 %v11765, %v11272
      %v11794 = vadd.f32 %v11766, %v11274
      %v11795 = vadd.f32 %v11767, %v10195
      %v11796 = vadd.f32 %v11768, %v10197
      %v11797 = vadd.f32 %v11769, %v11278
      %v11798 = vadd.f32 %v11770, %v11280
      %s11799 = scalar_lea.vmem %s150, 896
      %11800 = vst [vmem:[%s11799] sm:$0xff] %v11771
      %11801 = vst [vmem:[%s11799 + $0x8] sm:$0xff] %v11772
      %11802 = vst [vmem:[%s11799 + $0x10] sm:$0xff] %v11773
      %11803 = vst [vmem:[%s11799 + $0x18] sm:$0xff] %v11774
      %11804 = vst [vmem:[%s11799 + $0x20] sm:$0xff] %v11775
      %11805 = vst [vmem:[%s11799 + $0x28] sm:$0xff] %v11776
      %11806 = vst [vmem:[%s11799 + $0x30] sm:$0xff] %v11777
      %11807 = vst [vmem:[%s11799 + $0x38] sm:$0xff] %v11778
      %11808 = vst [vmem:[%s11799 + $0x40] sm:$0xff] %v11779
      %11809 = vst [vmem:[%s11799 + $0x48] sm:$0xff] %v11780
      %11810 = vst [vmem:[%s11799 + $0x50] sm:$0xff] %v11781
      %11811 = vst [vmem:[%s11799 + $0x58] sm:$0xff] %v11782
      %11812 = vst [vmem:[%s11799 + $0x60] sm:$0xff] %v11783
      %11813 = vst [vmem:[%s11799 + $0x68] sm:$0xff] %v11784
      %11814 = vst [vmem:[%s11799 + $0x70] sm:$0xff] %v11785
      %11815 = vst [vmem:[%s11799 + $0x78] sm:$0xff] %v11786
      %11816 = vst [vmem:[%s11799 + $0x80] sm:$0xff] %v11787
      %11817 = vst [vmem:[%s11799 + $0x88] sm:$0xff] %v11788
      %11818 = vst [vmem:[%s11799 + $0x90] sm:$0xff] %v11789
      %11819 = vst [vmem:[%s11799 + $0x98] sm:$0xff] %v11790
      %11820 = vst [vmem:[%s11799 + $0xa0] sm:$0xff] %v11791
      %11821 = vst [vmem:[%s11799 + $0xa8] sm:$0xff] %v11792
      %11822 = vst [vmem:[%s11799 + $0xb0] sm:$0xff] %v11793
      %11823 = vst [vmem:[%s11799 + $0xb8] sm:$0xff] %v11794
      %11824 = vst [vmem:[%s11799 + $0xc0] sm:$0xff] %v11795
      %11825 = vst [vmem:[%s11799 + $0xc8] sm:$0xff] %v11796
      %11826 = vst [vmem:[%s11799 + $0xd0] sm:$0xff] %v11797
      %11827 = vst [vmem:[%s11799 + $0xd8] sm:$0xff] %v11798
      %v11828 = vadd.f32 %v3561, %v6884
      %v11829 = vadd.f32 %v3563, %v6886
      %v11830 = vadd.f32 %v4644, %v7967
      %v11831 = vadd.f32 %v4646, %v7969
      %v11832 = vadd.f32 %v3567, %v6888
      %v11833 = vadd.f32 %v3569, %v6890
      %v11834 = vadd.f32 %v4650, %v7971
      %v11835 = vadd.f32 %v4652, %v7973
      %v11836 = vadd.f32 %v3571, %v6894
      %v11837 = vadd.f32 %v3573, %v6896
      %v11838 = vadd.f32 %v4654, %v7977
      %v11839 = vadd.f32 %v4656, %v7979
      %v11840 = vadd.f32 %v3577, %v6898
      %v11841 = vadd.f32 %v3579, %v6900
      %v11842 = vadd.f32 %v4660, %v7981
      %v11843 = vadd.f32 %v4662, %v7983
      %v11844 = vadd.f32 %v3581, %v6904
      %v11845 = vadd.f32 %v3583, %v6906
      %v11846 = vadd.f32 %v4664, %v7987
      %v11847 = vadd.f32 %v4666, %v7989
      %v11848 = vadd.f32 %v3587, %v6908
      %v11849 = vadd.f32 %v3589, %v6910
      %v11850 = vadd.f32 %v4670, %v7991
      %v11851 = vadd.f32 %v4672, %v7993
      %v11852 = vadd.f32 %v3591, %v6914
      %v11853 = vadd.f32 %v3593, %v6916
      %v11854 = vadd.f32 %v4674, %v7997
      %v11855 = vadd.f32 %v4676, %v7999
      %v11856 = vadd.f32 %v11828, %v10205
      %v11857 = vadd.f32 %v11829, %v10207
      %v11858 = vadd.f32 %v11830, %v11288
      %v11859 = vadd.f32 %v11831, %v11290
      %v11860 = vadd.f32 %v11832, %v10211
      %v11861 = vadd.f32 %v11833, %v10213
      %v11862 = vadd.f32 %v11834, %v11294
      %v11863 = vadd.f32 %v11835, %v11296
      %v11864 = vadd.f32 %v11836, %v10215
      %v11865 = vadd.f32 %v11837, %v10217
      %v11866 = vadd.f32 %v11838, %v11298
      %v11867 = vadd.f32 %v11839, %v11300
      %v11868 = vadd.f32 %v11840, %v10221
      %v11869 = vadd.f32 %v11841, %v10223
      %v11870 = vadd.f32 %v11842, %v11304
      %v11871 = vadd.f32 %v11843, %v11306
      %v11872 = vadd.f32 %v11844, %v10225
      %v11873 = vadd.f32 %v11845, %v10227
      %v11874 = vadd.f32 %v11846, %v11308
      %v11875 = vadd.f32 %v11847, %v11310
      %v11876 = vadd.f32 %v11848, %v10231
      %v11877 = vadd.f32 %v11849, %v10233
      %v11878 = vadd.f32 %v11850, %v11314
      %v11879 = vadd.f32 %v11851, %v11316
      %v11880 = vadd.f32 %v11852, %v10235
      %v11881 = vadd.f32 %v11853, %v10237
      %v11882 = vadd.f32 %v11854, %v11318
      %v11883 = vadd.f32 %v11855, %v11320
      %s11884 = scalar_lea.vmem %s150, 1120
      %11885 = vst [vmem:[%s11884] sm:$0xff] %v11856
      %11886 = vst [vmem:[%s11884 + $0x8] sm:$0xff] %v11857
      %11887 = vst [vmem:[%s11884 + $0x10] sm:$0xff] %v11858
      %11888 = vst [vmem:[%s11884 + $0x18] sm:$0xff] %v11859
      %11889 = vst [vmem:[%s11884 + $0x20] sm:$0xff] %v11860
      %11890 = vst [vmem:[%s11884 + $0x28] sm:$0xff] %v11861
      %11891 = vst [vmem:[%s11884 + $0x30] sm:$0xff] %v11862
      %11892 = vst [vmem:[%s11884 + $0x38] sm:$0xff] %v11863
      %11893 = vst [vmem:[%s11884 + $0x40] sm:$0xff] %v11864
      %11894 = vst [vmem:[%s11884 + $0x48] sm:$0xff] %v11865
      %11895 = vst [vmem:[%s11884 + $0x50] sm:$0xff] %v11866
      %11896 = vst [vmem:[%s11884 + $0x58] sm:$0xff] %v11867
      %11897 = vst [vmem:[%s11884 + $0x60] sm:$0xff] %v11868
      %11898 = vst [vmem:[%s11884 + $0x68] sm:$0xff] %v11869
      %11899 = vst [vmem:[%s11884 + $0x70] sm:$0xff] %v11870
      %11900 = vst [vmem:[%s11884 + $0x78] sm:$0xff] %v11871
      %11901 = vst [vmem:[%s11884 + $0x80] sm:$0xff] %v11872
      %11902 = vst [vmem:[%s11884 + $0x88] sm:$0xff] %v11873
      %11903 = vst [vmem:[%s11884 + $0x90] sm:$0xff] %v11874
      %11904 = vst [vmem:[%s11884 + $0x98] sm:$0xff] %v11875
      %11905 = vst [vmem:[%s11884 + $0xa0] sm:$0xff] %v11876
      %11906 = vst [vmem:[%s11884 + $0xa8] sm:$0xff] %v11877
      %11907 = vst [vmem:[%s11884 + $0xb0] sm:$0xff] %v11878
      %11908 = vst [vmem:[%s11884 + $0xb8] sm:$0xff] %v11879
      %11909 = vst [vmem:[%s11884 + $0xc0] sm:$0xff] %v11880
      %11910 = vst [vmem:[%s11884 + $0xc8] sm:$0xff] %v11881
      %11911 = vst [vmem:[%s11884 + $0xd0] sm:$0xff] %v11882
      %11912 = vst [vmem:[%s11884 + $0xd8] sm:$0xff] %v11883
      %v11913 = vadd.f32 %v3603, %v6924
      %v11914 = vadd.f32 %v3605, %v6926
      %v11915 = vadd.f32 %v4686, %v8007
      %v11916 = vadd.f32 %v4688, %v8009
      %v11917 = vadd.f32 %v3607, %v6930
      %v11918 = vadd.f32 %v3609, %v6932
      %v11919 = vadd.f32 %v4690, %v8013
      %v11920 = vadd.f32 %v4692, %v8015
      %v11921 = vadd.f32 %v3613, %v6934
      %v11922 = vadd.f32 %v3615, %v6936
      %v11923 = vadd.f32 %v4696, %v8017
      %v11924 = vadd.f32 %v4698, %v8019
      %v11925 = vadd.f32 %v3617, %v6940
      %v11926 = vadd.f32 %v3619, %v6942
      %v11927 = vadd.f32 %v4700, %v8023
      %v11928 = vadd.f32 %v4702, %v8025
      %v11929 = vadd.f32 %v3623, %v6944
      %v11930 = vadd.f32 %v3625, %v6946
      %v11931 = vadd.f32 %v4706, %v8027
      %v11932 = vadd.f32 %v4708, %v8029
      %v11933 = vadd.f32 %v3627, %v6950
      %v11934 = vadd.f32 %v3629, %v6952
      %v11935 = vadd.f32 %v4710, %v8033
      %v11936 = vadd.f32 %v4712, %v8035
      %v11937 = vadd.f32 %v3633, %v6954
      %v11938 = vadd.f32 %v3635, %v6956
      %v11939 = vadd.f32 %v4716, %v8037
      %v11940 = vadd.f32 %v4718, %v8039
      %v11941 = vadd.f32 %v11913, %v10247
      %v11942 = vadd.f32 %v11914, %v10249
      %v11943 = vadd.f32 %v11915, %v11330
      %v11944 = vadd.f32 %v11916, %v11332
      %v11945 = vadd.f32 %v11917, %v10251
      %v11946 = vadd.f32 %v11918, %v10253
      %v11947 = vadd.f32 %v11919, %v11334
      %v11948 = vadd.f32 %v11920, %v11336
      %v11949 = vadd.f32 %v11921, %v10257
      %v11950 = vadd.f32 %v11922, %v10259
      %v11951 = vadd.f32 %v11923, %v11340
      %v11952 = vadd.f32 %v11924, %v11342
      %v11953 = vadd.f32 %v11925, %v10261
      %v11954 = vadd.f32 %v11926, %v10263
      %v11955 = vadd.f32 %v11927, %v11344
      %v11956 = vadd.f32 %v11928, %v11346
      %v11957 = vadd.f32 %v11929, %v10267
      %v11958 = vadd.f32 %v11930, %v10269
      %v11959 = vadd.f32 %v11931, %v11350
      %v11960 = vadd.f32 %v11932, %v11352
      %v11961 = vadd.f32 %v11933, %v10271
      %v11962 = vadd.f32 %v11934, %v10273
      %v11963 = vadd.f32 %v11935, %v11354
      %v11964 = vadd.f32 %v11936, %v11356
      %v11965 = vadd.f32 %v11937, %v10277
      %v11966 = vadd.f32 %v11938, %v10279
      %v11967 = vadd.f32 %v11939, %v11360
      %v11968 = vadd.f32 %v11940, %v11362
      %s11969 = scalar_lea.vmem %s150, 1344
      %11970 = vst [vmem:[%s11969] sm:$0xff] %v11941
      %11971 = vst [vmem:[%s11969 + $0x8] sm:$0xff] %v11942
      %11972 = vst [vmem:[%s11969 + $0x10] sm:$0xff] %v11943
      %11973 = vst [vmem:[%s11969 + $0x18] sm:$0xff] %v11944
      %11974 = vst [vmem:[%s11969 + $0x20] sm:$0xff] %v11945
      %11975 = vst [vmem:[%s11969 + $0x28] sm:$0xff] %v11946
      %11976 = vst [vmem:[%s11969 + $0x30] sm:$0xff] %v11947
      %11977 = vst [vmem:[%s11969 + $0x38] sm:$0xff] %v11948
      %11978 = vst [vmem:[%s11969 + $0x40] sm:$0xff] %v11949
      %11979 = vst [vmem:[%s11969 + $0x48] sm:$0xff] %v11950
      %11980 = vst [vmem:[%s11969 + $0x50] sm:$0xff] %v11951
      %11981 = vst [vmem:[%s11969 + $0x58] sm:$0xff] %v11952
      %11982 = vst [vmem:[%s11969 + $0x60] sm:$0xff] %v11953
      %11983 = vst [vmem:[%s11969 + $0x68] sm:$0xff] %v11954
      %11984 = vst [vmem:[%s11969 + $0x70] sm:$0xff] %v11955
      %11985 = vst [vmem:[%s11969 + $0x78] sm:$0xff] %v11956
      %11986 = vst [vmem:[%s11969 + $0x80] sm:$0xff] %v11957
      %11987 = vst [vmem:[%s11969 + $0x88] sm:$0xff] %v11958
      %11988 = vst [vmem:[%s11969 + $0x90] sm:$0xff] %v11959
      %11989 = vst [vmem:[%s11969 + $0x98] sm:$0xff] %v11960
      %11990 = vst [vmem:[%s11969 + $0xa0] sm:$0xff] %v11961
      %11991 = vst [vmem:[%s11969 + $0xa8] sm:$0xff] %v11962
      %11992 = vst [vmem:[%s11969 + $0xb0] sm:$0xff] %v11963
      %11993 = vst [vmem:[%s11969 + $0xb8] sm:$0xff] %v11964
      %11994 = vst [vmem:[%s11969 + $0xc0] sm:$0xff] %v11965
      %11995 = vst [vmem:[%s11969 + $0xc8] sm:$0xff] %v11966
      %11996 = vst [vmem:[%s11969 + $0xd0] sm:$0xff] %v11967
      %11997 = vst [vmem:[%s11969 + $0xd8] sm:$0xff] %v11968
      %v11998 = vadd.f32 %v3643, %v6966
      %v11999 = vadd.f32 %v3645, %v6968
      %v12000 = vadd.f32 %v4726, %v8049
      %v12001 = vadd.f32 %v4728, %v8051
      %v12002 = vadd.f32 %v3649, %v6970
      %v12003 = vadd.f32 %v3651, %v6972
      %v12004 = vadd.f32 %v4732, %v8053
      %v12005 = vadd.f32 %v4734, %v8055
      %v12006 = vadd.f32 %v3653, %v6976
      %v12007 = vadd.f32 %v3655, %v6978
      %v12008 = vadd.f32 %v4736, %v8059
      %v12009 = vadd.f32 %v4738, %v8061
      %v12010 = vadd.f32 %v3659, %v6980
      %v12011 = vadd.f32 %v3661, %v6982
      %v12012 = vadd.f32 %v4742, %v8063
      %v12013 = vadd.f32 %v4744, %v8065
      %v12014 = vadd.f32 %v3663, %v6986
      %v12015 = vadd.f32 %v3665, %v6988
      %v12016 = vadd.f32 %v4746, %v8069
      %v12017 = vadd.f32 %v4748, %v8071
      %v12018 = vadd.f32 %v3669, %v6990
      %v12019 = vadd.f32 %v3671, %v6992
      %v12020 = vadd.f32 %v4752, %v8073
      %v12021 = vadd.f32 %v4754, %v8075
      %v12022 = vadd.f32 %v3673, %v6996
      %v12023 = vadd.f32 %v3675, %v6998
      %v12024 = vadd.f32 %v4756, %v8079
      %v12025 = vadd.f32 %v4758, %v8081
      %v12026 = vadd.f32 %v11998, %v10287
      %v12027 = vadd.f32 %v11999, %v10289
      %v12028 = vadd.f32 %v12000, %v11370
      %v12029 = vadd.f32 %v12001, %v11372
      %v12030 = vadd.f32 %v12002, %v10293
      %v12031 = vadd.f32 %v12003, %v10295
      %v12032 = vadd.f32 %v12004, %v11376
      %v12033 = vadd.f32 %v12005, %v11378
      %v12034 = vadd.f32 %v12006, %v10297
      %v12035 = vadd.f32 %v12007, %v10299
      %v12036 = vadd.f32 %v12008, %v11380
      %v12037 = vadd.f32 %v12009, %v11382
      %v12038 = vadd.f32 %v12010, %v10303
      %v12039 = vadd.f32 %v12011, %v10305
      %v12040 = vadd.f32 %v12012, %v11386
      %v12041 = vadd.f32 %v12013, %v11388
      %v12042 = vadd.f32 %v12014, %v10307
      %v12043 = vadd.f32 %v12015, %v10309
      %v12044 = vadd.f32 %v12016, %v11390
      %v12045 = vadd.f32 %v12017, %v11392
      %v12046 = vadd.f32 %v12018, %v10313
      %v12047 = vadd.f32 %v12019, %v10315
      %v12048 = vadd.f32 %v12020, %v11396
      %v12049 = vadd.f32 %v12021, %v11398
      %v12050 = vadd.f32 %v12022, %v10317
      %v12051 = vadd.f32 %v12023, %v10319
      %v12052 = vadd.f32 %v12024, %v11400
      %v12053 = vadd.f32 %v12025, %v11402
      %s12054 = scalar_lea.vmem %s150, 1568
      %12055 = vst [vmem:[%s12054] sm:$0xff] %v12026
      %12056 = vst [vmem:[%s12054 + $0x8] sm:$0xff] %v12027
      %12057 = vst [vmem:[%s12054 + $0x10] sm:$0xff] %v12028
      %12058 = vst [vmem:[%s12054 + $0x18] sm:$0xff] %v12029
      %12059 = vst [vmem:[%s12054 + $0x20] sm:$0xff] %v12030
      %12060 = vst [vmem:[%s12054 + $0x28] sm:$0xff] %v12031
      %12061 = vst [vmem:[%s12054 + $0x30] sm:$0xff] %v12032
      %12062 = vst [vmem:[%s12054 + $0x38] sm:$0xff] %v12033
      %12063 = vst [vmem:[%s12054 + $0x40] sm:$0xff] %v12034
      %12064 = vst [vmem:[%s12054 + $0x48] sm:$0xff] %v12035
      %12065 = vst [vmem:[%s12054 + $0x50] sm:$0xff] %v12036
      %12066 = vst [vmem:[%s12054 + $0x58] sm:$0xff] %v12037
      %12067 = vst [vmem:[%s12054 + $0x60] sm:$0xff] %v12038
      %12068 = vst [vmem:[%s12054 + $0x68] sm:$0xff] %v12039
      %12069 = vst [vmem:[%s12054 + $0x70] sm:$0xff] %v12040
      %12070 = vst [vmem:[%s12054 + $0x78] sm:$0xff] %v12041
      %12071 = vst [vmem:[%s12054 + $0x80] sm:$0xff] %v12042
      %12072 = vst [vmem:[%s12054 + $0x88] sm:$0xff] %v12043
      %12073 = vst [vmem:[%s12054 + $0x90] sm:$0xff] %v12044
      %12074 = vst [vmem:[%s12054 + $0x98] sm:$0xff] %v12045
      %12075 = vst [vmem:[%s12054 + $0xa0] sm:$0xff] %v12046
      %12076 = vst [vmem:[%s12054 + $0xa8] sm:$0xff] %v12047
      %12077 = vst [vmem:[%s12054 + $0xb0] sm:$0xff] %v12048
      %12078 = vst [vmem:[%s12054 + $0xb8] sm:$0xff] %v12049
      %12079 = vst [vmem:[%s12054 + $0xc0] sm:$0xff] %v12050
      %12080 = vst [vmem:[%s12054 + $0xc8] sm:$0xff] %v12051
      %12081 = vst [vmem:[%s12054 + $0xd0] sm:$0xff] %v12052
      %12082 = vst [vmem:[%s12054 + $0xd8] sm:$0xff] %v12053
      %s12083 = smul.u32 8, %s13
      %p12084 = scmp.lt.s32.totalorder %s12083, 127
      %s12085 = scalar_select %p12084, %s12083, 127
      %s12086 = smul.addr %s12085, 28
      %s12087 = smul.addr %s12086, 8
      %s12088 = scalar_lea.vmem %s2, %s12087
      // Predicated region
      $region29: #{kernel_generated_6_forward.1} parent=27 // pred_check
        %p12089 = pneg %p78
      $region30: #{kernel_generated_6_forward.1} parent=27 // pred_check_branch
        %12091 = sbr.rel (%p12089) target = $region32
      $region31: #{kernel_generated_6_forward.1} parent=27 // pred_region
        %s12092 = smul.u32 8, %s13
      $region32: #{kernel_generated_6_forward.1} parent=27 // pred_fallthru
        _
    $region28: #{kernel_generated_6_forward.1} parent=5 // pred_fallthru
      _
    %p12093 = scmp.le.s32.totalorder 2, %s8
    // Predicated region
    $region33: #{kernel_generated_6_forward.1} parent=5 // pred_check
      %p12094 = pneg %p12093
    $region34: #{kernel_generated_6_forward.1} parent=5 // pred_check_branch
      %12096 = sbr.rel (%p12094) target = $region36
    $region35: #{kernel_generated_6_forward.1} parent=5 // pred_region
      %s12097 = ssub.s32 %s8, 2
      // Predicated region
      $region37: #{kernel_generated_6_forward.1} parent=35 // pred_check
        %p12098 = pneg %p84
      $region38: #{kernel_generated_6_forward.1} parent=35 // pred_check_branch
        %12100 = sbr.rel (%p12098) target = $region40
      $region39: #{kernel_generated_6_forward.1} parent=35 // pred_region
        %s12101 = smul.u32 8, %s14
        %p12102 = scmp.lt.s32.totalorder %s12101, 127
        %s12103 = scalar_select %p12102, %s12101, 127
        %s12104 = smul.addr %s12103, 28
        %s12105 = smul.addr %s12104, 8
        %s12106 = scalar_lea.vmem %s2, %s12105
      $region40: #{kernel_generated_6_forward.1} parent=35 // pred_fallthru
        _
    $region36: #{kernel_generated_6_forward.1} parent=5 // pred_fallthru
      _
  $region6: #{kernel_generated_6_forward.1} parent=0 // loop_footer
    %s12 = sadd.s32 1, %s8
  $region7: #{kernel_generated_6_forward.1} parent=0 // loop_footer_branch
    %7 = sbr.rel target = $region3
  $region8: #{kernel_generated_6_forward.1} parent=0 // loop_exit
    _

</llo_original>
